<compile_context>
chip_gen: v5e
topology: v5e:2x2
jax: 0.10.0
libtpu: 0.0.40
codegen_flags: <defaults>
</compile_context>

<pallas_src>
import functools
import math

import jax
import jax.numpy as jnp
from jax.experimental import pallas as pl
from jax.experimental.pallas import tpu as pltpu

# ---------------- small LXMERT config ----------------
VOCAB = 100
HIDDEN = 32
NUM_HEADS = 4
HEAD_DIM = HIDDEN // NUM_HEADS
INTER = 64
NUM_L_LAYERS = 2
NUM_R_LAYERS = 2
NUM_X_LAYERS = 1
VIS_FEAT_DIM = 16
VIS_POS_DIM = 4
MAX_POS = 32
TYPE_VOCAB = 2
LN_EPS = 1e-12

_INV_SQRT2 = 1.0 / math.sqrt(2.0)
_ATT_SCALE = 1.0 / math.sqrt(HEAD_DIM)


# ---------------- in-kernel building blocks (values + VMEM weight refs) ----------------
def _ln(x, g_ref, b_ref):
    mean = jnp.mean(x, axis=-1, keepdims=True)
    var = jnp.mean(jnp.square(x - mean), axis=-1, keepdims=True)
    return (x - mean) * jax.lax.rsqrt(var + LN_EPS) * g_ref[...] + b_ref[...]


def _linear(x, lw):
    return jnp.dot(x, lw["w"][...], preferred_element_type=jnp.float32) + lw["b"][...]


def _gelu(x):  # exact (erf) GELU, as in HF LXMERT
    return 0.5 * x * (1.0 + jax.lax.erf(x * _INV_SQRT2))


def _softmax(s):
    s = s - jnp.max(s, axis=-1, keepdims=True)
    p = jnp.exp(s)
    return p * pl.reciprocal(jnp.sum(p, axis=-1, keepdims=True), approx=True)


def _mha(ap, x_q, x_kv, mask_add, *, self_attn):
    """Multi-head attention on 2-D slabs (rows = tokens of one batch element)."""
    w = ap["qkv"]["w"][...]          # (H, 3H) packed q|k|v
    b = ap["qkv"]["b"][...]          # (1, 3H)
    if self_attn:
        qkv = jnp.dot(x_q, w, preferred_element_type=jnp.float32) + b
        q = qkv[:, :HIDDEN]
        k = qkv[:, HIDDEN:2 * HIDDEN]
        v = qkv[:, 2 * HIDDEN:]
    else:
        q = jnp.dot(x_q, w[:, :HIDDEN], preferred_element_type=jnp.float32) + b[:, :HIDDEN]
        kv = jnp.dot(x_kv, w[:, HIDDEN:], preferred_element_type=jnp.float32) + b[:, HIDDEN:]
        k = kv[:, :HIDDEN]
        v = kv[:, HIDDEN:]

    heads = []
    for h in range(NUM_HEADS):           # static unroll; head split/merge stays in VMEM
        lo, hi = h * HEAD_DIM, (h + 1) * HEAD_DIM
        qh, kh, vh = q[:, lo:hi], k[:, lo:hi], v[:, lo:hi]
        s = jax.lax.dot_general(qh, kh, (((1,), (1,)), ((), ())),
                                preferred_element_type=jnp.float32) * _ATT_SCALE
        if mask_add is not None:
            s = s + mask_add              # (1, Lk) broadcast over query rows
        p = _softmax(s)
        heads.append(jnp.dot(p, vh, preferred_element_type=jnp.float32))
    return jnp.concatenate(heads, axis=1)  # (Lq, H)


def _attn_out(op, ctx, residual):
    return _ln(_linear(ctx, op["dense"]) + residual, op["ln_g"], op["ln_b"])


def _ffn(fp, x):
    inter = _gelu(_linear(x, fp["inter"]))
    return _ln(_linear(inter, fp["out"]) + x, fp["ln_g"], fp["ln_b"])


def _layer(lp, x, mask_add):
    ctx = _mha(lp["att"], x, x, mask_add, self_attn=True)
    x = _attn_out(lp["att_out"], ctx, x)
    return _ffn(lp["ffn"], x)


def _x_layer(xp, lang, lang_mask, vis, vis_mask):
    # shared cross-attention module applied symmetrically to pre-update states
    lang_cross = _mha(xp["cross_att"], lang, vis, vis_mask, self_attn=False)
    vis_cross = _mha(xp["cross_att"], vis, lang, lang_mask, self_attn=False)
    lang_att = _attn_out(xp["cross_out"], lang_cross, lang)
    vis_att = _attn_out(xp["cross_out"], vis_cross, vis)
    # per-modality self attention
    lang_self = _mha(xp["lang_self"]["att"], lang_att, lang_att, lang_mask, self_attn=True)
    lang_att = _attn_out(xp["lang_self"]["att_out"], lang_self, lang_att)
    vis_self = _mha(xp["vis_self"]["att"], vis_att, vis_att, vis_mask, self_attn=True)
    vis_att = _attn_out(xp["vis_self"]["att_out"], vis_self, vis_att)
    # per-modality FFN
    return _ffn(xp["lang_ffn"], lang_att), _ffn(xp["vis_ffn"], vis_att)


# ---------------- the fused whole-model kernel ----------------
def _lxmert_kernel(*refs, treedef, n_leaves):
    emb_ref, feat_ref, box_ref, mask_ref = refs[:4]
    w_refs = refs[4:4 + n_leaves]
    o_ref = refs[4 + n_leaves]
    p = jax.tree_util.tree_unflatten(treedef, w_refs)

    # text embeddings (already summed in XLA glue) -> LN
    lang = _ln(emb_ref[...], p["emb"]["ln_g"], p["emb"]["ln_b"])          # (L, H)

    # visual feature encoder: visn_fc+LN, box_fc+LN, average (dropout = id)
    vf = _ln(_linear(feat_ref[...], p["visn"]["visn_fc"]),
             p["visn"]["visn_ln_g"], p["visn"]["visn_ln_b"])
    vb = _ln(_linear(box_ref[...], p["visn"]["box_fc"]),
             p["visn"]["box_ln_g"], p["visn"]["box_ln_b"])
    vis = (vf + vb) * 0.5                                                 # (V, H)

    lang_mask = mask_ref[...]   # (1, L) additive mask
    vis_mask = None             # LXMERT default: no visual attention mask

    for lp in p["l_layers"]:
        lang = _layer(lp, lang, lang_mask)
    for rp in p["r_layers"]:
        vis = _layer(rp, vis, vis_mask)
    for xp in p["x_layers"]:
        lang, vis = _x_layer(xp, lang, lang_mask, vis, vis_mask)

    # pooler (dense + tanh on [CLS]) and seq_relationship head
    cls = lang[:1, :]                                                     # (1, H)
    pooled = jnp.tanh(_linear(cls, p["pooler"]))
    o_ref[...] = _linear(pooled, p["seq_rel"])                            # (1, 2)


# ---------------- forward wrapper ----------------
def lxmert_binary_cls_forward(params, input_ids, attention_mask, features,
                              normalized_boxes, token_type_ids):
    B, L = input_ids.shape
    V = features.shape[1]

    # embedding gathers stay in XLA glue
    t = params["tables"]
    emb = (jnp.take(t["word"], input_ids, axis=0)
           + t["pos"][None, :L, :]
           + jnp.take(t["type"], token_type_ids, axis=0)).astype(jnp.float32)   # (B, L, H)
    mask_add = ((1.0 - attention_mask.astype(jnp.float32)) * -10000.0)[:, None, :]  # (B, 1, L)

    leaves, treedef = jax.tree_util.tree_flatten(params["kernel"])
    kernel = functools.partial(_lxmert_kernel, treedef=treedef, n_leaves=len(leaves))

    act_specs = [
        pl.BlockSpec((None, L, HIDDEN), lambda b: (b, 0, 0)),
        pl.BlockSpec((None, V, VIS_FEAT_DIM), lambda b: (b, 0, 0)),
        pl.BlockSpec((None, V, VIS_POS_DIM), lambda b: (b, 0, 0)),
        pl.BlockSpec((None, 1, L), lambda b: (b, 0, 0)),
    ]
    # all weights: full-array blocks, same block every grid step (stay resident in VMEM)
    w_specs = [pl.BlockSpec(leaf.shape, lambda b, nd=leaf.ndim: (0,) * nd)
               for leaf in leaves]

    out = pl.pallas_call(
        kernel,
        out_shape=jax.ShapeDtypeStruct((B, 1, 2), jnp.float32),
        grid=(B,),
        in_specs=act_specs + w_specs,
        out_specs=pl.BlockSpec((None, 1, 2), lambda b: (b, 0, 0)),
        compiler_params=pltpu.CompilerParams(dimension_semantics=("parallel",)),
    )(emb, features, normalized_boxes, mask_add, *leaves)
    return out.reshape(B, 2)


# ---------------- deterministic parameter init ----------------
def init_params(key):
    keys = iter(jax.random.split(key, 512))

    def nxt():
        return next(keys)

    def lin(fi, fo):
        return {"w": 0.02 * jax.random.normal(nxt(), (fi, fo), jnp.float32),
                "b": 0.02 * jax.random.normal(nxt(), (1, fo), jnp.float32)}

    def ln_p():
        return jnp.ones((1, HIDDEN), jnp.float32), jnp.zeros((1, HIDDEN), jnp.float32)

    def attn():
        return {"qkv": lin(HIDDEN, 3 * HIDDEN)}   # packed q|k|v

    def attn_out():
        g, b = ln_p()
        return {"dense": lin(HIDDEN, HIDDEN), "ln_g": g, "ln_b": b}

    def ffn_p():
        g, b = ln_p()
        return {"inter": lin(HIDDEN, INTER), "out": lin(INTER, HIDDEN),
                "ln_g": g, "ln_b": b}

    def layer_p():
        return {"att": attn(), "att_out": attn_out(), "ffn": ffn_p()}

    def x_layer_p():
        return {"cross_att": attn(), "cross_out": attn_out(),
                "lang_self": {"att": attn(), "att_out": attn_out()},
                "vis_self": {"att": attn(), "att_out": attn_out()},
                "lang_ffn": ffn_p(), "vis_ffn": ffn_p()}

    eg, eb = ln_p()
    vg, vb = ln_p()
    bg, bb = ln_p()
    tables = {
        "word": 0.02 * jax.random.normal(nxt(), (VOCAB, HIDDEN), jnp.float32),
        "pos": 0.02 * jax.random.normal(nxt(), (MAX_POS, HIDDEN), jnp.float32),
        "type": 0.02 * jax.random.normal(nxt(), (TYPE_VOCAB, HIDDEN), jnp.float32),
    }
    kernel_params = {
        "emb": {"ln_g": eg, "ln_b": eb},
        "visn": {"visn_fc": lin(VIS_FEAT_DIM, HIDDEN), "visn_ln_g": vg, "visn_ln_b": vb,
                 "box_fc": lin(VIS_POS_DIM, HIDDEN), "box_ln_g": bg, "box_ln_b": bb},
        "l_layers": [layer_p() for _ in range(NUM_L_LAYERS)],
        "r_layers": [layer_p() for _ in range(NUM_R_LAYERS)],
        "x_layers": [x_layer_p() for _ in range(NUM_X_LAYERS)],
        "pooler": lin(HIDDEN, HIDDEN),
        "seq_rel": lin(HIDDEN, 2),
    }
    return {"tables": tables, "kernel": kernel_params}


if __name__ == "__main__":
    key = jax.random.PRNGKey(0)
    kp, k1, k2, k3 = jax.random.split(key, 4)
    params = init_params(kp)

    B, L, V = 2, 8, 4
    input_ids = jax.random.randint(k1, (B, L), 0, VOCAB, dtype=jnp.int32)
    attention_mask = jnp.ones((B, L), jnp.int32)
    features = jax.random.normal(k2, (B, V, VIS_FEAT_DIM), jnp.float32)
    normalized_boxes = jax.random.uniform(k3, (B, V, VIS_POS_DIM), jnp.float32)
    token_type_ids = jnp.zeros((B, L), jnp.int32)

    fwd = jax.jit(lxmert_binary_cls_forward)
    logits = fwd(params, input_ids, attention_mask, features, normalized_boxes,
                 token_type_ids)
    logits = jax.block_until_ready(logits)
    assert logits.shape == (B, 2) and logits.dtype == jnp.float32
    assert bool(jnp.all(jnp.isfinite(logits)))
    print("KERNEL_OK")
</pallas_src>

<mosaic_0001>
module attributes {stable_mosaic.version = 11 : i64} {
  func.func @_lxmert_kernel(%arg0: i32, %arg1: memref<1x8x32xf32, #tpu.memory_space<vmem>>, %arg2: memref<1x4x16xf32, #tpu.memory_space<vmem>>, %arg3: memref<1x4x4xf32, #tpu.memory_space<vmem>>, %arg4: memref<1x1x8xf32, #tpu.memory_space<vmem>>, %arg5: memref<1x32xf32, #tpu.memory_space<vmem>>, %arg6: memref<1x32xf32, #tpu.memory_space<vmem>>, %arg7: memref<1x96xf32, #tpu.memory_space<vmem>>, %arg8: memref<32x96xf32, #tpu.memory_space<vmem>>, %arg9: memref<1x32xf32, #tpu.memory_space<vmem>>, %arg10: memref<32x32xf32, #tpu.memory_space<vmem>>, %arg11: memref<1x32xf32, #tpu.memory_space<vmem>>, %arg12: memref<1x32xf32, #tpu.memory_space<vmem>>, %arg13: memref<1x64xf32, #tpu.memory_space<vmem>>, %arg14: memref<32x64xf32, #tpu.memory_space<vmem>>, %arg15: memref<1x32xf32, #tpu.memory_space<vmem>>, %arg16: memref<1x32xf32, #tpu.memory_space<vmem>>, %arg17: memref<1x32xf32, #tpu.memory_space<vmem>>, %arg18: memref<64x32xf32, #tpu.memory_space<vmem>>, %arg19: memref<1x96xf32, #tpu.memory_space<vmem>>, %arg20: memref<32x96xf32, #tpu.memory_space<vmem>>, %arg21: memref<1x32xf32, #tpu.memory_space<vmem>>, %arg22: memref<32x32xf32, #tpu.memory_space<vmem>>, %arg23: memref<1x32xf32, #tpu.memory_space<vmem>>, %arg24: memref<1x32xf32, #tpu.memory_space<vmem>>, %arg25: memref<1x64xf32, #tpu.memory_space<vmem>>, %arg26: memref<32x64xf32, #tpu.memory_space<vmem>>, %arg27: memref<1x32xf32, #tpu.memory_space<vmem>>, %arg28: memref<1x32xf32, #tpu.memory_space<vmem>>, %arg29: memref<1x32xf32, #tpu.memory_space<vmem>>, %arg30: memref<64x32xf32, #tpu.memory_space<vmem>>, %arg31: memref<1x32xf32, #tpu.memory_space<vmem>>, %arg32: memref<32x32xf32, #tpu.memory_space<vmem>>, %arg33: memref<1x96xf32, #tpu.memory_space<vmem>>, %arg34: memref<32x96xf32, #tpu.memory_space<vmem>>, %arg35: memref<1x32xf32, #tpu.memory_space<vmem>>, %arg36: memref<32x32xf32, #tpu.memory_space<vmem>>, %arg37: memref<1x32xf32, #tpu.memory_space<vmem>>, %arg38: memref<1x32xf32, #tpu.memory_space<vmem>>, %arg39: memref<1x64xf32, #tpu.memory_space<vmem>>, %arg40: memref<32x64xf32, #tpu.memory_space<vmem>>, %arg41: memref<1x32xf32, #tpu.memory_space<vmem>>, %arg42: memref<1x32xf32, #tpu.memory_space<vmem>>, %arg43: memref<1x32xf32, #tpu.memory_space<vmem>>, %arg44: memref<64x32xf32, #tpu.memory_space<vmem>>, %arg45: memref<1x96xf32, #tpu.memory_space<vmem>>, %arg46: memref<32x96xf32, #tpu.memory_space<vmem>>, %arg47: memref<1x32xf32, #tpu.memory_space<vmem>>, %arg48: memref<32x32xf32, #tpu.memory_space<vmem>>, %arg49: memref<1x32xf32, #tpu.memory_space<vmem>>, %arg50: memref<1x32xf32, #tpu.memory_space<vmem>>, %arg51: memref<1x64xf32, #tpu.memory_space<vmem>>, %arg52: memref<32x64xf32, #tpu.memory_space<vmem>>, %arg53: memref<1x32xf32, #tpu.memory_space<vmem>>, %arg54: memref<1x32xf32, #tpu.memory_space<vmem>>, %arg55: memref<1x32xf32, #tpu.memory_space<vmem>>, %arg56: memref<64x32xf32, #tpu.memory_space<vmem>>, %arg57: memref<1x2xf32, #tpu.memory_space<vmem>>, %arg58: memref<32x2xf32, #tpu.memory_space<vmem>>, %arg59: memref<1x32xf32, #tpu.memory_space<vmem>>, %arg60: memref<4x32xf32, #tpu.memory_space<vmem>>, %arg61: memref<1x32xf32, #tpu.memory_space<vmem>>, %arg62: memref<1x32xf32, #tpu.memory_space<vmem>>, %arg63: memref<1x32xf32, #tpu.memory_space<vmem>>, %arg64: memref<16x32xf32, #tpu.memory_space<vmem>>, %arg65: memref<1x32xf32, #tpu.memory_space<vmem>>, %arg66: memref<1x32xf32, #tpu.memory_space<vmem>>, %arg67: memref<1x96xf32, #tpu.memory_space<vmem>>, %arg68: memref<32x96xf32, #tpu.memory_space<vmem>>, %arg69: memref<1x32xf32, #tpu.memory_space<vmem>>, %arg70: memref<32x32xf32, #tpu.memory_space<vmem>>, %arg71: memref<1x32xf32, #tpu.memory_space<vmem>>, %arg72: memref<1x32xf32, #tpu.memory_space<vmem>>, %arg73: memref<1x64xf32, #tpu.memory_space<vmem>>, %arg74: memref<32x64xf32, #tpu.memory_space<vmem>>, %arg75: memref<1x32xf32, #tpu.memory_space<vmem>>, %arg76: memref<1x32xf32, #tpu.memory_space<vmem>>, %arg77: memref<1x32xf32, #tpu.memory_space<vmem>>, %arg78: memref<64x32xf32, #tpu.memory_space<vmem>>, %arg79: memref<1x96xf32, #tpu.memory_space<vmem>>, %arg80: memref<32x96xf32, #tpu.memory_space<vmem>>, %arg81: memref<1x32xf32, #tpu.memory_space<vmem>>, %arg82: memref<32x32xf32, #tpu.memory_space<vmem>>, %arg83: memref<1x32xf32, #tpu.memory_space<vmem>>, %arg84: memref<1x32xf32, #tpu.memory_space<vmem>>, %arg85: memref<1x64xf32, #tpu.memory_space<vmem>>, %arg86: memref<32x64xf32, #tpu.memory_space<vmem>>, %arg87: memref<1x32xf32, #tpu.memory_space<vmem>>, %arg88: memref<1x32xf32, #tpu.memory_space<vmem>>, %arg89: memref<1x32xf32, #tpu.memory_space<vmem>>, %arg90: memref<64x32xf32, #tpu.memory_space<vmem>>, %arg91: memref<1x96xf32, #tpu.memory_space<vmem>>, %arg92: memref<32x96xf32, #tpu.memory_space<vmem>>, %arg93: memref<1x32xf32, #tpu.memory_space<vmem>>, %arg94: memref<32x32xf32, #tpu.memory_space<vmem>>, %arg95: memref<1x32xf32, #tpu.memory_space<vmem>>, %arg96: memref<1x32xf32, #tpu.memory_space<vmem>>, %arg97: memref<1x1x2xf32, #tpu.memory_space<vmem>>) attributes {dimension_semantics = [#tpu.dimension_semantics<parallel>], iteration_bounds = array<i64: 2>, scalar_prefetch = 0 : i64, scratch_operands = 0 : i64, tpu.core_type = #tpu.core_type<tc>, window_params = [{transform_indices = @transform_0, window_bounds = array<i64: 1, 8, 32>}, {transform_indices = @transform_1, window_bounds = array<i64: 1, 4, 16>}, {transform_indices = @transform_2, window_bounds = array<i64: 1, 4, 4>}, {transform_indices = @transform_3, window_bounds = array<i64: 1, 1, 8>}, {pipeline_mode = #tpu.pipeline_mode<synchronous>, transform_indices = @transform_4, window_bounds = array<i64: 1, 32>}, {pipeline_mode = #tpu.pipeline_mode<synchronous>, transform_indices = @transform_5, window_bounds = array<i64: 1, 32>}, {pipeline_mode = #tpu.pipeline_mode<synchronous>, transform_indices = @transform_6, window_bounds = array<i64: 1, 96>}, {pipeline_mode = #tpu.pipeline_mode<synchronous>, transform_indices = @transform_7, window_bounds = array<i64: 32, 96>}, {pipeline_mode = #tpu.pipeline_mode<synchronous>, transform_indices = @transform_8, window_bounds = array<i64: 1, 32>}, {pipeline_mode = #tpu.pipeline_mode<synchronous>, transform_indices = @transform_9, window_bounds = array<i64: 32, 32>}, {pipeline_mode = #tpu.pipeline_mode<synchronous>, transform_indices = @transform_10, window_bounds = array<i64: 1, 32>}, {pipeline_mode = #tpu.pipeline_mode<synchronous>, transform_indices = @transform_11, window_bounds = array<i64: 1, 32>}, {pipeline_mode = #tpu.pipeline_mode<synchronous>, transform_indices = @transform_12, window_bounds = array<i64: 1, 64>}, {pipeline_mode = #tpu.pipeline_mode<synchronous>, transform_indices = @transform_13, window_bounds = array<i64: 32, 64>}, {pipeline_mode = #tpu.pipeline_mode<synchronous>, transform_indices = @transform_14, window_bounds = array<i64: 1, 32>}, {pipeline_mode = #tpu.pipeline_mode<synchronous>, transform_indices = @transform_15, window_bounds = array<i64: 1, 32>}, {pipeline_mode = #tpu.pipeline_mode<synchronous>, transform_indices = @transform_16, window_bounds = array<i64: 1, 32>}, {pipeline_mode = #tpu.pipeline_mode<synchronous>, transform_indices = @transform_17, window_bounds = array<i64: 64, 32>}, {pipeline_mode = #tpu.pipeline_mode<synchronous>, transform_indices = @transform_18, window_bounds = array<i64: 1, 96>}, {pipeline_mode = #tpu.pipeline_mode<synchronous>, transform_indices = @transform_19, window_bounds = array<i64: 32, 96>}, {pipeline_mode = #tpu.pipeline_mode<synchronous>, transform_indices = @transform_20, window_bounds = array<i64: 1, 32>}, {pipeline_mode = #tpu.pipeline_mode<synchronous>, transform_indices = @transform_21, window_bounds = array<i64: 32, 32>}, {pipeline_mode = #tpu.pipeline_mode<synchronous>, transform_indices = @transform_22, window_bounds = array<i64: 1, 32>}, {pipeline_mode = #tpu.pipeline_mode<synchronous>, transform_indices = @transform_23, window_bounds = array<i64: 1, 32>}, {pipeline_mode = #tpu.pipeline_mode<synchronous>, transform_indices = @transform_24, window_bounds = array<i64: 1, 64>}, {pipeline_mode = #tpu.pipeline_mode<synchronous>, transform_indices = @transform_25, window_bounds = array<i64: 32, 64>}, {pipeline_mode = #tpu.pipeline_mode<synchronous>, transform_indices = @transform_26, window_bounds = array<i64: 1, 32>}, {pipeline_mode = #tpu.pipeline_mode<synchronous>, transform_indices = @transform_27, window_bounds = array<i64: 1, 32>}, {pipeline_mode = #tpu.pipeline_mode<synchronous>, transform_indices = @transform_28, window_bounds = array<i64: 1, 32>}, {pipeline_mode = #tpu.pipeline_mode<synchronous>, transform_indices = @transform_29, window_bounds = array<i64: 64, 32>}, {pipeline_mode = #tpu.pipeline_mode<synchronous>, transform_indices = @transform_30, window_bounds = array<i64: 1, 32>}, {pipeline_mode = #tpu.pipeline_mode<synchronous>, transform_indices = @transform_31, window_bounds = array<i64: 32, 32>}, {pipeline_mode = #tpu.pipeline_mode<synchronous>, transform_indices = @transform_32, window_bounds = array<i64: 1, 96>}, {pipeline_mode = #tpu.pipeline_mode<synchronous>, transform_indices = @transform_33, window_bounds = array<i64: 32, 96>}, {pipeline_mode = #tpu.pipeline_mode<synchronous>, transform_indices = @transform_34, window_bounds = array<i64: 1, 32>}, {pipeline_mode = #tpu.pipeline_mode<synchronous>, transform_indices = @transform_35, window_bounds = array<i64: 32, 32>}, {pipeline_mode = #tpu.pipeline_mode<synchronous>, transform_indices = @transform_36, window_bounds = array<i64: 1, 32>}, {pipeline_mode = #tpu.pipeline_mode<synchronous>, transform_indices = @transform_37, window_bounds = array<i64: 1, 32>}, {pipeline_mode = #tpu.pipeline_mode<synchronous>, transform_indices = @transform_38, window_bounds = array<i64: 1, 64>}, {pipeline_mode = #tpu.pipeline_mode<synchronous>, transform_indices = @transform_39, window_bounds = array<i64: 32, 64>}, {pipeline_mode = #tpu.pipeline_mode<synchronous>, transform_indices = @transform_40, window_bounds = array<i64: 1, 32>}, {pipeline_mode = #tpu.pipeline_mode<synchronous>, transform_indices = @transform_41, window_bounds = array<i64: 1, 32>}, {pipeline_mode = #tpu.pipeline_mode<synchronous>, transform_indices = @transform_42, window_bounds = array<i64: 1, 32>}, {pipeline_mode = #tpu.pipeline_mode<synchronous>, transform_indices = @transform_43, window_bounds = array<i64: 64, 32>}, {pipeline_mode = #tpu.pipeline_mode<synchronous>, transform_indices = @transform_44, window_bounds = array<i64: 1, 96>}, {pipeline_mode = #tpu.pipeline_mode<synchronous>, transform_indices = @transform_45, window_bounds = array<i64: 32, 96>}, {pipeline_mode = #tpu.pipeline_mode<synchronous>, transform_indices = @transform_46, window_bounds = array<i64: 1, 32>}, {pipeline_mode = #tpu.pipeline_mode<synchronous>, transform_indices = @transform_47, window_bounds = array<i64: 32, 32>}, {pipeline_mode = #tpu.pipeline_mode<synchronous>, transform_indices = @transform_48, window_bounds = array<i64: 1, 32>}, {pipeline_mode = #tpu.pipeline_mode<synchronous>, transform_indices = @transform_49, window_bounds = array<i64: 1, 32>}, {pipeline_mode = #tpu.pipeline_mode<synchronous>, transform_indices = @transform_50, window_bounds = array<i64: 1, 64>}, {pipeline_mode = #tpu.pipeline_mode<synchronous>, transform_indices = @transform_51, window_bounds = array<i64: 32, 64>}, {pipeline_mode = #tpu.pipeline_mode<synchronous>, transform_indices = @transform_52, window_bounds = array<i64: 1, 32>}, {pipeline_mode = #tpu.pipeline_mode<synchronous>, transform_indices = @transform_53, window_bounds = array<i64: 1, 32>}, {pipeline_mode = #tpu.pipeline_mode<synchronous>, transform_indices = @transform_54, window_bounds = array<i64: 1, 32>}, {pipeline_mode = #tpu.pipeline_mode<synchronous>, transform_indices = @transform_55, window_bounds = array<i64: 64, 32>}, {pipeline_mode = #tpu.pipeline_mode<synchronous>, transform_indices = @transform_56, window_bounds = array<i64: 1, 2>}, {pipeline_mode = #tpu.pipeline_mode<synchronous>, transform_indices = @transform_57, window_bounds = array<i64: 32, 2>}, {pipeline_mode = #tpu.pipeline_mode<synchronous>, transform_indices = @transform_58, window_bounds = array<i64: 1, 32>}, {pipeline_mode = #tpu.pipeline_mode<synchronous>, transform_indices = @transform_59, window_bounds = array<i64: 4, 32>}, {pipeline_mode = #tpu.pipeline_mode<synchronous>, transform_indices = @transform_60, window_bounds = array<i64: 1, 32>}, {pipeline_mode = #tpu.pipeline_mode<synchronous>, transform_indices = @transform_61, window_bounds = array<i64: 1, 32>}, {pipeline_mode = #tpu.pipeline_mode<synchronous>, transform_indices = @transform_62, window_bounds = array<i64: 1, 32>}, {pipeline_mode = #tpu.pipeline_mode<synchronous>, transform_indices = @transform_63, window_bounds = array<i64: 16, 32>}, {pipeline_mode = #tpu.pipeline_mode<synchronous>, transform_indices = @transform_64, window_bounds = array<i64: 1, 32>}, {pipeline_mode = #tpu.pipeline_mode<synchronous>, transform_indices = @transform_65, window_bounds = array<i64: 1, 32>}, {pipeline_mode = #tpu.pipeline_mode<synchronous>, transform_indices = @transform_66, window_bounds = array<i64: 1, 96>}, {pipeline_mode = #tpu.pipeline_mode<synchronous>, transform_indices = @transform_67, window_bounds = array<i64: 32, 96>}, {pipeline_mode = #tpu.pipeline_mode<synchronous>, transform_indices = @transform_68, window_bounds = array<i64: 1, 32>}, {pipeline_mode = #tpu.pipeline_mode<synchronous>, transform_indices = @transform_69, window_bounds = array<i64: 32, 32>}, {pipeline_mode = #tpu.pipeline_mode<synchronous>, transform_indices = @transform_70, window_bounds = array<i64: 1, 32>}, {pipeline_mode = #tpu.pipeline_mode<synchronous>, transform_indices = @transform_71, window_bounds = array<i64: 1, 32>}, {pipeline_mode = #tpu.pipeline_mode<synchronous>, transform_indices = @transform_72, window_bounds = array<i64: 1, 64>}, {pipeline_mode = #tpu.pipeline_mode<synchronous>, transform_indices = @transform_73, window_bounds = array<i64: 32, 64>}, {pipeline_mode = #tpu.pipeline_mode<synchronous>, transform_indices = @transform_74, window_bounds = array<i64: 1, 32>}, {pipeline_mode = #tpu.pipeline_mode<synchronous>, transform_indices = @transform_75, window_bounds = array<i64: 1, 32>}, {pipeline_mode = #tpu.pipeline_mode<synchronous>, transform_indices = @transform_76, window_bounds = array<i64: 1, 32>}, {pipeline_mode = #tpu.pipeline_mode<synchronous>, transform_indices = @transform_77, window_bounds = array<i64: 64, 32>}, {pipeline_mode = #tpu.pipeline_mode<synchronous>, transform_indices = @transform_78, window_bounds = array<i64: 1, 96>}, {pipeline_mode = #tpu.pipeline_mode<synchronous>, transform_indices = @transform_79, window_bounds = array<i64: 32, 96>}, {pipeline_mode = #tpu.pipeline_mode<synchronous>, transform_indices = @transform_80, window_bounds = array<i64: 1, 32>}, {pipeline_mode = #tpu.pipeline_mode<synchronous>, transform_indices = @transform_81, window_bounds = array<i64: 32, 32>}, {pipeline_mode = #tpu.pipeline_mode<synchronous>, transform_indices = @transform_82, window_bounds = array<i64: 1, 32>}, {pipeline_mode = #tpu.pipeline_mode<synchronous>, transform_indices = @transform_83, window_bounds = array<i64: 1, 32>}, {pipeline_mode = #tpu.pipeline_mode<synchronous>, transform_indices = @transform_84, window_bounds = array<i64: 1, 64>}, {pipeline_mode = #tpu.pipeline_mode<synchronous>, transform_indices = @transform_85, window_bounds = array<i64: 32, 64>}, {pipeline_mode = #tpu.pipeline_mode<synchronous>, transform_indices = @transform_86, window_bounds = array<i64: 1, 32>}, {pipeline_mode = #tpu.pipeline_mode<synchronous>, transform_indices = @transform_87, window_bounds = array<i64: 1, 32>}, {pipeline_mode = #tpu.pipeline_mode<synchronous>, transform_indices = @transform_88, window_bounds = array<i64: 1, 32>}, {pipeline_mode = #tpu.pipeline_mode<synchronous>, transform_indices = @transform_89, window_bounds = array<i64: 64, 32>}, {pipeline_mode = #tpu.pipeline_mode<synchronous>, transform_indices = @transform_90, window_bounds = array<i64: 1, 96>}, {pipeline_mode = #tpu.pipeline_mode<synchronous>, transform_indices = @transform_91, window_bounds = array<i64: 32, 96>}, {pipeline_mode = #tpu.pipeline_mode<synchronous>, transform_indices = @transform_92, window_bounds = array<i64: 1, 32>}, {pipeline_mode = #tpu.pipeline_mode<synchronous>, transform_indices = @transform_93, window_bounds = array<i64: 32, 32>}, {pipeline_mode = #tpu.pipeline_mode<synchronous>, transform_indices = @transform_94, window_bounds = array<i64: 1, 32>}, {pipeline_mode = #tpu.pipeline_mode<synchronous>, transform_indices = @transform_95, window_bounds = array<i64: 1, 32>}, {transform_indices = @transform_96, window_bounds = array<i64: 1, 1, 2>}]} {
    %c0 = arith.constant 0 : index
    %c0_0 = arith.constant 0 : index
    %c0_1 = arith.constant 0 : index
    %0 = vector.load %arg1[%c0, %c0_0, %c0_1] : memref<1x8x32xf32, #tpu.memory_space<vmem>>, vector<1x8x32xf32>
    %1 = vector.shape_cast %0 : vector<1x8x32xf32> to vector<8x32xf32>
    %cst = arith.constant dense<0.000000e+00> : vector<8xf32>
    %2 = vector.multi_reduction <add>, %1, %cst [1] : vector<8x32xf32> to vector<8xf32>
    %3 = vector.shape_cast %2 : vector<8xf32> to vector<8x1xf32>
    %cst_2 = arith.constant 3.200000e+01 : f32
    %4 = vector.broadcast %cst_2 : f32 to vector<8x1xf32>
    %5 = arith.divf %3, %4 : vector<8x1xf32>
    %6 = vector.broadcast %5 : vector<8x1xf32> to vector<8x32xf32>
    %7 = arith.subf %1, %6 : vector<8x32xf32>
    %8 = arith.mulf %7, %7 : vector<8x32xf32>
    %cst_3 = arith.constant dense<0.000000e+00> : vector<8xf32>
    %9 = vector.multi_reduction <add>, %8, %cst_3 [1] : vector<8x32xf32> to vector<8xf32>
    %10 = vector.shape_cast %9 : vector<8xf32> to vector<8x1xf32>
    %cst_4 = arith.constant 3.200000e+01 : f32
    %11 = vector.broadcast %cst_4 : f32 to vector<8x1xf32>
    %12 = arith.divf %10, %11 : vector<8x1xf32>
    %13 = vector.broadcast %5 : vector<8x1xf32> to vector<8x32xf32>
    %14 = arith.subf %1, %13 : vector<8x32xf32>
    %cst_5 = arith.constant 9.99999996E-13 : f32
    %15 = vector.broadcast %cst_5 : f32 to vector<8x1xf32>
    %16 = arith.addf %12, %15 : vector<8x1xf32>
    %17 = math.rsqrt %16 : vector<8x1xf32>
    %18 = vector.broadcast %17 : vector<8x1xf32> to vector<8x32xf32>
    %19 = arith.mulf %14, %18 : vector<8x32xf32>
    %c0_6 = arith.constant 0 : index
    %c0_7 = arith.constant 0 : index
    %20 = vector.load %arg6[%c0_6, %c0_7] : memref<1x32xf32, #tpu.memory_space<vmem>>, vector<1x32xf32>
    %21 = vector.broadcast %20 : vector<1x32xf32> to vector<8x32xf32>
    %22 = arith.mulf %19, %21 : vector<8x32xf32>
    %c0_8 = arith.constant 0 : index
    %c0_9 = arith.constant 0 : index
    %23 = vector.load %arg5[%c0_8, %c0_9] : memref<1x32xf32, #tpu.memory_space<vmem>>, vector<1x32xf32>
    %24 = vector.broadcast %23 : vector<1x32xf32> to vector<8x32xf32>
    %25 = arith.addf %22, %24 : vector<8x32xf32>
    %c0_10 = arith.constant 0 : index
    %c0_11 = arith.constant 0 : index
    %c0_12 = arith.constant 0 : index
    %26 = vector.load %arg2[%c0_10, %c0_11, %c0_12] : memref<1x4x16xf32, #tpu.memory_space<vmem>>, vector<1x4x16xf32>
    %27 = vector.shape_cast %26 : vector<1x4x16xf32> to vector<4x16xf32>
    %c0_13 = arith.constant 0 : index
    %c0_14 = arith.constant 0 : index
    %28 = vector.load %arg64[%c0_13, %c0_14] : memref<16x32xf32, #tpu.memory_space<vmem>>, vector<16x32xf32>
    %cst_15 = arith.constant dense<0.000000e+00> : vector<4x32xf32>
    %29 = tpu.matmul %27, %28, %cst_15 {dimension_numbers = #tpu.dot_dimension_numbers<[1], [0], [0], [1], [0, 0, 1, 1], [], []>} : vector<4x16xf32>, vector<16x32xf32>, vector<4x32xf32> -> vector<4x32xf32>
    %c0_16 = arith.constant 0 : index
    %c0_17 = arith.constant 0 : index
    %30 = vector.load %arg63[%c0_16, %c0_17] : memref<1x32xf32, #tpu.memory_space<vmem>>, vector<1x32xf32>
    %31 = vector.broadcast %30 : vector<1x32xf32> to vector<4x32xf32>
    %32 = arith.addf %29, %31 : vector<4x32xf32>
    %cst_18 = arith.constant dense<0.000000e+00> : vector<4xf32>
    %33 = vector.multi_reduction <add>, %32, %cst_18 [1] : vector<4x32xf32> to vector<4xf32>
    %34 = vector.shape_cast %33 : vector<4xf32> to vector<4x1xf32>
    %cst_19 = arith.constant 3.200000e+01 : f32
    %35 = vector.broadcast %cst_19 : f32 to vector<4x1xf32>
    %36 = arith.divf %34, %35 : vector<4x1xf32>
    %37 = vector.broadcast %36 : vector<4x1xf32> to vector<4x32xf32>
    %38 = arith.subf %32, %37 : vector<4x32xf32>
    %39 = arith.mulf %38, %38 : vector<4x32xf32>
    %cst_20 = arith.constant dense<0.000000e+00> : vector<4xf32>
    %40 = vector.multi_reduction <add>, %39, %cst_20 [1] : vector<4x32xf32> to vector<4xf32>
    %41 = vector.shape_cast %40 : vector<4xf32> to vector<4x1xf32>
    %cst_21 = arith.constant 3.200000e+01 : f32
    %42 = vector.broadcast %cst_21 : f32 to vector<4x1xf32>
    %43 = arith.divf %41, %42 : vector<4x1xf32>
    %44 = vector.broadcast %36 : vector<4x1xf32> to vector<4x32xf32>
    %45 = arith.subf %32, %44 : vector<4x32xf32>
    %cst_22 = arith.constant 9.99999996E-13 : f32
    %46 = vector.broadcast %cst_22 : f32 to vector<4x1xf32>
    %47 = arith.addf %43, %46 : vector<4x1xf32>
    %48 = math.rsqrt %47 : vector<4x1xf32>
    %49 = vector.broadcast %48 : vector<4x1xf32> to vector<4x32xf32>
    %50 = arith.mulf %45, %49 : vector<4x32xf32>
    %c0_23 = arith.constant 0 : index
    %c0_24 = arith.constant 0 : index
    %51 = vector.load %arg66[%c0_23, %c0_24] : memref<1x32xf32, #tpu.memory_space<vmem>>, vector<1x32xf32>
    %52 = vector.broadcast %51 : vector<1x32xf32> to vector<4x32xf32>
    %53 = arith.mulf %50, %52 : vector<4x32xf32>
    %c0_25 = arith.constant 0 : index
    %c0_26 = arith.constant 0 : index
    %54 = vector.load %arg65[%c0_25, %c0_26] : memref<1x32xf32, #tpu.memory_space<vmem>>, vector<1x32xf32>
    %55 = vector.broadcast %54 : vector<1x32xf32> to vector<4x32xf32>
    %56 = arith.addf %53, %55 : vector<4x32xf32>
    %c0_27 = arith.constant 0 : index
    %c0_28 = arith.constant 0 : index
    %c0_29 = arith.constant 0 : index
    %57 = vector.load %arg3[%c0_27, %c0_28, %c0_29] : memref<1x4x4xf32, #tpu.memory_space<vmem>>, vector<1x4x4xf32>
    %58 = vector.shape_cast %57 : vector<1x4x4xf32> to vector<4x4xf32>
    %c0_30 = arith.constant 0 : index
    %c0_31 = arith.constant 0 : index
    %59 = vector.load %arg60[%c0_30, %c0_31] : memref<4x32xf32, #tpu.memory_space<vmem>>, vector<4x32xf32>
    %cst_32 = arith.constant dense<0.000000e+00> : vector<4x32xf32>
    %60 = tpu.matmul %58, %59, %cst_32 {dimension_numbers = #tpu.dot_dimension_numbers<[1], [0], [0], [1], [0, 0, 1, 1], [], []>} : vector<4x4xf32>, vector<4x32xf32>, vector<4x32xf32> -> vector<4x32xf32>
    %c0_33 = arith.constant 0 : index
    %c0_34 = arith.constant 0 : index
    %61 = vector.load %arg59[%c0_33, %c0_34] : memref<1x32xf32, #tpu.memory_space<vmem>>, vector<1x32xf32>
    %62 = vector.broadcast %61 : vector<1x32xf32> to vector<4x32xf32>
    %63 = arith.addf %60, %62 : vector<4x32xf32>
    %cst_35 = arith.constant dense<0.000000e+00> : vector<4xf32>
    %64 = vector.multi_reduction <add>, %63, %cst_35 [1] : vector<4x32xf32> to vector<4xf32>
    %65 = vector.shape_cast %64 : vector<4xf32> to vector<4x1xf32>
    %cst_36 = arith.constant 3.200000e+01 : f32
    %66 = vector.broadcast %cst_36 : f32 to vector<4x1xf32>
    %67 = arith.divf %65, %66 : vector<4x1xf32>
    %68 = vector.broadcast %67 : vector<4x1xf32> to vector<4x32xf32>
    %69 = arith.subf %63, %68 : vector<4x32xf32>
    %70 = arith.mulf %69, %69 : vector<4x32xf32>
    %cst_37 = arith.constant dense<0.000000e+00> : vector<4xf32>
    %71 = vector.multi_reduction <add>, %70, %cst_37 [1] : vector<4x32xf32> to vector<4xf32>
    %72 = vector.shape_cast %71 : vector<4xf32> to vector<4x1xf32>
    %cst_38 = arith.constant 3.200000e+01 : f32
    %73 = vector.broadcast %cst_38 : f32 to vector<4x1xf32>
    %74 = arith.divf %72, %73 : vector<4x1xf32>
    %75 = vector.broadcast %67 : vector<4x1xf32> to vector<4x32xf32>
    %76 = arith.subf %63, %75 : vector<4x32xf32>
    %cst_39 = arith.constant 9.99999996E-13 : f32
    %77 = vector.broadcast %cst_39 : f32 to vector<4x1xf32>
    %78 = arith.addf %74, %77 : vector<4x1xf32>
    %79 = math.rsqrt %78 : vector<4x1xf32>
    %80 = vector.broadcast %79 : vector<4x1xf32> to vector<4x32xf32>
    %81 = arith.mulf %76, %80 : vector<4x32xf32>
    %c0_40 = arith.constant 0 : index
    %c0_41 = arith.constant 0 : index
    %82 = vector.load %arg62[%c0_40, %c0_41] : memref<1x32xf32, #tpu.memory_space<vmem>>, vector<1x32xf32>
    %83 = vector.broadcast %82 : vector<1x32xf32> to vector<4x32xf32>
    %84 = arith.mulf %81, %83 : vector<4x32xf32>
    %c0_42 = arith.constant 0 : index
    %c0_43 = arith.constant 0 : index
    %85 = vector.load %arg61[%c0_42, %c0_43] : memref<1x32xf32, #tpu.memory_space<vmem>>, vector<1x32xf32>
    %86 = vector.broadcast %85 : vector<1x32xf32> to vector<4x32xf32>
    %87 = arith.addf %84, %86 : vector<4x32xf32>
    %88 = arith.addf %56, %87 : vector<4x32xf32>
    %cst_44 = arith.constant 5.000000e-01 : f32
    %89 = vector.broadcast %cst_44 : f32 to vector<4x32xf32>
    %90 = arith.mulf %88, %89 : vector<4x32xf32>
    %c0_45 = arith.constant 0 : index
    %c0_46 = arith.constant 0 : index
    %c0_47 = arith.constant 0 : index
    %91 = vector.load %arg4[%c0_45, %c0_46, %c0_47] : memref<1x1x8xf32, #tpu.memory_space<vmem>>, vector<1x1x8xf32>
    %92 = vector.shape_cast %91 : vector<1x1x8xf32> to vector<1x8xf32>
    %c0_48 = arith.constant 0 : index
    %c0_49 = arith.constant 0 : index
    %93 = vector.load %arg8[%c0_48, %c0_49] : memref<32x96xf32, #tpu.memory_space<vmem>>, vector<32x96xf32>
    %c0_50 = arith.constant 0 : index
    %c0_51 = arith.constant 0 : index
    %94 = vector.load %arg7[%c0_50, %c0_51] : memref<1x96xf32, #tpu.memory_space<vmem>>, vector<1x96xf32>
    %cst_52 = arith.constant dense<0.000000e+00> : vector<8x96xf32>
    %95 = tpu.matmul %25, %93, %cst_52 {dimension_numbers = #tpu.dot_dimension_numbers<[1], [0], [0], [1], [0, 0, 1, 1], [], []>} : vector<8x32xf32>, vector<32x96xf32>, vector<8x96xf32> -> vector<8x96xf32>
    %96 = vector.broadcast %94 : vector<1x96xf32> to vector<8x96xf32>
    %97 = arith.addf %95, %96 : vector<8x96xf32>
    %98 = vector.extract_strided_slice %97 {offsets = [0, 0], sizes = [8, 32], strides = [1, 1]} : vector<8x96xf32> to vector<8x32xf32>
    %99 = vector.extract_strided_slice %97 {offsets = [0, 32], sizes = [8, 32], strides = [1, 1]} : vector<8x96xf32> to vector<8x32xf32>
    %100 = vector.extract_strided_slice %97 {offsets = [0, 64], sizes = [8, 32], strides = [1, 1]} : vector<8x96xf32> to vector<8x32xf32>
    %101 = vector.extract_strided_slice %98 {offsets = [0, 0], sizes = [8, 8], strides = [1, 1]} : vector<8x32xf32> to vector<8x8xf32>
    %102 = vector.extract_strided_slice %99 {offsets = [0, 0], sizes = [8, 8], strides = [1, 1]} : vector<8x32xf32> to vector<8x8xf32>
    %103 = vector.extract_strided_slice %100 {offsets = [0, 0], sizes = [8, 8], strides = [1, 1]} : vector<8x32xf32> to vector<8x8xf32>
    %cst_53 = arith.constant dense<0.000000e+00> : vector<8x8xf32>
    %104 = tpu.matmul %101, %102, %cst_53 {dimension_numbers = #tpu.dot_dimension_numbers<[1], [1], [0], [0], [0, 0, 1, 0], [], []>} : vector<8x8xf32>, vector<8x8xf32>, vector<8x8xf32> -> vector<8x8xf32>
    %cst_54 = arith.constant 0.353553385 : f32
    %105 = vector.broadcast %cst_54 : f32 to vector<8x8xf32>
    %106 = arith.mulf %104, %105 : vector<8x8xf32>
    %107 = vector.broadcast %92 : vector<1x8xf32> to vector<8x8xf32>
    %108 = arith.addf %106, %107 : vector<8x8xf32>
    %cst_55 = arith.constant dense<0xFF800000> : vector<8xf32>
    %109 = vector.multi_reduction <maximumf>, %108, %cst_55 [1] : vector<8x8xf32> to vector<8xf32>
    %110 = vector.shape_cast %109 : vector<8xf32> to vector<8x1xf32>
    %111 = vector.broadcast %110 : vector<8x1xf32> to vector<8x8xf32>
    %112 = arith.subf %108, %111 : vector<8x8xf32>
    %113 = math.exp %112 : vector<8x8xf32>
    %cst_56 = arith.constant dense<0.000000e+00> : vector<8xf32>
    %114 = vector.multi_reduction <add>, %113, %cst_56 [1] : vector<8x8xf32> to vector<8xf32>
    %115 = vector.shape_cast %114 : vector<8xf32> to vector<8x1xf32>
    %116 = tpu.reciprocal %115 {approx = true} : vector<8x1xf32> -> vector<8x1xf32>
    %117 = vector.broadcast %116 : vector<8x1xf32> to vector<8x8xf32>
    %118 = arith.mulf %113, %117 : vector<8x8xf32>
    %cst_57 = arith.constant dense<0.000000e+00> : vector<8x8xf32>
    %119 = tpu.matmul %118, %103, %cst_57 {dimension_numbers = #tpu.dot_dimension_numbers<[1], [0], [0], [1], [0, 0, 1, 1], [], []>} : vector<8x8xf32>, vector<8x8xf32>, vector<8x8xf32> -> vector<8x8xf32>
    %120 = vector.extract_strided_slice %98 {offsets = [0, 8], sizes = [8, 8], strides = [1, 1]} : vector<8x32xf32> to vector<8x8xf32>
    %121 = vector.extract_strided_slice %99 {offsets = [0, 8], sizes = [8, 8], strides = [1, 1]} : vector<8x32xf32> to vector<8x8xf32>
    %122 = vector.extract_strided_slice %100 {offsets = [0, 8], sizes = [8, 8], strides = [1, 1]} : vector<8x32xf32> to vector<8x8xf32>
    %cst_58 = arith.constant dense<0.000000e+00> : vector<8x8xf32>
    %123 = tpu.matmul %120, %121, %cst_58 {dimension_numbers = #tpu.dot_dimension_numbers<[1], [1], [0], [0], [0, 0, 1, 0], [], []>} : vector<8x8xf32>, vector<8x8xf32>, vector<8x8xf32> -> vector<8x8xf32>
    %cst_59 = arith.constant 0.353553385 : f32
    %124 = vector.broadcast %cst_59 : f32 to vector<8x8xf32>
    %125 = arith.mulf %123, %124 : vector<8x8xf32>
    %126 = vector.broadcast %92 : vector<1x8xf32> to vector<8x8xf32>
    %127 = arith.addf %125, %126 : vector<8x8xf32>
    %cst_60 = arith.constant dense<0xFF800000> : vector<8xf32>
    %128 = vector.multi_reduction <maximumf>, %127, %cst_60 [1] : vector<8x8xf32> to vector<8xf32>
    %129 = vector.shape_cast %128 : vector<8xf32> to vector<8x1xf32>
    %130 = vector.broadcast %129 : vector<8x1xf32> to vector<8x8xf32>
    %131 = arith.subf %127, %130 : vector<8x8xf32>
    %132 = math.exp %131 : vector<8x8xf32>
    %cst_61 = arith.constant dense<0.000000e+00> : vector<8xf32>
    %133 = vector.multi_reduction <add>, %132, %cst_61 [1] : vector<8x8xf32> to vector<8xf32>
    %134 = vector.shape_cast %133 : vector<8xf32> to vector<8x1xf32>
    %135 = tpu.reciprocal %134 {approx = true} : vector<8x1xf32> -> vector<8x1xf32>
    %136 = vector.broadcast %135 : vector<8x1xf32> to vector<8x8xf32>
    %137 = arith.mulf %132, %136 : vector<8x8xf32>
    %cst_62 = arith.constant dense<0.000000e+00> : vector<8x8xf32>
    %138 = tpu.matmul %137, %122, %cst_62 {dimension_numbers = #tpu.dot_dimension_numbers<[1], [0], [0], [1], [0, 0, 1, 1], [], []>} : vector<8x8xf32>, vector<8x8xf32>, vector<8x8xf32> -> vector<8x8xf32>
    %139 = vector.extract_strided_slice %98 {offsets = [0, 16], sizes = [8, 8], strides = [1, 1]} : vector<8x32xf32> to vector<8x8xf32>
    %140 = vector.extract_strided_slice %99 {offsets = [0, 16], sizes = [8, 8], strides = [1, 1]} : vector<8x32xf32> to vector<8x8xf32>
    %141 = vector.extract_strided_slice %100 {offsets = [0, 16], sizes = [8, 8], strides = [1, 1]} : vector<8x32xf32> to vector<8x8xf32>
    %cst_63 = arith.constant dense<0.000000e+00> : vector<8x8xf32>
    %142 = tpu.matmul %139, %140, %cst_63 {dimension_numbers = #tpu.dot_dimension_numbers<[1], [1], [0], [0], [0, 0, 1, 0], [], []>} : vector<8x8xf32>, vector<8x8xf32>, vector<8x8xf32> -> vector<8x8xf32>
    %cst_64 = arith.constant 0.353553385 : f32
    %143 = vector.broadcast %cst_64 : f32 to vector<8x8xf32>
    %144 = arith.mulf %142, %143 : vector<8x8xf32>
    %145 = vector.broadcast %92 : vector<1x8xf32> to vector<8x8xf32>
    %146 = arith.addf %144, %145 : vector<8x8xf32>
    %cst_65 = arith.constant dense<0xFF800000> : vector<8xf32>
    %147 = vector.multi_reduction <maximumf>, %146, %cst_65 [1] : vector<8x8xf32> to vector<8xf32>
    %148 = vector.shape_cast %147 : vector<8xf32> to vector<8x1xf32>
    %149 = vector.broadcast %148 : vector<8x1xf32> to vector<8x8xf32>
    %150 = arith.subf %146, %149 : vector<8x8xf32>
    %151 = math.exp %150 : vector<8x8xf32>
    %cst_66 = arith.constant dense<0.000000e+00> : vector<8xf32>
    %152 = vector.multi_reduction <add>, %151, %cst_66 [1] : vector<8x8xf32> to vector<8xf32>
    %153 = vector.shape_cast %152 : vector<8xf32> to vector<8x1xf32>
    %154 = tpu.reciprocal %153 {approx = true} : vector<8x1xf32> -> vector<8x1xf32>
    %155 = vector.broadcast %154 : vector<8x1xf32> to vector<8x8xf32>
    %156 = arith.mulf %151, %155 : vector<8x8xf32>
    %cst_67 = arith.constant dense<0.000000e+00> : vector<8x8xf32>
    %157 = tpu.matmul %156, %141, %cst_67 {dimension_numbers = #tpu.dot_dimension_numbers<[1], [0], [0], [1], [0, 0, 1, 1], [], []>} : vector<8x8xf32>, vector<8x8xf32>, vector<8x8xf32> -> vector<8x8xf32>
    %158 = vector.extract_strided_slice %98 {offsets = [0, 24], sizes = [8, 8], strides = [1, 1]} : vector<8x32xf32> to vector<8x8xf32>
    %159 = vector.extract_strided_slice %99 {offsets = [0, 24], sizes = [8, 8], strides = [1, 1]} : vector<8x32xf32> to vector<8x8xf32>
    %160 = vector.extract_strided_slice %100 {offsets = [0, 24], sizes = [8, 8], strides = [1, 1]} : vector<8x32xf32> to vector<8x8xf32>
    %cst_68 = arith.constant dense<0.000000e+00> : vector<8x8xf32>
    %161 = tpu.matmul %158, %159, %cst_68 {dimension_numbers = #tpu.dot_dimension_numbers<[1], [1], [0], [0], [0, 0, 1, 0], [], []>} : vector<8x8xf32>, vector<8x8xf32>, vector<8x8xf32> -> vector<8x8xf32>
    %cst_69 = arith.constant 0.353553385 : f32
    %162 = vector.broadcast %cst_69 : f32 to vector<8x8xf32>
    %163 = arith.mulf %161, %162 : vector<8x8xf32>
    %164 = vector.broadcast %92 : vector<1x8xf32> to vector<8x8xf32>
    %165 = arith.addf %163, %164 : vector<8x8xf32>
    %cst_70 = arith.constant dense<0xFF800000> : vector<8xf32>
    %166 = vector.multi_reduction <maximumf>, %165, %cst_70 [1] : vector<8x8xf32> to vector<8xf32>
    %167 = vector.shape_cast %166 : vector<8xf32> to vector<8x1xf32>
    %168 = vector.broadcast %167 : vector<8x1xf32> to vector<8x8xf32>
    %169 = arith.subf %165, %168 : vector<8x8xf32>
    %170 = math.exp %169 : vector<8x8xf32>
    %cst_71 = arith.constant dense<0.000000e+00> : vector<8xf32>
    %171 = vector.multi_reduction <add>, %170, %cst_71 [1] : vector<8x8xf32> to vector<8xf32>
    %172 = vector.shape_cast %171 : vector<8xf32> to vector<8x1xf32>
    %173 = tpu.reciprocal %172 {approx = true} : vector<8x1xf32> -> vector<8x1xf32>
    %174 = vector.broadcast %173 : vector<8x1xf32> to vector<8x8xf32>
    %175 = arith.mulf %170, %174 : vector<8x8xf32>
    %cst_72 = arith.constant dense<0.000000e+00> : vector<8x8xf32>
    %176 = tpu.matmul %175, %160, %cst_72 {dimension_numbers = #tpu.dot_dimension_numbers<[1], [0], [0], [1], [0, 0, 1, 1], [], []>} : vector<8x8xf32>, vector<8x8xf32>, vector<8x8xf32> -> vector<8x8xf32>
    %177 = tpu.concatenate %119, %138, %157, %176 in 1 : vector<8x8xf32>, vector<8x8xf32>, vector<8x8xf32>, vector<8x8xf32> -> vector<8x32xf32>
    %c0_73 = arith.constant 0 : index
    %c0_74 = arith.constant 0 : index
    %178 = vector.load %arg10[%c0_73, %c0_74] : memref<32x32xf32, #tpu.memory_space<vmem>>, vector<32x32xf32>
    %cst_75 = arith.constant dense<0.000000e+00> : vector<8x32xf32>
    %179 = tpu.matmul %177, %178, %cst_75 {dimension_numbers = #tpu.dot_dimension_numbers<[1], [0], [0], [1], [0, 0, 1, 1], [], []>} : vector<8x32xf32>, vector<32x32xf32>, vector<8x32xf32> -> vector<8x32xf32>
    %c0_76 = arith.constant 0 : index
    %c0_77 = arith.constant 0 : index
    %180 = vector.load %arg9[%c0_76, %c0_77] : memref<1x32xf32, #tpu.memory_space<vmem>>, vector<1x32xf32>
    %181 = vector.broadcast %180 : vector<1x32xf32> to vector<8x32xf32>
    %182 = arith.addf %179, %181 : vector<8x32xf32>
    %183 = arith.addf %182, %25 : vector<8x32xf32>
    %cst_78 = arith.constant dense<0.000000e+00> : vector<8xf32>
    %184 = vector.multi_reduction <add>, %183, %cst_78 [1] : vector<8x32xf32> to vector<8xf32>
    %185 = vector.shape_cast %184 : vector<8xf32> to vector<8x1xf32>
    %cst_79 = arith.constant 3.200000e+01 : f32
    %186 = vector.broadcast %cst_79 : f32 to vector<8x1xf32>
    %187 = arith.divf %185, %186 : vector<8x1xf32>
    %188 = vector.broadcast %187 : vector<8x1xf32> to vector<8x32xf32>
    %189 = arith.subf %183, %188 : vector<8x32xf32>
    %190 = arith.mulf %189, %189 : vector<8x32xf32>
    %cst_80 = arith.constant dense<0.000000e+00> : vector<8xf32>
    %191 = vector.multi_reduction <add>, %190, %cst_80 [1] : vector<8x32xf32> to vector<8xf32>
    %192 = vector.shape_cast %191 : vector<8xf32> to vector<8x1xf32>
    %cst_81 = arith.constant 3.200000e+01 : f32
    %193 = vector.broadcast %cst_81 : f32 to vector<8x1xf32>
    %194 = arith.divf %192, %193 : vector<8x1xf32>
    %195 = vector.broadcast %187 : vector<8x1xf32> to vector<8x32xf32>
    %196 = arith.subf %183, %195 : vector<8x32xf32>
    %cst_82 = arith.constant 9.99999996E-13 : f32
    %197 = vector.broadcast %cst_82 : f32 to vector<8x1xf32>
    %198 = arith.addf %194, %197 : vector<8x1xf32>
    %199 = math.rsqrt %198 : vector<8x1xf32>
    %200 = vector.broadcast %199 : vector<8x1xf32> to vector<8x32xf32>
    %201 = arith.mulf %196, %200 : vector<8x32xf32>
    %c0_83 = arith.constant 0 : index
    %c0_84 = arith.constant 0 : index
    %202 = vector.load %arg12[%c0_83, %c0_84] : memref<1x32xf32, #tpu.memory_space<vmem>>, vector<1x32xf32>
    %203 = vector.broadcast %202 : vector<1x32xf32> to vector<8x32xf32>
    %204 = arith.mulf %201, %203 : vector<8x32xf32>
    %c0_85 = arith.constant 0 : index
    %c0_86 = arith.constant 0 : index
    %205 = vector.load %arg11[%c0_85, %c0_86] : memref<1x32xf32, #tpu.memory_space<vmem>>, vector<1x32xf32>
    %206 = vector.broadcast %205 : vector<1x32xf32> to vector<8x32xf32>
    %207 = arith.addf %204, %206 : vector<8x32xf32>
    %c0_87 = arith.constant 0 : index
    %c0_88 = arith.constant 0 : index
    %208 = vector.load %arg14[%c0_87, %c0_88] : memref<32x64xf32, #tpu.memory_space<vmem>>, vector<32x64xf32>
    %cst_89 = arith.constant dense<0.000000e+00> : vector<8x64xf32>
    %209 = tpu.matmul %207, %208, %cst_89 {dimension_numbers = #tpu.dot_dimension_numbers<[1], [0], [0], [1], [0, 0, 1, 1], [], []>} : vector<8x32xf32>, vector<32x64xf32>, vector<8x64xf32> -> vector<8x64xf32>
    %c0_90 = arith.constant 0 : index
    %c0_91 = arith.constant 0 : index
    %210 = vector.load %arg13[%c0_90, %c0_91] : memref<1x64xf32, #tpu.memory_space<vmem>>, vector<1x64xf32>
    %211 = vector.broadcast %210 : vector<1x64xf32> to vector<8x64xf32>
    %212 = arith.addf %209, %211 : vector<8x64xf32>
    %cst_92 = arith.constant 5.000000e-01 : f32
    %213 = vector.broadcast %cst_92 : f32 to vector<8x64xf32>
    %214 = arith.mulf %213, %212 : vector<8x64xf32>
    %cst_93 = arith.constant 0.707106769 : f32
    %215 = vector.broadcast %cst_93 : f32 to vector<8x64xf32>
    %216 = arith.mulf %212, %215 : vector<8x64xf32>
    %217 = math.erf %216 : vector<8x64xf32>
    %cst_94 = arith.constant 1.000000e+00 : f32
    %218 = vector.broadcast %cst_94 : f32 to vector<8x64xf32>
    %219 = arith.addf %218, %217 : vector<8x64xf32>
    %220 = arith.mulf %214, %219 : vector<8x64xf32>
    %c0_95 = arith.constant 0 : index
    %c0_96 = arith.constant 0 : index
    %221 = vector.load %arg18[%c0_95, %c0_96] : memref<64x32xf32, #tpu.memory_space<vmem>>, vector<64x32xf32>
    %cst_97 = arith.constant dense<0.000000e+00> : vector<8x32xf32>
    %222 = tpu.matmul %220, %221, %cst_97 {dimension_numbers = #tpu.dot_dimension_numbers<[1], [0], [0], [1], [0, 0, 1, 1], [], []>} : vector<8x64xf32>, vector<64x32xf32>, vector<8x32xf32> -> vector<8x32xf32>
    %c0_98 = arith.constant 0 : index
    %c0_99 = arith.constant 0 : index
    %223 = vector.load %arg17[%c0_98, %c0_99] : memref<1x32xf32, #tpu.memory_space<vmem>>, vector<1x32xf32>
    %224 = vector.broadcast %223 : vector<1x32xf32> to vector<8x32xf32>
    %225 = arith.addf %222, %224 : vector<8x32xf32>
    %226 = arith.addf %225, %207 : vector<8x32xf32>
    %cst_100 = arith.constant dense<0.000000e+00> : vector<8xf32>
    %227 = vector.multi_reduction <add>, %226, %cst_100 [1] : vector<8x32xf32> to vector<8xf32>
    %228 = vector.shape_cast %227 : vector<8xf32> to vector<8x1xf32>
    %cst_101 = arith.constant 3.200000e+01 : f32
    %229 = vector.broadcast %cst_101 : f32 to vector<8x1xf32>
    %230 = arith.divf %228, %229 : vector<8x1xf32>
    %231 = vector.broadcast %230 : vector<8x1xf32> to vector<8x32xf32>
    %232 = arith.subf %226, %231 : vector<8x32xf32>
    %233 = arith.mulf %232, %232 : vector<8x32xf32>
    %cst_102 = arith.constant dense<0.000000e+00> : vector<8xf32>
    %234 = vector.multi_reduction <add>, %233, %cst_102 [1] : vector<8x32xf32> to vector<8xf32>
    %235 = vector.shape_cast %234 : vector<8xf32> to vector<8x1xf32>
    %cst_103 = arith.constant 3.200000e+01 : f32
    %236 = vector.broadcast %cst_103 : f32 to vector<8x1xf32>
    %237 = arith.divf %235, %236 : vector<8x1xf32>
    %238 = vector.broadcast %230 : vector<8x1xf32> to vector<8x32xf32>
    %239 = arith.subf %226, %238 : vector<8x32xf32>
    %cst_104 = arith.constant 9.99999996E-13 : f32
    %240 = vector.broadcast %cst_104 : f32 to vector<8x1xf32>
    %241 = arith.addf %237, %240 : vector<8x1xf32>
    %242 = math.rsqrt %241 : vector<8x1xf32>
    %243 = vector.broadcast %242 : vector<8x1xf32> to vector<8x32xf32>
    %244 = arith.mulf %239, %243 : vector<8x32xf32>
    %c0_105 = arith.constant 0 : index
    %c0_106 = arith.constant 0 : index
    %245 = vector.load %arg16[%c0_105, %c0_106] : memref<1x32xf32, #tpu.memory_space<vmem>>, vector<1x32xf32>
    %246 = vector.broadcast %245 : vector<1x32xf32> to vector<8x32xf32>
    %247 = arith.mulf %244, %246 : vector<8x32xf32>
    %c0_107 = arith.constant 0 : index
    %c0_108 = arith.constant 0 : index
    %248 = vector.load %arg15[%c0_107, %c0_108] : memref<1x32xf32, #tpu.memory_space<vmem>>, vector<1x32xf32>
    %249 = vector.broadcast %248 : vector<1x32xf32> to vector<8x32xf32>
    %250 = arith.addf %247, %249 : vector<8x32xf32>
    %c0_109 = arith.constant 0 : index
    %c0_110 = arith.constant 0 : index
    %251 = vector.load %arg20[%c0_109, %c0_110] : memref<32x96xf32, #tpu.memory_space<vmem>>, vector<32x96xf32>
    %c0_111 = arith.constant 0 : index
    %c0_112 = arith.constant 0 : index
    %252 = vector.load %arg19[%c0_111, %c0_112] : memref<1x96xf32, #tpu.memory_space<vmem>>, vector<1x96xf32>
    %cst_113 = arith.constant dense<0.000000e+00> : vector<8x96xf32>
    %253 = tpu.matmul %250, %251, %cst_113 {dimension_numbers = #tpu.dot_dimension_numbers<[1], [0], [0], [1], [0, 0, 1, 1], [], []>} : vector<8x32xf32>, vector<32x96xf32>, vector<8x96xf32> -> vector<8x96xf32>
    %254 = vector.broadcast %252 : vector<1x96xf32> to vector<8x96xf32>
    %255 = arith.addf %253, %254 : vector<8x96xf32>
    %256 = vector.extract_strided_slice %255 {offsets = [0, 0], sizes = [8, 32], strides = [1, 1]} : vector<8x96xf32> to vector<8x32xf32>
    %257 = vector.extract_strided_slice %255 {offsets = [0, 32], sizes = [8, 32], strides = [1, 1]} : vector<8x96xf32> to vector<8x32xf32>
    %258 = vector.extract_strided_slice %255 {offsets = [0, 64], sizes = [8, 32], strides = [1, 1]} : vector<8x96xf32> to vector<8x32xf32>
    %259 = vector.extract_strided_slice %256 {offsets = [0, 0], sizes = [8, 8], strides = [1, 1]} : vector<8x32xf32> to vector<8x8xf32>
    %260 = vector.extract_strided_slice %257 {offsets = [0, 0], sizes = [8, 8], strides = [1, 1]} : vector<8x32xf32> to vector<8x8xf32>
    %261 = vector.extract_strided_slice %258 {offsets = [0, 0], sizes = [8, 8], strides = [1, 1]} : vector<8x32xf32> to vector<8x8xf32>
    %cst_114 = arith.constant dense<0.000000e+00> : vector<8x8xf32>
    %262 = tpu.matmul %259, %260, %cst_114 {dimension_numbers = #tpu.dot_dimension_numbers<[1], [1], [0], [0], [0, 0, 1, 0], [], []>} : vector<8x8xf32>, vector<8x8xf32>, vector<8x8xf32> -> vector<8x8xf32>
    %cst_115 = arith.constant 0.353553385 : f32
    %263 = vector.broadcast %cst_115 : f32 to vector<8x8xf32>
    %264 = arith.mulf %262, %263 : vector<8x8xf32>
    %265 = vector.broadcast %92 : vector<1x8xf32> to vector<8x8xf32>
    %266 = arith.addf %264, %265 : vector<8x8xf32>
    %cst_116 = arith.constant dense<0xFF800000> : vector<8xf32>
    %267 = vector.multi_reduction <maximumf>, %266, %cst_116 [1] : vector<8x8xf32> to vector<8xf32>
    %268 = vector.shape_cast %267 : vector<8xf32> to vector<8x1xf32>
    %269 = vector.broadcast %268 : vector<8x1xf32> to vector<8x8xf32>
    %270 = arith.subf %266, %269 : vector<8x8xf32>
    %271 = math.exp %270 : vector<8x8xf32>
    %cst_117 = arith.constant dense<0.000000e+00> : vector<8xf32>
    %272 = vector.multi_reduction <add>, %271, %cst_117 [1] : vector<8x8xf32> to vector<8xf32>
    %273 = vector.shape_cast %272 : vector<8xf32> to vector<8x1xf32>
    %274 = tpu.reciprocal %273 {approx = true} : vector<8x1xf32> -> vector<8x1xf32>
    %275 = vector.broadcast %274 : vector<8x1xf32> to vector<8x8xf32>
    %276 = arith.mulf %271, %275 : vector<8x8xf32>
    %cst_118 = arith.constant dense<0.000000e+00> : vector<8x8xf32>
    %277 = tpu.matmul %276, %261, %cst_118 {dimension_numbers = #tpu.dot_dimension_numbers<[1], [0], [0], [1], [0, 0, 1, 1], [], []>} : vector<8x8xf32>, vector<8x8xf32>, vector<8x8xf32> -> vector<8x8xf32>
    %278 = vector.extract_strided_slice %256 {offsets = [0, 8], sizes = [8, 8], strides = [1, 1]} : vector<8x32xf32> to vector<8x8xf32>
    %279 = vector.extract_strided_slice %257 {offsets = [0, 8], sizes = [8, 8], strides = [1, 1]} : vector<8x32xf32> to vector<8x8xf32>
    %280 = vector.extract_strided_slice %258 {offsets = [0, 8], sizes = [8, 8], strides = [1, 1]} : vector<8x32xf32> to vector<8x8xf32>
    %cst_119 = arith.constant dense<0.000000e+00> : vector<8x8xf32>
    %281 = tpu.matmul %278, %279, %cst_119 {dimension_numbers = #tpu.dot_dimension_numbers<[1], [1], [0], [0], [0, 0, 1, 0], [], []>} : vector<8x8xf32>, vector<8x8xf32>, vector<8x8xf32> -> vector<8x8xf32>
    %cst_120 = arith.constant 0.353553385 : f32
    %282 = vector.broadcast %cst_120 : f32 to vector<8x8xf32>
    %283 = arith.mulf %281, %282 : vector<8x8xf32>
    %284 = vector.broadcast %92 : vector<1x8xf32> to vector<8x8xf32>
    %285 = arith.addf %283, %284 : vector<8x8xf32>
    %cst_121 = arith.constant dense<0xFF800000> : vector<8xf32>
    %286 = vector.multi_reduction <maximumf>, %285, %cst_121 [1] : vector<8x8xf32> to vector<8xf32>
    %287 = vector.shape_cast %286 : vector<8xf32> to vector<8x1xf32>
    %288 = vector.broadcast %287 : vector<8x1xf32> to vector<8x8xf32>
    %289 = arith.subf %285, %288 : vector<8x8xf32>
    %290 = math.exp %289 : vector<8x8xf32>
    %cst_122 = arith.constant dense<0.000000e+00> : vector<8xf32>
    %291 = vector.multi_reduction <add>, %290, %cst_122 [1] : vector<8x8xf32> to vector<8xf32>
    %292 = vector.shape_cast %291 : vector<8xf32> to vector<8x1xf32>
    %293 = tpu.reciprocal %292 {approx = true} : vector<8x1xf32> -> vector<8x1xf32>
    %294 = vector.broadcast %293 : vector<8x1xf32> to vector<8x8xf32>
    %295 = arith.mulf %290, %294 : vector<8x8xf32>
    %cst_123 = arith.constant dense<0.000000e+00> : vector<8x8xf32>
    %296 = tpu.matmul %295, %280, %cst_123 {dimension_numbers = #tpu.dot_dimension_numbers<[1], [0], [0], [1], [0, 0, 1, 1], [], []>} : vector<8x8xf32>, vector<8x8xf32>, vector<8x8xf32> -> vector<8x8xf32>
    %297 = vector.extract_strided_slice %256 {offsets = [0, 16], sizes = [8, 8], strides = [1, 1]} : vector<8x32xf32> to vector<8x8xf32>
    %298 = vector.extract_strided_slice %257 {offsets = [0, 16], sizes = [8, 8], strides = [1, 1]} : vector<8x32xf32> to vector<8x8xf32>
    %299 = vector.extract_strided_slice %258 {offsets = [0, 16], sizes = [8, 8], strides = [1, 1]} : vector<8x32xf32> to vector<8x8xf32>
    %cst_124 = arith.constant dense<0.000000e+00> : vector<8x8xf32>
    %300 = tpu.matmul %297, %298, %cst_124 {dimension_numbers = #tpu.dot_dimension_numbers<[1], [1], [0], [0], [0, 0, 1, 0], [], []>} : vector<8x8xf32>, vector<8x8xf32>, vector<8x8xf32> -> vector<8x8xf32>
    %cst_125 = arith.constant 0.353553385 : f32
    %301 = vector.broadcast %cst_125 : f32 to vector<8x8xf32>
    %302 = arith.mulf %300, %301 : vector<8x8xf32>
    %303 = vector.broadcast %92 : vector<1x8xf32> to vector<8x8xf32>
    %304 = arith.addf %302, %303 : vector<8x8xf32>
    %cst_126 = arith.constant dense<0xFF800000> : vector<8xf32>
    %305 = vector.multi_reduction <maximumf>, %304, %cst_126 [1] : vector<8x8xf32> to vector<8xf32>
    %306 = vector.shape_cast %305 : vector<8xf32> to vector<8x1xf32>
    %307 = vector.broadcast %306 : vector<8x1xf32> to vector<8x8xf32>
    %308 = arith.subf %304, %307 : vector<8x8xf32>
    %309 = math.exp %308 : vector<8x8xf32>
    %cst_127 = arith.constant dense<0.000000e+00> : vector<8xf32>
    %310 = vector.multi_reduction <add>, %309, %cst_127 [1] : vector<8x8xf32> to vector<8xf32>
    %311 = vector.shape_cast %310 : vector<8xf32> to vector<8x1xf32>
    %312 = tpu.reciprocal %311 {approx = true} : vector<8x1xf32> -> vector<8x1xf32>
    %313 = vector.broadcast %312 : vector<8x1xf32> to vector<8x8xf32>
    %314 = arith.mulf %309, %313 : vector<8x8xf32>
    %cst_128 = arith.constant dense<0.000000e+00> : vector<8x8xf32>
    %315 = tpu.matmul %314, %299, %cst_128 {dimension_numbers = #tpu.dot_dimension_numbers<[1], [0], [0], [1], [0, 0, 1, 1], [], []>} : vector<8x8xf32>, vector<8x8xf32>, vector<8x8xf32> -> vector<8x8xf32>
    %316 = vector.extract_strided_slice %256 {offsets = [0, 24], sizes = [8, 8], strides = [1, 1]} : vector<8x32xf32> to vector<8x8xf32>
    %317 = vector.extract_strided_slice %257 {offsets = [0, 24], sizes = [8, 8], strides = [1, 1]} : vector<8x32xf32> to vector<8x8xf32>
    %318 = vector.extract_strided_slice %258 {offsets = [0, 24], sizes = [8, 8], strides = [1, 1]} : vector<8x32xf32> to vector<8x8xf32>
    %cst_129 = arith.constant dense<0.000000e+00> : vector<8x8xf32>
    %319 = tpu.matmul %316, %317, %cst_129 {dimension_numbers = #tpu.dot_dimension_numbers<[1], [1], [0], [0], [0, 0, 1, 0], [], []>} : vector<8x8xf32>, vector<8x8xf32>, vector<8x8xf32> -> vector<8x8xf32>
    %cst_130 = arith.constant 0.353553385 : f32
    %320 = vector.broadcast %cst_130 : f32 to vector<8x8xf32>
    %321 = arith.mulf %319, %320 : vector<8x8xf32>
    %322 = vector.broadcast %92 : vector<1x8xf32> to vector<8x8xf32>
    %323 = arith.addf %321, %322 : vector<8x8xf32>
    %cst_131 = arith.constant dense<0xFF800000> : vector<8xf32>
    %324 = vector.multi_reduction <maximumf>, %323, %cst_131 [1] : vector<8x8xf32> to vector<8xf32>
    %325 = vector.shape_cast %324 : vector<8xf32> to vector<8x1xf32>
    %326 = vector.broadcast %325 : vector<8x1xf32> to vector<8x8xf32>
    %327 = arith.subf %323, %326 : vector<8x8xf32>
    %328 = math.exp %327 : vector<8x8xf32>
    %cst_132 = arith.constant dense<0.000000e+00> : vector<8xf32>
    %329 = vector.multi_reduction <add>, %328, %cst_132 [1] : vector<8x8xf32> to vector<8xf32>
    %330 = vector.shape_cast %329 : vector<8xf32> to vector<8x1xf32>
    %331 = tpu.reciprocal %330 {approx = true} : vector<8x1xf32> -> vector<8x1xf32>
    %332 = vector.broadcast %331 : vector<8x1xf32> to vector<8x8xf32>
    %333 = arith.mulf %328, %332 : vector<8x8xf32>
    %cst_133 = arith.constant dense<0.000000e+00> : vector<8x8xf32>
    %334 = tpu.matmul %333, %318, %cst_133 {dimension_numbers = #tpu.dot_dimension_numbers<[1], [0], [0], [1], [0, 0, 1, 1], [], []>} : vector<8x8xf32>, vector<8x8xf32>, vector<8x8xf32> -> vector<8x8xf32>
    %335 = tpu.concatenate %277, %296, %315, %334 in 1 : vector<8x8xf32>, vector<8x8xf32>, vector<8x8xf32>, vector<8x8xf32> -> vector<8x32xf32>
    %c0_134 = arith.constant 0 : index
    %c0_135 = arith.constant 0 : index
    %336 = vector.load %arg22[%c0_134, %c0_135] : memref<32x32xf32, #tpu.memory_space<vmem>>, vector<32x32xf32>
    %cst_136 = arith.constant dense<0.000000e+00> : vector<8x32xf32>
    %337 = tpu.matmul %335, %336, %cst_136 {dimension_numbers = #tpu.dot_dimension_numbers<[1], [0], [0], [1], [0, 0, 1, 1], [], []>} : vector<8x32xf32>, vector<32x32xf32>, vector<8x32xf32> -> vector<8x32xf32>
    %c0_137 = arith.constant 0 : index
    %c0_138 = arith.constant 0 : index
    %338 = vector.load %arg21[%c0_137, %c0_138] : memref<1x32xf32, #tpu.memory_space<vmem>>, vector<1x32xf32>
    %339 = vector.broadcast %338 : vector<1x32xf32> to vector<8x32xf32>
    %340 = arith.addf %337, %339 : vector<8x32xf32>
    %341 = arith.addf %340, %250 : vector<8x32xf32>
    %cst_139 = arith.constant dense<0.000000e+00> : vector<8xf32>
    %342 = vector.multi_reduction <add>, %341, %cst_139 [1] : vector<8x32xf32> to vector<8xf32>
    %343 = vector.shape_cast %342 : vector<8xf32> to vector<8x1xf32>
    %cst_140 = arith.constant 3.200000e+01 : f32
    %344 = vector.broadcast %cst_140 : f32 to vector<8x1xf32>
    %345 = arith.divf %343, %344 : vector<8x1xf32>
    %346 = vector.broadcast %345 : vector<8x1xf32> to vector<8x32xf32>
    %347 = arith.subf %341, %346 : vector<8x32xf32>
    %348 = arith.mulf %347, %347 : vector<8x32xf32>
    %cst_141 = arith.constant dense<0.000000e+00> : vector<8xf32>
    %349 = vector.multi_reduction <add>, %348, %cst_141 [1] : vector<8x32xf32> to vector<8xf32>
    %350 = vector.shape_cast %349 : vector<8xf32> to vector<8x1xf32>
    %cst_142 = arith.constant 3.200000e+01 : f32
    %351 = vector.broadcast %cst_142 : f32 to vector<8x1xf32>
    %352 = arith.divf %350, %351 : vector<8x1xf32>
    %353 = vector.broadcast %345 : vector<8x1xf32> to vector<8x32xf32>
    %354 = arith.subf %341, %353 : vector<8x32xf32>
    %cst_143 = arith.constant 9.99999996E-13 : f32
    %355 = vector.broadcast %cst_143 : f32 to vector<8x1xf32>
    %356 = arith.addf %352, %355 : vector<8x1xf32>
    %357 = math.rsqrt %356 : vector<8x1xf32>
    %358 = vector.broadcast %357 : vector<8x1xf32> to vector<8x32xf32>
    %359 = arith.mulf %354, %358 : vector<8x32xf32>
    %c0_144 = arith.constant 0 : index
    %c0_145 = arith.constant 0 : index
    %360 = vector.load %arg24[%c0_144, %c0_145] : memref<1x32xf32, #tpu.memory_space<vmem>>, vector<1x32xf32>
    %361 = vector.broadcast %360 : vector<1x32xf32> to vector<8x32xf32>
    %362 = arith.mulf %359, %361 : vector<8x32xf32>
    %c0_146 = arith.constant 0 : index
    %c0_147 = arith.constant 0 : index
    %363 = vector.load %arg23[%c0_146, %c0_147] : memref<1x32xf32, #tpu.memory_space<vmem>>, vector<1x32xf32>
    %364 = vector.broadcast %363 : vector<1x32xf32> to vector<8x32xf32>
    %365 = arith.addf %362, %364 : vector<8x32xf32>
    %c0_148 = arith.constant 0 : index
    %c0_149 = arith.constant 0 : index
    %366 = vector.load %arg26[%c0_148, %c0_149] : memref<32x64xf32, #tpu.memory_space<vmem>>, vector<32x64xf32>
    %cst_150 = arith.constant dense<0.000000e+00> : vector<8x64xf32>
    %367 = tpu.matmul %365, %366, %cst_150 {dimension_numbers = #tpu.dot_dimension_numbers<[1], [0], [0], [1], [0, 0, 1, 1], [], []>} : vector<8x32xf32>, vector<32x64xf32>, vector<8x64xf32> -> vector<8x64xf32>
    %c0_151 = arith.constant 0 : index
    %c0_152 = arith.constant 0 : index
    %368 = vector.load %arg25[%c0_151, %c0_152] : memref<1x64xf32, #tpu.memory_space<vmem>>, vector<1x64xf32>
    %369 = vector.broadcast %368 : vector<1x64xf32> to vector<8x64xf32>
    %370 = arith.addf %367, %369 : vector<8x64xf32>
    %cst_153 = arith.constant 5.000000e-01 : f32
    %371 = vector.broadcast %cst_153 : f32 to vector<8x64xf32>
    %372 = arith.mulf %371, %370 : vector<8x64xf32>
    %cst_154 = arith.constant 0.707106769 : f32
    %373 = vector.broadcast %cst_154 : f32 to vector<8x64xf32>
    %374 = arith.mulf %370, %373 : vector<8x64xf32>
    %375 = math.erf %374 : vector<8x64xf32>
    %cst_155 = arith.constant 1.000000e+00 : f32
    %376 = vector.broadcast %cst_155 : f32 to vector<8x64xf32>
    %377 = arith.addf %376, %375 : vector<8x64xf32>
    %378 = arith.mulf %372, %377 : vector<8x64xf32>
    %c0_156 = arith.constant 0 : index
    %c0_157 = arith.constant 0 : index
    %379 = vector.load %arg30[%c0_156, %c0_157] : memref<64x32xf32, #tpu.memory_space<vmem>>, vector<64x32xf32>
    %cst_158 = arith.constant dense<0.000000e+00> : vector<8x32xf32>
    %380 = tpu.matmul %378, %379, %cst_158 {dimension_numbers = #tpu.dot_dimension_numbers<[1], [0], [0], [1], [0, 0, 1, 1], [], []>} : vector<8x64xf32>, vector<64x32xf32>, vector<8x32xf32> -> vector<8x32xf32>
    %c0_159 = arith.constant 0 : index
    %c0_160 = arith.constant 0 : index
    %381 = vector.load %arg29[%c0_159, %c0_160] : memref<1x32xf32, #tpu.memory_space<vmem>>, vector<1x32xf32>
    %382 = vector.broadcast %381 : vector<1x32xf32> to vector<8x32xf32>
    %383 = arith.addf %380, %382 : vector<8x32xf32>
    %384 = arith.addf %383, %365 : vector<8x32xf32>
    %cst_161 = arith.constant dense<0.000000e+00> : vector<8xf32>
    %385 = vector.multi_reduction <add>, %384, %cst_161 [1] : vector<8x32xf32> to vector<8xf32>
    %386 = vector.shape_cast %385 : vector<8xf32> to vector<8x1xf32>
    %cst_162 = arith.constant 3.200000e+01 : f32
    %387 = vector.broadcast %cst_162 : f32 to vector<8x1xf32>
    %388 = arith.divf %386, %387 : vector<8x1xf32>
    %389 = vector.broadcast %388 : vector<8x1xf32> to vector<8x32xf32>
    %390 = arith.subf %384, %389 : vector<8x32xf32>
    %391 = arith.mulf %390, %390 : vector<8x32xf32>
    %cst_163 = arith.constant dense<0.000000e+00> : vector<8xf32>
    %392 = vector.multi_reduction <add>, %391, %cst_163 [1] : vector<8x32xf32> to vector<8xf32>
    %393 = vector.shape_cast %392 : vector<8xf32> to vector<8x1xf32>
    %cst_164 = arith.constant 3.200000e+01 : f32
    %394 = vector.broadcast %cst_164 : f32 to vector<8x1xf32>
    %395 = arith.divf %393, %394 : vector<8x1xf32>
    %396 = vector.broadcast %388 : vector<8x1xf32> to vector<8x32xf32>
    %397 = arith.subf %384, %396 : vector<8x32xf32>
    %cst_165 = arith.constant 9.99999996E-13 : f32
    %398 = vector.broadcast %cst_165 : f32 to vector<8x1xf32>
    %399 = arith.addf %395, %398 : vector<8x1xf32>
    %400 = math.rsqrt %399 : vector<8x1xf32>
    %401 = vector.broadcast %400 : vector<8x1xf32> to vector<8x32xf32>
    %402 = arith.mulf %397, %401 : vector<8x32xf32>
    %c0_166 = arith.constant 0 : index
    %c0_167 = arith.constant 0 : index
    %403 = vector.load %arg28[%c0_166, %c0_167] : memref<1x32xf32, #tpu.memory_space<vmem>>, vector<1x32xf32>
    %404 = vector.broadcast %403 : vector<1x32xf32> to vector<8x32xf32>
    %405 = arith.mulf %402, %404 : vector<8x32xf32>
    %c0_168 = arith.constant 0 : index
    %c0_169 = arith.constant 0 : index
    %406 = vector.load %arg27[%c0_168, %c0_169] : memref<1x32xf32, #tpu.memory_space<vmem>>, vector<1x32xf32>
    %407 = vector.broadcast %406 : vector<1x32xf32> to vector<8x32xf32>
    %408 = arith.addf %405, %407 : vector<8x32xf32>
    %c0_170 = arith.constant 0 : index
    %c0_171 = arith.constant 0 : index
    %409 = vector.load %arg34[%c0_170, %c0_171] : memref<32x96xf32, #tpu.memory_space<vmem>>, vector<32x96xf32>
    %c0_172 = arith.constant 0 : index
    %c0_173 = arith.constant 0 : index
    %410 = vector.load %arg33[%c0_172, %c0_173] : memref<1x96xf32, #tpu.memory_space<vmem>>, vector<1x96xf32>
    %cst_174 = arith.constant dense<0.000000e+00> : vector<4x96xf32>
    %411 = tpu.matmul %90, %409, %cst_174 {dimension_numbers = #tpu.dot_dimension_numbers<[1], [0], [0], [1], [0, 0, 1, 1], [], []>} : vector<4x32xf32>, vector<32x96xf32>, vector<4x96xf32> -> vector<4x96xf32>
    %412 = vector.broadcast %410 : vector<1x96xf32> to vector<4x96xf32>
    %413 = arith.addf %411, %412 : vector<4x96xf32>
    %414 = vector.extract_strided_slice %413 {offsets = [0, 0], sizes = [4, 32], strides = [1, 1]} : vector<4x96xf32> to vector<4x32xf32>
    %415 = vector.extract_strided_slice %413 {offsets = [0, 32], sizes = [4, 32], strides = [1, 1]} : vector<4x96xf32> to vector<4x32xf32>
    %416 = vector.extract_strided_slice %413 {offsets = [0, 64], sizes = [4, 32], strides = [1, 1]} : vector<4x96xf32> to vector<4x32xf32>
    %417 = vector.extract_strided_slice %414 {offsets = [0, 0], sizes = [4, 8], strides = [1, 1]} : vector<4x32xf32> to vector<4x8xf32>
    %418 = vector.extract_strided_slice %415 {offsets = [0, 0], sizes = [4, 8], strides = [1, 1]} : vector<4x32xf32> to vector<4x8xf32>
    %419 = vector.extract_strided_slice %416 {offsets = [0, 0], sizes = [4, 8], strides = [1, 1]} : vector<4x32xf32> to vector<4x8xf32>
    %cst_175 = arith.constant dense<0.000000e+00> : vector<4x4xf32>
    %420 = tpu.matmul %417, %418, %cst_175 {dimension_numbers = #tpu.dot_dimension_numbers<[1], [1], [0], [0], [0, 0, 1, 0], [], []>} : vector<4x8xf32>, vector<4x8xf32>, vector<4x4xf32> -> vector<4x4xf32>
    %cst_176 = arith.constant 0.353553385 : f32
    %421 = vector.broadcast %cst_176 : f32 to vector<4x4xf32>
    %422 = arith.mulf %420, %421 : vector<4x4xf32>
    %cst_177 = arith.constant dense<0xFF800000> : vector<4xf32>
    %423 = vector.multi_reduction <maximumf>, %422, %cst_177 [1] : vector<4x4xf32> to vector<4xf32>
    %424 = vector.shape_cast %423 : vector<4xf32> to vector<4x1xf32>
    %425 = vector.broadcast %424 : vector<4x1xf32> to vector<4x4xf32>
    %426 = arith.subf %422, %425 : vector<4x4xf32>
    %427 = math.exp %426 : vector<4x4xf32>
    %cst_178 = arith.constant dense<0.000000e+00> : vector<4xf32>
    %428 = vector.multi_reduction <add>, %427, %cst_178 [1] : vector<4x4xf32> to vector<4xf32>
    %429 = vector.shape_cast %428 : vector<4xf32> to vector<4x1xf32>
    %430 = tpu.reciprocal %429 {approx = true} : vector<4x1xf32> -> vector<4x1xf32>
    %431 = vector.broadcast %430 : vector<4x1xf32> to vector<4x4xf32>
    %432 = arith.mulf %427, %431 : vector<4x4xf32>
    %cst_179 = arith.constant dense<0.000000e+00> : vector<4x8xf32>
    %433 = tpu.matmul %432, %419, %cst_179 {dimension_numbers = #tpu.dot_dimension_numbers<[1], [0], [0], [1], [0, 0, 1, 1], [], []>} : vector<4x4xf32>, vector<4x8xf32>, vector<4x8xf32> -> vector<4x8xf32>
    %434 = vector.extract_strided_slice %414 {offsets = [0, 8], sizes = [4, 8], strides = [1, 1]} : vector<4x32xf32> to vector<4x8xf32>
    %435 = vector.extract_strided_slice %415 {offsets = [0, 8], sizes = [4, 8], strides = [1, 1]} : vector<4x32xf32> to vector<4x8xf32>
    %436 = vector.extract_strided_slice %416 {offsets = [0, 8], sizes = [4, 8], strides = [1, 1]} : vector<4x32xf32> to vector<4x8xf32>
    %cst_180 = arith.constant dense<0.000000e+00> : vector<4x4xf32>
    %437 = tpu.matmul %434, %435, %cst_180 {dimension_numbers = #tpu.dot_dimension_numbers<[1], [1], [0], [0], [0, 0, 1, 0], [], []>} : vector<4x8xf32>, vector<4x8xf32>, vector<4x4xf32> -> vector<4x4xf32>
    %cst_181 = arith.constant 0.353553385 : f32
    %438 = vector.broadcast %cst_181 : f32 to vector<4x4xf32>
    %439 = arith.mulf %437, %438 : vector<4x4xf32>
    %cst_182 = arith.constant dense<0xFF800000> : vector<4xf32>
    %440 = vector.multi_reduction <maximumf>, %439, %cst_182 [1] : vector<4x4xf32> to vector<4xf32>
    %441 = vector.shape_cast %440 : vector<4xf32> to vector<4x1xf32>
    %442 = vector.broadcast %441 : vector<4x1xf32> to vector<4x4xf32>
    %443 = arith.subf %439, %442 : vector<4x4xf32>
    %444 = math.exp %443 : vector<4x4xf32>
    %cst_183 = arith.constant dense<0.000000e+00> : vector<4xf32>
    %445 = vector.multi_reduction <add>, %444, %cst_183 [1] : vector<4x4xf32> to vector<4xf32>
    %446 = vector.shape_cast %445 : vector<4xf32> to vector<4x1xf32>
    %447 = tpu.reciprocal %446 {approx = true} : vector<4x1xf32> -> vector<4x1xf32>
    %448 = vector.broadcast %447 : vector<4x1xf32> to vector<4x4xf32>
    %449 = arith.mulf %444, %448 : vector<4x4xf32>
    %cst_184 = arith.constant dense<0.000000e+00> : vector<4x8xf32>
    %450 = tpu.matmul %449, %436, %cst_184 {dimension_numbers = #tpu.dot_dimension_numbers<[1], [0], [0], [1], [0, 0, 1, 1], [], []>} : vector<4x4xf32>, vector<4x8xf32>, vector<4x8xf32> -> vector<4x8xf32>
    %451 = vector.extract_strided_slice %414 {offsets = [0, 16], sizes = [4, 8], strides = [1, 1]} : vector<4x32xf32> to vector<4x8xf32>
    %452 = vector.extract_strided_slice %415 {offsets = [0, 16], sizes = [4, 8], strides = [1, 1]} : vector<4x32xf32> to vector<4x8xf32>
    %453 = vector.extract_strided_slice %416 {offsets = [0, 16], sizes = [4, 8], strides = [1, 1]} : vector<4x32xf32> to vector<4x8xf32>
    %cst_185 = arith.constant dense<0.000000e+00> : vector<4x4xf32>
    %454 = tpu.matmul %451, %452, %cst_185 {dimension_numbers = #tpu.dot_dimension_numbers<[1], [1], [0], [0], [0, 0, 1, 0], [], []>} : vector<4x8xf32>, vector<4x8xf32>, vector<4x4xf32> -> vector<4x4xf32>
    %cst_186 = arith.constant 0.353553385 : f32
    %455 = vector.broadcast %cst_186 : f32 to vector<4x4xf32>
    %456 = arith.mulf %454, %455 : vector<4x4xf32>
    %cst_187 = arith.constant dense<0xFF800000> : vector<4xf32>
    %457 = vector.multi_reduction <maximumf>, %456, %cst_187 [1] : vector<4x4xf32> to vector<4xf32>
    %458 = vector.shape_cast %457 : vector<4xf32> to vector<4x1xf32>
    %459 = vector.broadcast %458 : vector<4x1xf32> to vector<4x4xf32>
    %460 = arith.subf %456, %459 : vector<4x4xf32>
    %461 = math.exp %460 : vector<4x4xf32>
    %cst_188 = arith.constant dense<0.000000e+00> : vector<4xf32>
    %462 = vector.multi_reduction <add>, %461, %cst_188 [1] : vector<4x4xf32> to vector<4xf32>
    %463 = vector.shape_cast %462 : vector<4xf32> to vector<4x1xf32>
    %464 = tpu.reciprocal %463 {approx = true} : vector<4x1xf32> -> vector<4x1xf32>
    %465 = vector.broadcast %464 : vector<4x1xf32> to vector<4x4xf32>
    %466 = arith.mulf %461, %465 : vector<4x4xf32>
    %cst_189 = arith.constant dense<0.000000e+00> : vector<4x8xf32>
    %467 = tpu.matmul %466, %453, %cst_189 {dimension_numbers = #tpu.dot_dimension_numbers<[1], [0], [0], [1], [0, 0, 1, 1], [], []>} : vector<4x4xf32>, vector<4x8xf32>, vector<4x8xf32> -> vector<4x8xf32>
    %468 = vector.extract_strided_slice %414 {offsets = [0, 24], sizes = [4, 8], strides = [1, 1]} : vector<4x32xf32> to vector<4x8xf32>
    %469 = vector.extract_strided_slice %415 {offsets = [0, 24], sizes = [4, 8], strides = [1, 1]} : vector<4x32xf32> to vector<4x8xf32>
    %470 = vector.extract_strided_slice %416 {offsets = [0, 24], sizes = [4, 8], strides = [1, 1]} : vector<4x32xf32> to vector<4x8xf32>
    %cst_190 = arith.constant dense<0.000000e+00> : vector<4x4xf32>
    %471 = tpu.matmul %468, %469, %cst_190 {dimension_numbers = #tpu.dot_dimension_numbers<[1], [1], [0], [0], [0, 0, 1, 0], [], []>} : vector<4x8xf32>, vector<4x8xf32>, vector<4x4xf32> -> vector<4x4xf32>
    %cst_191 = arith.constant 0.353553385 : f32
    %472 = vector.broadcast %cst_191 : f32 to vector<4x4xf32>
    %473 = arith.mulf %471, %472 : vector<4x4xf32>
    %cst_192 = arith.constant dense<0xFF800000> : vector<4xf32>
    %474 = vector.multi_reduction <maximumf>, %473, %cst_192 [1] : vector<4x4xf32> to vector<4xf32>
    %475 = vector.shape_cast %474 : vector<4xf32> to vector<4x1xf32>
    %476 = vector.broadcast %475 : vector<4x1xf32> to vector<4x4xf32>
    %477 = arith.subf %473, %476 : vector<4x4xf32>
    %478 = math.exp %477 : vector<4x4xf32>
    %cst_193 = arith.constant dense<0.000000e+00> : vector<4xf32>
    %479 = vector.multi_reduction <add>, %478, %cst_193 [1] : vector<4x4xf32> to vector<4xf32>
    %480 = vector.shape_cast %479 : vector<4xf32> to vector<4x1xf32>
    %481 = tpu.reciprocal %480 {approx = true} : vector<4x1xf32> -> vector<4x1xf32>
    %482 = vector.broadcast %481 : vector<4x1xf32> to vector<4x4xf32>
    %483 = arith.mulf %478, %482 : vector<4x4xf32>
    %cst_194 = arith.constant dense<0.000000e+00> : vector<4x8xf32>
    %484 = tpu.matmul %483, %470, %cst_194 {dimension_numbers = #tpu.dot_dimension_numbers<[1], [0], [0], [1], [0, 0, 1, 1], [], []>} : vector<4x4xf32>, vector<4x8xf32>, vector<4x8xf32> -> vector<4x8xf32>
    %485 = tpu.concatenate %433, %450, %467, %484 in 1 : vector<4x8xf32>, vector<4x8xf32>, vector<4x8xf32>, vector<4x8xf32> -> vector<4x32xf32>
    %c0_195 = arith.constant 0 : index
    %c0_196 = arith.constant 0 : index
    %486 = vector.load %arg36[%c0_195, %c0_196] : memref<32x32xf32, #tpu.memory_space<vmem>>, vector<32x32xf32>
    %cst_197 = arith.constant dense<0.000000e+00> : vector<4x32xf32>
    %487 = tpu.matmul %485, %486, %cst_197 {dimension_numbers = #tpu.dot_dimension_numbers<[1], [0], [0], [1], [0, 0, 1, 1], [], []>} : vector<4x32xf32>, vector<32x32xf32>, vector<4x32xf32> -> vector<4x32xf32>
    %c0_198 = arith.constant 0 : index
    %c0_199 = arith.constant 0 : index
    %488 = vector.load %arg35[%c0_198, %c0_199] : memref<1x32xf32, #tpu.memory_space<vmem>>, vector<1x32xf32>
    %489 = vector.broadcast %488 : vector<1x32xf32> to vector<4x32xf32>
    %490 = arith.addf %487, %489 : vector<4x32xf32>
    %491 = arith.addf %490, %90 : vector<4x32xf32>
    %cst_200 = arith.constant dense<0.000000e+00> : vector<4xf32>
    %492 = vector.multi_reduction <add>, %491, %cst_200 [1] : vector<4x32xf32> to vector<4xf32>
    %493 = vector.shape_cast %492 : vector<4xf32> to vector<4x1xf32>
    %cst_201 = arith.constant 3.200000e+01 : f32
    %494 = vector.broadcast %cst_201 : f32 to vector<4x1xf32>
    %495 = arith.divf %493, %494 : vector<4x1xf32>
    %496 = vector.broadcast %495 : vector<4x1xf32> to vector<4x32xf32>
    %497 = arith.subf %491, %496 : vector<4x32xf32>
    %498 = arith.mulf %497, %497 : vector<4x32xf32>
    %cst_202 = arith.constant dense<0.000000e+00> : vector<4xf32>
    %499 = vector.multi_reduction <add>, %498, %cst_202 [1] : vector<4x32xf32> to vector<4xf32>
    %500 = vector.shape_cast %499 : vector<4xf32> to vector<4x1xf32>
    %cst_203 = arith.constant 3.200000e+01 : f32
    %501 = vector.broadcast %cst_203 : f32 to vector<4x1xf32>
    %502 = arith.divf %500, %501 : vector<4x1xf32>
    %503 = vector.broadcast %495 : vector<4x1xf32> to vector<4x32xf32>
    %504 = arith.subf %491, %503 : vector<4x32xf32>
    %cst_204 = arith.constant 9.99999996E-13 : f32
    %505 = vector.broadcast %cst_204 : f32 to vector<4x1xf32>
    %506 = arith.addf %502, %505 : vector<4x1xf32>
    %507 = math.rsqrt %506 : vector<4x1xf32>
    %508 = vector.broadcast %507 : vector<4x1xf32> to vector<4x32xf32>
    %509 = arith.mulf %504, %508 : vector<4x32xf32>
    %c0_205 = arith.constant 0 : index
    %c0_206 = arith.constant 0 : index
    %510 = vector.load %arg38[%c0_205, %c0_206] : memref<1x32xf32, #tpu.memory_space<vmem>>, vector<1x32xf32>
    %511 = vector.broadcast %510 : vector<1x32xf32> to vector<4x32xf32>
    %512 = arith.mulf %509, %511 : vector<4x32xf32>
    %c0_207 = arith.constant 0 : index
    %c0_208 = arith.constant 0 : index
    %513 = vector.load %arg37[%c0_207, %c0_208] : memref<1x32xf32, #tpu.memory_space<vmem>>, vector<1x32xf32>
    %514 = vector.broadcast %513 : vector<1x32xf32> to vector<4x32xf32>
    %515 = arith.addf %512, %514 : vector<4x32xf32>
    %c0_209 = arith.constant 0 : index
    %c0_210 = arith.constant 0 : index
    %516 = vector.load %arg40[%c0_209, %c0_210] : memref<32x64xf32, #tpu.memory_space<vmem>>, vector<32x64xf32>
    %cst_211 = arith.constant dense<0.000000e+00> : vector<4x64xf32>
    %517 = tpu.matmul %515, %516, %cst_211 {dimension_numbers = #tpu.dot_dimension_numbers<[1], [0], [0], [1], [0, 0, 1, 1], [], []>} : vector<4x32xf32>, vector<32x64xf32>, vector<4x64xf32> -> vector<4x64xf32>
    %c0_212 = arith.constant 0 : index
    %c0_213 = arith.constant 0 : index
    %518 = vector.load %arg39[%c0_212, %c0_213] : memref<1x64xf32, #tpu.memory_space<vmem>>, vector<1x64xf32>
    %519 = vector.broadcast %518 : vector<1x64xf32> to vector<4x64xf32>
    %520 = arith.addf %517, %519 : vector<4x64xf32>
    %cst_214 = arith.constant 5.000000e-01 : f32
    %521 = vector.broadcast %cst_214 : f32 to vector<4x64xf32>
    %522 = arith.mulf %521, %520 : vector<4x64xf32>
    %cst_215 = arith.constant 0.707106769 : f32
    %523 = vector.broadcast %cst_215 : f32 to vector<4x64xf32>
    %524 = arith.mulf %520, %523 : vector<4x64xf32>
    %525 = math.erf %524 : vector<4x64xf32>
    %cst_216 = arith.constant 1.000000e+00 : f32
    %526 = vector.broadcast %cst_216 : f32 to vector<4x64xf32>
    %527 = arith.addf %526, %525 : vector<4x64xf32>
    %528 = arith.mulf %522, %527 : vector<4x64xf32>
    %c0_217 = arith.constant 0 : index
    %c0_218 = arith.constant 0 : index
    %529 = vector.load %arg44[%c0_217, %c0_218] : memref<64x32xf32, #tpu.memory_space<vmem>>, vector<64x32xf32>
    %cst_219 = arith.constant dense<0.000000e+00> : vector<4x32xf32>
    %530 = tpu.matmul %528, %529, %cst_219 {dimension_numbers = #tpu.dot_dimension_numbers<[1], [0], [0], [1], [0, 0, 1, 1], [], []>} : vector<4x64xf32>, vector<64x32xf32>, vector<4x32xf32> -> vector<4x32xf32>
    %c0_220 = arith.constant 0 : index
    %c0_221 = arith.constant 0 : index
    %531 = vector.load %arg43[%c0_220, %c0_221] : memref<1x32xf32, #tpu.memory_space<vmem>>, vector<1x32xf32>
    %532 = vector.broadcast %531 : vector<1x32xf32> to vector<4x32xf32>
    %533 = arith.addf %530, %532 : vector<4x32xf32>
    %534 = arith.addf %533, %515 : vector<4x32xf32>
    %cst_222 = arith.constant dense<0.000000e+00> : vector<4xf32>
    %535 = vector.multi_reduction <add>, %534, %cst_222 [1] : vector<4x32xf32> to vector<4xf32>
    %536 = vector.shape_cast %535 : vector<4xf32> to vector<4x1xf32>
    %cst_223 = arith.constant 3.200000e+01 : f32
    %537 = vector.broadcast %cst_223 : f32 to vector<4x1xf32>
    %538 = arith.divf %536, %537 : vector<4x1xf32>
    %539 = vector.broadcast %538 : vector<4x1xf32> to vector<4x32xf32>
    %540 = arith.subf %534, %539 : vector<4x32xf32>
    %541 = arith.mulf %540, %540 : vector<4x32xf32>
    %cst_224 = arith.constant dense<0.000000e+00> : vector<4xf32>
    %542 = vector.multi_reduction <add>, %541, %cst_224 [1] : vector<4x32xf32> to vector<4xf32>
    %543 = vector.shape_cast %542 : vector<4xf32> to vector<4x1xf32>
    %cst_225 = arith.constant 3.200000e+01 : f32
    %544 = vector.broadcast %cst_225 : f32 to vector<4x1xf32>
    %545 = arith.divf %543, %544 : vector<4x1xf32>
    %546 = vector.broadcast %538 : vector<4x1xf32> to vector<4x32xf32>
    %547 = arith.subf %534, %546 : vector<4x32xf32>
    %cst_226 = arith.constant 9.99999996E-13 : f32
    %548 = vector.broadcast %cst_226 : f32 to vector<4x1xf32>
    %549 = arith.addf %545, %548 : vector<4x1xf32>
    %550 = math.rsqrt %549 : vector<4x1xf32>
    %551 = vector.broadcast %550 : vector<4x1xf32> to vector<4x32xf32>
    %552 = arith.mulf %547, %551 : vector<4x32xf32>
    %c0_227 = arith.constant 0 : index
    %c0_228 = arith.constant 0 : index
    %553 = vector.load %arg42[%c0_227, %c0_228] : memref<1x32xf32, #tpu.memory_space<vmem>>, vector<1x32xf32>
    %554 = vector.broadcast %553 : vector<1x32xf32> to vector<4x32xf32>
    %555 = arith.mulf %552, %554 : vector<4x32xf32>
    %c0_229 = arith.constant 0 : index
    %c0_230 = arith.constant 0 : index
    %556 = vector.load %arg41[%c0_229, %c0_230] : memref<1x32xf32, #tpu.memory_space<vmem>>, vector<1x32xf32>
    %557 = vector.broadcast %556 : vector<1x32xf32> to vector<4x32xf32>
    %558 = arith.addf %555, %557 : vector<4x32xf32>
    %c0_231 = arith.constant 0 : index
    %c0_232 = arith.constant 0 : index
    %559 = vector.load %arg46[%c0_231, %c0_232] : memref<32x96xf32, #tpu.memory_space<vmem>>, vector<32x96xf32>
    %c0_233 = arith.constant 0 : index
    %c0_234 = arith.constant 0 : index
    %560 = vector.load %arg45[%c0_233, %c0_234] : memref<1x96xf32, #tpu.memory_space<vmem>>, vector<1x96xf32>
    %cst_235 = arith.constant dense<0.000000e+00> : vector<4x96xf32>
    %561 = tpu.matmul %558, %559, %cst_235 {dimension_numbers = #tpu.dot_dimension_numbers<[1], [0], [0], [1], [0, 0, 1, 1], [], []>} : vector<4x32xf32>, vector<32x96xf32>, vector<4x96xf32> -> vector<4x96xf32>
    %562 = vector.broadcast %560 : vector<1x96xf32> to vector<4x96xf32>
    %563 = arith.addf %561, %562 : vector<4x96xf32>
    %564 = vector.extract_strided_slice %563 {offsets = [0, 0], sizes = [4, 32], strides = [1, 1]} : vector<4x96xf32> to vector<4x32xf32>
    %565 = vector.extract_strided_slice %563 {offsets = [0, 32], sizes = [4, 32], strides = [1, 1]} : vector<4x96xf32> to vector<4x32xf32>
    %566 = vector.extract_strided_slice %563 {offsets = [0, 64], sizes = [4, 32], strides = [1, 1]} : vector<4x96xf32> to vector<4x32xf32>
    %567 = vector.extract_strided_slice %564 {offsets = [0, 0], sizes = [4, 8], strides = [1, 1]} : vector<4x32xf32> to vector<4x8xf32>
    %568 = vector.extract_strided_slice %565 {offsets = [0, 0], sizes = [4, 8], strides = [1, 1]} : vector<4x32xf32> to vector<4x8xf32>
    %569 = vector.extract_strided_slice %566 {offsets = [0, 0], sizes = [4, 8], strides = [1, 1]} : vector<4x32xf32> to vector<4x8xf32>
    %cst_236 = arith.constant dense<0.000000e+00> : vector<4x4xf32>
    %570 = tpu.matmul %567, %568, %cst_236 {dimension_numbers = #tpu.dot_dimension_numbers<[1], [1], [0], [0], [0, 0, 1, 0], [], []>} : vector<4x8xf32>, vector<4x8xf32>, vector<4x4xf32> -> vector<4x4xf32>
    %cst_237 = arith.constant 0.353553385 : f32
    %571 = vector.broadcast %cst_237 : f32 to vector<4x4xf32>
    %572 = arith.mulf %570, %571 : vector<4x4xf32>
    %cst_238 = arith.constant dense<0xFF800000> : vector<4xf32>
    %573 = vector.multi_reduction <maximumf>, %572, %cst_238 [1] : vector<4x4xf32> to vector<4xf32>
    %574 = vector.shape_cast %573 : vector<4xf32> to vector<4x1xf32>
    %575 = vector.broadcast %574 : vector<4x1xf32> to vector<4x4xf32>
    %576 = arith.subf %572, %575 : vector<4x4xf32>
    %577 = math.exp %576 : vector<4x4xf32>
    %cst_239 = arith.constant dense<0.000000e+00> : vector<4xf32>
    %578 = vector.multi_reduction <add>, %577, %cst_239 [1] : vector<4x4xf32> to vector<4xf32>
    %579 = vector.shape_cast %578 : vector<4xf32> to vector<4x1xf32>
    %580 = tpu.reciprocal %579 {approx = true} : vector<4x1xf32> -> vector<4x1xf32>
    %581 = vector.broadcast %580 : vector<4x1xf32> to vector<4x4xf32>
    %582 = arith.mulf %577, %581 : vector<4x4xf32>
    %cst_240 = arith.constant dense<0.000000e+00> : vector<4x8xf32>
    %583 = tpu.matmul %582, %569, %cst_240 {dimension_numbers = #tpu.dot_dimension_numbers<[1], [0], [0], [1], [0, 0, 1, 1], [], []>} : vector<4x4xf32>, vector<4x8xf32>, vector<4x8xf32> -> vector<4x8xf32>
    %584 = vector.extract_strided_slice %564 {offsets = [0, 8], sizes = [4, 8], strides = [1, 1]} : vector<4x32xf32> to vector<4x8xf32>
    %585 = vector.extract_strided_slice %565 {offsets = [0, 8], sizes = [4, 8], strides = [1, 1]} : vector<4x32xf32> to vector<4x8xf32>
    %586 = vector.extract_strided_slice %566 {offsets = [0, 8], sizes = [4, 8], strides = [1, 1]} : vector<4x32xf32> to vector<4x8xf32>
    %cst_241 = arith.constant dense<0.000000e+00> : vector<4x4xf32>
    %587 = tpu.matmul %584, %585, %cst_241 {dimension_numbers = #tpu.dot_dimension_numbers<[1], [1], [0], [0], [0, 0, 1, 0], [], []>} : vector<4x8xf32>, vector<4x8xf32>, vector<4x4xf32> -> vector<4x4xf32>
    %cst_242 = arith.constant 0.353553385 : f32
    %588 = vector.broadcast %cst_242 : f32 to vector<4x4xf32>
    %589 = arith.mulf %587, %588 : vector<4x4xf32>
    %cst_243 = arith.constant dense<0xFF800000> : vector<4xf32>
    %590 = vector.multi_reduction <maximumf>, %589, %cst_243 [1] : vector<4x4xf32> to vector<4xf32>
    %591 = vector.shape_cast %590 : vector<4xf32> to vector<4x1xf32>
    %592 = vector.broadcast %591 : vector<4x1xf32> to vector<4x4xf32>
    %593 = arith.subf %589, %592 : vector<4x4xf32>
    %594 = math.exp %593 : vector<4x4xf32>
    %cst_244 = arith.constant dense<0.000000e+00> : vector<4xf32>
    %595 = vector.multi_reduction <add>, %594, %cst_244 [1] : vector<4x4xf32> to vector<4xf32>
    %596 = vector.shape_cast %595 : vector<4xf32> to vector<4x1xf32>
    %597 = tpu.reciprocal %596 {approx = true} : vector<4x1xf32> -> vector<4x1xf32>
    %598 = vector.broadcast %597 : vector<4x1xf32> to vector<4x4xf32>
    %599 = arith.mulf %594, %598 : vector<4x4xf32>
    %cst_245 = arith.constant dense<0.000000e+00> : vector<4x8xf32>
    %600 = tpu.matmul %599, %586, %cst_245 {dimension_numbers = #tpu.dot_dimension_numbers<[1], [0], [0], [1], [0, 0, 1, 1], [], []>} : vector<4x4xf32>, vector<4x8xf32>, vector<4x8xf32> -> vector<4x8xf32>
    %601 = vector.extract_strided_slice %564 {offsets = [0, 16], sizes = [4, 8], strides = [1, 1]} : vector<4x32xf32> to vector<4x8xf32>
    %602 = vector.extract_strided_slice %565 {offsets = [0, 16], sizes = [4, 8], strides = [1, 1]} : vector<4x32xf32> to vector<4x8xf32>
    %603 = vector.extract_strided_slice %566 {offsets = [0, 16], sizes = [4, 8], strides = [1, 1]} : vector<4x32xf32> to vector<4x8xf32>
    %cst_246 = arith.constant dense<0.000000e+00> : vector<4x4xf32>
    %604 = tpu.matmul %601, %602, %cst_246 {dimension_numbers = #tpu.dot_dimension_numbers<[1], [1], [0], [0], [0, 0, 1, 0], [], []>} : vector<4x8xf32>, vector<4x8xf32>, vector<4x4xf32> -> vector<4x4xf32>
    %cst_247 = arith.constant 0.353553385 : f32
    %605 = vector.broadcast %cst_247 : f32 to vector<4x4xf32>
    %606 = arith.mulf %604, %605 : vector<4x4xf32>
    %cst_248 = arith.constant dense<0xFF800000> : vector<4xf32>
    %607 = vector.multi_reduction <maximumf>, %606, %cst_248 [1] : vector<4x4xf32> to vector<4xf32>
    %608 = vector.shape_cast %607 : vector<4xf32> to vector<4x1xf32>
    %609 = vector.broadcast %608 : vector<4x1xf32> to vector<4x4xf32>
    %610 = arith.subf %606, %609 : vector<4x4xf32>
    %611 = math.exp %610 : vector<4x4xf32>
    %cst_249 = arith.constant dense<0.000000e+00> : vector<4xf32>
    %612 = vector.multi_reduction <add>, %611, %cst_249 [1] : vector<4x4xf32> to vector<4xf32>
    %613 = vector.shape_cast %612 : vector<4xf32> to vector<4x1xf32>
    %614 = tpu.reciprocal %613 {approx = true} : vector<4x1xf32> -> vector<4x1xf32>
    %615 = vector.broadcast %614 : vector<4x1xf32> to vector<4x4xf32>
    %616 = arith.mulf %611, %615 : vector<4x4xf32>
    %cst_250 = arith.constant dense<0.000000e+00> : vector<4x8xf32>
    %617 = tpu.matmul %616, %603, %cst_250 {dimension_numbers = #tpu.dot_dimension_numbers<[1], [0], [0], [1], [0, 0, 1, 1], [], []>} : vector<4x4xf32>, vector<4x8xf32>, vector<4x8xf32> -> vector<4x8xf32>
    %618 = vector.extract_strided_slice %564 {offsets = [0, 24], sizes = [4, 8], strides = [1, 1]} : vector<4x32xf32> to vector<4x8xf32>
    %619 = vector.extract_strided_slice %565 {offsets = [0, 24], sizes = [4, 8], strides = [1, 1]} : vector<4x32xf32> to vector<4x8xf32>
    %620 = vector.extract_strided_slice %566 {offsets = [0, 24], sizes = [4, 8], strides = [1, 1]} : vector<4x32xf32> to vector<4x8xf32>
    %cst_251 = arith.constant dense<0.000000e+00> : vector<4x4xf32>
    %621 = tpu.matmul %618, %619, %cst_251 {dimension_numbers = #tpu.dot_dimension_numbers<[1], [1], [0], [0], [0, 0, 1, 0], [], []>} : vector<4x8xf32>, vector<4x8xf32>, vector<4x4xf32> -> vector<4x4xf32>
    %cst_252 = arith.constant 0.353553385 : f32
    %622 = vector.broadcast %cst_252 : f32 to vector<4x4xf32>
    %623 = arith.mulf %621, %622 : vector<4x4xf32>
    %cst_253 = arith.constant dense<0xFF800000> : vector<4xf32>
    %624 = vector.multi_reduction <maximumf>, %623, %cst_253 [1] : vector<4x4xf32> to vector<4xf32>
    %625 = vector.shape_cast %624 : vector<4xf32> to vector<4x1xf32>
    %626 = vector.broadcast %625 : vector<4x1xf32> to vector<4x4xf32>
    %627 = arith.subf %623, %626 : vector<4x4xf32>
    %628 = math.exp %627 : vector<4x4xf32>
    %cst_254 = arith.constant dense<0.000000e+00> : vector<4xf32>
    %629 = vector.multi_reduction <add>, %628, %cst_254 [1] : vector<4x4xf32> to vector<4xf32>
    %630 = vector.shape_cast %629 : vector<4xf32> to vector<4x1xf32>
    %631 = tpu.reciprocal %630 {approx = true} : vector<4x1xf32> -> vector<4x1xf32>
    %632 = vector.broadcast %631 : vector<4x1xf32> to vector<4x4xf32>
    %633 = arith.mulf %628, %632 : vector<4x4xf32>
    %cst_255 = arith.constant dense<0.000000e+00> : vector<4x8xf32>
    %634 = tpu.matmul %633, %620, %cst_255 {dimension_numbers = #tpu.dot_dimension_numbers<[1], [0], [0], [1], [0, 0, 1, 1], [], []>} : vector<4x4xf32>, vector<4x8xf32>, vector<4x8xf32> -> vector<4x8xf32>
    %635 = tpu.concatenate %583, %600, %617, %634 in 1 : vector<4x8xf32>, vector<4x8xf32>, vector<4x8xf32>, vector<4x8xf32> -> vector<4x32xf32>
    %c0_256 = arith.constant 0 : index
    %c0_257 = arith.constant 0 : index
    %636 = vector.load %arg48[%c0_256, %c0_257] : memref<32x32xf32, #tpu.memory_space<vmem>>, vector<32x32xf32>
    %cst_258 = arith.constant dense<0.000000e+00> : vector<4x32xf32>
    %637 = tpu.matmul %635, %636, %cst_258 {dimension_numbers = #tpu.dot_dimension_numbers<[1], [0], [0], [1], [0, 0, 1, 1], [], []>} : vector<4x32xf32>, vector<32x32xf32>, vector<4x32xf32> -> vector<4x32xf32>
    %c0_259 = arith.constant 0 : index
    %c0_260 = arith.constant 0 : index
    %638 = vector.load %arg47[%c0_259, %c0_260] : memref<1x32xf32, #tpu.memory_space<vmem>>, vector<1x32xf32>
    %639 = vector.broadcast %638 : vector<1x32xf32> to vector<4x32xf32>
    %640 = arith.addf %637, %639 : vector<4x32xf32>
    %641 = arith.addf %640, %558 : vector<4x32xf32>
    %cst_261 = arith.constant dense<0.000000e+00> : vector<4xf32>
    %642 = vector.multi_reduction <add>, %641, %cst_261 [1] : vector<4x32xf32> to vector<4xf32>
    %643 = vector.shape_cast %642 : vector<4xf32> to vector<4x1xf32>
    %cst_262 = arith.constant 3.200000e+01 : f32
    %644 = vector.broadcast %cst_262 : f32 to vector<4x1xf32>
    %645 = arith.divf %643, %644 : vector<4x1xf32>
    %646 = vector.broadcast %645 : vector<4x1xf32> to vector<4x32xf32>
    %647 = arith.subf %641, %646 : vector<4x32xf32>
    %648 = arith.mulf %647, %647 : vector<4x32xf32>
    %cst_263 = arith.constant dense<0.000000e+00> : vector<4xf32>
    %649 = vector.multi_reduction <add>, %648, %cst_263 [1] : vector<4x32xf32> to vector<4xf32>
    %650 = vector.shape_cast %649 : vector<4xf32> to vector<4x1xf32>
    %cst_264 = arith.constant 3.200000e+01 : f32
    %651 = vector.broadcast %cst_264 : f32 to vector<4x1xf32>
    %652 = arith.divf %650, %651 : vector<4x1xf32>
    %653 = vector.broadcast %645 : vector<4x1xf32> to vector<4x32xf32>
    %654 = arith.subf %641, %653 : vector<4x32xf32>
    %cst_265 = arith.constant 9.99999996E-13 : f32
    %655 = vector.broadcast %cst_265 : f32 to vector<4x1xf32>
    %656 = arith.addf %652, %655 : vector<4x1xf32>
    %657 = math.rsqrt %656 : vector<4x1xf32>
    %658 = vector.broadcast %657 : vector<4x1xf32> to vector<4x32xf32>
    %659 = arith.mulf %654, %658 : vector<4x32xf32>
    %c0_266 = arith.constant 0 : index
    %c0_267 = arith.constant 0 : index
    %660 = vector.load %arg50[%c0_266, %c0_267] : memref<1x32xf32, #tpu.memory_space<vmem>>, vector<1x32xf32>
    %661 = vector.broadcast %660 : vector<1x32xf32> to vector<4x32xf32>
    %662 = arith.mulf %659, %661 : vector<4x32xf32>
    %c0_268 = arith.constant 0 : index
    %c0_269 = arith.constant 0 : index
    %663 = vector.load %arg49[%c0_268, %c0_269] : memref<1x32xf32, #tpu.memory_space<vmem>>, vector<1x32xf32>
    %664 = vector.broadcast %663 : vector<1x32xf32> to vector<4x32xf32>
    %665 = arith.addf %662, %664 : vector<4x32xf32>
    %c0_270 = arith.constant 0 : index
    %c0_271 = arith.constant 0 : index
    %666 = vector.load %arg52[%c0_270, %c0_271] : memref<32x64xf32, #tpu.memory_space<vmem>>, vector<32x64xf32>
    %cst_272 = arith.constant dense<0.000000e+00> : vector<4x64xf32>
    %667 = tpu.matmul %665, %666, %cst_272 {dimension_numbers = #tpu.dot_dimension_numbers<[1], [0], [0], [1], [0, 0, 1, 1], [], []>} : vector<4x32xf32>, vector<32x64xf32>, vector<4x64xf32> -> vector<4x64xf32>
    %c0_273 = arith.constant 0 : index
    %c0_274 = arith.constant 0 : index
    %668 = vector.load %arg51[%c0_273, %c0_274] : memref<1x64xf32, #tpu.memory_space<vmem>>, vector<1x64xf32>
    %669 = vector.broadcast %668 : vector<1x64xf32> to vector<4x64xf32>
    %670 = arith.addf %667, %669 : vector<4x64xf32>
    %cst_275 = arith.constant 5.000000e-01 : f32
    %671 = vector.broadcast %cst_275 : f32 to vector<4x64xf32>
    %672 = arith.mulf %671, %670 : vector<4x64xf32>
    %cst_276 = arith.constant 0.707106769 : f32
    %673 = vector.broadcast %cst_276 : f32 to vector<4x64xf32>
    %674 = arith.mulf %670, %673 : vector<4x64xf32>
    %675 = math.erf %674 : vector<4x64xf32>
    %cst_277 = arith.constant 1.000000e+00 : f32
    %676 = vector.broadcast %cst_277 : f32 to vector<4x64xf32>
    %677 = arith.addf %676, %675 : vector<4x64xf32>
    %678 = arith.mulf %672, %677 : vector<4x64xf32>
    %c0_278 = arith.constant 0 : index
    %c0_279 = arith.constant 0 : index
    %679 = vector.load %arg56[%c0_278, %c0_279] : memref<64x32xf32, #tpu.memory_space<vmem>>, vector<64x32xf32>
    %cst_280 = arith.constant dense<0.000000e+00> : vector<4x32xf32>
    %680 = tpu.matmul %678, %679, %cst_280 {dimension_numbers = #tpu.dot_dimension_numbers<[1], [0], [0], [1], [0, 0, 1, 1], [], []>} : vector<4x64xf32>, vector<64x32xf32>, vector<4x32xf32> -> vector<4x32xf32>
    %c0_281 = arith.constant 0 : index
    %c0_282 = arith.constant 0 : index
    %681 = vector.load %arg55[%c0_281, %c0_282] : memref<1x32xf32, #tpu.memory_space<vmem>>, vector<1x32xf32>
    %682 = vector.broadcast %681 : vector<1x32xf32> to vector<4x32xf32>
    %683 = arith.addf %680, %682 : vector<4x32xf32>
    %684 = arith.addf %683, %665 : vector<4x32xf32>
    %cst_283 = arith.constant dense<0.000000e+00> : vector<4xf32>
    %685 = vector.multi_reduction <add>, %684, %cst_283 [1] : vector<4x32xf32> to vector<4xf32>
    %686 = vector.shape_cast %685 : vector<4xf32> to vector<4x1xf32>
    %cst_284 = arith.constant 3.200000e+01 : f32
    %687 = vector.broadcast %cst_284 : f32 to vector<4x1xf32>
    %688 = arith.divf %686, %687 : vector<4x1xf32>
    %689 = vector.broadcast %688 : vector<4x1xf32> to vector<4x32xf32>
    %690 = arith.subf %684, %689 : vector<4x32xf32>
    %691 = arith.mulf %690, %690 : vector<4x32xf32>
    %cst_285 = arith.constant dense<0.000000e+00> : vector<4xf32>
    %692 = vector.multi_reduction <add>, %691, %cst_285 [1] : vector<4x32xf32> to vector<4xf32>
    %693 = vector.shape_cast %692 : vector<4xf32> to vector<4x1xf32>
    %cst_286 = arith.constant 3.200000e+01 : f32
    %694 = vector.broadcast %cst_286 : f32 to vector<4x1xf32>
    %695 = arith.divf %693, %694 : vector<4x1xf32>
    %696 = vector.broadcast %688 : vector<4x1xf32> to vector<4x32xf32>
    %697 = arith.subf %684, %696 : vector<4x32xf32>
    %cst_287 = arith.constant 9.99999996E-13 : f32
    %698 = vector.broadcast %cst_287 : f32 to vector<4x1xf32>
    %699 = arith.addf %695, %698 : vector<4x1xf32>
    %700 = math.rsqrt %699 : vector<4x1xf32>
    %701 = vector.broadcast %700 : vector<4x1xf32> to vector<4x32xf32>
    %702 = arith.mulf %697, %701 : vector<4x32xf32>
    %c0_288 = arith.constant 0 : index
    %c0_289 = arith.constant 0 : index
    %703 = vector.load %arg54[%c0_288, %c0_289] : memref<1x32xf32, #tpu.memory_space<vmem>>, vector<1x32xf32>
    %704 = vector.broadcast %703 : vector<1x32xf32> to vector<4x32xf32>
    %705 = arith.mulf %702, %704 : vector<4x32xf32>
    %c0_290 = arith.constant 0 : index
    %c0_291 = arith.constant 0 : index
    %706 = vector.load %arg53[%c0_290, %c0_291] : memref<1x32xf32, #tpu.memory_space<vmem>>, vector<1x32xf32>
    %707 = vector.broadcast %706 : vector<1x32xf32> to vector<4x32xf32>
    %708 = arith.addf %705, %707 : vector<4x32xf32>
    %c0_292 = arith.constant 0 : index
    %c0_293 = arith.constant 0 : index
    %709 = vector.load %arg68[%c0_292, %c0_293] : memref<32x96xf32, #tpu.memory_space<vmem>>, vector<32x96xf32>
    %c0_294 = arith.constant 0 : index
    %c0_295 = arith.constant 0 : index
    %710 = vector.load %arg67[%c0_294, %c0_295] : memref<1x96xf32, #tpu.memory_space<vmem>>, vector<1x96xf32>
    %711 = vector.extract_strided_slice %709 {offsets = [0, 0], sizes = [32, 32], strides = [1, 1]} : vector<32x96xf32> to vector<32x32xf32>
    %cst_296 = arith.constant dense<0.000000e+00> : vector<8x32xf32>
    %712 = tpu.matmul %408, %711, %cst_296 {dimension_numbers = #tpu.dot_dimension_numbers<[1], [0], [0], [1], [0, 0, 1, 1], [], []>} : vector<8x32xf32>, vector<32x32xf32>, vector<8x32xf32> -> vector<8x32xf32>
    %713 = vector.extract_strided_slice %710 {offsets = [0, 0], sizes = [1, 32], strides = [1, 1]} : vector<1x96xf32> to vector<1x32xf32>
    %714 = vector.broadcast %713 : vector<1x32xf32> to vector<8x32xf32>
    %715 = arith.addf %712, %714 : vector<8x32xf32>
    %716 = vector.extract_strided_slice %709 {offsets = [0, 32], sizes = [32, 64], strides = [1, 1]} : vector<32x96xf32> to vector<32x64xf32>
    %cst_297 = arith.constant dense<0.000000e+00> : vector<4x64xf32>
    %717 = tpu.matmul %708, %716, %cst_297 {dimension_numbers = #tpu.dot_dimension_numbers<[1], [0], [0], [1], [0, 0, 1, 1], [], []>} : vector<4x32xf32>, vector<32x64xf32>, vector<4x64xf32> -> vector<4x64xf32>
    %718 = vector.extract_strided_slice %710 {offsets = [0, 32], sizes = [1, 64], strides = [1, 1]} : vector<1x96xf32> to vector<1x64xf32>
    %719 = vector.broadcast %718 : vector<1x64xf32> to vector<4x64xf32>
    %720 = arith.addf %717, %719 : vector<4x64xf32>
    %721 = vector.extract_strided_slice %720 {offsets = [0, 0], sizes = [4, 32], strides = [1, 1]} : vector<4x64xf32> to vector<4x32xf32>
    %722 = vector.extract_strided_slice %720 {offsets = [0, 32], sizes = [4, 32], strides = [1, 1]} : vector<4x64xf32> to vector<4x32xf32>
    %723 = vector.extract_strided_slice %715 {offsets = [0, 0], sizes = [8, 8], strides = [1, 1]} : vector<8x32xf32> to vector<8x8xf32>
    %724 = vector.extract_strided_slice %721 {offsets = [0, 0], sizes = [4, 8], strides = [1, 1]} : vector<4x32xf32> to vector<4x8xf32>
    %725 = vector.extract_strided_slice %722 {offsets = [0, 0], sizes = [4, 8], strides = [1, 1]} : vector<4x32xf32> to vector<4x8xf32>
    %cst_298 = arith.constant dense<0.000000e+00> : vector<8x4xf32>
    %726 = tpu.matmul %723, %724, %cst_298 {dimension_numbers = #tpu.dot_dimension_numbers<[1], [1], [0], [0], [0, 0, 1, 0], [], []>} : vector<8x8xf32>, vector<4x8xf32>, vector<8x4xf32> -> vector<8x4xf32>
    %cst_299 = arith.constant 0.353553385 : f32
    %727 = vector.broadcast %cst_299 : f32 to vector<8x4xf32>
    %728 = arith.mulf %726, %727 : vector<8x4xf32>
    %cst_300 = arith.constant dense<0xFF800000> : vector<8xf32>
    %729 = vector.multi_reduction <maximumf>, %728, %cst_300 [1] : vector<8x4xf32> to vector<8xf32>
    %730 = vector.shape_cast %729 : vector<8xf32> to vector<8x1xf32>
    %731 = vector.broadcast %730 : vector<8x1xf32> to vector<8x4xf32>
    %732 = arith.subf %728, %731 : vector<8x4xf32>
    %733 = math.exp %732 : vector<8x4xf32>
    %cst_301 = arith.constant dense<0.000000e+00> : vector<8xf32>
    %734 = vector.multi_reduction <add>, %733, %cst_301 [1] : vector<8x4xf32> to vector<8xf32>
    %735 = vector.shape_cast %734 : vector<8xf32> to vector<8x1xf32>
    %736 = tpu.reciprocal %735 {approx = true} : vector<8x1xf32> -> vector<8x1xf32>
    %737 = vector.broadcast %736 : vector<8x1xf32> to vector<8x4xf32>
    %738 = arith.mulf %733, %737 : vector<8x4xf32>
    %cst_302 = arith.constant dense<0.000000e+00> : vector<8x8xf32>
    %739 = tpu.matmul %738, %725, %cst_302 {dimension_numbers = #tpu.dot_dimension_numbers<[1], [0], [0], [1], [0, 0, 1, 1], [], []>} : vector<8x4xf32>, vector<4x8xf32>, vector<8x8xf32> -> vector<8x8xf32>
    %740 = vector.extract_strided_slice %715 {offsets = [0, 8], sizes = [8, 8], strides = [1, 1]} : vector<8x32xf32> to vector<8x8xf32>
    %741 = vector.extract_strided_slice %721 {offsets = [0, 8], sizes = [4, 8], strides = [1, 1]} : vector<4x32xf32> to vector<4x8xf32>
    %742 = vector.extract_strided_slice %722 {offsets = [0, 8], sizes = [4, 8], strides = [1, 1]} : vector<4x32xf32> to vector<4x8xf32>
    %cst_303 = arith.constant dense<0.000000e+00> : vector<8x4xf32>
    %743 = tpu.matmul %740, %741, %cst_303 {dimension_numbers = #tpu.dot_dimension_numbers<[1], [1], [0], [0], [0, 0, 1, 0], [], []>} : vector<8x8xf32>, vector<4x8xf32>, vector<8x4xf32> -> vector<8x4xf32>
    %cst_304 = arith.constant 0.353553385 : f32
    %744 = vector.broadcast %cst_304 : f32 to vector<8x4xf32>
    %745 = arith.mulf %743, %744 : vector<8x4xf32>
    %cst_305 = arith.constant dense<0xFF800000> : vector<8xf32>
    %746 = vector.multi_reduction <maximumf>, %745, %cst_305 [1] : vector<8x4xf32> to vector<8xf32>
    %747 = vector.shape_cast %746 : vector<8xf32> to vector<8x1xf32>
    %748 = vector.broadcast %747 : vector<8x1xf32> to vector<8x4xf32>
    %749 = arith.subf %745, %748 : vector<8x4xf32>
    %750 = math.exp %749 : vector<8x4xf32>
    %cst_306 = arith.constant dense<0.000000e+00> : vector<8xf32>
    %751 = vector.multi_reduction <add>, %750, %cst_306 [1] : vector<8x4xf32> to vector<8xf32>
    %752 = vector.shape_cast %751 : vector<8xf32> to vector<8x1xf32>
    %753 = tpu.reciprocal %752 {approx = true} : vector<8x1xf32> -> vector<8x1xf32>
    %754 = vector.broadcast %753 : vector<8x1xf32> to vector<8x4xf32>
    %755 = arith.mulf %750, %754 : vector<8x4xf32>
    %cst_307 = arith.constant dense<0.000000e+00> : vector<8x8xf32>
    %756 = tpu.matmul %755, %742, %cst_307 {dimension_numbers = #tpu.dot_dimension_numbers<[1], [0], [0], [1], [0, 0, 1, 1], [], []>} : vector<8x4xf32>, vector<4x8xf32>, vector<8x8xf32> -> vector<8x8xf32>
    %757 = vector.extract_strided_slice %715 {offsets = [0, 16], sizes = [8, 8], strides = [1, 1]} : vector<8x32xf32> to vector<8x8xf32>
    %758 = vector.extract_strided_slice %721 {offsets = [0, 16], sizes = [4, 8], strides = [1, 1]} : vector<4x32xf32> to vector<4x8xf32>
    %759 = vector.extract_strided_slice %722 {offsets = [0, 16], sizes = [4, 8], strides = [1, 1]} : vector<4x32xf32> to vector<4x8xf32>
    %cst_308 = arith.constant dense<0.000000e+00> : vector<8x4xf32>
    %760 = tpu.matmul %757, %758, %cst_308 {dimension_numbers = #tpu.dot_dimension_numbers<[1], [1], [0], [0], [0, 0, 1, 0], [], []>} : vector<8x8xf32>, vector<4x8xf32>, vector<8x4xf32> -> vector<8x4xf32>
    %cst_309 = arith.constant 0.353553385 : f32
    %761 = vector.broadcast %cst_309 : f32 to vector<8x4xf32>
    %762 = arith.mulf %760, %761 : vector<8x4xf32>
    %cst_310 = arith.constant dense<0xFF800000> : vector<8xf32>
    %763 = vector.multi_reduction <maximumf>, %762, %cst_310 [1] : vector<8x4xf32> to vector<8xf32>
    %764 = vector.shape_cast %763 : vector<8xf32> to vector<8x1xf32>
    %765 = vector.broadcast %764 : vector<8x1xf32> to vector<8x4xf32>
    %766 = arith.subf %762, %765 : vector<8x4xf32>
    %767 = math.exp %766 : vector<8x4xf32>
    %cst_311 = arith.constant dense<0.000000e+00> : vector<8xf32>
    %768 = vector.multi_reduction <add>, %767, %cst_311 [1] : vector<8x4xf32> to vector<8xf32>
    %769 = vector.shape_cast %768 : vector<8xf32> to vector<8x1xf32>
    %770 = tpu.reciprocal %769 {approx = true} : vector<8x1xf32> -> vector<8x1xf32>
    %771 = vector.broadcast %770 : vector<8x1xf32> to vector<8x4xf32>
    %772 = arith.mulf %767, %771 : vector<8x4xf32>
    %cst_312 = arith.constant dense<0.000000e+00> : vector<8x8xf32>
    %773 = tpu.matmul %772, %759, %cst_312 {dimension_numbers = #tpu.dot_dimension_numbers<[1], [0], [0], [1], [0, 0, 1, 1], [], []>} : vector<8x4xf32>, vector<4x8xf32>, vector<8x8xf32> -> vector<8x8xf32>
    %774 = vector.extract_strided_slice %715 {offsets = [0, 24], sizes = [8, 8], strides = [1, 1]} : vector<8x32xf32> to vector<8x8xf32>
    %775 = vector.extract_strided_slice %721 {offsets = [0, 24], sizes = [4, 8], strides = [1, 1]} : vector<4x32xf32> to vector<4x8xf32>
    %776 = vector.extract_strided_slice %722 {offsets = [0, 24], sizes = [4, 8], strides = [1, 1]} : vector<4x32xf32> to vector<4x8xf32>
    %cst_313 = arith.constant dense<0.000000e+00> : vector<8x4xf32>
    %777 = tpu.matmul %774, %775, %cst_313 {dimension_numbers = #tpu.dot_dimension_numbers<[1], [1], [0], [0], [0, 0, 1, 0], [], []>} : vector<8x8xf32>, vector<4x8xf32>, vector<8x4xf32> -> vector<8x4xf32>
    %cst_314 = arith.constant 0.353553385 : f32
    %778 = vector.broadcast %cst_314 : f32 to vector<8x4xf32>
    %779 = arith.mulf %777, %778 : vector<8x4xf32>
    %cst_315 = arith.constant dense<0xFF800000> : vector<8xf32>
    %780 = vector.multi_reduction <maximumf>, %779, %cst_315 [1] : vector<8x4xf32> to vector<8xf32>
    %781 = vector.shape_cast %780 : vector<8xf32> to vector<8x1xf32>
    %782 = vector.broadcast %781 : vector<8x1xf32> to vector<8x4xf32>
    %783 = arith.subf %779, %782 : vector<8x4xf32>
    %784 = math.exp %783 : vector<8x4xf32>
    %cst_316 = arith.constant dense<0.000000e+00> : vector<8xf32>
    %785 = vector.multi_reduction <add>, %784, %cst_316 [1] : vector<8x4xf32> to vector<8xf32>
    %786 = vector.shape_cast %785 : vector<8xf32> to vector<8x1xf32>
    %787 = tpu.reciprocal %786 {approx = true} : vector<8x1xf32> -> vector<8x1xf32>
    %788 = vector.broadcast %787 : vector<8x1xf32> to vector<8x4xf32>
    %789 = arith.mulf %784, %788 : vector<8x4xf32>
    %cst_317 = arith.constant dense<0.000000e+00> : vector<8x8xf32>
    %790 = tpu.matmul %789, %776, %cst_317 {dimension_numbers = #tpu.dot_dimension_numbers<[1], [0], [0], [1], [0, 0, 1, 1], [], []>} : vector<8x4xf32>, vector<4x8xf32>, vector<8x8xf32> -> vector<8x8xf32>
    %791 = tpu.concatenate %739, %756, %773, %790 in 1 : vector<8x8xf32>, vector<8x8xf32>, vector<8x8xf32>, vector<8x8xf32> -> vector<8x32xf32>
    %c0_318 = arith.constant 0 : index
    %c0_319 = arith.constant 0 : index
    %792 = vector.load %arg70[%c0_318, %c0_319] : memref<32x32xf32, #tpu.memory_space<vmem>>, vector<32x32xf32>
    %cst_320 = arith.constant dense<0.000000e+00> : vector<8x32xf32>
    %793 = tpu.matmul %791, %792, %cst_320 {dimension_numbers = #tpu.dot_dimension_numbers<[1], [0], [0], [1], [0, 0, 1, 1], [], []>} : vector<8x32xf32>, vector<32x32xf32>, vector<8x32xf32> -> vector<8x32xf32>
    %c0_321 = arith.constant 0 : index
    %c0_322 = arith.constant 0 : index
    %794 = vector.load %arg69[%c0_321, %c0_322] : memref<1x32xf32, #tpu.memory_space<vmem>>, vector<1x32xf32>
    %795 = vector.broadcast %794 : vector<1x32xf32> to vector<8x32xf32>
    %796 = arith.addf %793, %795 : vector<8x32xf32>
    %797 = arith.addf %796, %408 : vector<8x32xf32>
    %cst_323 = arith.constant dense<0.000000e+00> : vector<8xf32>
    %798 = vector.multi_reduction <add>, %797, %cst_323 [1] : vector<8x32xf32> to vector<8xf32>
    %799 = vector.shape_cast %798 : vector<8xf32> to vector<8x1xf32>
    %cst_324 = arith.constant 3.200000e+01 : f32
    %800 = vector.broadcast %cst_324 : f32 to vector<8x1xf32>
    %801 = arith.divf %799, %800 : vector<8x1xf32>
    %802 = vector.broadcast %801 : vector<8x1xf32> to vector<8x32xf32>
    %803 = arith.subf %797, %802 : vector<8x32xf32>
    %804 = arith.mulf %803, %803 : vector<8x32xf32>
    %cst_325 = arith.constant dense<0.000000e+00> : vector<8xf32>
    %805 = vector.multi_reduction <add>, %804, %cst_325 [1] : vector<8x32xf32> to vector<8xf32>
    %806 = vector.shape_cast %805 : vector<8xf32> to vector<8x1xf32>
    %cst_326 = arith.constant 3.200000e+01 : f32
    %807 = vector.broadcast %cst_326 : f32 to vector<8x1xf32>
    %808 = arith.divf %806, %807 : vector<8x1xf32>
    %809 = vector.broadcast %801 : vector<8x1xf32> to vector<8x32xf32>
    %810 = arith.subf %797, %809 : vector<8x32xf32>
    %cst_327 = arith.constant 9.99999996E-13 : f32
    %811 = vector.broadcast %cst_327 : f32 to vector<8x1xf32>
    %812 = arith.addf %808, %811 : vector<8x1xf32>
    %813 = math.rsqrt %812 : vector<8x1xf32>
    %814 = vector.broadcast %813 : vector<8x1xf32> to vector<8x32xf32>
    %815 = arith.mulf %810, %814 : vector<8x32xf32>
    %c0_328 = arith.constant 0 : index
    %c0_329 = arith.constant 0 : index
    %816 = vector.load %arg72[%c0_328, %c0_329] : memref<1x32xf32, #tpu.memory_space<vmem>>, vector<1x32xf32>
    %817 = vector.broadcast %816 : vector<1x32xf32> to vector<8x32xf32>
    %818 = arith.mulf %815, %817 : vector<8x32xf32>
    %c0_330 = arith.constant 0 : index
    %c0_331 = arith.constant 0 : index
    %819 = vector.load %arg71[%c0_330, %c0_331] : memref<1x32xf32, #tpu.memory_space<vmem>>, vector<1x32xf32>
    %820 = vector.broadcast %819 : vector<1x32xf32> to vector<8x32xf32>
    %821 = arith.addf %818, %820 : vector<8x32xf32>
    %c0_332 = arith.constant 0 : index
    %c0_333 = arith.constant 0 : index
    %822 = vector.load %arg80[%c0_332, %c0_333] : memref<32x96xf32, #tpu.memory_space<vmem>>, vector<32x96xf32>
    %c0_334 = arith.constant 0 : index
    %c0_335 = arith.constant 0 : index
    %823 = vector.load %arg79[%c0_334, %c0_335] : memref<1x96xf32, #tpu.memory_space<vmem>>, vector<1x96xf32>
    %cst_336 = arith.constant dense<0.000000e+00> : vector<8x96xf32>
    %824 = tpu.matmul %821, %822, %cst_336 {dimension_numbers = #tpu.dot_dimension_numbers<[1], [0], [0], [1], [0, 0, 1, 1], [], []>} : vector<8x32xf32>, vector<32x96xf32>, vector<8x96xf32> -> vector<8x96xf32>
    %825 = vector.broadcast %823 : vector<1x96xf32> to vector<8x96xf32>
    %826 = arith.addf %824, %825 : vector<8x96xf32>
    %827 = vector.extract_strided_slice %826 {offsets = [0, 0], sizes = [8, 32], strides = [1, 1]} : vector<8x96xf32> to vector<8x32xf32>
    %828 = vector.extract_strided_slice %826 {offsets = [0, 32], sizes = [8, 32], strides = [1, 1]} : vector<8x96xf32> to vector<8x32xf32>
    %829 = vector.extract_strided_slice %826 {offsets = [0, 64], sizes = [8, 32], strides = [1, 1]} : vector<8x96xf32> to vector<8x32xf32>
    %830 = vector.extract_strided_slice %827 {offsets = [0, 0], sizes = [8, 8], strides = [1, 1]} : vector<8x32xf32> to vector<8x8xf32>
    %831 = vector.extract_strided_slice %828 {offsets = [0, 0], sizes = [8, 8], strides = [1, 1]} : vector<8x32xf32> to vector<8x8xf32>
    %832 = vector.extract_strided_slice %829 {offsets = [0, 0], sizes = [8, 8], strides = [1, 1]} : vector<8x32xf32> to vector<8x8xf32>
    %cst_337 = arith.constant dense<0.000000e+00> : vector<8x8xf32>
    %833 = tpu.matmul %830, %831, %cst_337 {dimension_numbers = #tpu.dot_dimension_numbers<[1], [1], [0], [0], [0, 0, 1, 0], [], []>} : vector<8x8xf32>, vector<8x8xf32>, vector<8x8xf32> -> vector<8x8xf32>
    %cst_338 = arith.constant 0.353553385 : f32
    %834 = vector.broadcast %cst_338 : f32 to vector<8x8xf32>
    %835 = arith.mulf %833, %834 : vector<8x8xf32>
    %836 = vector.broadcast %92 : vector<1x8xf32> to vector<8x8xf32>
    %837 = arith.addf %835, %836 : vector<8x8xf32>
    %cst_339 = arith.constant dense<0xFF800000> : vector<8xf32>
    %838 = vector.multi_reduction <maximumf>, %837, %cst_339 [1] : vector<8x8xf32> to vector<8xf32>
    %839 = vector.shape_cast %838 : vector<8xf32> to vector<8x1xf32>
    %840 = vector.broadcast %839 : vector<8x1xf32> to vector<8x8xf32>
    %841 = arith.subf %837, %840 : vector<8x8xf32>
    %842 = math.exp %841 : vector<8x8xf32>
    %cst_340 = arith.constant dense<0.000000e+00> : vector<8xf32>
    %843 = vector.multi_reduction <add>, %842, %cst_340 [1] : vector<8x8xf32> to vector<8xf32>
    %844 = vector.shape_cast %843 : vector<8xf32> to vector<8x1xf32>
    %845 = tpu.reciprocal %844 {approx = true} : vector<8x1xf32> -> vector<8x1xf32>
    %846 = vector.broadcast %845 : vector<8x1xf32> to vector<8x8xf32>
    %847 = arith.mulf %842, %846 : vector<8x8xf32>
    %cst_341 = arith.constant dense<0.000000e+00> : vector<8x8xf32>
    %848 = tpu.matmul %847, %832, %cst_341 {dimension_numbers = #tpu.dot_dimension_numbers<[1], [0], [0], [1], [0, 0, 1, 1], [], []>} : vector<8x8xf32>, vector<8x8xf32>, vector<8x8xf32> -> vector<8x8xf32>
    %849 = vector.extract_strided_slice %827 {offsets = [0, 8], sizes = [8, 8], strides = [1, 1]} : vector<8x32xf32> to vector<8x8xf32>
    %850 = vector.extract_strided_slice %828 {offsets = [0, 8], sizes = [8, 8], strides = [1, 1]} : vector<8x32xf32> to vector<8x8xf32>
    %851 = vector.extract_strided_slice %829 {offsets = [0, 8], sizes = [8, 8], strides = [1, 1]} : vector<8x32xf32> to vector<8x8xf32>
    %cst_342 = arith.constant dense<0.000000e+00> : vector<8x8xf32>
    %852 = tpu.matmul %849, %850, %cst_342 {dimension_numbers = #tpu.dot_dimension_numbers<[1], [1], [0], [0], [0, 0, 1, 0], [], []>} : vector<8x8xf32>, vector<8x8xf32>, vector<8x8xf32> -> vector<8x8xf32>
    %cst_343 = arith.constant 0.353553385 : f32
    %853 = vector.broadcast %cst_343 : f32 to vector<8x8xf32>
    %854 = arith.mulf %852, %853 : vector<8x8xf32>
    %855 = vector.broadcast %92 : vector<1x8xf32> to vector<8x8xf32>
    %856 = arith.addf %854, %855 : vector<8x8xf32>
    %cst_344 = arith.constant dense<0xFF800000> : vector<8xf32>
    %857 = vector.multi_reduction <maximumf>, %856, %cst_344 [1] : vector<8x8xf32> to vector<8xf32>
    %858 = vector.shape_cast %857 : vector<8xf32> to vector<8x1xf32>
    %859 = vector.broadcast %858 : vector<8x1xf32> to vector<8x8xf32>
    %860 = arith.subf %856, %859 : vector<8x8xf32>
    %861 = math.exp %860 : vector<8x8xf32>
    %cst_345 = arith.constant dense<0.000000e+00> : vector<8xf32>
    %862 = vector.multi_reduction <add>, %861, %cst_345 [1] : vector<8x8xf32> to vector<8xf32>
    %863 = vector.shape_cast %862 : vector<8xf32> to vector<8x1xf32>
    %864 = tpu.reciprocal %863 {approx = true} : vector<8x1xf32> -> vector<8x1xf32>
    %865 = vector.broadcast %864 : vector<8x1xf32> to vector<8x8xf32>
    %866 = arith.mulf %861, %865 : vector<8x8xf32>
    %cst_346 = arith.constant dense<0.000000e+00> : vector<8x8xf32>
    %867 = tpu.matmul %866, %851, %cst_346 {dimension_numbers = #tpu.dot_dimension_numbers<[1], [0], [0], [1], [0, 0, 1, 1], [], []>} : vector<8x8xf32>, vector<8x8xf32>, vector<8x8xf32> -> vector<8x8xf32>
    %868 = vector.extract_strided_slice %827 {offsets = [0, 16], sizes = [8, 8], strides = [1, 1]} : vector<8x32xf32> to vector<8x8xf32>
    %869 = vector.extract_strided_slice %828 {offsets = [0, 16], sizes = [8, 8], strides = [1, 1]} : vector<8x32xf32> to vector<8x8xf32>
    %870 = vector.extract_strided_slice %829 {offsets = [0, 16], sizes = [8, 8], strides = [1, 1]} : vector<8x32xf32> to vector<8x8xf32>
    %cst_347 = arith.constant dense<0.000000e+00> : vector<8x8xf32>
    %871 = tpu.matmul %868, %869, %cst_347 {dimension_numbers = #tpu.dot_dimension_numbers<[1], [1], [0], [0], [0, 0, 1, 0], [], []>} : vector<8x8xf32>, vector<8x8xf32>, vector<8x8xf32> -> vector<8x8xf32>
    %cst_348 = arith.constant 0.353553385 : f32
    %872 = vector.broadcast %cst_348 : f32 to vector<8x8xf32>
    %873 = arith.mulf %871, %872 : vector<8x8xf32>
    %874 = vector.broadcast %92 : vector<1x8xf32> to vector<8x8xf32>
    %875 = arith.addf %873, %874 : vector<8x8xf32>
    %cst_349 = arith.constant dense<0xFF800000> : vector<8xf32>
    %876 = vector.multi_reduction <maximumf>, %875, %cst_349 [1] : vector<8x8xf32> to vector<8xf32>
    %877 = vector.shape_cast %876 : vector<8xf32> to vector<8x1xf32>
    %878 = vector.broadcast %877 : vector<8x1xf32> to vector<8x8xf32>
    %879 = arith.subf %875, %878 : vector<8x8xf32>
    %880 = math.exp %879 : vector<8x8xf32>
    %cst_350 = arith.constant dense<0.000000e+00> : vector<8xf32>
    %881 = vector.multi_reduction <add>, %880, %cst_350 [1] : vector<8x8xf32> to vector<8xf32>
    %882 = vector.shape_cast %881 : vector<8xf32> to vector<8x1xf32>
    %883 = tpu.reciprocal %882 {approx = true} : vector<8x1xf32> -> vector<8x1xf32>
    %884 = vector.broadcast %883 : vector<8x1xf32> to vector<8x8xf32>
    %885 = arith.mulf %880, %884 : vector<8x8xf32>
    %cst_351 = arith.constant dense<0.000000e+00> : vector<8x8xf32>
    %886 = tpu.matmul %885, %870, %cst_351 {dimension_numbers = #tpu.dot_dimension_numbers<[1], [0], [0], [1], [0, 0, 1, 1], [], []>} : vector<8x8xf32>, vector<8x8xf32>, vector<8x8xf32> -> vector<8x8xf32>
    %887 = vector.extract_strided_slice %827 {offsets = [0, 24], sizes = [8, 8], strides = [1, 1]} : vector<8x32xf32> to vector<8x8xf32>
    %888 = vector.extract_strided_slice %828 {offsets = [0, 24], sizes = [8, 8], strides = [1, 1]} : vector<8x32xf32> to vector<8x8xf32>
    %889 = vector.extract_strided_slice %829 {offsets = [0, 24], sizes = [8, 8], strides = [1, 1]} : vector<8x32xf32> to vector<8x8xf32>
    %cst_352 = arith.constant dense<0.000000e+00> : vector<8x8xf32>
    %890 = tpu.matmul %887, %888, %cst_352 {dimension_numbers = #tpu.dot_dimension_numbers<[1], [1], [0], [0], [0, 0, 1, 0], [], []>} : vector<8x8xf32>, vector<8x8xf32>, vector<8x8xf32> -> vector<8x8xf32>
    %cst_353 = arith.constant 0.353553385 : f32
    %891 = vector.broadcast %cst_353 : f32 to vector<8x8xf32>
    %892 = arith.mulf %890, %891 : vector<8x8xf32>
    %893 = vector.broadcast %92 : vector<1x8xf32> to vector<8x8xf32>
    %894 = arith.addf %892, %893 : vector<8x8xf32>
    %cst_354 = arith.constant dense<0xFF800000> : vector<8xf32>
    %895 = vector.multi_reduction <maximumf>, %894, %cst_354 [1] : vector<8x8xf32> to vector<8xf32>
    %896 = vector.shape_cast %895 : vector<8xf32> to vector<8x1xf32>
    %897 = vector.broadcast %896 : vector<8x1xf32> to vector<8x8xf32>
    %898 = arith.subf %894, %897 : vector<8x8xf32>
    %899 = math.exp %898 : vector<8x8xf32>
    %cst_355 = arith.constant dense<0.000000e+00> : vector<8xf32>
    %900 = vector.multi_reduction <add>, %899, %cst_355 [1] : vector<8x8xf32> to vector<8xf32>
    %901 = vector.shape_cast %900 : vector<8xf32> to vector<8x1xf32>
    %902 = tpu.reciprocal %901 {approx = true} : vector<8x1xf32> -> vector<8x1xf32>
    %903 = vector.broadcast %902 : vector<8x1xf32> to vector<8x8xf32>
    %904 = arith.mulf %899, %903 : vector<8x8xf32>
    %cst_356 = arith.constant dense<0.000000e+00> : vector<8x8xf32>
    %905 = tpu.matmul %904, %889, %cst_356 {dimension_numbers = #tpu.dot_dimension_numbers<[1], [0], [0], [1], [0, 0, 1, 1], [], []>} : vector<8x8xf32>, vector<8x8xf32>, vector<8x8xf32> -> vector<8x8xf32>
    %906 = tpu.concatenate %848, %867, %886, %905 in 1 : vector<8x8xf32>, vector<8x8xf32>, vector<8x8xf32>, vector<8x8xf32> -> vector<8x32xf32>
    %c0_357 = arith.constant 0 : index
    %c0_358 = arith.constant 0 : index
    %907 = vector.load %arg82[%c0_357, %c0_358] : memref<32x32xf32, #tpu.memory_space<vmem>>, vector<32x32xf32>
    %cst_359 = arith.constant dense<0.000000e+00> : vector<8x32xf32>
    %908 = tpu.matmul %906, %907, %cst_359 {dimension_numbers = #tpu.dot_dimension_numbers<[1], [0], [0], [1], [0, 0, 1, 1], [], []>} : vector<8x32xf32>, vector<32x32xf32>, vector<8x32xf32> -> vector<8x32xf32>
    %c0_360 = arith.constant 0 : index
    %c0_361 = arith.constant 0 : index
    %909 = vector.load %arg81[%c0_360, %c0_361] : memref<1x32xf32, #tpu.memory_space<vmem>>, vector<1x32xf32>
    %910 = vector.broadcast %909 : vector<1x32xf32> to vector<8x32xf32>
    %911 = arith.addf %908, %910 : vector<8x32xf32>
    %912 = arith.addf %911, %821 : vector<8x32xf32>
    %cst_362 = arith.constant dense<0.000000e+00> : vector<8xf32>
    %913 = vector.multi_reduction <add>, %912, %cst_362 [1] : vector<8x32xf32> to vector<8xf32>
    %914 = vector.shape_cast %913 : vector<8xf32> to vector<8x1xf32>
    %cst_363 = arith.constant 3.200000e+01 : f32
    %915 = vector.broadcast %cst_363 : f32 to vector<8x1xf32>
    %916 = arith.divf %914, %915 : vector<8x1xf32>
    %917 = vector.broadcast %916 : vector<8x1xf32> to vector<8x32xf32>
    %918 = arith.subf %912, %917 : vector<8x32xf32>
    %919 = arith.mulf %918, %918 : vector<8x32xf32>
    %cst_364 = arith.constant dense<0.000000e+00> : vector<8xf32>
    %920 = vector.multi_reduction <add>, %919, %cst_364 [1] : vector<8x32xf32> to vector<8xf32>
    %921 = vector.shape_cast %920 : vector<8xf32> to vector<8x1xf32>
    %cst_365 = arith.constant 3.200000e+01 : f32
    %922 = vector.broadcast %cst_365 : f32 to vector<8x1xf32>
    %923 = arith.divf %921, %922 : vector<8x1xf32>
    %924 = vector.broadcast %916 : vector<8x1xf32> to vector<8x32xf32>
    %925 = arith.subf %912, %924 : vector<8x32xf32>
    %cst_366 = arith.constant 9.99999996E-13 : f32
    %926 = vector.broadcast %cst_366 : f32 to vector<8x1xf32>
    %927 = arith.addf %923, %926 : vector<8x1xf32>
    %928 = math.rsqrt %927 : vector<8x1xf32>
    %929 = vector.broadcast %928 : vector<8x1xf32> to vector<8x32xf32>
    %930 = arith.mulf %925, %929 : vector<8x32xf32>
    %c0_367 = arith.constant 0 : index
    %c0_368 = arith.constant 0 : index
    %931 = vector.load %arg84[%c0_367, %c0_368] : memref<1x32xf32, #tpu.memory_space<vmem>>, vector<1x32xf32>
    %932 = vector.broadcast %931 : vector<1x32xf32> to vector<8x32xf32>
    %933 = arith.mulf %930, %932 : vector<8x32xf32>
    %c0_369 = arith.constant 0 : index
    %c0_370 = arith.constant 0 : index
    %934 = vector.load %arg83[%c0_369, %c0_370] : memref<1x32xf32, #tpu.memory_space<vmem>>, vector<1x32xf32>
    %935 = vector.broadcast %934 : vector<1x32xf32> to vector<8x32xf32>
    %936 = arith.addf %933, %935 : vector<8x32xf32>
    %c0_371 = arith.constant 0 : index
    %c0_372 = arith.constant 0 : index
    %937 = vector.load %arg74[%c0_371, %c0_372] : memref<32x64xf32, #tpu.memory_space<vmem>>, vector<32x64xf32>
    %cst_373 = arith.constant dense<0.000000e+00> : vector<8x64xf32>
    %938 = tpu.matmul %936, %937, %cst_373 {dimension_numbers = #tpu.dot_dimension_numbers<[1], [0], [0], [1], [0, 0, 1, 1], [], []>} : vector<8x32xf32>, vector<32x64xf32>, vector<8x64xf32> -> vector<8x64xf32>
    %c0_374 = arith.constant 0 : index
    %c0_375 = arith.constant 0 : index
    %939 = vector.load %arg73[%c0_374, %c0_375] : memref<1x64xf32, #tpu.memory_space<vmem>>, vector<1x64xf32>
    %940 = vector.broadcast %939 : vector<1x64xf32> to vector<8x64xf32>
    %941 = arith.addf %938, %940 : vector<8x64xf32>
    %cst_376 = arith.constant 5.000000e-01 : f32
    %942 = vector.broadcast %cst_376 : f32 to vector<8x64xf32>
    %943 = arith.mulf %942, %941 : vector<8x64xf32>
    %cst_377 = arith.constant 0.707106769 : f32
    %944 = vector.broadcast %cst_377 : f32 to vector<8x64xf32>
    %945 = arith.mulf %941, %944 : vector<8x64xf32>
    %946 = math.erf %945 : vector<8x64xf32>
    %cst_378 = arith.constant 1.000000e+00 : f32
    %947 = vector.broadcast %cst_378 : f32 to vector<8x64xf32>
    %948 = arith.addf %947, %946 : vector<8x64xf32>
    %949 = arith.mulf %943, %948 : vector<8x64xf32>
    %c0_379 = arith.constant 0 : index
    %c0_380 = arith.constant 0 : index
    %950 = vector.load %arg78[%c0_379, %c0_380] : memref<64x32xf32, #tpu.memory_space<vmem>>, vector<64x32xf32>
    %cst_381 = arith.constant dense<0.000000e+00> : vector<8x32xf32>
    %951 = tpu.matmul %949, %950, %cst_381 {dimension_numbers = #tpu.dot_dimension_numbers<[1], [0], [0], [1], [0, 0, 1, 1], [], []>} : vector<8x64xf32>, vector<64x32xf32>, vector<8x32xf32> -> vector<8x32xf32>
    %c0_382 = arith.constant 0 : index
    %c0_383 = arith.constant 0 : index
    %952 = vector.load %arg77[%c0_382, %c0_383] : memref<1x32xf32, #tpu.memory_space<vmem>>, vector<1x32xf32>
    %953 = vector.broadcast %952 : vector<1x32xf32> to vector<8x32xf32>
    %954 = arith.addf %951, %953 : vector<8x32xf32>
    %955 = arith.addf %954, %936 : vector<8x32xf32>
    %cst_384 = arith.constant dense<0.000000e+00> : vector<8xf32>
    %956 = vector.multi_reduction <add>, %955, %cst_384 [1] : vector<8x32xf32> to vector<8xf32>
    %957 = vector.shape_cast %956 : vector<8xf32> to vector<8x1xf32>
    %cst_385 = arith.constant 3.200000e+01 : f32
    %958 = vector.broadcast %cst_385 : f32 to vector<8x1xf32>
    %959 = arith.divf %957, %958 : vector<8x1xf32>
    %960 = vector.broadcast %959 : vector<8x1xf32> to vector<8x32xf32>
    %961 = arith.subf %955, %960 : vector<8x32xf32>
    %962 = arith.mulf %961, %961 : vector<8x32xf32>
    %cst_386 = arith.constant dense<0.000000e+00> : vector<8xf32>
    %963 = vector.multi_reduction <add>, %962, %cst_386 [1] : vector<8x32xf32> to vector<8xf32>
    %964 = vector.shape_cast %963 : vector<8xf32> to vector<8x1xf32>
    %cst_387 = arith.constant 3.200000e+01 : f32
    %965 = vector.broadcast %cst_387 : f32 to vector<8x1xf32>
    %966 = arith.divf %964, %965 : vector<8x1xf32>
    %967 = vector.broadcast %959 : vector<8x1xf32> to vector<8x32xf32>
    %968 = arith.subf %955, %967 : vector<8x32xf32>
    %cst_388 = arith.constant 9.99999996E-13 : f32
    %969 = vector.broadcast %cst_388 : f32 to vector<8x1xf32>
    %970 = arith.addf %966, %969 : vector<8x1xf32>
    %971 = math.rsqrt %970 : vector<8x1xf32>
    %972 = vector.broadcast %971 : vector<8x1xf32> to vector<8x32xf32>
    %973 = arith.mulf %968, %972 : vector<8x32xf32>
    %c0_389 = arith.constant 0 : index
    %c0_390 = arith.constant 0 : index
    %974 = vector.load %arg76[%c0_389, %c0_390] : memref<1x32xf32, #tpu.memory_space<vmem>>, vector<1x32xf32>
    %975 = vector.broadcast %974 : vector<1x32xf32> to vector<8x32xf32>
    %976 = arith.mulf %973, %975 : vector<8x32xf32>
    %c0_391 = arith.constant 0 : index
    %c0_392 = arith.constant 0 : index
    %977 = vector.load %arg75[%c0_391, %c0_392] : memref<1x32xf32, #tpu.memory_space<vmem>>, vector<1x32xf32>
    %978 = vector.broadcast %977 : vector<1x32xf32> to vector<8x32xf32>
    %979 = arith.addf %976, %978 : vector<8x32xf32>
    %980 = vector.extract_strided_slice %979 {offsets = [0, 0], sizes = [1, 32], strides = [1, 1]} : vector<8x32xf32> to vector<1x32xf32>
    %c0_393 = arith.constant 0 : index
    %c0_394 = arith.constant 0 : index
    %981 = vector.load %arg32[%c0_393, %c0_394] : memref<32x32xf32, #tpu.memory_space<vmem>>, vector<32x32xf32>
    %cst_395 = arith.constant dense<0.000000e+00> : vector<1x32xf32>
    %982 = tpu.matmul %980, %981, %cst_395 {dimension_numbers = #tpu.dot_dimension_numbers<[1], [0], [0], [1], [0, 0, 1, 1], [], []>} : vector<1x32xf32>, vector<32x32xf32>, vector<1x32xf32> -> vector<1x32xf32>
    %c0_396 = arith.constant 0 : index
    %c0_397 = arith.constant 0 : index
    %983 = vector.load %arg31[%c0_396, %c0_397] : memref<1x32xf32, #tpu.memory_space<vmem>>, vector<1x32xf32>
    %984 = arith.addf %982, %983 : vector<1x32xf32>
    %985 = math.tanh %984 : vector<1x32xf32>
    %c0_398 = arith.constant 0 : index
    %c0_399 = arith.constant 0 : index
    %986 = vector.load %arg58[%c0_398, %c0_399] : memref<32x2xf32, #tpu.memory_space<vmem>>, vector<32x2xf32>
    %cst_400 = arith.constant dense<0.000000e+00> : vector<1x2xf32>
    %987 = tpu.matmul %985, %986, %cst_400 {dimension_numbers = #tpu.dot_dimension_numbers<[1], [0], [0], [1], [0, 0, 1, 1], [], []>} : vector<1x32xf32>, vector<32x2xf32>, vector<1x2xf32> -> vector<1x2xf32>
    %c0_401 = arith.constant 0 : index
    %c0_402 = arith.constant 0 : index
    %988 = vector.load %arg57[%c0_401, %c0_402] : memref<1x2xf32, #tpu.memory_space<vmem>>, vector<1x2xf32>
    %989 = arith.addf %987, %988 : vector<1x2xf32>
    %c0_403 = arith.constant 0 : index
    %c0_404 = arith.constant 0 : index
    %c0_405 = arith.constant 0 : index
    %990 = vector.load %arg97[%c0_403, %c0_404, %c0_405] : memref<1x1x2xf32, #tpu.memory_space<vmem>>, vector<1x1x2xf32>
    %991 = vector.shape_cast %990 : vector<1x1x2xf32> to vector<1x2xf32>
    %992 = vector.shape_cast %989 : vector<1x2xf32> to vector<1x1x2xf32>
    tpu.vector_store %arg97[%c0_403, %c0_404, %c0_405], %992 {strides = array<i32>} : memref<1x1x2xf32, #tpu.memory_space<vmem>>, vector<1x1x2xf32>,
    return
  }
  func.func @transform_0(%arg0: i32) -> (i32, i32, i32) {
    %c0_i32 = arith.constant 0 : i32
    %c0_i32_0 = arith.constant 0 : i32
    %c0_i32_1 = arith.constant 0 : i32
    return %arg0, %c0_i32, %c0_i32_0 : i32, i32, i32
  }
  func.func @transform_1(%arg0: i32) -> (i32, i32, i32) {
    %c0_i32 = arith.constant 0 : i32
    %c0_i32_0 = arith.constant 0 : i32
    %c0_i32_1 = arith.constant 0 : i32
    return %arg0, %c0_i32, %c0_i32_0 : i32, i32, i32
  }
  func.func @transform_2(%arg0: i32) -> (i32, i32, i32) {
    %c0_i32 = arith.constant 0 : i32
    %c0_i32_0 = arith.constant 0 : i32
    %c0_i32_1 = arith.constant 0 : i32
    return %arg0, %c0_i32, %c0_i32_0 : i32, i32, i32
  }
  func.func @transform_3(%arg0: i32) -> (i32, i32, i32) {
    %c0_i32 = arith.constant 0 : i32
    %c0_i32_0 = arith.constant 0 : i32
    %c0_i32_1 = arith.constant 0 : i32
    return %arg0, %c0_i32, %c0_i32_0 : i32, i32, i32
  }
  func.func @transform_4(%arg0: i32) -> (i32, i32) {
    %c0_i32 = arith.constant 0 : i32
    %c0_i32_0 = arith.constant 0 : i32
    %c0_i32_1 = arith.constant 0 : i32
    return %c0_i32, %c0_i32_0 : i32, i32
  }
  func.func @transform_5(%arg0: i32) -> (i32, i32) {
    %c0_i32 = arith.constant 0 : i32
    %c0_i32_0 = arith.constant 0 : i32
    %c0_i32_1 = arith.constant 0 : i32
    return %c0_i32, %c0_i32_0 : i32, i32
  }
  func.func @transform_6(%arg0: i32) -> (i32, i32) {
    %c0_i32 = arith.constant 0 : i32
    %c0_i32_0 = arith.constant 0 : i32
    %c0_i32_1 = arith.constant 0 : i32
    return %c0_i32, %c0_i32_0 : i32, i32
  }
  func.func @transform_7(%arg0: i32) -> (i32, i32) {
    %c0_i32 = arith.constant 0 : i32
    %c0_i32_0 = arith.constant 0 : i32
    %c0_i32_1 = arith.constant 0 : i32
    return %c0_i32, %c0_i32_0 : i32, i32
  }
  func.func @transform_8(%arg0: i32) -> (i32, i32) {
    %c0_i32 = arith.constant 0 : i32
    %c0_i32_0 = arith.constant 0 : i32
    %c0_i32_1 = arith.constant 0 : i32
    return %c0_i32, %c0_i32_0 : i32, i32
  }
  func.func @transform_9(%arg0: i32) -> (i32, i32) {
    %c0_i32 = arith.constant 0 : i32
    %c0_i32_0 = arith.constant 0 : i32
    %c0_i32_1 = arith.constant 0 : i32
    return %c0_i32, %c0_i32_0 : i32, i32
  }
  func.func @transform_10(%arg0: i32) -> (i32, i32) {
    %c0_i32 = arith.constant 0 : i32
    %c0_i32_0 = arith.constant 0 : i32
    %c0_i32_1 = arith.constant 0 : i32
    return %c0_i32, %c0_i32_0 : i32, i32
  }
  func.func @transform_11(%arg0: i32) -> (i32, i32) {
    %c0_i32 = arith.constant 0 : i32
    %c0_i32_0 = arith.constant 0 : i32
    %c0_i32_1 = arith.constant 0 : i32
    return %c0_i32, %c0_i32_0 : i32, i32
  }
  func.func @transform_12(%arg0: i32) -> (i32, i32) {
    %c0_i32 = arith.constant 0 : i32
    %c0_i32_0 = arith.constant 0 : i32
    %c0_i32_1 = arith.constant 0 : i32
    return %c0_i32, %c0_i32_0 : i32, i32
  }
  func.func @transform_13(%arg0: i32) -> (i32, i32) {
    %c0_i32 = arith.constant 0 : i32
    %c0_i32_0 = arith.constant 0 : i32
    %c0_i32_1 = arith.constant 0 : i32
    return %c0_i32, %c0_i32_0 : i32, i32
  }
  func.func @transform_14(%arg0: i32) -> (i32, i32) {
    %c0_i32 = arith.constant 0 : i32
    %c0_i32_0 = arith.constant 0 : i32
    %c0_i32_1 = arith.constant 0 : i32
    return %c0_i32, %c0_i32_0 : i32, i32
  }
  func.func @transform_15(%arg0: i32) -> (i32, i32) {
    %c0_i32 = arith.constant 0 : i32
    %c0_i32_0 = arith.constant 0 : i32
    %c0_i32_1 = arith.constant 0 : i32
    return %c0_i32, %c0_i32_0 : i32, i32
  }
  func.func @transform_16(%arg0: i32) -> (i32, i32) {
    %c0_i32 = arith.constant 0 : i32
    %c0_i32_0 = arith.constant 0 : i32
    %c0_i32_1 = arith.constant 0 : i32
    return %c0_i32, %c0_i32_0 : i32, i32
  }
  func.func @transform_17(%arg0: i32) -> (i32, i32) {
    %c0_i32 = arith.constant 0 : i32
    %c0_i32_0 = arith.constant 0 : i32
    %c0_i32_1 = arith.constant 0 : i32
    return %c0_i32, %c0_i32_0 : i32, i32
  }
  func.func @transform_18(%arg0: i32) -> (i32, i32) {
    %c0_i32 = arith.constant 0 : i32
    %c0_i32_0 = arith.constant 0 : i32
    %c0_i32_1 = arith.constant 0 : i32
    return %c0_i32, %c0_i32_0 : i32, i32
  }
  func.func @transform_19(%arg0: i32) -> (i32, i32) {
    %c0_i32 = arith.constant 0 : i32
    %c0_i32_0 = arith.constant 0 : i32
    %c0_i32_1 = arith.constant 0 : i32
    return %c0_i32, %c0_i32_0 : i32, i32
  }
  func.func @transform_20(%arg0: i32) -> (i32, i32) {
    %c0_i32 = arith.constant 0 : i32
    %c0_i32_0 = arith.constant 0 : i32
    %c0_i32_1 = arith.constant 0 : i32
    return %c0_i32, %c0_i32_0 : i32, i32
  }
  func.func @transform_21(%arg0: i32) -> (i32, i32) {
    %c0_i32 = arith.constant 0 : i32
    %c0_i32_0 = arith.constant 0 : i32
    %c0_i32_1 = arith.constant 0 : i32
    return %c0_i32, %c0_i32_0 : i32, i32
  }
  func.func @transform_22(%arg0: i32) -> (i32, i32) {
    %c0_i32 = arith.constant 0 : i32
    %c0_i32_0 = arith.constant 0 : i32
    %c0_i32_1 = arith.constant 0 : i32
    return %c0_i32, %c0_i32_0 : i32, i32
  }
  func.func @transform_23(%arg0: i32) -> (i32, i32) {
    %c0_i32 = arith.constant 0 : i32
    %c0_i32_0 = arith.constant 0 : i32
    %c0_i32_1 = arith.constant 0 : i32
    return %c0_i32, %c0_i32_0 : i32, i32
  }
  func.func @transform_24(%arg0: i32) -> (i32, i32) {
    %c0_i32 = arith.constant 0 : i32
    %c0_i32_0 = arith.constant 0 : i32
    %c0_i32_1 = arith.constant 0 : i32
    return %c0_i32, %c0_i32_0 : i32, i32
  }
  func.func @transform_25(%arg0: i32) -> (i32, i32) {
    %c0_i32 = arith.constant 0 : i32
    %c0_i32_0 = arith.constant 0 : i32
    %c0_i32_1 = arith.constant 0 : i32
    return %c0_i32, %c0_i32_0 : i32, i32
  }
  func.func @transform_26(%arg0: i32) -> (i32, i32) {
    %c0_i32 = arith.constant 0 : i32
    %c0_i32_0 = arith.constant 0 : i32
    %c0_i32_1 = arith.constant 0 : i32
    return %c0_i32, %c0_i32_0 : i32, i32
  }
  func.func @transform_27(%arg0: i32) -> (i32, i32) {
    %c0_i32 = arith.constant 0 : i32
    %c0_i32_0 = arith.constant 0 : i32
    %c0_i32_1 = arith.constant 0 : i32
    return %c0_i32, %c0_i32_0 : i32, i32
  }
  func.func @transform_28(%arg0: i32) -> (i32, i32) {
    %c0_i32 = arith.constant 0 : i32
    %c0_i32_0 = arith.constant 0 : i32
    %c0_i32_1 = arith.constant 0 : i32
    return %c0_i32, %c0_i32_0 : i32, i32
  }
  func.func @transform_29(%arg0: i32) -> (i32, i32) {
    %c0_i32 = arith.constant 0 : i32
    %c0_i32_0 = arith.constant 0 : i32
    %c0_i32_1 = arith.constant 0 : i32
    return %c0_i32, %c0_i32_0 : i32, i32
  }
  func.func @transform_30(%arg0: i32) -> (i32, i32) {
    %c0_i32 = arith.constant 0 : i32
    %c0_i32_0 = arith.constant 0 : i32
    %c0_i32_1 = arith.constant 0 : i32
    return %c0_i32, %c0_i32_0 : i32, i32
  }
  func.func @transform_31(%arg0: i32) -> (i32, i32) {
    %c0_i32 = arith.constant 0 : i32
    %c0_i32_0 = arith.constant 0 : i32
    %c0_i32_1 = arith.constant 0 : i32
    return %c0_i32, %c0_i32_0 : i32, i32
  }
  func.func @transform_32(%arg0: i32) -> (i32, i32) {
    %c0_i32 = arith.constant 0 : i32
    %c0_i32_0 = arith.constant 0 : i32
    %c0_i32_1 = arith.constant 0 : i32
    return %c0_i32, %c0_i32_0 : i32, i32
  }
  func.func @transform_33(%arg0: i32) -> (i32, i32) {
    %c0_i32 = arith.constant 0 : i32
    %c0_i32_0 = arith.constant 0 : i32
    %c0_i32_1 = arith.constant 0 : i32
    return %c0_i32, %c0_i32_0 : i32, i32
  }
  func.func @transform_34(%arg0: i32) -> (i32, i32) {
    %c0_i32 = arith.constant 0 : i32
    %c0_i32_0 = arith.constant 0 : i32
    %c0_i32_1 = arith.constant 0 : i32
    return %c0_i32, %c0_i32_0 : i32, i32
  }
  func.func @transform_35(%arg0: i32) -> (i32, i32) {
    %c0_i32 = arith.constant 0 : i32
    %c0_i32_0 = arith.constant 0 : i32
    %c0_i32_1 = arith.constant 0 : i32
    return %c0_i32, %c0_i32_0 : i32, i32
  }
  func.func @transform_36(%arg0: i32) -> (i32, i32) {
    %c0_i32 = arith.constant 0 : i32
    %c0_i32_0 = arith.constant 0 : i32
    %c0_i32_1 = arith.constant 0 : i32
    return %c0_i32, %c0_i32_0 : i32, i32
  }
  func.func @transform_37(%arg0: i32) -> (i32, i32) {
    %c0_i32 = arith.constant 0 : i32
    %c0_i32_0 = arith.constant 0 : i32
    %c0_i32_1 = arith.constant 0 : i32
    return %c0_i32, %c0_i32_0 : i32, i32
  }
  func.func @transform_38(%arg0: i32) -> (i32, i32) {
    %c0_i32 = arith.constant 0 : i32
    %c0_i32_0 = arith.constant 0 : i32
    %c0_i32_1 = arith.constant 0 : i32
    return %c0_i32, %c0_i32_0 : i32, i32
  }
  func.func @transform_39(%arg0: i32) -> (i32, i32) {
    %c0_i32 = arith.constant 0 : i32
    %c0_i32_0 = arith.constant 0 : i32
    %c0_i32_1 = arith.constant 0 : i32
    return %c0_i32, %c0_i32_0 : i32, i32
  }
  func.func @transform_40(%arg0: i32) -> (i32, i32) {
    %c0_i32 = arith.constant 0 : i32
    %c0_i32_0 = arith.constant 0 : i32
    %c0_i32_1 = arith.constant 0 : i32
    return %c0_i32, %c0_i32_0 : i32, i32
  }
  func.func @transform_41(%arg0: i32) -> (i32, i32) {
    %c0_i32 = arith.constant 0 : i32
    %c0_i32_0 = arith.constant 0 : i32
    %c0_i32_1 = arith.constant 0 : i32
    return %c0_i32, %c0_i32_0 : i32, i32
  }
  func.func @transform_42(%arg0: i32) -> (i32, i32) {
    %c0_i32 = arith.constant 0 : i32
    %c0_i32_0 = arith.constant 0 : i32
    %c0_i32_1 = arith.constant 0 : i32
    return %c0_i32, %c0_i32_0 : i32, i32
  }
  func.func @transform_43(%arg0: i32) -> (i32, i32) {
    %c0_i32 = arith.constant 0 : i32
    %c0_i32_0 = arith.constant 0 : i32
    %c0_i32_1 = arith.constant 0 : i32
    return %c0_i32, %c0_i32_0 : i32, i32
  }
  func.func @transform_44(%arg0: i32) -> (i32, i32) {
    %c0_i32 = arith.constant 0 : i32
    %c0_i32_0 = arith.constant 0 : i32
    %c0_i32_1 = arith.constant 0 : i32
    return %c0_i32, %c0_i32_0 : i32, i32
  }
  func.func @transform_45(%arg0: i32) -> (i32, i32) {
    %c0_i32 = arith.constant 0 : i32
    %c0_i32_0 = arith.constant 0 : i32
    %c0_i32_1 = arith.constant 0 : i32
    return %c0_i32, %c0_i32_0 : i32, i32
  }
  func.func @transform_46(%arg0: i32) -> (i32, i32) {
    %c0_i32 = arith.constant 0 : i32
    %c0_i32_0 = arith.constant 0 : i32
    %c0_i32_1 = arith.constant 0 : i32
    return %c0_i32, %c0_i32_0 : i32, i32
  }
  func.func @transform_47(%arg0: i32) -> (i32, i32) {
    %c0_i32 = arith.constant 0 : i32
    %c0_i32_0 = arith.constant 0 : i32
    %c0_i32_1 = arith.constant 0 : i32
    return %c0_i32, %c0_i32_0 : i32, i32
  }
  func.func @transform_48(%arg0: i32) -> (i32, i32) {
    %c0_i32 = arith.constant 0 : i32
    %c0_i32_0 = arith.constant 0 : i32
    %c0_i32_1 = arith.constant 0 : i32
    return %c0_i32, %c0_i32_0 : i32, i32
  }
  func.func @transform_49(%arg0: i32) -> (i32, i32) {
    %c0_i32 = arith.constant 0 : i32
    %c0_i32_0 = arith.constant 0 : i32
    %c0_i32_1 = arith.constant 0 : i32
    return %c0_i32, %c0_i32_0 : i32, i32
  }
  func.func @transform_50(%arg0: i32) -> (i32, i32) {
    %c0_i32 = arith.constant 0 : i32
    %c0_i32_0 = arith.constant 0 : i32
    %c0_i32_1 = arith.constant 0 : i32
    return %c0_i32, %c0_i32_0 : i32, i32
  }
  func.func @transform_51(%arg0: i32) -> (i32, i32) {
    %c0_i32 = arith.constant 0 : i32
    %c0_i32_0 = arith.constant 0 : i32
    %c0_i32_1 = arith.constant 0 : i32
    return %c0_i32, %c0_i32_0 : i32, i32
  }
  func.func @transform_52(%arg0: i32) -> (i32, i32) {
    %c0_i32 = arith.constant 0 : i32
    %c0_i32_0 = arith.constant 0 : i32
    %c0_i32_1 = arith.constant 0 : i32
    return %c0_i32, %c0_i32_0 : i32, i32
  }
  func.func @transform_53(%arg0: i32) -> (i32, i32) {
    %c0_i32 = arith.constant 0 : i32
    %c0_i32_0 = arith.constant 0 : i32
    %c0_i32_1 = arith.constant 0 : i32
    return %c0_i32, %c0_i32_0 : i32, i32
  }
  func.func @transform_54(%arg0: i32) -> (i32, i32) {
    %c0_i32 = arith.constant 0 : i32
    %c0_i32_0 = arith.constant 0 : i32
    %c0_i32_1 = arith.constant 0 : i32
    return %c0_i32, %c0_i32_0 : i32, i32
  }
  func.func @transform_55(%arg0: i32) -> (i32, i32) {
    %c0_i32 = arith.constant 0 : i32
    %c0_i32_0 = arith.constant 0 : i32
    %c0_i32_1 = arith.constant 0 : i32
    return %c0_i32, %c0_i32_0 : i32, i32
  }
  func.func @transform_56(%arg0: i32) -> (i32, i32) {
    %c0_i32 = arith.constant 0 : i32
    %c0_i32_0 = arith.constant 0 : i32
    %c0_i32_1 = arith.constant 0 : i32
    return %c0_i32, %c0_i32_0 : i32, i32
  }
  func.func @transform_57(%arg0: i32) -> (i32, i32) {
    %c0_i32 = arith.constant 0 : i32
    %c0_i32_0 = arith.constant 0 : i32
    %c0_i32_1 = arith.constant 0 : i32
    return %c0_i32, %c0_i32_0 : i32, i32
  }
  func.func @transform_58(%arg0: i32) -> (i32, i32) {
    %c0_i32 = arith.constant 0 : i32
    %c0_i32_0 = arith.constant 0 : i32
    %c0_i32_1 = arith.constant 0 : i32
    return %c0_i32, %c0_i32_0 : i32, i32
  }
  func.func @transform_59(%arg0: i32) -> (i32, i32) {
    %c0_i32 = arith.constant 0 : i32
    %c0_i32_0 = arith.constant 0 : i32
    %c0_i32_1 = arith.constant 0 : i32
    return %c0_i32, %c0_i32_0 : i32, i32
  }
  func.func @transform_60(%arg0: i32) -> (i32, i32) {
    %c0_i32 = arith.constant 0 : i32
    %c0_i32_0 = arith.constant 0 : i32
    %c0_i32_1 = arith.constant 0 : i32
    return %c0_i32, %c0_i32_0 : i32, i32
  }
  func.func @transform_61(%arg0: i32) -> (i32, i32) {
    %c0_i32 = arith.constant 0 : i32
    %c0_i32_0 = arith.constant 0 : i32
    %c0_i32_1 = arith.constant 0 : i32
    return %c0_i32, %c0_i32_0 : i32, i32
  }
  func.func @transform_62(%arg0: i32) -> (i32, i32) {
    %c0_i32 = arith.constant 0 : i32
    %c0_i32_0 = arith.constant 0 : i32
    %c0_i32_1 = arith.constant 0 : i32
    return %c0_i32, %c0_i32_0 : i32, i32
  }
  func.func @transform_63(%arg0: i32) -> (i32, i32) {
    %c0_i32 = arith.constant 0 : i32
    %c0_i32_0 = arith.constant 0 : i32
    %c0_i32_1 = arith.constant 0 : i32
    return %c0_i32, %c0_i32_0 : i32, i32
  }
  func.func @transform_64(%arg0: i32) -> (i32, i32) {
    %c0_i32 = arith.constant 0 : i32
    %c0_i32_0 = arith.constant 0 : i32
    %c0_i32_1 = arith.constant 0 : i32
    return %c0_i32, %c0_i32_0 : i32, i32
  }
  func.func @transform_65(%arg0: i32) -> (i32, i32) {
    %c0_i32 = arith.constant 0 : i32
    %c0_i32_0 = arith.constant 0 : i32
    %c0_i32_1 = arith.constant 0 : i32
    return %c0_i32, %c0_i32_0 : i32, i32
  }
  func.func @transform_66(%arg0: i32) -> (i32, i32) {
    %c0_i32 = arith.constant 0 : i32
    %c0_i32_0 = arith.constant 0 : i32
    %c0_i32_1 = arith.constant 0 : i32
    return %c0_i32, %c0_i32_0 : i32, i32
  }
  func.func @transform_67(%arg0: i32) -> (i32, i32) {
    %c0_i32 = arith.constant 0 : i32
    %c0_i32_0 = arith.constant 0 : i32
    %c0_i32_1 = arith.constant 0 : i32
    return %c0_i32, %c0_i32_0 : i32, i32
  }
  func.func @transform_68(%arg0: i32) -> (i32, i32) {
    %c0_i32 = arith.constant 0 : i32
    %c0_i32_0 = arith.constant 0 : i32
    %c0_i32_1 = arith.constant 0 : i32
    return %c0_i32, %c0_i32_0 : i32, i32
  }
  func.func @transform_69(%arg0: i32) -> (i32, i32) {
    %c0_i32 = arith.constant 0 : i32
    %c0_i32_0 = arith.constant 0 : i32
    %c0_i32_1 = arith.constant 0 : i32
    return %c0_i32, %c0_i32_0 : i32, i32
  }
  func.func @transform_70(%arg0: i32) -> (i32, i32) {
    %c0_i32 = arith.constant 0 : i32
    %c0_i32_0 = arith.constant 0 : i32
    %c0_i32_1 = arith.constant 0 : i32
    return %c0_i32, %c0_i32_0 : i32, i32
  }
  func.func @transform_71(%arg0: i32) -> (i32, i32) {
    %c0_i32 = arith.constant 0 : i32
    %c0_i32_0 = arith.constant 0 : i32
    %c0_i32_1 = arith.constant 0 : i32
    return %c0_i32, %c0_i32_0 : i32, i32
  }
  func.func @transform_72(%arg0: i32) -> (i32, i32) {
    %c0_i32 = arith.constant 0 : i32
    %c0_i32_0 = arith.constant 0 : i32
    %c0_i32_1 = arith.constant 0 : i32
    return %c0_i32, %c0_i32_0 : i32, i32
  }
  func.func @transform_73(%arg0: i32) -> (i32, i32) {
    %c0_i32 = arith.constant 0 : i32
    %c0_i32_0 = arith.constant 0 : i32
    %c0_i32_1 = arith.constant 0 : i32
    return %c0_i32, %c0_i32_0 : i32, i32
  }
  func.func @transform_74(%arg0: i32) -> (i32, i32) {
    %c0_i32 = arith.constant 0 : i32
    %c0_i32_0 = arith.constant 0 : i32
    %c0_i32_1 = arith.constant 0 : i32
    return %c0_i32, %c0_i32_0 : i32, i32
  }
  func.func @transform_75(%arg0: i32) -> (i32, i32) {
    %c0_i32 = arith.constant 0 : i32
    %c0_i32_0 = arith.constant 0 : i32
    %c0_i32_1 = arith.constant 0 : i32
    return %c0_i32, %c0_i32_0 : i32, i32
  }
  func.func @transform_76(%arg0: i32) -> (i32, i32) {
    %c0_i32 = arith.constant 0 : i32
    %c0_i32_0 = arith.constant 0 : i32
    %c0_i32_1 = arith.constant 0 : i32
    return %c0_i32, %c0_i32_0 : i32, i32
  }
  func.func @transform_77(%arg0: i32) -> (i32, i32) {
    %c0_i32 = arith.constant 0 : i32
    %c0_i32_0 = arith.constant 0 : i32
    %c0_i32_1 = arith.constant 0 : i32
    return %c0_i32, %c0_i32_0 : i32, i32
  }
  func.func @transform_78(%arg0: i32) -> (i32, i32) {
    %c0_i32 = arith.constant 0 : i32
    %c0_i32_0 = arith.constant 0 : i32
    %c0_i32_1 = arith.constant 0 : i32
    return %c0_i32, %c0_i32_0 : i32, i32
  }
  func.func @transform_79(%arg0: i32) -> (i32, i32) {
    %c0_i32 = arith.constant 0 : i32
    %c0_i32_0 = arith.constant 0 : i32
    %c0_i32_1 = arith.constant 0 : i32
    return %c0_i32, %c0_i32_0 : i32, i32
  }
  func.func @transform_80(%arg0: i32) -> (i32, i32) {
    %c0_i32 = arith.constant 0 : i32
    %c0_i32_0 = arith.constant 0 : i32
    %c0_i32_1 = arith.constant 0 : i32
    return %c0_i32, %c0_i32_0 : i32, i32
  }
  func.func @transform_81(%arg0: i32) -> (i32, i32) {
    %c0_i32 = arith.constant 0 : i32
    %c0_i32_0 = arith.constant 0 : i32
    %c0_i32_1 = arith.constant 0 : i32
    return %c0_i32, %c0_i32_0 : i32, i32
  }
  func.func @transform_82(%arg0: i32) -> (i32, i32) {
    %c0_i32 = arith.constant 0 : i32
    %c0_i32_0 = arith.constant 0 : i32
    %c0_i32_1 = arith.constant 0 : i32
    return %c0_i32, %c0_i32_0 : i32, i32
  }
  func.func @transform_83(%arg0: i32) -> (i32, i32) {
    %c0_i32 = arith.constant 0 : i32
    %c0_i32_0 = arith.constant 0 : i32
    %c0_i32_1 = arith.constant 0 : i32
    return %c0_i32, %c0_i32_0 : i32, i32
  }
  func.func @transform_84(%arg0: i32) -> (i32, i32) {
    %c0_i32 = arith.constant 0 : i32
    %c0_i32_0 = arith.constant 0 : i32
    %c0_i32_1 = arith.constant 0 : i32
    return %c0_i32, %c0_i32_0 : i32, i32
  }
  func.func @transform_85(%arg0: i32) -> (i32, i32) {
    %c0_i32 = arith.constant 0 : i32
    %c0_i32_0 = arith.constant 0 : i32
    %c0_i32_1 = arith.constant 0 : i32
    return %c0_i32, %c0_i32_0 : i32, i32
  }
  func.func @transform_86(%arg0: i32) -> (i32, i32) {
    %c0_i32 = arith.constant 0 : i32
    %c0_i32_0 = arith.constant 0 : i32
    %c0_i32_1 = arith.constant 0 : i32
    return %c0_i32, %c0_i32_0 : i32, i32
  }
  func.func @transform_87(%arg0: i32) -> (i32, i32) {
    %c0_i32 = arith.constant 0 : i32
    %c0_i32_0 = arith.constant 0 : i32
    %c0_i32_1 = arith.constant 0 : i32
    return %c0_i32, %c0_i32_0 : i32, i32
  }
  func.func @transform_88(%arg0: i32) -> (i32, i32) {
    %c0_i32 = arith.constant 0 : i32
    %c0_i32_0 = arith.constant 0 : i32
    %c0_i32_1 = arith.constant 0 : i32
    return %c0_i32, %c0_i32_0 : i32, i32
  }
  func.func @transform_89(%arg0: i32) -> (i32, i32) {
    %c0_i32 = arith.constant 0 : i32
    %c0_i32_0 = arith.constant 0 : i32
    %c0_i32_1 = arith.constant 0 : i32
    return %c0_i32, %c0_i32_0 : i32, i32
  }
  func.func @transform_90(%arg0: i32) -> (i32, i32) {
    %c0_i32 = arith.constant 0 : i32
    %c0_i32_0 = arith.constant 0 : i32
    %c0_i32_1 = arith.constant 0 : i32
    return %c0_i32, %c0_i32_0 : i32, i32
  }
  func.func @transform_91(%arg0: i32) -> (i32, i32) {
    %c0_i32 = arith.constant 0 : i32
    %c0_i32_0 = arith.constant 0 : i32
    %c0_i32_1 = arith.constant 0 : i32
    return %c0_i32, %c0_i32_0 : i32, i32
  }
  func.func @transform_92(%arg0: i32) -> (i32, i32) {
    %c0_i32 = arith.constant 0 : i32
    %c0_i32_0 = arith.constant 0 : i32
    %c0_i32_1 = arith.constant 0 : i32
    return %c0_i32, %c0_i32_0 : i32, i32
  }
  func.func @transform_93(%arg0: i32) -> (i32, i32) {
    %c0_i32 = arith.constant 0 : i32
    %c0_i32_0 = arith.constant 0 : i32
    %c0_i32_1 = arith.constant 0 : i32
    return %c0_i32, %c0_i32_0 : i32, i32
  }
  func.func @transform_94(%arg0: i32) -> (i32, i32) {
    %c0_i32 = arith.constant 0 : i32
    %c0_i32_0 = arith.constant 0 : i32
    %c0_i32_1 = arith.constant 0 : i32
    return %c0_i32, %c0_i32_0 : i32, i32
  }
  func.func @transform_95(%arg0: i32) -> (i32, i32) {
    %c0_i32 = arith.constant 0 : i32
    %c0_i32_0 = arith.constant 0 : i32
    %c0_i32_1 = arith.constant 0 : i32
    return %c0_i32, %c0_i32_0 : i32, i32
  }
  func.func @transform_96(%arg0: i32) -> (i32, i32, i32) {
    %c0_i32 = arith.constant 0 : i32
    %c0_i32_0 = arith.constant 0 : i32
    %c0_i32_1 = arith.constant 0 : i32
    return %arg0, %c0_i32, %c0_i32_0 : i32, i32, i32
  }
}

</mosaic_0001>

<llo_original>
// kernel: lxmert_binary_cls_forward.1
$region0: #{lxmert_binary_cls_forward.1}
  #allocation0 [shape = 'u32[]', space=smem, size = 0x4, offset = 0x4, fixed_abs, tag = 'smem constant byte address 0x4 - core index']
  #allocation1 [shape = 'u32[72,128]{1,0:T(1,128)}', space=vmem, size = 0x9000, scoped, tag = 'internal scratch']
  %s0 = inlined_call_operand.smem [shape: u32[97], index: -1, kind: input, shape index: {}]
  %s1 = sld [smem:[%s0]]
  %s2 = scalar_lea.smem %s0, 1
  %s3 = sld [smem:[%s2]]
  %s4 = scalar_lea.smem %s0, 2
  %s5 = sld [smem:[%s4]]
  %s6 = scalar_lea.smem %s0, 3
  %s7 = sld [smem:[%s6]]
  %s8 = scalar_lea.smem %s0, 4
  %s9 = sld [smem:[%s8]]
  %s10 = scalar_lea.smem %s0, 5
  %s11 = sld [smem:[%s10]]
  %s12 = scalar_lea.smem %s0, 6
  %s13 = sld [smem:[%s12]]
  %s14 = scalar_lea.smem %s0, 7
  %s15 = sld [smem:[%s14]]
  %s16 = scalar_lea.smem %s0, 8
  %s17 = sld [smem:[%s16]]
  %s18 = scalar_lea.smem %s0, 9
  %s19 = sld [smem:[%s18]]
  %s20 = scalar_lea.smem %s0, 10
  %s21 = sld [smem:[%s20]]
  %s22 = scalar_lea.smem %s0, 11
  %s23 = sld [smem:[%s22]]
  %s24 = scalar_lea.smem %s0, 12
  %s25 = sld [smem:[%s24]]
  %s26 = scalar_lea.smem %s0, 13
  %s27 = sld [smem:[%s26]]
  %s28 = scalar_lea.smem %s0, 14
  %s29 = sld [smem:[%s28]]
  %s30 = scalar_lea.smem %s0, 15
  %s31 = sld [smem:[%s30]]
  %s32 = scalar_lea.smem %s0, 16
  %s33 = sld [smem:[%s32]]
  %s34 = scalar_lea.smem %s0, 17
  %s35 = sld [smem:[%s34]]
  %s36 = scalar_lea.smem %s0, 18
  %s37 = sld [smem:[%s36]]
  %s38 = scalar_lea.smem %s0, 19
  %s39 = sld [smem:[%s38]]
  %s40 = scalar_lea.smem %s0, 20
  %s41 = sld [smem:[%s40]]
  %s42 = scalar_lea.smem %s0, 21
  %s43 = sld [smem:[%s42]]
  %s44 = scalar_lea.smem %s0, 22
  %s45 = sld [smem:[%s44]]
  %s46 = scalar_lea.smem %s0, 23
  %s47 = sld [smem:[%s46]]
  %s48 = scalar_lea.smem %s0, 24
  %s49 = sld [smem:[%s48]]
  %s50 = scalar_lea.smem %s0, 25
  %s51 = sld [smem:[%s50]]
  %s52 = scalar_lea.smem %s0, 26
  %s53 = sld [smem:[%s52]]
  %s54 = scalar_lea.smem %s0, 27
  %s55 = sld [smem:[%s54]]
  %s56 = scalar_lea.smem %s0, 28
  %s57 = sld [smem:[%s56]]
  %s58 = scalar_lea.smem %s0, 29
  %s59 = sld [smem:[%s58]]
  %s60 = scalar_lea.smem %s0, 30
  %s61 = sld [smem:[%s60]]
  %s62 = scalar_lea.smem %s0, 31
  %s63 = sld [smem:[%s62]]
  %s64 = scalar_lea.smem %s0, 32
  %s65 = sld [smem:[%s64]]
  %s66 = scalar_lea.smem %s0, 33
  %s67 = sld [smem:[%s66]]
  %s68 = scalar_lea.smem %s0, 34
  %s69 = sld [smem:[%s68]]
  %s70 = scalar_lea.smem %s0, 35
  %s71 = sld [smem:[%s70]]
  %s72 = scalar_lea.smem %s0, 36
  %s73 = sld [smem:[%s72]]
  %s74 = scalar_lea.smem %s0, 37
  %s75 = sld [smem:[%s74]]
  %s76 = scalar_lea.smem %s0, 38
  %s77 = sld [smem:[%s76]]
  %s78 = scalar_lea.smem %s0, 39
  %s79 = sld [smem:[%s78]]
  %s80 = scalar_lea.smem %s0, 40
  %s81 = sld [smem:[%s80]]
  %s82 = scalar_lea.smem %s0, 41
  %s83 = sld [smem:[%s82]]
  %s84 = scalar_lea.smem %s0, 42
  %s85 = sld [smem:[%s84]]
  %s86 = scalar_lea.smem %s0, 43
  %s87 = sld [smem:[%s86]]
  %s88 = scalar_lea.smem %s0, 44
  %s89 = sld [smem:[%s88]]
  %s90 = scalar_lea.smem %s0, 45
  %s91 = sld [smem:[%s90]]
  %s92 = scalar_lea.smem %s0, 46
  %s93 = sld [smem:[%s92]]
  %s94 = scalar_lea.smem %s0, 47
  %s95 = sld [smem:[%s94]]
  %s96 = scalar_lea.smem %s0, 48
  %s97 = sld [smem:[%s96]]
  %s98 = scalar_lea.smem %s0, 49
  %s99 = sld [smem:[%s98]]
  %s100 = scalar_lea.smem %s0, 50
  %s101 = sld [smem:[%s100]]
  %s102 = scalar_lea.smem %s0, 51
  %s103 = sld [smem:[%s102]]
  %s104 = scalar_lea.smem %s0, 52
  %s105 = sld [smem:[%s104]]
  %s106 = scalar_lea.smem %s0, 53
  %s107 = sld [smem:[%s106]]
  %s108 = scalar_lea.smem %s0, 54
  %s109 = sld [smem:[%s108]]
  %s110 = scalar_lea.smem %s0, 55
  %s111 = sld [smem:[%s110]]
  %s112 = scalar_lea.smem %s0, 56
  %s113 = sld [smem:[%s112]]
  %s114 = scalar_lea.smem %s0, 57
  %s115 = sld [smem:[%s114]]
  %s116 = scalar_lea.smem %s0, 58
  %s117 = sld [smem:[%s116]]
  %s118 = scalar_lea.smem %s0, 59
  %s119 = sld [smem:[%s118]]
  %s120 = scalar_lea.smem %s0, 60
  %s121 = sld [smem:[%s120]]
  %s122 = scalar_lea.smem %s0, 61
  %s123 = sld [smem:[%s122]]
  %s124 = scalar_lea.smem %s0, 62
  %s125 = sld [smem:[%s124]]
  %s126 = scalar_lea.smem %s0, 63
  %s127 = sld [smem:[%s126]]
  %s128 = scalar_lea.smem %s0, 64
  %s129 = sld [smem:[%s128]]
  %s130 = scalar_lea.smem %s0, 65
  %s131 = sld [smem:[%s130]]
  %s132 = scalar_lea.smem %s0, 66
  %s133 = sld [smem:[%s132]]
  %s134 = scalar_lea.smem %s0, 67
  %s135 = sld [smem:[%s134]]
  %s136 = scalar_lea.smem %s0, 68
  %s137 = sld [smem:[%s136]]
  %s138 = scalar_lea.smem %s0, 69
  %s139 = sld [smem:[%s138]]
  %s140 = scalar_lea.smem %s0, 70
  %s141 = sld [smem:[%s140]]
  %s142 = scalar_lea.smem %s0, 71
  %s143 = sld [smem:[%s142]]
  %s144 = scalar_lea.smem %s0, 72
  %s145 = sld [smem:[%s144]]
  %s146 = scalar_lea.smem %s0, 73
  %s147 = sld [smem:[%s146]]
  %s148 = scalar_lea.smem %s0, 74
  %s149 = sld [smem:[%s148]]
  %s150 = scalar_lea.smem %s0, 75
  %s151 = sld [smem:[%s150]]
  %s152 = scalar_lea.smem %s0, 76
  %s153 = sld [smem:[%s152]]
  %s154 = scalar_lea.smem %s0, 77
  %s155 = sld [smem:[%s154]]
  %s156 = scalar_lea.smem %s0, 78
  %s157 = sld [smem:[%s156]]
  %s158 = scalar_lea.smem %s0, 79
  %s159 = sld [smem:[%s158]]
  %s160 = scalar_lea.smem %s0, 80
  %s161 = sld [smem:[%s160]]
  %s162 = scalar_lea.smem %s0, 81
  %s163 = sld [smem:[%s162]]
  %s164 = scalar_lea.smem %s0, 82
  %s165 = sld [smem:[%s164]]
  %s166 = scalar_lea.smem %s0, 83
  %s167 = sld [smem:[%s166]]
  %s168 = scalar_lea.smem %s0, 84
  %s169 = sld [smem:[%s168]]
  %s170 = scalar_lea.smem %s0, 85
  %s171 = sld [smem:[%s170]]
  %s172 = scalar_lea.smem %s0, 86
  %s173 = sld [smem:[%s172]]
  %s174 = scalar_lea.smem %s0, 87
  %s175 = sld [smem:[%s174]]
  %s176 = scalar_lea.smem %s0, 88
  %s177 = sld [smem:[%s176]]
  %s178 = scalar_lea.smem %s0, 89
  %s179 = sld [smem:[%s178]]
  %s180 = scalar_lea.smem %s0, 90
  %s181 = sld [smem:[%s180]]
  %s182 = scalar_lea.smem %s0, 91
  %s183 = sld [smem:[%s182]]
  %s184 = scalar_lea.smem %s0, 92
  %s185 = sld [smem:[%s184]]
  %s186 = scalar_lea.smem %s0, 93
  %s187 = sld [smem:[%s186]]
  %s188 = scalar_lea.smem %s0, 94
  %s189 = sld [smem:[%s188]]
  %s190 = scalar_lea.smem %s0, 95
  %s191 = sld [smem:[%s190]]
  %s192 = scalar_lea.smem %s0, 96
  %s193 = sld [smem:[%s192]]
  %s194 = sld [smem:[#allocation0]]
  $region649: #{lxmert_binary_cls_forward.1} parent=0
    _
  %s196 = ssub.s32 1, %s194
  %s197 = scalar_select 0, %s196, %s194
  $region1: #{lxmert_binary_cls_forward.1} parent=0
    #allocation2 [shape = 'u8[512]{0}', space=vmem, size = 0x400, scoped, tag = 'input window, operand 10, single buffered']
    #allocation3 [shape = 's32[2]{0}', space=sflag, size = 0x8, scoped, tag = 'scoped memory for lxmert_binary_cls_forward.1']
    #allocation4 [shape = 's32[2]{0}', space=sflag, size = 0x8, scoped, tag = 'scoped memory for lxmert_binary_cls_forward.1']
    #allocation5 [shape = 'u8[512]{0}', space=vmem, size = 0x400, scoped, tag = 'input window, operand 11, single buffered']
    #allocation6 [shape = 's32[1]{0}', space=sflag, size = 0x4, scoped, tag = 'scoped memory for lxmert_binary_cls_forward.1']
    #allocation7 [shape = 'u8[512]{0}', space=vmem, size = 0x400, scoped, tag = 'input window, operand 12, single buffered']
    #allocation8 [shape = 'u8[512]{0}', space=vmem, size = 0x400, scoped, tag = 'input window, operand 14, single buffered']
    #allocation9 [shape = 's32[1]{0}', space=sflag, size = 0x4, scoped, tag = 'scoped memory for lxmert_binary_cls_forward.1']
    #allocation10 [shape = 'u8[512]{0}', space=vmem, size = 0x400, scoped, tag = 'input window, operand 15, single buffered']
    #allocation11 [shape = 'u8[512]{0}', space=vmem, size = 0x400, scoped, tag = 'input window, operand 16, single buffered']
    #allocation12 [shape = 's32[1]{0}', space=sflag, size = 0x4, scoped, tag = 'scoped memory for lxmert_binary_cls_forward.1']
    #allocation13 [shape = 'u8[512]{0}', space=vmem, size = 0x400, scoped, tag = 'input window, operand 18, single buffered']
    #allocation14 [shape = 'u8[512]{0}', space=vmem, size = 0x400, scoped, tag = 'input window, operand 20, single buffered']
    #allocation15 [shape = 's32[1]{0}', space=sflag, size = 0x4, scoped, tag = 'scoped memory for lxmert_binary_cls_forward.1']
    #allocation16 [shape = 'u8[512]{0}', space=vmem, size = 0x400, scoped, tag = 'input window, operand 22, single buffered']
    #allocation17 [shape = 'u8[512]{0}', space=vmem, size = 0x400, scoped, tag = 'input window, operand 23, single buffered']
    #allocation18 [shape = 's32[1]{0}', space=sflag, size = 0x4, scoped, tag = 'scoped memory for lxmert_binary_cls_forward.1']
    #allocation19 [shape = 'u8[512]{0}', space=vmem, size = 0x400, scoped, tag = 'input window, operand 24, single buffered']
    #allocation20 [shape = 'u8[512]{0}', space=vmem, size = 0x400, scoped, tag = 'input window, operand 26, single buffered']
    #allocation21 [shape = 's32[1]{0}', space=sflag, size = 0x4, scoped, tag = 'scoped memory for lxmert_binary_cls_forward.1']
    #allocation22 [shape = 'u8[512]{0}', space=vmem, size = 0x400, scoped, tag = 'input window, operand 27, single buffered']
    #allocation23 [shape = 'u8[512]{0}', space=vmem, size = 0x400, scoped, tag = 'input window, operand 28, single buffered']
    #allocation24 [shape = 's32[1]{0}', space=sflag, size = 0x4, scoped, tag = 'scoped memory for lxmert_binary_cls_forward.1']
    #allocation25 [shape = 'u8[512]{0}', space=vmem, size = 0x400, scoped, tag = 'input window, operand 30, single buffered']
    #allocation26 [shape = 'u8[512]{0}', space=vmem, size = 0x400, scoped, tag = 'input window, operand 32, single buffered']
    #allocation27 [shape = 's32[1]{0}', space=sflag, size = 0x4, scoped, tag = 'scoped memory for lxmert_binary_cls_forward.1']
    #allocation28 [shape = 'u8[512]{0}', space=vmem, size = 0x400, scoped, tag = 'input window, operand 34, single buffered']
    #allocation29 [shape = 'u8[512]{0}', space=vmem, size = 0x400, scoped, tag = 'input window, operand 36, single buffered']
    #allocation30 [shape = 's32[1]{0}', space=sflag, size = 0x4, scoped, tag = 'scoped memory for lxmert_binary_cls_forward.1']
    #allocation31 [shape = 'u8[512]{0}', space=vmem, size = 0x400, scoped, tag = 'input window, operand 37, single buffered']
    #allocation32 [shape = 'u8[512]{0}', space=vmem, size = 0x400, scoped, tag = 'input window, operand 38, single buffered']
    #allocation33 [shape = 's32[1]{0}', space=sflag, size = 0x4, scoped, tag = 'scoped memory for lxmert_binary_cls_forward.1']
    #allocation34 [shape = 'u8[512]{0}', space=vmem, size = 0x400, scoped, tag = 'input window, operand 40, single buffered']
    #allocation35 [shape = 'u8[512]{0}', space=vmem, size = 0x400, scoped, tag = 'input window, operand 41, single buffered']
    #allocation36 [shape = 's32[1]{0}', space=sflag, size = 0x4, scoped, tag = 'scoped memory for lxmert_binary_cls_forward.1']
    #allocation37 [shape = 'u8[512]{0}', space=vmem, size = 0x400, scoped, tag = 'input window, operand 42, single buffered']
    #allocation38 [shape = 'u8[512]{0}', space=vmem, size = 0x400, scoped, tag = 'input window, operand 44, single buffered']
    #allocation39 [shape = 's32[1]{0}', space=sflag, size = 0x4, scoped, tag = 'scoped memory for lxmert_binary_cls_forward.1']
    #allocation40 [shape = 'u8[512]{0}', space=vmem, size = 0x400, scoped, tag = 'input window, operand 46, single buffered']
    #allocation41 [shape = 'u8[512]{0}', space=vmem, size = 0x400, scoped, tag = 'input window, operand 48, single buffered']
    #allocation42 [shape = 's32[1]{0}', space=sflag, size = 0x4, scoped, tag = 'scoped memory for lxmert_binary_cls_forward.1']
    #allocation43 [shape = 'u8[512]{0}', space=vmem, size = 0x400, scoped, tag = 'input window, operand 49, single buffered']
    #allocation44 [shape = 'u8[512]{0}', space=vmem, size = 0x400, scoped, tag = 'input window, operand 50, single buffered']
    #allocation45 [shape = 's32[1]{0}', space=sflag, size = 0x4, scoped, tag = 'scoped memory for lxmert_binary_cls_forward.1']
    #allocation46 [shape = 'u8[512]{0}', space=vmem, size = 0x400, scoped, tag = 'input window, operand 52, single buffered']
    #allocation47 [shape = 'u8[512]{0}', space=vmem, size = 0x400, scoped, tag = 'input window, operand 53, single buffered']
    #allocation48 [shape = 's32[1]{0}', space=sflag, size = 0x4, scoped, tag = 'scoped memory for lxmert_binary_cls_forward.1']
    #allocation49 [shape = 'u8[512]{0}', space=vmem, size = 0x400, scoped, tag = 'input window, operand 54, single buffered']
    #allocation50 [shape = 'u8[512]{0}', space=vmem, size = 0x400, scoped, tag = 'input window, operand 56, single buffered']
    #allocation51 [shape = 's32[1]{0}', space=sflag, size = 0x4, scoped, tag = 'scoped memory for lxmert_binary_cls_forward.1']
    #allocation52 [shape = 'u8[512]{0}', space=vmem, size = 0x400, scoped, tag = 'input window, operand 58, single buffered']
    #allocation53 [shape = 'u8[512]{0}', space=vmem, size = 0x400, scoped, tag = 'input window, operand 60, single buffered']
    #allocation54 [shape = 's32[1]{0}', space=sflag, size = 0x4, scoped, tag = 'scoped memory for lxmert_binary_cls_forward.1']
    #allocation55 [shape = 'u8[512]{0}', space=vmem, size = 0x400, scoped, tag = 'input window, operand 61, single buffered']
    #allocation56 [shape = 'u8[512]{0}', space=vmem, size = 0x400, scoped, tag = 'input window, operand 62, single buffered']
    #allocation57 [shape = 's32[1]{0}', space=sflag, size = 0x4, scoped, tag = 'scoped memory for lxmert_binary_cls_forward.1']
    #allocation58 [shape = 'u8[512]{0}', space=vmem, size = 0x400, scoped, tag = 'input window, operand 64, single buffered']
    #allocation59 [shape = 'u8[512]{0}', space=vmem, size = 0x400, scoped, tag = 'input window, operand 65, single buffered']
    #allocation60 [shape = 's32[1]{0}', space=sflag, size = 0x4, scoped, tag = 'scoped memory for lxmert_binary_cls_forward.1']
    #allocation61 [shape = 'u8[512]{0}', space=vmem, size = 0x400, scoped, tag = 'input window, operand 66, single buffered']
    #allocation62 [shape = 'u8[512]{0}', space=vmem, size = 0x400, scoped, tag = 'input window, operand 68, single buffered']
    #allocation63 [shape = 's32[1]{0}', space=sflag, size = 0x4, scoped, tag = 'scoped memory for lxmert_binary_cls_forward.1']
    #allocation64 [shape = 'u8[512]{0}', space=vmem, size = 0x400, scoped, tag = 'input window, operand 70, single buffered']
    #allocation65 [shape = 'u8[512]{0}', space=vmem, size = 0x400, scoped, tag = 'input window, operand 71, single buffered']
    #allocation66 [shape = 's32[1]{0}', space=sflag, size = 0x4, scoped, tag = 'scoped memory for lxmert_binary_cls_forward.1']
    #allocation67 [shape = 'u8[512]{0}', space=vmem, size = 0x400, scoped, tag = 'input window, operand 72, single buffered']
    #allocation68 [shape = 'u8[512]{0}', space=vmem, size = 0x400, scoped, tag = 'input window, operand 74, single buffered']
    #allocation69 [shape = 's32[1]{0}', space=sflag, size = 0x4, scoped, tag = 'scoped memory for lxmert_binary_cls_forward.1']
    #allocation70 [shape = 'u8[512]{0}', space=vmem, size = 0x400, scoped, tag = 'input window, operand 75, single buffered']
    #allocation71 [shape = 'u8[512]{0}', space=vmem, size = 0x400, scoped, tag = 'input window, operand 76, single buffered']
    #allocation72 [shape = 's32[1]{0}', space=sflag, size = 0x4, scoped, tag = 'scoped memory for lxmert_binary_cls_forward.1']
    #allocation73 [shape = 'u8[512]{0}', space=vmem, size = 0x400, scoped, tag = 'input window, operand 78, single buffered']
    #allocation74 [shape = 'u8[512]{0}', space=vmem, size = 0x400, scoped, tag = 'input window, operand 80, single buffered']
    #allocation75 [shape = 's32[1]{0}', space=sflag, size = 0x4, scoped, tag = 'scoped memory for lxmert_binary_cls_forward.1']
    #allocation76 [shape = 'u8[512]{0}', space=vmem, size = 0x400, scoped, tag = 'input window, operand 82, single buffered']
    #allocation77 [shape = 'u8[512]{0}', space=vmem, size = 0x400, scoped, tag = 'input window, operand 83, single buffered']
    #allocation78 [shape = 's32[1]{0}', space=sflag, size = 0x4, scoped, tag = 'scoped memory for lxmert_binary_cls_forward.1']
    #allocation79 [shape = 'u8[512]{0}', space=vmem, size = 0x400, scoped, tag = 'input window, operand 84, single buffered']
    #allocation80 [shape = 'u8[512]{0}', space=vmem, size = 0x400, scoped, tag = 'input window, operand 86, single buffered']
    #allocation81 [shape = 's32[1]{0}', space=sflag, size = 0x4, scoped, tag = 'scoped memory for lxmert_binary_cls_forward.1']
    #allocation82 [shape = 'u8[512]{0}', space=vmem, size = 0x400, scoped, tag = 'input window, operand 87, single buffered']
    #allocation83 [shape = 'u8[512]{0}', space=vmem, size = 0x400, scoped, tag = 'input window, operand 88, single buffered']
    #allocation84 [shape = 's32[1]{0}', space=sflag, size = 0x4, scoped, tag = 'scoped memory for lxmert_binary_cls_forward.1']
    #allocation85 [shape = 'u8[512]{0}', space=vmem, size = 0x400, scoped, tag = 'input window, operand 90, single buffered']
    #allocation86 [shape = 'u8[512]{0}', space=vmem, size = 0x400, scoped, tag = 'input window, operand 92, single buffered']
    #allocation87 [shape = 's32[1]{0}', space=sflag, size = 0x4, scoped, tag = 'scoped memory for lxmert_binary_cls_forward.1']
    #allocation88 [shape = 'u8[512]{0}', space=vmem, size = 0x400, scoped, tag = 'input window, operand 94, single buffered']
    #allocation89 [shape = 'u8[512]{0}', space=vmem, size = 0x400, scoped, tag = 'input window, operand 95, single buffered']
    #allocation90 [shape = 's32[1]{0}', space=sflag, size = 0x4, scoped, tag = 'scoped memory for lxmert_binary_cls_forward.1']
    #allocation91 [shape = 'u8[1024]{0}', space=vmem, size = 0x400, scoped, tag = 'output window, operand 0']
    %198 = vsyncpa [#allocation3], 0
    %199 = vsyncpa [#allocation6], 0
    %200 = vsyncpa [#allocation9], 0
    %201 = vsyncpa [#allocation12], 0
    %202 = vsyncpa [#allocation15], 0
    %203 = vsyncpa [#allocation18], 0
    %204 = vsyncpa [#allocation21], 0
    %205 = vsyncpa [#allocation24], 0
    %206 = vsyncpa [#allocation27], 0
    %207 = vsyncpa [#allocation30], 0
    %208 = vsyncpa [#allocation33], 0
    %209 = vsyncpa [#allocation36], 0
    %210 = vsyncpa [#allocation39], 0
    %211 = vsyncpa [#allocation42], 0
    %212 = vsyncpa [#allocation45], 0
    %213 = vsyncpa [#allocation48], 0
    %214 = vsyncpa [#allocation51], 0
    %215 = vsyncpa [#allocation54], 0
    %216 = vsyncpa [#allocation57], 0
    %217 = vsyncpa [#allocation60], 0
    %218 = vsyncpa [#allocation63], 0
    %219 = vsyncpa [#allocation66], 0
    %220 = vsyncpa [#allocation69], 0
    %221 = vsyncpa [#allocation72], 0
    %222 = vsyncpa [#allocation75], 0
    %223 = vsyncpa [#allocation78], 0
    %224 = vsyncpa [#allocation81], 0
    %225 = vsyncpa [#allocation84], 0
    %226 = vsyncpa [#allocation87], 0
    %227 = vsyncpa [#allocation90], 0
    %228 = vsyncpa [#allocation4], 0
    %s229 = scalar_lea.sflag [#allocation4], 1
    %230 = vsyncpa %s229, 0
    loop: start=0, step=1, limit=4
    $region2: #{lxmert_binary_cls_forward.1} parent=1 // loop_pre_header
      _
    $region3: #{lxmert_binary_cls_forward.1} parent=1 // loop_header
      %s232 = sphi 0, %s236
      %p233 = scmp.ge.s32.totalorder %s232, 4
      %s242 = sphi 0, %s244
      %s245 = sphi 0, %s242
      %s246 = sphi 0, %s245
      %s262 = sphi 0, %s246
      %s268 = sphi 0, %s270
      %s271 = sphi 0, %s268
      %s272 = sphi 0, %s271
      %s288 = sphi 0, %s272
      %s294 = sphi 0, %s296
      %s297 = sphi 0, %s294
      %s298 = sphi 0, %s297
      %s314 = sphi 0, %s298
      %s320 = sphi 0, %s322
      %s323 = sphi 0, %s320
      %s324 = sphi 0, %s323
      %s340 = sphi 0, %s324
      %s344 = sphi 0, %s344
      %s346 = sphi 0, %s344
      %s347 = sphi 0, %s346
      %s361 = sphi 0, %s347
      %s365 = sphi 0, %s365
      %s367 = sphi 0, %s365
      %s368 = sphi 0, %s367
      %s382 = sphi 0, %s368
      %s386 = sphi 0, %s386
      %s388 = sphi 0, %s386
      %s389 = sphi 0, %s388
      %s403 = sphi 0, %s389
      %s407 = sphi 0, %s407
      %s409 = sphi 0, %s407
      %s410 = sphi 0, %s409
      %s424 = sphi 0, %s410
      %s428 = sphi 0, %s428
      %s430 = sphi 0, %s428
      %s431 = sphi 0, %s430
      %s445 = sphi 0, %s431
      %s449 = sphi 0, %s449
      %s451 = sphi 0, %s449
      %s452 = sphi 0, %s451
      %s466 = sphi 0, %s452
      %s470 = sphi 0, %s470
      %s472 = sphi 0, %s470
      %s473 = sphi 0, %s472
      %s487 = sphi 0, %s473
      %s491 = sphi 0, %s491
      %s493 = sphi 0, %s491
      %s494 = sphi 0, %s493
      %s508 = sphi 0, %s494
      %s512 = sphi 0, %s512
      %s514 = sphi 0, %s512
      %s515 = sphi 0, %s514
      %s529 = sphi 0, %s515
      %s533 = sphi 0, %s533
      %s535 = sphi 0, %s533
      %s536 = sphi 0, %s535
      %s550 = sphi 0, %s536
      %s554 = sphi 0, %s554
      %s556 = sphi 0, %s554
      %s557 = sphi 0, %s556
      %s571 = sphi 0, %s557
      %s575 = sphi 0, %s575
      %s577 = sphi 0, %s575
      %s578 = sphi 0, %s577
      %s592 = sphi 0, %s578
      %s596 = sphi 0, %s596
      %s598 = sphi 0, %s596
      %s599 = sphi 0, %s598
      %s613 = sphi 0, %s599
      %s617 = sphi 0, %s617
      %s619 = sphi 0, %s617
      %s620 = sphi 0, %s619
      %s634 = sphi 0, %s620
      %s638 = sphi 0, %s638
      %s640 = sphi 0, %s638
      %s641 = sphi 0, %s640
      %s655 = sphi 0, %s641
      %s659 = sphi 0, %s659
      %s661 = sphi 0, %s659
      %s662 = sphi 0, %s661
      %s676 = sphi 0, %s662
      %s680 = sphi 0, %s680
      %s682 = sphi 0, %s680
      %s683 = sphi 0, %s682
      %s697 = sphi 0, %s683
      %s701 = sphi 0, %s701
      %s703 = sphi 0, %s701
      %s704 = sphi 0, %s703
      %s718 = sphi 0, %s704
      %s722 = sphi 0, %s722
      %s724 = sphi 0, %s722
      %s725 = sphi 0, %s724
      %s739 = sphi 0, %s725
      %s743 = sphi 0, %s743
      %s745 = sphi 0, %s743
      %s746 = sphi 0, %s745
      %s760 = sphi 0, %s746
      %s764 = sphi 0, %s764
      %s766 = sphi 0, %s764
      %s767 = sphi 0, %s766
      %s781 = sphi 0, %s767
      %s785 = sphi 0, %s785
      %s787 = sphi 0, %s785
      %s788 = sphi 0, %s787
      %s802 = sphi 0, %s788
      %s806 = sphi 0, %s806
      %s808 = sphi 0, %s806
      %s809 = sphi 0, %s808
      %s823 = sphi 0, %s809
      %s827 = sphi 0, %s827
      %s829 = sphi 0, %s827
      %s830 = sphi 0, %s829
      %s844 = sphi 0, %s830
      %s848 = sphi 0, %s848
      %s850 = sphi 0, %s848
      %s851 = sphi 0, %s850
      %s865 = sphi 0, %s851
      %s869 = sphi 0, %s869
      %s871 = sphi 0, %s869
      %s872 = sphi 0, %s871
      %s886 = sphi 0, %s872
      %s890 = sphi 0, %s890
      %s892 = sphi 0, %s890
      %s893 = sphi 0, %s892
      %s907 = sphi 0, %s893
      %s911 = sphi 0, %s911
      %s913 = sphi 0, %s911
      %s914 = sphi 0, %s913
      %s928 = sphi 0, %s914
      %s932 = sphi 0, %s932
      %s934 = sphi 0, %s932
      %s935 = sphi 0, %s934
      %s949 = sphi 0, %s935
      %s953 = sphi 0, %s953
      %s955 = sphi 0, %s953
      %s956 = sphi 0, %s955
      %s970 = sphi 0, %s956
      %s974 = sphi 0, %s974
      %s976 = sphi 0, %s974
      %s977 = sphi 0, %s976
      %s991 = sphi 0, %s977
      %s995 = sphi 0, %s995
      %s997 = sphi 0, %s995
      %s998 = sphi 0, %s997
      %s1012 = sphi 0, %s998
      %s1016 = sphi 0, %s1016
      %s1018 = sphi 0, %s1016
      %s1019 = sphi 0, %s1018
      %s1033 = sphi 0, %s1019
      %s1037 = sphi 0, %s1037
      %s1039 = sphi 0, %s1037
      %s1040 = sphi 0, %s1039
      %s1054 = sphi 0, %s1040
      %s1058 = sphi 0, %s1058
      %s1060 = sphi 0, %s1058
      %s1061 = sphi 0, %s1060
      %s1075 = sphi 0, %s1061
      %s1079 = sphi 0, %s1079
      %s1081 = sphi 0, %s1079
      %s1082 = sphi 0, %s1081
      %s1096 = sphi 0, %s1082
      %s1100 = sphi 0, %s1100
      %s1102 = sphi 0, %s1100
      %s1103 = sphi 0, %s1102
      %s1117 = sphi 0, %s1103
      %s1121 = sphi 0, %s1121
      %s1123 = sphi 0, %s1121
      %s1124 = sphi 0, %s1123
      %s1138 = sphi 0, %s1124
      %s1142 = sphi 0, %s1142
      %s1144 = sphi 0, %s1142
      %s1145 = sphi 0, %s1144
      %s1159 = sphi 0, %s1145
      %s1163 = sphi 0, %s1163
      %s1165 = sphi 0, %s1163
      %s1166 = sphi 0, %s1165
      %s1180 = sphi 0, %s1166
      %s1184 = sphi 0, %s1184
      %s1186 = sphi 0, %s1184
      %s1187 = sphi 0, %s1186
      %s1201 = sphi 0, %s1187
      %s1205 = sphi 0, %s1205
      %s1207 = sphi 0, %s1205
      %s1208 = sphi 0, %s1207
      %s1222 = sphi 0, %s1208
      %s1226 = sphi 0, %s1226
      %s1228 = sphi 0, %s1226
      %s1229 = sphi 0, %s1228
      %s1243 = sphi 0, %s1229
      %s1247 = sphi 0, %s1247
      %s1249 = sphi 0, %s1247
      %s1250 = sphi 0, %s1249
      %s1264 = sphi 0, %s1250
      %s1268 = sphi 0, %s1268
      %s1270 = sphi 0, %s1268
      %s1271 = sphi 0, %s1270
      %s1285 = sphi 0, %s1271
      %s1289 = sphi 0, %s1289
      %s1291 = sphi 0, %s1289
      %s1292 = sphi 0, %s1291
      %s1306 = sphi 0, %s1292
      %s1310 = sphi 0, %s1310
      %s1312 = sphi 0, %s1310
      %s1313 = sphi 0, %s1312
      %s1327 = sphi 0, %s1313
      %s1331 = sphi 0, %s1331
      %s1333 = sphi 0, %s1331
      %s1334 = sphi 0, %s1333
      %s1348 = sphi 0, %s1334
      %s1352 = sphi 0, %s1352
      %s1354 = sphi 0, %s1352
      %s1355 = sphi 0, %s1354
      %s1369 = sphi 0, %s1355
      %s1373 = sphi 0, %s1373
      %s1375 = sphi 0, %s1373
      %s1376 = sphi 0, %s1375
      %s1390 = sphi 0, %s1376
      %s1394 = sphi 0, %s1394
      %s1396 = sphi 0, %s1394
      %s1397 = sphi 0, %s1396
      %s1411 = sphi 0, %s1397
      %s1415 = sphi 0, %s1415
      %s1417 = sphi 0, %s1415
      %s1418 = sphi 0, %s1417
      %s1432 = sphi 0, %s1418
      %s1436 = sphi 0, %s1436
      %s1438 = sphi 0, %s1436
      %s1439 = sphi 0, %s1438
      %s1453 = sphi 0, %s1439
      %s1457 = sphi 0, %s1457
      %s1459 = sphi 0, %s1457
      %s1460 = sphi 0, %s1459
      %s1474 = sphi 0, %s1460
      %s1478 = sphi 0, %s1478
      %s1480 = sphi 0, %s1478
      %s1481 = sphi 0, %s1480
      %s1495 = sphi 0, %s1481
      %s1499 = sphi 0, %s1499
      %s1501 = sphi 0, %s1499
      %s1502 = sphi 0, %s1501
      %s1516 = sphi 0, %s1502
      %s1520 = sphi 0, %s1520
      %s1522 = sphi 0, %s1520
      %s1523 = sphi 0, %s1522
      %s1537 = sphi 0, %s1523
      %s1541 = sphi 0, %s1541
      %s1543 = sphi 0, %s1541
      %s1544 = sphi 0, %s1543
      %s1558 = sphi 0, %s1544
      %s1562 = sphi 0, %s1562
      %s1564 = sphi 0, %s1562
      %s1565 = sphi 0, %s1564
      %s1579 = sphi 0, %s1565
      %s1583 = sphi 0, %s1583
      %s1585 = sphi 0, %s1583
      %s1586 = sphi 0, %s1585
      %s1600 = sphi 0, %s1586
      %s1604 = sphi 0, %s1604
      %s1606 = sphi 0, %s1604
      %s1607 = sphi 0, %s1606
      %s1621 = sphi 0, %s1607
      %s1625 = sphi 0, %s1625
      %s1627 = sphi 0, %s1625
      %s1628 = sphi 0, %s1627
      %s1642 = sphi 0, %s1628
      %s1646 = sphi 0, %s1646
      %s1648 = sphi 0, %s1646
      %s1649 = sphi 0, %s1648
      %s1663 = sphi 0, %s1649
      %s1667 = sphi 0, %s1667
      %s1669 = sphi 0, %s1667
      %s1670 = sphi 0, %s1669
      %s1684 = sphi 0, %s1670
      %s1688 = sphi 0, %s1688
      %s1690 = sphi 0, %s1688
      %s1691 = sphi 0, %s1690
      %s1705 = sphi 0, %s1691
      %s1709 = sphi 0, %s1709
      %s1711 = sphi 0, %s1709
      %s1712 = sphi 0, %s1711
      %s1726 = sphi 0, %s1712
      %s1730 = sphi 0, %s1730
      %s1732 = sphi 0, %s1730
      %s1733 = sphi 0, %s1732
      %s1747 = sphi 0, %s1733
      %s1751 = sphi 0, %s1751
      %s1753 = sphi 0, %s1751
      %s1754 = sphi 0, %s1753
      %s1768 = sphi 0, %s1754
      %s1772 = sphi 0, %s1772
      %s1774 = sphi 0, %s1772
      %s1775 = sphi 0, %s1774
      %s1789 = sphi 0, %s1775
      %s1793 = sphi 0, %s1793
      %s1795 = sphi 0, %s1793
      %s1796 = sphi 0, %s1795
      %s1810 = sphi 0, %s1796
      %s1814 = sphi 0, %s1814
      %s1816 = sphi 0, %s1814
      %s1817 = sphi 0, %s1816
      %s1831 = sphi 0, %s1817
      %s1835 = sphi 0, %s1835
      %s1837 = sphi 0, %s1835
      %s1838 = sphi 0, %s1837
      %s1852 = sphi 0, %s1838
      %s1856 = sphi 0, %s1856
      %s1858 = sphi 0, %s1856
      %s1859 = sphi 0, %s1858
      %s1873 = sphi 0, %s1859
      %s1877 = sphi 0, %s1877
      %s1879 = sphi 0, %s1877
      %s1880 = sphi 0, %s1879
      %s1894 = sphi 0, %s1880
      %s1898 = sphi 0, %s1898
      %s1900 = sphi 0, %s1898
      %s1901 = sphi 0, %s1900
      %s1915 = sphi 0, %s1901
      %s1919 = sphi 0, %s1919
      %s1921 = sphi 0, %s1919
      %s1922 = sphi 0, %s1921
      %s1936 = sphi 0, %s1922
      %s1940 = sphi 0, %s1940
      %s1942 = sphi 0, %s1940
      %s1943 = sphi 0, %s1942
      %s1957 = sphi 0, %s1943
      %s1961 = sphi 0, %s1961
      %s1963 = sphi 0, %s1961
      %s1964 = sphi 0, %s1963
      %s1978 = sphi 0, %s1964
      %s1982 = sphi 0, %s1982
      %s1984 = sphi 0, %s1982
      %s1985 = sphi 0, %s1984
      %s1999 = sphi 0, %s1985
      %s2003 = sphi 0, %s2003
      %s2005 = sphi 0, %s2003
      %s2006 = sphi 0, %s2005
      %s2020 = sphi 0, %s2006
      %s2024 = sphi 0, %s2024
      %s2026 = sphi 0, %s2024
      %s2027 = sphi 0, %s2026
      %s2041 = sphi 0, %s2027
      %s2045 = sphi 0, %s2045
      %s2047 = sphi 0, %s2045
      %s2048 = sphi 0, %s2047
      %s2062 = sphi 0, %s2048
      %s2066 = sphi 0, %s2066
      %s2068 = sphi 0, %s2066
      %s2069 = sphi 0, %s2068
      %s2083 = sphi 0, %s2069
      %s2087 = sphi 0, %s2087
      %s2089 = sphi 0, %s2087
      %s2090 = sphi 0, %s2089
      %s2104 = sphi 0, %s2090
      %s2108 = sphi 0, %s2108
      %s2110 = sphi 0, %s2108
      %s2111 = sphi 0, %s2110
      %s2125 = sphi 0, %s2111
      %s2129 = sphi 0, %s2129
      %s2131 = sphi 0, %s2129
      %s2132 = sphi 0, %s2131
      %s2146 = sphi 0, %s2132
      %s2150 = sphi 0, %s2150
      %s2152 = sphi 0, %s2150
      %s2153 = sphi 0, %s2152
      %s2167 = sphi 0, %s2153
      %s2171 = sphi 0, %s2171
      %s2173 = sphi 0, %s2171
      %s2174 = sphi 0, %s2173
      %s2188 = sphi 0, %s2174
      %s2192 = sphi 0, %s2192
      %s2194 = sphi 0, %s2192
      %s2195 = sphi 0, %s2194
      %s2209 = sphi 0, %s2195
      %s2213 = sphi 0, %s2213
      %s2215 = sphi 0, %s2213
      %s2216 = sphi 0, %s2215
      %s2230 = sphi 0, %s2216
      %s2234 = sphi 0, %s2234
      %s2236 = sphi 0, %s2234
      %s2237 = sphi 0, %s2236
      %s2251 = sphi 0, %s2237
      %s2255 = sphi 0, %s2255
      %s2257 = sphi 0, %s2255
      %s2258 = sphi 0, %s2257
      %s2272 = sphi 0, %s2258
      %s2278 = sphi 0, %s2280
      %s2281 = sphi 0, %s2278
      %s2282 = sphi 0, %s2281
      %s2298 = sphi 0, %s2282
    $region4: #{lxmert_binary_cls_forward.1} parent=1 // loop_header_branch
      %235 = sbr.rel (%p233) target = $region8
    $region5: #{lxmert_binary_cls_forward.1} parent=1 // loop_body
      %s237 = ssub.s32 %s232, 1
      %s238 = ssub.s32 %s232, 2
      %s239 = sadd.s32 %s232, 1
      %s240 = ssub.s32 %s232, %s239
      %p241 = scmp.eq.s32.totalorder %s240, 0
      %s243 = sadd.s32 %s242, 1
      %s244 = scalar_select %p241, %s242, %s243
      %p247 = pneg %p241
      %p248 = scmp.eq.s32.totalorder %s232, 1
      %p249 = por %p247, %p248
      %p250 = scmp.ne.s32.totalorder %s242, %s245
      %p251 = scmp.eq.s32.totalorder %s232, 0
      %p252 = por %p250, %p251
      %p253 = scmp.ne.s32.totalorder %s242, %s245
      %p254 = scmp.eq.s32.totalorder %s237, 1
      %p255 = por %p253, %p254
      %p256 = scmp.ne.s32.totalorder %s245, %s246
      %p257 = scmp.eq.s32.totalorder %s237, 0
      %p258 = por %p256, %p257
      %p259 = scmp.ne.s32.totalorder %s245, %s246
      %p260 = scmp.eq.s32.totalorder %s238, 1
      %p261 = por %p259, %p260
      %p263 = scmp.ne.s32.totalorder %s246, %s262
      %p264 = scmp.eq.s32.totalorder %s238, 0
      %p265 = por %p263, %p264
      %s266 = ssub.s32 %s232, %s239
      %p267 = scmp.eq.s32.totalorder %s266, 0
      %s269 = sadd.s32 %s268, 1
      %s270 = scalar_select %p267, %s268, %s269
      %p273 = pneg %p267
      %p274 = scmp.eq.s32.totalorder %s232, 1
      %p275 = por %p273, %p274
      %p276 = scmp.ne.s32.totalorder %s268, %s271
      %p277 = scmp.eq.s32.totalorder %s232, 0
      %p278 = por %p276, %p277
      %p279 = scmp.ne.s32.totalorder %s268, %s271
      %p280 = scmp.eq.s32.totalorder %s237, 1
      %p281 = por %p279, %p280
      %p282 = scmp.ne.s32.totalorder %s271, %s272
      %p283 = scmp.eq.s32.totalorder %s237, 0
      %p284 = por %p282, %p283
      %p285 = scmp.ne.s32.totalorder %s271, %s272
      %p286 = scmp.eq.s32.totalorder %s238, 1
      %p287 = por %p285, %p286
      %p289 = scmp.ne.s32.totalorder %s272, %s288
      %p290 = scmp.eq.s32.totalorder %s238, 0
      %p291 = por %p289, %p290
      %s292 = ssub.s32 %s232, %s239
      %p293 = scmp.eq.s32.totalorder %s292, 0
      %s295 = sadd.s32 %s294, 1
      %s296 = scalar_select %p293, %s294, %s295
      %p299 = pneg %p293
      %p300 = scmp.eq.s32.totalorder %s232, 1
      %p301 = por %p299, %p300
      %p302 = scmp.ne.s32.totalorder %s294, %s297
      %p303 = scmp.eq.s32.totalorder %s232, 0
      %p304 = por %p302, %p303
      %p305 = scmp.ne.s32.totalorder %s294, %s297
      %p306 = scmp.eq.s32.totalorder %s237, 1
      %p307 = por %p305, %p306
      %p308 = scmp.ne.s32.totalorder %s297, %s298
      %p309 = scmp.eq.s32.totalorder %s237, 0
      %p310 = por %p308, %p309
      %p311 = scmp.ne.s32.totalorder %s297, %s298
      %p312 = scmp.eq.s32.totalorder %s238, 1
      %p313 = por %p311, %p312
      %p315 = scmp.ne.s32.totalorder %s298, %s314
      %p316 = scmp.eq.s32.totalorder %s238, 0
      %p317 = por %p315, %p316
      %s318 = ssub.s32 %s232, %s239
      %p319 = scmp.eq.s32.totalorder %s318, 0
      %s321 = sadd.s32 %s320, 1
      %s322 = scalar_select %p319, %s320, %s321
      %p325 = pneg %p319
      %p326 = scmp.eq.s32.totalorder %s232, 1
      %p327 = por %p325, %p326
      %p328 = scmp.ne.s32.totalorder %s320, %s323
      %p329 = scmp.eq.s32.totalorder %s232, 0
      %p330 = por %p328, %p329
      %p331 = scmp.ne.s32.totalorder %s320, %s323
      %p332 = scmp.eq.s32.totalorder %s237, 1
      %p333 = por %p331, %p332
      %p334 = scmp.ne.s32.totalorder %s323, %s324
      %p335 = scmp.eq.s32.totalorder %s237, 0
      %p336 = por %p334, %p335
      %p337 = scmp.ne.s32.totalorder %s323, %s324
      %p338 = scmp.eq.s32.totalorder %s238, 1
      %p339 = por %p337, %p338
      %p341 = scmp.ne.s32.totalorder %s324, %s340
      %p342 = scmp.eq.s32.totalorder %s238, 0
      %p343 = por %p341, %p342
      %s345 = sadd.s32 %s344, 1
      %p348 = scmp.eq.s32.totalorder %s232, 1
      %p349 = scmp.ne.s32.totalorder %s344, %s346
      %p350 = scmp.eq.s32.totalorder %s232, 0
      %p351 = por %p349, %p350
      %p352 = scmp.ne.s32.totalorder %s344, %s346
      %p353 = scmp.eq.s32.totalorder %s237, 1
      %p354 = por %p352, %p353
      %p355 = scmp.ne.s32.totalorder %s346, %s347
      %p356 = scmp.eq.s32.totalorder %s237, 0
      %p357 = por %p355, %p356
      %p358 = scmp.ne.s32.totalorder %s346, %s347
      %p359 = scmp.eq.s32.totalorder %s238, 1
      %p360 = por %p358, %p359
      %p362 = scmp.ne.s32.totalorder %s347, %s361
      %p363 = scmp.eq.s32.totalorder %s238, 0
      %p364 = por %p362, %p363
      %s366 = sadd.s32 %s365, 1
      %p369 = scmp.eq.s32.totalorder %s232, 1
      %p370 = scmp.ne.s32.totalorder %s365, %s367
      %p371 = scmp.eq.s32.totalorder %s232, 0
      %p372 = por %p370, %p371
      %p373 = scmp.ne.s32.totalorder %s365, %s367
      %p374 = scmp.eq.s32.totalorder %s237, 1
      %p375 = por %p373, %p374
      %p376 = scmp.ne.s32.totalorder %s367, %s368
      %p377 = scmp.eq.s32.totalorder %s237, 0
      %p378 = por %p376, %p377
      %p379 = scmp.ne.s32.totalorder %s367, %s368
      %p380 = scmp.eq.s32.totalorder %s238, 1
      %p381 = por %p379, %p380
      %p383 = scmp.ne.s32.totalorder %s368, %s382
      %p384 = scmp.eq.s32.totalorder %s238, 0
      %p385 = por %p383, %p384
      %s387 = sadd.s32 %s386, 1
      %p390 = scmp.eq.s32.totalorder %s232, 1
      %p391 = scmp.ne.s32.totalorder %s386, %s388
      %p392 = scmp.eq.s32.totalorder %s232, 0
      %p393 = por %p391, %p392
      %p394 = scmp.ne.s32.totalorder %s386, %s388
      %p395 = scmp.eq.s32.totalorder %s237, 1
      %p396 = por %p394, %p395
      %p397 = scmp.ne.s32.totalorder %s388, %s389
      %p398 = scmp.eq.s32.totalorder %s237, 0
      %p399 = por %p397, %p398
      %p400 = scmp.ne.s32.totalorder %s388, %s389
      %p401 = scmp.eq.s32.totalorder %s238, 1
      %p402 = por %p400, %p401
      %p404 = scmp.ne.s32.totalorder %s389, %s403
      %p405 = scmp.eq.s32.totalorder %s238, 0
      %p406 = por %p404, %p405
      %s408 = sadd.s32 %s407, 1
      %p411 = scmp.eq.s32.totalorder %s232, 1
      %p412 = scmp.ne.s32.totalorder %s407, %s409
      %p413 = scmp.eq.s32.totalorder %s232, 0
      %p414 = por %p412, %p413
      %p415 = scmp.ne.s32.totalorder %s407, %s409
      %p416 = scmp.eq.s32.totalorder %s237, 1
      %p417 = por %p415, %p416
      %p418 = scmp.ne.s32.totalorder %s409, %s410
      %p419 = scmp.eq.s32.totalorder %s237, 0
      %p420 = por %p418, %p419
      %p421 = scmp.ne.s32.totalorder %s409, %s410
      %p422 = scmp.eq.s32.totalorder %s238, 1
      %p423 = por %p421, %p422
      %p425 = scmp.ne.s32.totalorder %s410, %s424
      %p426 = scmp.eq.s32.totalorder %s238, 0
      %p427 = por %p425, %p426
      %s429 = sadd.s32 %s428, 1
      %p432 = scmp.eq.s32.totalorder %s232, 1
      %p433 = scmp.ne.s32.totalorder %s428, %s430
      %p434 = scmp.eq.s32.totalorder %s232, 0
      %p435 = por %p433, %p434
      %p436 = scmp.ne.s32.totalorder %s428, %s430
      %p437 = scmp.eq.s32.totalorder %s237, 1
      %p438 = por %p436, %p437
      %p439 = scmp.ne.s32.totalorder %s430, %s431
      %p440 = scmp.eq.s32.totalorder %s237, 0
      %p441 = por %p439, %p440
      %p442 = scmp.ne.s32.totalorder %s430, %s431
      %p443 = scmp.eq.s32.totalorder %s238, 1
      %p444 = por %p442, %p443
      %p446 = scmp.ne.s32.totalorder %s431, %s445
      %p447 = scmp.eq.s32.totalorder %s238, 0
      %p448 = por %p446, %p447
      %s450 = sadd.s32 %s449, 1
      %p453 = scmp.eq.s32.totalorder %s232, 1
      %p454 = scmp.ne.s32.totalorder %s449, %s451
      %p455 = scmp.eq.s32.totalorder %s232, 0
      %p456 = por %p454, %p455
      %p457 = scmp.ne.s32.totalorder %s449, %s451
      %p458 = scmp.eq.s32.totalorder %s237, 1
      %p459 = por %p457, %p458
      %p460 = scmp.ne.s32.totalorder %s451, %s452
      %p461 = scmp.eq.s32.totalorder %s237, 0
      %p462 = por %p460, %p461
      %p463 = scmp.ne.s32.totalorder %s451, %s452
      %p464 = scmp.eq.s32.totalorder %s238, 1
      %p465 = por %p463, %p464
      %p467 = scmp.ne.s32.totalorder %s452, %s466
      %p468 = scmp.eq.s32.totalorder %s238, 0
      %p469 = por %p467, %p468
      %s471 = sadd.s32 %s470, 1
      %p474 = scmp.eq.s32.totalorder %s232, 1
      %p475 = scmp.ne.s32.totalorder %s470, %s472
      %p476 = scmp.eq.s32.totalorder %s232, 0
      %p477 = por %p475, %p476
      %p478 = scmp.ne.s32.totalorder %s470, %s472
      %p479 = scmp.eq.s32.totalorder %s237, 1
      %p480 = por %p478, %p479
      %p481 = scmp.ne.s32.totalorder %s472, %s473
      %p482 = scmp.eq.s32.totalorder %s237, 0
      %p483 = por %p481, %p482
      %p484 = scmp.ne.s32.totalorder %s472, %s473
      %p485 = scmp.eq.s32.totalorder %s238, 1
      %p486 = por %p484, %p485
      %p488 = scmp.ne.s32.totalorder %s473, %s487
      %p489 = scmp.eq.s32.totalorder %s238, 0
      %p490 = por %p488, %p489
      %s492 = sadd.s32 %s491, 1
      %p495 = scmp.eq.s32.totalorder %s232, 1
      %p496 = scmp.ne.s32.totalorder %s491, %s493
      %p497 = scmp.eq.s32.totalorder %s232, 0
      %p498 = por %p496, %p497
      %p499 = scmp.ne.s32.totalorder %s491, %s493
      %p500 = scmp.eq.s32.totalorder %s237, 1
      %p501 = por %p499, %p500
      %p502 = scmp.ne.s32.totalorder %s493, %s494
      %p503 = scmp.eq.s32.totalorder %s237, 0
      %p504 = por %p502, %p503
      %p505 = scmp.ne.s32.totalorder %s493, %s494
      %p506 = scmp.eq.s32.totalorder %s238, 1
      %p507 = por %p505, %p506
      %p509 = scmp.ne.s32.totalorder %s494, %s508
      %p510 = scmp.eq.s32.totalorder %s238, 0
      %p511 = por %p509, %p510
      %s513 = sadd.s32 %s512, 1
      %p516 = scmp.eq.s32.totalorder %s232, 1
      %p517 = scmp.ne.s32.totalorder %s512, %s514
      %p518 = scmp.eq.s32.totalorder %s232, 0
      %p519 = por %p517, %p518
      %p520 = scmp.ne.s32.totalorder %s512, %s514
      %p521 = scmp.eq.s32.totalorder %s237, 1
      %p522 = por %p520, %p521
      %p523 = scmp.ne.s32.totalorder %s514, %s515
      %p524 = scmp.eq.s32.totalorder %s237, 0
      %p525 = por %p523, %p524
      %p526 = scmp.ne.s32.totalorder %s514, %s515
      %p527 = scmp.eq.s32.totalorder %s238, 1
      %p528 = por %p526, %p527
      %p530 = scmp.ne.s32.totalorder %s515, %s529
      %p531 = scmp.eq.s32.totalorder %s238, 0
      %p532 = por %p530, %p531
      %s534 = sadd.s32 %s533, 1
      %p537 = scmp.eq.s32.totalorder %s232, 1
      %p538 = scmp.ne.s32.totalorder %s533, %s535
      %p539 = scmp.eq.s32.totalorder %s232, 0
      %p540 = por %p538, %p539
      %p541 = scmp.ne.s32.totalorder %s533, %s535
      %p542 = scmp.eq.s32.totalorder %s237, 1
      %p543 = por %p541, %p542
      %p544 = scmp.ne.s32.totalorder %s535, %s536
      %p545 = scmp.eq.s32.totalorder %s237, 0
      %p546 = por %p544, %p545
      %p547 = scmp.ne.s32.totalorder %s535, %s536
      %p548 = scmp.eq.s32.totalorder %s238, 1
      %p549 = por %p547, %p548
      %p551 = scmp.ne.s32.totalorder %s536, %s550
      %p552 = scmp.eq.s32.totalorder %s238, 0
      %p553 = por %p551, %p552
      %s555 = sadd.s32 %s554, 1
      %p558 = scmp.eq.s32.totalorder %s232, 1
      %p559 = scmp.ne.s32.totalorder %s554, %s556
      %p560 = scmp.eq.s32.totalorder %s232, 0
      %p561 = por %p559, %p560
      %p562 = scmp.ne.s32.totalorder %s554, %s556
      %p563 = scmp.eq.s32.totalorder %s237, 1
      %p564 = por %p562, %p563
      %p565 = scmp.ne.s32.totalorder %s556, %s557
      %p566 = scmp.eq.s32.totalorder %s237, 0
      %p567 = por %p565, %p566
      %p568 = scmp.ne.s32.totalorder %s556, %s557
      %p569 = scmp.eq.s32.totalorder %s238, 1
      %p570 = por %p568, %p569
      %p572 = scmp.ne.s32.totalorder %s557, %s571
      %p573 = scmp.eq.s32.totalorder %s238, 0
      %p574 = por %p572, %p573
      %s576 = sadd.s32 %s575, 1
      %p579 = scmp.eq.s32.totalorder %s232, 1
      %p580 = scmp.ne.s32.totalorder %s575, %s577
      %p581 = scmp.eq.s32.totalorder %s232, 0
      %p582 = por %p580, %p581
      %p583 = scmp.ne.s32.totalorder %s575, %s577
      %p584 = scmp.eq.s32.totalorder %s237, 1
      %p585 = por %p583, %p584
      %p586 = scmp.ne.s32.totalorder %s577, %s578
      %p587 = scmp.eq.s32.totalorder %s237, 0
      %p588 = por %p586, %p587
      %p589 = scmp.ne.s32.totalorder %s577, %s578
      %p590 = scmp.eq.s32.totalorder %s238, 1
      %p591 = por %p589, %p590
      %p593 = scmp.ne.s32.totalorder %s578, %s592
      %p594 = scmp.eq.s32.totalorder %s238, 0
      %p595 = por %p593, %p594
      %s597 = sadd.s32 %s596, 1
      %p600 = scmp.eq.s32.totalorder %s232, 1
      %p601 = scmp.ne.s32.totalorder %s596, %s598
      %p602 = scmp.eq.s32.totalorder %s232, 0
      %p603 = por %p601, %p602
      %p604 = scmp.ne.s32.totalorder %s596, %s598
      %p605 = scmp.eq.s32.totalorder %s237, 1
      %p606 = por %p604, %p605
      %p607 = scmp.ne.s32.totalorder %s598, %s599
      %p608 = scmp.eq.s32.totalorder %s237, 0
      %p609 = por %p607, %p608
      %p610 = scmp.ne.s32.totalorder %s598, %s599
      %p611 = scmp.eq.s32.totalorder %s238, 1
      %p612 = por %p610, %p611
      %p614 = scmp.ne.s32.totalorder %s599, %s613
      %p615 = scmp.eq.s32.totalorder %s238, 0
      %p616 = por %p614, %p615
      %s618 = sadd.s32 %s617, 1
      %p621 = scmp.eq.s32.totalorder %s232, 1
      %p622 = scmp.ne.s32.totalorder %s617, %s619
      %p623 = scmp.eq.s32.totalorder %s232, 0
      %p624 = por %p622, %p623
      %p625 = scmp.ne.s32.totalorder %s617, %s619
      %p626 = scmp.eq.s32.totalorder %s237, 1
      %p627 = por %p625, %p626
      %p628 = scmp.ne.s32.totalorder %s619, %s620
      %p629 = scmp.eq.s32.totalorder %s237, 0
      %p630 = por %p628, %p629
      %p631 = scmp.ne.s32.totalorder %s619, %s620
      %p632 = scmp.eq.s32.totalorder %s238, 1
      %p633 = por %p631, %p632
      %p635 = scmp.ne.s32.totalorder %s620, %s634
      %p636 = scmp.eq.s32.totalorder %s238, 0
      %p637 = por %p635, %p636
      %s639 = sadd.s32 %s638, 1
      %p642 = scmp.eq.s32.totalorder %s232, 1
      %p643 = scmp.ne.s32.totalorder %s638, %s640
      %p644 = scmp.eq.s32.totalorder %s232, 0
      %p645 = por %p643, %p644
      %p646 = scmp.ne.s32.totalorder %s638, %s640
      %p647 = scmp.eq.s32.totalorder %s237, 1
      %p648 = por %p646, %p647
      %p649 = scmp.ne.s32.totalorder %s640, %s641
      %p650 = scmp.eq.s32.totalorder %s237, 0
      %p651 = por %p649, %p650
      %p652 = scmp.ne.s32.totalorder %s640, %s641
      %p653 = scmp.eq.s32.totalorder %s238, 1
      %p654 = por %p652, %p653
      %p656 = scmp.ne.s32.totalorder %s641, %s655
      %p657 = scmp.eq.s32.totalorder %s238, 0
      %p658 = por %p656, %p657
      %s660 = sadd.s32 %s659, 1
      %p663 = scmp.eq.s32.totalorder %s232, 1
      %p664 = scmp.ne.s32.totalorder %s659, %s661
      %p665 = scmp.eq.s32.totalorder %s232, 0
      %p666 = por %p664, %p665
      %p667 = scmp.ne.s32.totalorder %s659, %s661
      %p668 = scmp.eq.s32.totalorder %s237, 1
      %p669 = por %p667, %p668
      %p670 = scmp.ne.s32.totalorder %s661, %s662
      %p671 = scmp.eq.s32.totalorder %s237, 0
      %p672 = por %p670, %p671
      %p673 = scmp.ne.s32.totalorder %s661, %s662
      %p674 = scmp.eq.s32.totalorder %s238, 1
      %p675 = por %p673, %p674
      %p677 = scmp.ne.s32.totalorder %s662, %s676
      %p678 = scmp.eq.s32.totalorder %s238, 0
      %p679 = por %p677, %p678
      %s681 = sadd.s32 %s680, 1
      %p684 = scmp.eq.s32.totalorder %s232, 1
      %p685 = scmp.ne.s32.totalorder %s680, %s682
      %p686 = scmp.eq.s32.totalorder %s232, 0
      %p687 = por %p685, %p686
      %p688 = scmp.ne.s32.totalorder %s680, %s682
      %p689 = scmp.eq.s32.totalorder %s237, 1
      %p690 = por %p688, %p689
      %p691 = scmp.ne.s32.totalorder %s682, %s683
      %p692 = scmp.eq.s32.totalorder %s237, 0
      %p693 = por %p691, %p692
      %p694 = scmp.ne.s32.totalorder %s682, %s683
      %p695 = scmp.eq.s32.totalorder %s238, 1
      %p696 = por %p694, %p695
      %p698 = scmp.ne.s32.totalorder %s683, %s697
      %p699 = scmp.eq.s32.totalorder %s238, 0
      %p700 = por %p698, %p699
      %s702 = sadd.s32 %s701, 1
      %p705 = scmp.eq.s32.totalorder %s232, 1
      %p706 = scmp.ne.s32.totalorder %s701, %s703
      %p707 = scmp.eq.s32.totalorder %s232, 0
      %p708 = por %p706, %p707
      %p709 = scmp.ne.s32.totalorder %s701, %s703
      %p710 = scmp.eq.s32.totalorder %s237, 1
      %p711 = por %p709, %p710
      %p712 = scmp.ne.s32.totalorder %s703, %s704
      %p713 = scmp.eq.s32.totalorder %s237, 0
      %p714 = por %p712, %p713
      %p715 = scmp.ne.s32.totalorder %s703, %s704
      %p716 = scmp.eq.s32.totalorder %s238, 1
      %p717 = por %p715, %p716
      %p719 = scmp.ne.s32.totalorder %s704, %s718
      %p720 = scmp.eq.s32.totalorder %s238, 0
      %p721 = por %p719, %p720
      %s723 = sadd.s32 %s722, 1
      %p726 = scmp.eq.s32.totalorder %s232, 1
      %p727 = scmp.ne.s32.totalorder %s722, %s724
      %p728 = scmp.eq.s32.totalorder %s232, 0
      %p729 = por %p727, %p728
      %p730 = scmp.ne.s32.totalorder %s722, %s724
      %p731 = scmp.eq.s32.totalorder %s237, 1
      %p732 = por %p730, %p731
      %p733 = scmp.ne.s32.totalorder %s724, %s725
      %p734 = scmp.eq.s32.totalorder %s237, 0
      %p735 = por %p733, %p734
      %p736 = scmp.ne.s32.totalorder %s724, %s725
      %p737 = scmp.eq.s32.totalorder %s238, 1
      %p738 = por %p736, %p737
      %p740 = scmp.ne.s32.totalorder %s725, %s739
      %p741 = scmp.eq.s32.totalorder %s238, 0
      %p742 = por %p740, %p741
      %s744 = sadd.s32 %s743, 1
      %p747 = scmp.eq.s32.totalorder %s232, 1
      %p748 = scmp.ne.s32.totalorder %s743, %s745
      %p749 = scmp.eq.s32.totalorder %s232, 0
      %p750 = por %p748, %p749
      %p751 = scmp.ne.s32.totalorder %s743, %s745
      %p752 = scmp.eq.s32.totalorder %s237, 1
      %p753 = por %p751, %p752
      %p754 = scmp.ne.s32.totalorder %s745, %s746
      %p755 = scmp.eq.s32.totalorder %s237, 0
      %p756 = por %p754, %p755
      %p757 = scmp.ne.s32.totalorder %s745, %s746
      %p758 = scmp.eq.s32.totalorder %s238, 1
      %p759 = por %p757, %p758
      %p761 = scmp.ne.s32.totalorder %s746, %s760
      %p762 = scmp.eq.s32.totalorder %s238, 0
      %p763 = por %p761, %p762
      %s765 = sadd.s32 %s764, 1
      %p768 = scmp.eq.s32.totalorder %s232, 1
      %p769 = scmp.ne.s32.totalorder %s764, %s766
      %p770 = scmp.eq.s32.totalorder %s232, 0
      %p771 = por %p769, %p770
      %p772 = scmp.ne.s32.totalorder %s764, %s766
      %p773 = scmp.eq.s32.totalorder %s237, 1
      %p774 = por %p772, %p773
      %p775 = scmp.ne.s32.totalorder %s766, %s767
      %p776 = scmp.eq.s32.totalorder %s237, 0
      %p777 = por %p775, %p776
      %p778 = scmp.ne.s32.totalorder %s766, %s767
      %p779 = scmp.eq.s32.totalorder %s238, 1
      %p780 = por %p778, %p779
      %p782 = scmp.ne.s32.totalorder %s767, %s781
      %p783 = scmp.eq.s32.totalorder %s238, 0
      %p784 = por %p782, %p783
      %s786 = sadd.s32 %s785, 1
      %p789 = scmp.eq.s32.totalorder %s232, 1
      %p790 = scmp.ne.s32.totalorder %s785, %s787
      %p791 = scmp.eq.s32.totalorder %s232, 0
      %p792 = por %p790, %p791
      %p793 = scmp.ne.s32.totalorder %s785, %s787
      %p794 = scmp.eq.s32.totalorder %s237, 1
      %p795 = por %p793, %p794
      %p796 = scmp.ne.s32.totalorder %s787, %s788
      %p797 = scmp.eq.s32.totalorder %s237, 0
      %p798 = por %p796, %p797
      %p799 = scmp.ne.s32.totalorder %s787, %s788
      %p800 = scmp.eq.s32.totalorder %s238, 1
      %p801 = por %p799, %p800
      %p803 = scmp.ne.s32.totalorder %s788, %s802
      %p804 = scmp.eq.s32.totalorder %s238, 0
      %p805 = por %p803, %p804
      %s807 = sadd.s32 %s806, 1
      %p810 = scmp.eq.s32.totalorder %s232, 1
      %p811 = scmp.ne.s32.totalorder %s806, %s808
      %p812 = scmp.eq.s32.totalorder %s232, 0
      %p813 = por %p811, %p812
      %p814 = scmp.ne.s32.totalorder %s806, %s808
      %p815 = scmp.eq.s32.totalorder %s237, 1
      %p816 = por %p814, %p815
      %p817 = scmp.ne.s32.totalorder %s808, %s809
      %p818 = scmp.eq.s32.totalorder %s237, 0
      %p819 = por %p817, %p818
      %p820 = scmp.ne.s32.totalorder %s808, %s809
      %p821 = scmp.eq.s32.totalorder %s238, 1
      %p822 = por %p820, %p821
      %p824 = scmp.ne.s32.totalorder %s809, %s823
      %p825 = scmp.eq.s32.totalorder %s238, 0
      %p826 = por %p824, %p825
      %s828 = sadd.s32 %s827, 1
      %p831 = scmp.eq.s32.totalorder %s232, 1
      %p832 = scmp.ne.s32.totalorder %s827, %s829
      %p833 = scmp.eq.s32.totalorder %s232, 0
      %p834 = por %p832, %p833
      %p835 = scmp.ne.s32.totalorder %s827, %s829
      %p836 = scmp.eq.s32.totalorder %s237, 1
      %p837 = por %p835, %p836
      %p838 = scmp.ne.s32.totalorder %s829, %s830
      %p839 = scmp.eq.s32.totalorder %s237, 0
      %p840 = por %p838, %p839
      %p841 = scmp.ne.s32.totalorder %s829, %s830
      %p842 = scmp.eq.s32.totalorder %s238, 1
      %p843 = por %p841, %p842
      %p845 = scmp.ne.s32.totalorder %s830, %s844
      %p846 = scmp.eq.s32.totalorder %s238, 0
      %p847 = por %p845, %p846
      %s849 = sadd.s32 %s848, 1
      %p852 = scmp.eq.s32.totalorder %s232, 1
      %p853 = scmp.ne.s32.totalorder %s848, %s850
      %p854 = scmp.eq.s32.totalorder %s232, 0
      %p855 = por %p853, %p854
      %p856 = scmp.ne.s32.totalorder %s848, %s850
      %p857 = scmp.eq.s32.totalorder %s237, 1
      %p858 = por %p856, %p857
      %p859 = scmp.ne.s32.totalorder %s850, %s851
      %p860 = scmp.eq.s32.totalorder %s237, 0
      %p861 = por %p859, %p860
      %p862 = scmp.ne.s32.totalorder %s850, %s851
      %p863 = scmp.eq.s32.totalorder %s238, 1
      %p864 = por %p862, %p863
      %p866 = scmp.ne.s32.totalorder %s851, %s865
      %p867 = scmp.eq.s32.totalorder %s238, 0
      %p868 = por %p866, %p867
      %s870 = sadd.s32 %s869, 1
      %p873 = scmp.eq.s32.totalorder %s232, 1
      %p874 = scmp.ne.s32.totalorder %s869, %s871
      %p875 = scmp.eq.s32.totalorder %s232, 0
      %p876 = por %p874, %p875
      %p877 = scmp.ne.s32.totalorder %s869, %s871
      %p878 = scmp.eq.s32.totalorder %s237, 1
      %p879 = por %p877, %p878
      %p880 = scmp.ne.s32.totalorder %s871, %s872
      %p881 = scmp.eq.s32.totalorder %s237, 0
      %p882 = por %p880, %p881
      %p883 = scmp.ne.s32.totalorder %s871, %s872
      %p884 = scmp.eq.s32.totalorder %s238, 1
      %p885 = por %p883, %p884
      %p887 = scmp.ne.s32.totalorder %s872, %s886
      %p888 = scmp.eq.s32.totalorder %s238, 0
      %p889 = por %p887, %p888
      %s891 = sadd.s32 %s890, 1
      %p894 = scmp.eq.s32.totalorder %s232, 1
      %p895 = scmp.ne.s32.totalorder %s890, %s892
      %p896 = scmp.eq.s32.totalorder %s232, 0
      %p897 = por %p895, %p896
      %p898 = scmp.ne.s32.totalorder %s890, %s892
      %p899 = scmp.eq.s32.totalorder %s237, 1
      %p900 = por %p898, %p899
      %p901 = scmp.ne.s32.totalorder %s892, %s893
      %p902 = scmp.eq.s32.totalorder %s237, 0
      %p903 = por %p901, %p902
      %p904 = scmp.ne.s32.totalorder %s892, %s893
      %p905 = scmp.eq.s32.totalorder %s238, 1
      %p906 = por %p904, %p905
      %p908 = scmp.ne.s32.totalorder %s893, %s907
      %p909 = scmp.eq.s32.totalorder %s238, 0
      %p910 = por %p908, %p909
      %s912 = sadd.s32 %s911, 1
      %p915 = scmp.eq.s32.totalorder %s232, 1
      %p916 = scmp.ne.s32.totalorder %s911, %s913
      %p917 = scmp.eq.s32.totalorder %s232, 0
      %p918 = por %p916, %p917
      %p919 = scmp.ne.s32.totalorder %s911, %s913
      %p920 = scmp.eq.s32.totalorder %s237, 1
      %p921 = por %p919, %p920
      %p922 = scmp.ne.s32.totalorder %s913, %s914
      %p923 = scmp.eq.s32.totalorder %s237, 0
      %p924 = por %p922, %p923
      %p925 = scmp.ne.s32.totalorder %s913, %s914
      %p926 = scmp.eq.s32.totalorder %s238, 1
      %p927 = por %p925, %p926
      %p929 = scmp.ne.s32.totalorder %s914, %s928
      %p930 = scmp.eq.s32.totalorder %s238, 0
      %p931 = por %p929, %p930
      %s933 = sadd.s32 %s932, 1
      %p936 = scmp.eq.s32.totalorder %s232, 1
      %p937 = scmp.ne.s32.totalorder %s932, %s934
      %p938 = scmp.eq.s32.totalorder %s232, 0
      %p939 = por %p937, %p938
      %p940 = scmp.ne.s32.totalorder %s932, %s934
      %p941 = scmp.eq.s32.totalorder %s237, 1
      %p942 = por %p940, %p941
      %p943 = scmp.ne.s32.totalorder %s934, %s935
      %p944 = scmp.eq.s32.totalorder %s237, 0
      %p945 = por %p943, %p944
      %p946 = scmp.ne.s32.totalorder %s934, %s935
      %p947 = scmp.eq.s32.totalorder %s238, 1
      %p948 = por %p946, %p947
      %p950 = scmp.ne.s32.totalorder %s935, %s949
      %p951 = scmp.eq.s32.totalorder %s238, 0
      %p952 = por %p950, %p951
      %s954 = sadd.s32 %s953, 1
      %p957 = scmp.eq.s32.totalorder %s232, 1
      %p958 = scmp.ne.s32.totalorder %s953, %s955
      %p959 = scmp.eq.s32.totalorder %s232, 0
      %p960 = por %p958, %p959
      %p961 = scmp.ne.s32.totalorder %s953, %s955
      %p962 = scmp.eq.s32.totalorder %s237, 1
      %p963 = por %p961, %p962
      %p964 = scmp.ne.s32.totalorder %s955, %s956
      %p965 = scmp.eq.s32.totalorder %s237, 0
      %p966 = por %p964, %p965
      %p967 = scmp.ne.s32.totalorder %s955, %s956
      %p968 = scmp.eq.s32.totalorder %s238, 1
      %p969 = por %p967, %p968
      %p971 = scmp.ne.s32.totalorder %s956, %s970
      %p972 = scmp.eq.s32.totalorder %s238, 0
      %p973 = por %p971, %p972
      %s975 = sadd.s32 %s974, 1
      %p978 = scmp.eq.s32.totalorder %s232, 1
      %p979 = scmp.ne.s32.totalorder %s974, %s976
      %p980 = scmp.eq.s32.totalorder %s232, 0
      %p981 = por %p979, %p980
      %p982 = scmp.ne.s32.totalorder %s974, %s976
      %p983 = scmp.eq.s32.totalorder %s237, 1
      %p984 = por %p982, %p983
      %p985 = scmp.ne.s32.totalorder %s976, %s977
      %p986 = scmp.eq.s32.totalorder %s237, 0
      %p987 = por %p985, %p986
      %p988 = scmp.ne.s32.totalorder %s976, %s977
      %p989 = scmp.eq.s32.totalorder %s238, 1
      %p990 = por %p988, %p989
      %p992 = scmp.ne.s32.totalorder %s977, %s991
      %p993 = scmp.eq.s32.totalorder %s238, 0
      %p994 = por %p992, %p993
      %s996 = sadd.s32 %s995, 1
      %p999 = scmp.eq.s32.totalorder %s232, 1
      %p1000 = scmp.ne.s32.totalorder %s995, %s997
      %p1001 = scmp.eq.s32.totalorder %s232, 0
      %p1002 = por %p1000, %p1001
      %p1003 = scmp.ne.s32.totalorder %s995, %s997
      %p1004 = scmp.eq.s32.totalorder %s237, 1
      %p1005 = por %p1003, %p1004
      %p1006 = scmp.ne.s32.totalorder %s997, %s998
      %p1007 = scmp.eq.s32.totalorder %s237, 0
      %p1008 = por %p1006, %p1007
      %p1009 = scmp.ne.s32.totalorder %s997, %s998
      %p1010 = scmp.eq.s32.totalorder %s238, 1
      %p1011 = por %p1009, %p1010
      %p1013 = scmp.ne.s32.totalorder %s998, %s1012
      %p1014 = scmp.eq.s32.totalorder %s238, 0
      %p1015 = por %p1013, %p1014
      %s1017 = sadd.s32 %s1016, 1
      %p1020 = scmp.eq.s32.totalorder %s232, 1
      %p1021 = scmp.ne.s32.totalorder %s1016, %s1018
      %p1022 = scmp.eq.s32.totalorder %s232, 0
      %p1023 = por %p1021, %p1022
      %p1024 = scmp.ne.s32.totalorder %s1016, %s1018
      %p1025 = scmp.eq.s32.totalorder %s237, 1
      %p1026 = por %p1024, %p1025
      %p1027 = scmp.ne.s32.totalorder %s1018, %s1019
      %p1028 = scmp.eq.s32.totalorder %s237, 0
      %p1029 = por %p1027, %p1028
      %p1030 = scmp.ne.s32.totalorder %s1018, %s1019
      %p1031 = scmp.eq.s32.totalorder %s238, 1
      %p1032 = por %p1030, %p1031
      %p1034 = scmp.ne.s32.totalorder %s1019, %s1033
      %p1035 = scmp.eq.s32.totalorder %s238, 0
      %p1036 = por %p1034, %p1035
      %s1038 = sadd.s32 %s1037, 1
      %p1041 = scmp.eq.s32.totalorder %s232, 1
      %p1042 = scmp.ne.s32.totalorder %s1037, %s1039
      %p1043 = scmp.eq.s32.totalorder %s232, 0
      %p1044 = por %p1042, %p1043
      %p1045 = scmp.ne.s32.totalorder %s1037, %s1039
      %p1046 = scmp.eq.s32.totalorder %s237, 1
      %p1047 = por %p1045, %p1046
      %p1048 = scmp.ne.s32.totalorder %s1039, %s1040
      %p1049 = scmp.eq.s32.totalorder %s237, 0
      %p1050 = por %p1048, %p1049
      %p1051 = scmp.ne.s32.totalorder %s1039, %s1040
      %p1052 = scmp.eq.s32.totalorder %s238, 1
      %p1053 = por %p1051, %p1052
      %p1055 = scmp.ne.s32.totalorder %s1040, %s1054
      %p1056 = scmp.eq.s32.totalorder %s238, 0
      %p1057 = por %p1055, %p1056
      %s1059 = sadd.s32 %s1058, 1
      %p1062 = scmp.eq.s32.totalorder %s232, 1
      %p1063 = scmp.ne.s32.totalorder %s1058, %s1060
      %p1064 = scmp.eq.s32.totalorder %s232, 0
      %p1065 = por %p1063, %p1064
      %p1066 = scmp.ne.s32.totalorder %s1058, %s1060
      %p1067 = scmp.eq.s32.totalorder %s237, 1
      %p1068 = por %p1066, %p1067
      %p1069 = scmp.ne.s32.totalorder %s1060, %s1061
      %p1070 = scmp.eq.s32.totalorder %s237, 0
      %p1071 = por %p1069, %p1070
      %p1072 = scmp.ne.s32.totalorder %s1060, %s1061
      %p1073 = scmp.eq.s32.totalorder %s238, 1
      %p1074 = por %p1072, %p1073
      %p1076 = scmp.ne.s32.totalorder %s1061, %s1075
      %p1077 = scmp.eq.s32.totalorder %s238, 0
      %p1078 = por %p1076, %p1077
      %s1080 = sadd.s32 %s1079, 1
      %p1083 = scmp.eq.s32.totalorder %s232, 1
      %p1084 = scmp.ne.s32.totalorder %s1079, %s1081
      %p1085 = scmp.eq.s32.totalorder %s232, 0
      %p1086 = por %p1084, %p1085
      %p1087 = scmp.ne.s32.totalorder %s1079, %s1081
      %p1088 = scmp.eq.s32.totalorder %s237, 1
      %p1089 = por %p1087, %p1088
      %p1090 = scmp.ne.s32.totalorder %s1081, %s1082
      %p1091 = scmp.eq.s32.totalorder %s237, 0
      %p1092 = por %p1090, %p1091
      %p1093 = scmp.ne.s32.totalorder %s1081, %s1082
      %p1094 = scmp.eq.s32.totalorder %s238, 1
      %p1095 = por %p1093, %p1094
      %p1097 = scmp.ne.s32.totalorder %s1082, %s1096
      %p1098 = scmp.eq.s32.totalorder %s238, 0
      %p1099 = por %p1097, %p1098
      %s1101 = sadd.s32 %s1100, 1
      %p1104 = scmp.eq.s32.totalorder %s232, 1
      %p1105 = scmp.ne.s32.totalorder %s1100, %s1102
      %p1106 = scmp.eq.s32.totalorder %s232, 0
      %p1107 = por %p1105, %p1106
      %p1108 = scmp.ne.s32.totalorder %s1100, %s1102
      %p1109 = scmp.eq.s32.totalorder %s237, 1
      %p1110 = por %p1108, %p1109
      %p1111 = scmp.ne.s32.totalorder %s1102, %s1103
      %p1112 = scmp.eq.s32.totalorder %s237, 0
      %p1113 = por %p1111, %p1112
      %p1114 = scmp.ne.s32.totalorder %s1102, %s1103
      %p1115 = scmp.eq.s32.totalorder %s238, 1
      %p1116 = por %p1114, %p1115
      %p1118 = scmp.ne.s32.totalorder %s1103, %s1117
      %p1119 = scmp.eq.s32.totalorder %s238, 0
      %p1120 = por %p1118, %p1119
      %s1122 = sadd.s32 %s1121, 1
      %p1125 = scmp.eq.s32.totalorder %s232, 1
      %p1126 = scmp.ne.s32.totalorder %s1121, %s1123
      %p1127 = scmp.eq.s32.totalorder %s232, 0
      %p1128 = por %p1126, %p1127
      %p1129 = scmp.ne.s32.totalorder %s1121, %s1123
      %p1130 = scmp.eq.s32.totalorder %s237, 1
      %p1131 = por %p1129, %p1130
      %p1132 = scmp.ne.s32.totalorder %s1123, %s1124
      %p1133 = scmp.eq.s32.totalorder %s237, 0
      %p1134 = por %p1132, %p1133
      %p1135 = scmp.ne.s32.totalorder %s1123, %s1124
      %p1136 = scmp.eq.s32.totalorder %s238, 1
      %p1137 = por %p1135, %p1136
      %p1139 = scmp.ne.s32.totalorder %s1124, %s1138
      %p1140 = scmp.eq.s32.totalorder %s238, 0
      %p1141 = por %p1139, %p1140
      %s1143 = sadd.s32 %s1142, 1
      %p1146 = scmp.eq.s32.totalorder %s232, 1
      %p1147 = scmp.ne.s32.totalorder %s1142, %s1144
      %p1148 = scmp.eq.s32.totalorder %s232, 0
      %p1149 = por %p1147, %p1148
      %p1150 = scmp.ne.s32.totalorder %s1142, %s1144
      %p1151 = scmp.eq.s32.totalorder %s237, 1
      %p1152 = por %p1150, %p1151
      %p1153 = scmp.ne.s32.totalorder %s1144, %s1145
      %p1154 = scmp.eq.s32.totalorder %s237, 0
      %p1155 = por %p1153, %p1154
      %p1156 = scmp.ne.s32.totalorder %s1144, %s1145
      %p1157 = scmp.eq.s32.totalorder %s238, 1
      %p1158 = por %p1156, %p1157
      %p1160 = scmp.ne.s32.totalorder %s1145, %s1159
      %p1161 = scmp.eq.s32.totalorder %s238, 0
      %p1162 = por %p1160, %p1161
      %s1164 = sadd.s32 %s1163, 1
      %p1167 = scmp.eq.s32.totalorder %s232, 1
      %p1168 = scmp.ne.s32.totalorder %s1163, %s1165
      %p1169 = scmp.eq.s32.totalorder %s232, 0
      %p1170 = por %p1168, %p1169
      %p1171 = scmp.ne.s32.totalorder %s1163, %s1165
      %p1172 = scmp.eq.s32.totalorder %s237, 1
      %p1173 = por %p1171, %p1172
      %p1174 = scmp.ne.s32.totalorder %s1165, %s1166
      %p1175 = scmp.eq.s32.totalorder %s237, 0
      %p1176 = por %p1174, %p1175
      %p1177 = scmp.ne.s32.totalorder %s1165, %s1166
      %p1178 = scmp.eq.s32.totalorder %s238, 1
      %p1179 = por %p1177, %p1178
      %p1181 = scmp.ne.s32.totalorder %s1166, %s1180
      %p1182 = scmp.eq.s32.totalorder %s238, 0
      %p1183 = por %p1181, %p1182
      %s1185 = sadd.s32 %s1184, 1
      %p1188 = scmp.eq.s32.totalorder %s232, 1
      %p1189 = scmp.ne.s32.totalorder %s1184, %s1186
      %p1190 = scmp.eq.s32.totalorder %s232, 0
      %p1191 = por %p1189, %p1190
      %p1192 = scmp.ne.s32.totalorder %s1184, %s1186
      %p1193 = scmp.eq.s32.totalorder %s237, 1
      %p1194 = por %p1192, %p1193
      %p1195 = scmp.ne.s32.totalorder %s1186, %s1187
      %p1196 = scmp.eq.s32.totalorder %s237, 0
      %p1197 = por %p1195, %p1196
      %p1198 = scmp.ne.s32.totalorder %s1186, %s1187
      %p1199 = scmp.eq.s32.totalorder %s238, 1
      %p1200 = por %p1198, %p1199
      %p1202 = scmp.ne.s32.totalorder %s1187, %s1201
      %p1203 = scmp.eq.s32.totalorder %s238, 0
      %p1204 = por %p1202, %p1203
      %s1206 = sadd.s32 %s1205, 1
      %p1209 = scmp.eq.s32.totalorder %s232, 1
      %p1210 = scmp.ne.s32.totalorder %s1205, %s1207
      %p1211 = scmp.eq.s32.totalorder %s232, 0
      %p1212 = por %p1210, %p1211
      %p1213 = scmp.ne.s32.totalorder %s1205, %s1207
      %p1214 = scmp.eq.s32.totalorder %s237, 1
      %p1215 = por %p1213, %p1214
      %p1216 = scmp.ne.s32.totalorder %s1207, %s1208
      %p1217 = scmp.eq.s32.totalorder %s237, 0
      %p1218 = por %p1216, %p1217
      %p1219 = scmp.ne.s32.totalorder %s1207, %s1208
      %p1220 = scmp.eq.s32.totalorder %s238, 1
      %p1221 = por %p1219, %p1220
      %p1223 = scmp.ne.s32.totalorder %s1208, %s1222
      %p1224 = scmp.eq.s32.totalorder %s238, 0
      %p1225 = por %p1223, %p1224
      %s1227 = sadd.s32 %s1226, 1
      %p1230 = scmp.eq.s32.totalorder %s232, 1
      %p1231 = scmp.ne.s32.totalorder %s1226, %s1228
      %p1232 = scmp.eq.s32.totalorder %s232, 0
      %p1233 = por %p1231, %p1232
      %p1234 = scmp.ne.s32.totalorder %s1226, %s1228
      %p1235 = scmp.eq.s32.totalorder %s237, 1
      %p1236 = por %p1234, %p1235
      %p1237 = scmp.ne.s32.totalorder %s1228, %s1229
      %p1238 = scmp.eq.s32.totalorder %s237, 0
      %p1239 = por %p1237, %p1238
      %p1240 = scmp.ne.s32.totalorder %s1228, %s1229
      %p1241 = scmp.eq.s32.totalorder %s238, 1
      %p1242 = por %p1240, %p1241
      %p1244 = scmp.ne.s32.totalorder %s1229, %s1243
      %p1245 = scmp.eq.s32.totalorder %s238, 0
      %p1246 = por %p1244, %p1245
      %s1248 = sadd.s32 %s1247, 1
      %p1251 = scmp.eq.s32.totalorder %s232, 1
      %p1252 = scmp.ne.s32.totalorder %s1247, %s1249
      %p1253 = scmp.eq.s32.totalorder %s232, 0
      %p1254 = por %p1252, %p1253
      %p1255 = scmp.ne.s32.totalorder %s1247, %s1249
      %p1256 = scmp.eq.s32.totalorder %s237, 1
      %p1257 = por %p1255, %p1256
      %p1258 = scmp.ne.s32.totalorder %s1249, %s1250
      %p1259 = scmp.eq.s32.totalorder %s237, 0
      %p1260 = por %p1258, %p1259
      %p1261 = scmp.ne.s32.totalorder %s1249, %s1250
      %p1262 = scmp.eq.s32.totalorder %s238, 1
      %p1263 = por %p1261, %p1262
      %p1265 = scmp.ne.s32.totalorder %s1250, %s1264
      %p1266 = scmp.eq.s32.totalorder %s238, 0
      %p1267 = por %p1265, %p1266
      %s1269 = sadd.s32 %s1268, 1
      %p1272 = scmp.eq.s32.totalorder %s232, 1
      %p1273 = scmp.ne.s32.totalorder %s1268, %s1270
      %p1274 = scmp.eq.s32.totalorder %s232, 0
      %p1275 = por %p1273, %p1274
      %p1276 = scmp.ne.s32.totalorder %s1268, %s1270
      %p1277 = scmp.eq.s32.totalorder %s237, 1
      %p1278 = por %p1276, %p1277
      %p1279 = scmp.ne.s32.totalorder %s1270, %s1271
      %p1280 = scmp.eq.s32.totalorder %s237, 0
      %p1281 = por %p1279, %p1280
      %p1282 = scmp.ne.s32.totalorder %s1270, %s1271
      %p1283 = scmp.eq.s32.totalorder %s238, 1
      %p1284 = por %p1282, %p1283
      %p1286 = scmp.ne.s32.totalorder %s1271, %s1285
      %p1287 = scmp.eq.s32.totalorder %s238, 0
      %p1288 = por %p1286, %p1287
      %s1290 = sadd.s32 %s1289, 1
      %p1293 = scmp.eq.s32.totalorder %s232, 1
      %p1294 = scmp.ne.s32.totalorder %s1289, %s1291
      %p1295 = scmp.eq.s32.totalorder %s232, 0
      %p1296 = por %p1294, %p1295
      %p1297 = scmp.ne.s32.totalorder %s1289, %s1291
      %p1298 = scmp.eq.s32.totalorder %s237, 1
      %p1299 = por %p1297, %p1298
      %p1300 = scmp.ne.s32.totalorder %s1291, %s1292
      %p1301 = scmp.eq.s32.totalorder %s237, 0
      %p1302 = por %p1300, %p1301
      %p1303 = scmp.ne.s32.totalorder %s1291, %s1292
      %p1304 = scmp.eq.s32.totalorder %s238, 1
      %p1305 = por %p1303, %p1304
      %p1307 = scmp.ne.s32.totalorder %s1292, %s1306
      %p1308 = scmp.eq.s32.totalorder %s238, 0
      %p1309 = por %p1307, %p1308
      %s1311 = sadd.s32 %s1310, 1
      %p1314 = scmp.eq.s32.totalorder %s232, 1
      %p1315 = scmp.ne.s32.totalorder %s1310, %s1312
      %p1316 = scmp.eq.s32.totalorder %s232, 0
      %p1317 = por %p1315, %p1316
      %p1318 = scmp.ne.s32.totalorder %s1310, %s1312
      %p1319 = scmp.eq.s32.totalorder %s237, 1
      %p1320 = por %p1318, %p1319
      %p1321 = scmp.ne.s32.totalorder %s1312, %s1313
      %p1322 = scmp.eq.s32.totalorder %s237, 0
      %p1323 = por %p1321, %p1322
      %p1324 = scmp.ne.s32.totalorder %s1312, %s1313
      %p1325 = scmp.eq.s32.totalorder %s238, 1
      %p1326 = por %p1324, %p1325
      %p1328 = scmp.ne.s32.totalorder %s1313, %s1327
      %p1329 = scmp.eq.s32.totalorder %s238, 0
      %p1330 = por %p1328, %p1329
      %s1332 = sadd.s32 %s1331, 1
      %p1335 = scmp.eq.s32.totalorder %s232, 1
      %p1336 = scmp.ne.s32.totalorder %s1331, %s1333
      %p1337 = scmp.eq.s32.totalorder %s232, 0
      %p1338 = por %p1336, %p1337
      %p1339 = scmp.ne.s32.totalorder %s1331, %s1333
      %p1340 = scmp.eq.s32.totalorder %s237, 1
      %p1341 = por %p1339, %p1340
      %p1342 = scmp.ne.s32.totalorder %s1333, %s1334
      %p1343 = scmp.eq.s32.totalorder %s237, 0
      %p1344 = por %p1342, %p1343
      %p1345 = scmp.ne.s32.totalorder %s1333, %s1334
      %p1346 = scmp.eq.s32.totalorder %s238, 1
      %p1347 = por %p1345, %p1346
      %p1349 = scmp.ne.s32.totalorder %s1334, %s1348
      %p1350 = scmp.eq.s32.totalorder %s238, 0
      %p1351 = por %p1349, %p1350
      %s1353 = sadd.s32 %s1352, 1
      %p1356 = scmp.eq.s32.totalorder %s232, 1
      %p1357 = scmp.ne.s32.totalorder %s1352, %s1354
      %p1358 = scmp.eq.s32.totalorder %s232, 0
      %p1359 = por %p1357, %p1358
      %p1360 = scmp.ne.s32.totalorder %s1352, %s1354
      %p1361 = scmp.eq.s32.totalorder %s237, 1
      %p1362 = por %p1360, %p1361
      %p1363 = scmp.ne.s32.totalorder %s1354, %s1355
      %p1364 = scmp.eq.s32.totalorder %s237, 0
      %p1365 = por %p1363, %p1364
      %p1366 = scmp.ne.s32.totalorder %s1354, %s1355
      %p1367 = scmp.eq.s32.totalorder %s238, 1
      %p1368 = por %p1366, %p1367
      %p1370 = scmp.ne.s32.totalorder %s1355, %s1369
      %p1371 = scmp.eq.s32.totalorder %s238, 0
      %p1372 = por %p1370, %p1371
      %s1374 = sadd.s32 %s1373, 1
      %p1377 = scmp.eq.s32.totalorder %s232, 1
      %p1378 = scmp.ne.s32.totalorder %s1373, %s1375
      %p1379 = scmp.eq.s32.totalorder %s232, 0
      %p1380 = por %p1378, %p1379
      %p1381 = scmp.ne.s32.totalorder %s1373, %s1375
      %p1382 = scmp.eq.s32.totalorder %s237, 1
      %p1383 = por %p1381, %p1382
      %p1384 = scmp.ne.s32.totalorder %s1375, %s1376
      %p1385 = scmp.eq.s32.totalorder %s237, 0
      %p1386 = por %p1384, %p1385
      %p1387 = scmp.ne.s32.totalorder %s1375, %s1376
      %p1388 = scmp.eq.s32.totalorder %s238, 1
      %p1389 = por %p1387, %p1388
      %p1391 = scmp.ne.s32.totalorder %s1376, %s1390
      %p1392 = scmp.eq.s32.totalorder %s238, 0
      %p1393 = por %p1391, %p1392
      %s1395 = sadd.s32 %s1394, 1
      %p1398 = scmp.eq.s32.totalorder %s232, 1
      %p1399 = scmp.ne.s32.totalorder %s1394, %s1396
      %p1400 = scmp.eq.s32.totalorder %s232, 0
      %p1401 = por %p1399, %p1400
      %p1402 = scmp.ne.s32.totalorder %s1394, %s1396
      %p1403 = scmp.eq.s32.totalorder %s237, 1
      %p1404 = por %p1402, %p1403
      %p1405 = scmp.ne.s32.totalorder %s1396, %s1397
      %p1406 = scmp.eq.s32.totalorder %s237, 0
      %p1407 = por %p1405, %p1406
      %p1408 = scmp.ne.s32.totalorder %s1396, %s1397
      %p1409 = scmp.eq.s32.totalorder %s238, 1
      %p1410 = por %p1408, %p1409
      %p1412 = scmp.ne.s32.totalorder %s1397, %s1411
      %p1413 = scmp.eq.s32.totalorder %s238, 0
      %p1414 = por %p1412, %p1413
      %s1416 = sadd.s32 %s1415, 1
      %p1419 = scmp.eq.s32.totalorder %s232, 1
      %p1420 = scmp.ne.s32.totalorder %s1415, %s1417
      %p1421 = scmp.eq.s32.totalorder %s232, 0
      %p1422 = por %p1420, %p1421
      %p1423 = scmp.ne.s32.totalorder %s1415, %s1417
      %p1424 = scmp.eq.s32.totalorder %s237, 1
      %p1425 = por %p1423, %p1424
      %p1426 = scmp.ne.s32.totalorder %s1417, %s1418
      %p1427 = scmp.eq.s32.totalorder %s237, 0
      %p1428 = por %p1426, %p1427
      %p1429 = scmp.ne.s32.totalorder %s1417, %s1418
      %p1430 = scmp.eq.s32.totalorder %s238, 1
      %p1431 = por %p1429, %p1430
      %p1433 = scmp.ne.s32.totalorder %s1418, %s1432
      %p1434 = scmp.eq.s32.totalorder %s238, 0
      %p1435 = por %p1433, %p1434
      %s1437 = sadd.s32 %s1436, 1
      %p1440 = scmp.eq.s32.totalorder %s232, 1
      %p1441 = scmp.ne.s32.totalorder %s1436, %s1438
      %p1442 = scmp.eq.s32.totalorder %s232, 0
      %p1443 = por %p1441, %p1442
      %p1444 = scmp.ne.s32.totalorder %s1436, %s1438
      %p1445 = scmp.eq.s32.totalorder %s237, 1
      %p1446 = por %p1444, %p1445
      %p1447 = scmp.ne.s32.totalorder %s1438, %s1439
      %p1448 = scmp.eq.s32.totalorder %s237, 0
      %p1449 = por %p1447, %p1448
      %p1450 = scmp.ne.s32.totalorder %s1438, %s1439
      %p1451 = scmp.eq.s32.totalorder %s238, 1
      %p1452 = por %p1450, %p1451
      %p1454 = scmp.ne.s32.totalorder %s1439, %s1453
      %p1455 = scmp.eq.s32.totalorder %s238, 0
      %p1456 = por %p1454, %p1455
      %s1458 = sadd.s32 %s1457, 1
      %p1461 = scmp.eq.s32.totalorder %s232, 1
      %p1462 = scmp.ne.s32.totalorder %s1457, %s1459
      %p1463 = scmp.eq.s32.totalorder %s232, 0
      %p1464 = por %p1462, %p1463
      %p1465 = scmp.ne.s32.totalorder %s1457, %s1459
      %p1466 = scmp.eq.s32.totalorder %s237, 1
      %p1467 = por %p1465, %p1466
      %p1468 = scmp.ne.s32.totalorder %s1459, %s1460
      %p1469 = scmp.eq.s32.totalorder %s237, 0
      %p1470 = por %p1468, %p1469
      %p1471 = scmp.ne.s32.totalorder %s1459, %s1460
      %p1472 = scmp.eq.s32.totalorder %s238, 1
      %p1473 = por %p1471, %p1472
      %p1475 = scmp.ne.s32.totalorder %s1460, %s1474
      %p1476 = scmp.eq.s32.totalorder %s238, 0
      %p1477 = por %p1475, %p1476
      %s1479 = sadd.s32 %s1478, 1
      %p1482 = scmp.eq.s32.totalorder %s232, 1
      %p1483 = scmp.ne.s32.totalorder %s1478, %s1480
      %p1484 = scmp.eq.s32.totalorder %s232, 0
      %p1485 = por %p1483, %p1484
      %p1486 = scmp.ne.s32.totalorder %s1478, %s1480
      %p1487 = scmp.eq.s32.totalorder %s237, 1
      %p1488 = por %p1486, %p1487
      %p1489 = scmp.ne.s32.totalorder %s1480, %s1481
      %p1490 = scmp.eq.s32.totalorder %s237, 0
      %p1491 = por %p1489, %p1490
      %p1492 = scmp.ne.s32.totalorder %s1480, %s1481
      %p1493 = scmp.eq.s32.totalorder %s238, 1
      %p1494 = por %p1492, %p1493
      %p1496 = scmp.ne.s32.totalorder %s1481, %s1495
      %p1497 = scmp.eq.s32.totalorder %s238, 0
      %p1498 = por %p1496, %p1497
      %s1500 = sadd.s32 %s1499, 1
      %p1503 = scmp.eq.s32.totalorder %s232, 1
      %p1504 = scmp.ne.s32.totalorder %s1499, %s1501
      %p1505 = scmp.eq.s32.totalorder %s232, 0
      %p1506 = por %p1504, %p1505
      %p1507 = scmp.ne.s32.totalorder %s1499, %s1501
      %p1508 = scmp.eq.s32.totalorder %s237, 1
      %p1509 = por %p1507, %p1508
      %p1510 = scmp.ne.s32.totalorder %s1501, %s1502
      %p1511 = scmp.eq.s32.totalorder %s237, 0
      %p1512 = por %p1510, %p1511
      %p1513 = scmp.ne.s32.totalorder %s1501, %s1502
      %p1514 = scmp.eq.s32.totalorder %s238, 1
      %p1515 = por %p1513, %p1514
      %p1517 = scmp.ne.s32.totalorder %s1502, %s1516
      %p1518 = scmp.eq.s32.totalorder %s238, 0
      %p1519 = por %p1517, %p1518
      %s1521 = sadd.s32 %s1520, 1
      %p1524 = scmp.eq.s32.totalorder %s232, 1
      %p1525 = scmp.ne.s32.totalorder %s1520, %s1522
      %p1526 = scmp.eq.s32.totalorder %s232, 0
      %p1527 = por %p1525, %p1526
      %p1528 = scmp.ne.s32.totalorder %s1520, %s1522
      %p1529 = scmp.eq.s32.totalorder %s237, 1
      %p1530 = por %p1528, %p1529
      %p1531 = scmp.ne.s32.totalorder %s1522, %s1523
      %p1532 = scmp.eq.s32.totalorder %s237, 0
      %p1533 = por %p1531, %p1532
      %p1534 = scmp.ne.s32.totalorder %s1522, %s1523
      %p1535 = scmp.eq.s32.totalorder %s238, 1
      %p1536 = por %p1534, %p1535
      %p1538 = scmp.ne.s32.totalorder %s1523, %s1537
      %p1539 = scmp.eq.s32.totalorder %s238, 0
      %p1540 = por %p1538, %p1539
      %s1542 = sadd.s32 %s1541, 1
      %p1545 = scmp.eq.s32.totalorder %s232, 1
      %p1546 = scmp.ne.s32.totalorder %s1541, %s1543
      %p1547 = scmp.eq.s32.totalorder %s232, 0
      %p1548 = por %p1546, %p1547
      %p1549 = scmp.ne.s32.totalorder %s1541, %s1543
      %p1550 = scmp.eq.s32.totalorder %s237, 1
      %p1551 = por %p1549, %p1550
      %p1552 = scmp.ne.s32.totalorder %s1543, %s1544
      %p1553 = scmp.eq.s32.totalorder %s237, 0
      %p1554 = por %p1552, %p1553
      %p1555 = scmp.ne.s32.totalorder %s1543, %s1544
      %p1556 = scmp.eq.s32.totalorder %s238, 1
      %p1557 = por %p1555, %p1556
      %p1559 = scmp.ne.s32.totalorder %s1544, %s1558
      %p1560 = scmp.eq.s32.totalorder %s238, 0
      %p1561 = por %p1559, %p1560
      %s1563 = sadd.s32 %s1562, 1
      %p1566 = scmp.eq.s32.totalorder %s232, 1
      %p1567 = scmp.ne.s32.totalorder %s1562, %s1564
      %p1568 = scmp.eq.s32.totalorder %s232, 0
      %p1569 = por %p1567, %p1568
      %p1570 = scmp.ne.s32.totalorder %s1562, %s1564
      %p1571 = scmp.eq.s32.totalorder %s237, 1
      %p1572 = por %p1570, %p1571
      %p1573 = scmp.ne.s32.totalorder %s1564, %s1565
      %p1574 = scmp.eq.s32.totalorder %s237, 0
      %p1575 = por %p1573, %p1574
      %p1576 = scmp.ne.s32.totalorder %s1564, %s1565
      %p1577 = scmp.eq.s32.totalorder %s238, 1
      %p1578 = por %p1576, %p1577
      %p1580 = scmp.ne.s32.totalorder %s1565, %s1579
      %p1581 = scmp.eq.s32.totalorder %s238, 0
      %p1582 = por %p1580, %p1581
      %s1584 = sadd.s32 %s1583, 1
      %p1587 = scmp.eq.s32.totalorder %s232, 1
      %p1588 = scmp.ne.s32.totalorder %s1583, %s1585
      %p1589 = scmp.eq.s32.totalorder %s232, 0
      %p1590 = por %p1588, %p1589
      %p1591 = scmp.ne.s32.totalorder %s1583, %s1585
      %p1592 = scmp.eq.s32.totalorder %s237, 1
      %p1593 = por %p1591, %p1592
      %p1594 = scmp.ne.s32.totalorder %s1585, %s1586
      %p1595 = scmp.eq.s32.totalorder %s237, 0
      %p1596 = por %p1594, %p1595
      %p1597 = scmp.ne.s32.totalorder %s1585, %s1586
      %p1598 = scmp.eq.s32.totalorder %s238, 1
      %p1599 = por %p1597, %p1598
      %p1601 = scmp.ne.s32.totalorder %s1586, %s1600
      %p1602 = scmp.eq.s32.totalorder %s238, 0
      %p1603 = por %p1601, %p1602
      %s1605 = sadd.s32 %s1604, 1
      %p1608 = scmp.eq.s32.totalorder %s232, 1
      %p1609 = scmp.ne.s32.totalorder %s1604, %s1606
      %p1610 = scmp.eq.s32.totalorder %s232, 0
      %p1611 = por %p1609, %p1610
      %p1612 = scmp.ne.s32.totalorder %s1604, %s1606
      %p1613 = scmp.eq.s32.totalorder %s237, 1
      %p1614 = por %p1612, %p1613
      %p1615 = scmp.ne.s32.totalorder %s1606, %s1607
      %p1616 = scmp.eq.s32.totalorder %s237, 0
      %p1617 = por %p1615, %p1616
      %p1618 = scmp.ne.s32.totalorder %s1606, %s1607
      %p1619 = scmp.eq.s32.totalorder %s238, 1
      %p1620 = por %p1618, %p1619
      %p1622 = scmp.ne.s32.totalorder %s1607, %s1621
      %p1623 = scmp.eq.s32.totalorder %s238, 0
      %p1624 = por %p1622, %p1623
      %s1626 = sadd.s32 %s1625, 1
      %p1629 = scmp.eq.s32.totalorder %s232, 1
      %p1630 = scmp.ne.s32.totalorder %s1625, %s1627
      %p1631 = scmp.eq.s32.totalorder %s232, 0
      %p1632 = por %p1630, %p1631
      %p1633 = scmp.ne.s32.totalorder %s1625, %s1627
      %p1634 = scmp.eq.s32.totalorder %s237, 1
      %p1635 = por %p1633, %p1634
      %p1636 = scmp.ne.s32.totalorder %s1627, %s1628
      %p1637 = scmp.eq.s32.totalorder %s237, 0
      %p1638 = por %p1636, %p1637
      %p1639 = scmp.ne.s32.totalorder %s1627, %s1628
      %p1640 = scmp.eq.s32.totalorder %s238, 1
      %p1641 = por %p1639, %p1640
      %p1643 = scmp.ne.s32.totalorder %s1628, %s1642
      %p1644 = scmp.eq.s32.totalorder %s238, 0
      %p1645 = por %p1643, %p1644
      %s1647 = sadd.s32 %s1646, 1
      %p1650 = scmp.eq.s32.totalorder %s232, 1
      %p1651 = scmp.ne.s32.totalorder %s1646, %s1648
      %p1652 = scmp.eq.s32.totalorder %s232, 0
      %p1653 = por %p1651, %p1652
      %p1654 = scmp.ne.s32.totalorder %s1646, %s1648
      %p1655 = scmp.eq.s32.totalorder %s237, 1
      %p1656 = por %p1654, %p1655
      %p1657 = scmp.ne.s32.totalorder %s1648, %s1649
      %p1658 = scmp.eq.s32.totalorder %s237, 0
      %p1659 = por %p1657, %p1658
      %p1660 = scmp.ne.s32.totalorder %s1648, %s1649
      %p1661 = scmp.eq.s32.totalorder %s238, 1
      %p1662 = por %p1660, %p1661
      %p1664 = scmp.ne.s32.totalorder %s1649, %s1663
      %p1665 = scmp.eq.s32.totalorder %s238, 0
      %p1666 = por %p1664, %p1665
      %s1668 = sadd.s32 %s1667, 1
      %p1671 = scmp.eq.s32.totalorder %s232, 1
      %p1672 = scmp.ne.s32.totalorder %s1667, %s1669
      %p1673 = scmp.eq.s32.totalorder %s232, 0
      %p1674 = por %p1672, %p1673
      %p1675 = scmp.ne.s32.totalorder %s1667, %s1669
      %p1676 = scmp.eq.s32.totalorder %s237, 1
      %p1677 = por %p1675, %p1676
      %p1678 = scmp.ne.s32.totalorder %s1669, %s1670
      %p1679 = scmp.eq.s32.totalorder %s237, 0
      %p1680 = por %p1678, %p1679
      %p1681 = scmp.ne.s32.totalorder %s1669, %s1670
      %p1682 = scmp.eq.s32.totalorder %s238, 1
      %p1683 = por %p1681, %p1682
      %p1685 = scmp.ne.s32.totalorder %s1670, %s1684
      %p1686 = scmp.eq.s32.totalorder %s238, 0
      %p1687 = por %p1685, %p1686
      %s1689 = sadd.s32 %s1688, 1
      %p1692 = scmp.eq.s32.totalorder %s232, 1
      %p1693 = scmp.ne.s32.totalorder %s1688, %s1690
      %p1694 = scmp.eq.s32.totalorder %s232, 0
      %p1695 = por %p1693, %p1694
      %p1696 = scmp.ne.s32.totalorder %s1688, %s1690
      %p1697 = scmp.eq.s32.totalorder %s237, 1
      %p1698 = por %p1696, %p1697
      %p1699 = scmp.ne.s32.totalorder %s1690, %s1691
      %p1700 = scmp.eq.s32.totalorder %s237, 0
      %p1701 = por %p1699, %p1700
      %p1702 = scmp.ne.s32.totalorder %s1690, %s1691
      %p1703 = scmp.eq.s32.totalorder %s238, 1
      %p1704 = por %p1702, %p1703
      %p1706 = scmp.ne.s32.totalorder %s1691, %s1705
      %p1707 = scmp.eq.s32.totalorder %s238, 0
      %p1708 = por %p1706, %p1707
      %s1710 = sadd.s32 %s1709, 1
      %p1713 = scmp.eq.s32.totalorder %s232, 1
      %p1714 = scmp.ne.s32.totalorder %s1709, %s1711
      %p1715 = scmp.eq.s32.totalorder %s232, 0
      %p1716 = por %p1714, %p1715
      %p1717 = scmp.ne.s32.totalorder %s1709, %s1711
      %p1718 = scmp.eq.s32.totalorder %s237, 1
      %p1719 = por %p1717, %p1718
      %p1720 = scmp.ne.s32.totalorder %s1711, %s1712
      %p1721 = scmp.eq.s32.totalorder %s237, 0
      %p1722 = por %p1720, %p1721
      %p1723 = scmp.ne.s32.totalorder %s1711, %s1712
      %p1724 = scmp.eq.s32.totalorder %s238, 1
      %p1725 = por %p1723, %p1724
      %p1727 = scmp.ne.s32.totalorder %s1712, %s1726
      %p1728 = scmp.eq.s32.totalorder %s238, 0
      %p1729 = por %p1727, %p1728
      %s1731 = sadd.s32 %s1730, 1
      %p1734 = scmp.eq.s32.totalorder %s232, 1
      %p1735 = scmp.ne.s32.totalorder %s1730, %s1732
      %p1736 = scmp.eq.s32.totalorder %s232, 0
      %p1737 = por %p1735, %p1736
      %p1738 = scmp.ne.s32.totalorder %s1730, %s1732
      %p1739 = scmp.eq.s32.totalorder %s237, 1
      %p1740 = por %p1738, %p1739
      %p1741 = scmp.ne.s32.totalorder %s1732, %s1733
      %p1742 = scmp.eq.s32.totalorder %s237, 0
      %p1743 = por %p1741, %p1742
      %p1744 = scmp.ne.s32.totalorder %s1732, %s1733
      %p1745 = scmp.eq.s32.totalorder %s238, 1
      %p1746 = por %p1744, %p1745
      %p1748 = scmp.ne.s32.totalorder %s1733, %s1747
      %p1749 = scmp.eq.s32.totalorder %s238, 0
      %p1750 = por %p1748, %p1749
      %s1752 = sadd.s32 %s1751, 1
      %p1755 = scmp.eq.s32.totalorder %s232, 1
      %p1756 = scmp.ne.s32.totalorder %s1751, %s1753
      %p1757 = scmp.eq.s32.totalorder %s232, 0
      %p1758 = por %p1756, %p1757
      %p1759 = scmp.ne.s32.totalorder %s1751, %s1753
      %p1760 = scmp.eq.s32.totalorder %s237, 1
      %p1761 = por %p1759, %p1760
      %p1762 = scmp.ne.s32.totalorder %s1753, %s1754
      %p1763 = scmp.eq.s32.totalorder %s237, 0
      %p1764 = por %p1762, %p1763
      %p1765 = scmp.ne.s32.totalorder %s1753, %s1754
      %p1766 = scmp.eq.s32.totalorder %s238, 1
      %p1767 = por %p1765, %p1766
      %p1769 = scmp.ne.s32.totalorder %s1754, %s1768
      %p1770 = scmp.eq.s32.totalorder %s238, 0
      %p1771 = por %p1769, %p1770
      %s1773 = sadd.s32 %s1772, 1
      %p1776 = scmp.eq.s32.totalorder %s232, 1
      %p1777 = scmp.ne.s32.totalorder %s1772, %s1774
      %p1778 = scmp.eq.s32.totalorder %s232, 0
      %p1779 = por %p1777, %p1778
      %p1780 = scmp.ne.s32.totalorder %s1772, %s1774
      %p1781 = scmp.eq.s32.totalorder %s237, 1
      %p1782 = por %p1780, %p1781
      %p1783 = scmp.ne.s32.totalorder %s1774, %s1775
      %p1784 = scmp.eq.s32.totalorder %s237, 0
      %p1785 = por %p1783, %p1784
      %p1786 = scmp.ne.s32.totalorder %s1774, %s1775
      %p1787 = scmp.eq.s32.totalorder %s238, 1
      %p1788 = por %p1786, %p1787
      %p1790 = scmp.ne.s32.totalorder %s1775, %s1789
      %p1791 = scmp.eq.s32.totalorder %s238, 0
      %p1792 = por %p1790, %p1791
      %s1794 = sadd.s32 %s1793, 1
      %p1797 = scmp.eq.s32.totalorder %s232, 1
      %p1798 = scmp.ne.s32.totalorder %s1793, %s1795
      %p1799 = scmp.eq.s32.totalorder %s232, 0
      %p1800 = por %p1798, %p1799
      %p1801 = scmp.ne.s32.totalorder %s1793, %s1795
      %p1802 = scmp.eq.s32.totalorder %s237, 1
      %p1803 = por %p1801, %p1802
      %p1804 = scmp.ne.s32.totalorder %s1795, %s1796
      %p1805 = scmp.eq.s32.totalorder %s237, 0
      %p1806 = por %p1804, %p1805
      %p1807 = scmp.ne.s32.totalorder %s1795, %s1796
      %p1808 = scmp.eq.s32.totalorder %s238, 1
      %p1809 = por %p1807, %p1808
      %p1811 = scmp.ne.s32.totalorder %s1796, %s1810
      %p1812 = scmp.eq.s32.totalorder %s238, 0
      %p1813 = por %p1811, %p1812
      %s1815 = sadd.s32 %s1814, 1
      %p1818 = scmp.eq.s32.totalorder %s232, 1
      %p1819 = scmp.ne.s32.totalorder %s1814, %s1816
      %p1820 = scmp.eq.s32.totalorder %s232, 0
      %p1821 = por %p1819, %p1820
      %p1822 = scmp.ne.s32.totalorder %s1814, %s1816
      %p1823 = scmp.eq.s32.totalorder %s237, 1
      %p1824 = por %p1822, %p1823
      %p1825 = scmp.ne.s32.totalorder %s1816, %s1817
      %p1826 = scmp.eq.s32.totalorder %s237, 0
      %p1827 = por %p1825, %p1826
      %p1828 = scmp.ne.s32.totalorder %s1816, %s1817
      %p1829 = scmp.eq.s32.totalorder %s238, 1
      %p1830 = por %p1828, %p1829
      %p1832 = scmp.ne.s32.totalorder %s1817, %s1831
      %p1833 = scmp.eq.s32.totalorder %s238, 0
      %p1834 = por %p1832, %p1833
      %s1836 = sadd.s32 %s1835, 1
      %p1839 = scmp.eq.s32.totalorder %s232, 1
      %p1840 = scmp.ne.s32.totalorder %s1835, %s1837
      %p1841 = scmp.eq.s32.totalorder %s232, 0
      %p1842 = por %p1840, %p1841
      %p1843 = scmp.ne.s32.totalorder %s1835, %s1837
      %p1844 = scmp.eq.s32.totalorder %s237, 1
      %p1845 = por %p1843, %p1844
      %p1846 = scmp.ne.s32.totalorder %s1837, %s1838
      %p1847 = scmp.eq.s32.totalorder %s237, 0
      %p1848 = por %p1846, %p1847
      %p1849 = scmp.ne.s32.totalorder %s1837, %s1838
      %p1850 = scmp.eq.s32.totalorder %s238, 1
      %p1851 = por %p1849, %p1850
      %p1853 = scmp.ne.s32.totalorder %s1838, %s1852
      %p1854 = scmp.eq.s32.totalorder %s238, 0
      %p1855 = por %p1853, %p1854
      %s1857 = sadd.s32 %s1856, 1
      %p1860 = scmp.eq.s32.totalorder %s232, 1
      %p1861 = scmp.ne.s32.totalorder %s1856, %s1858
      %p1862 = scmp.eq.s32.totalorder %s232, 0
      %p1863 = por %p1861, %p1862
      %p1864 = scmp.ne.s32.totalorder %s1856, %s1858
      %p1865 = scmp.eq.s32.totalorder %s237, 1
      %p1866 = por %p1864, %p1865
      %p1867 = scmp.ne.s32.totalorder %s1858, %s1859
      %p1868 = scmp.eq.s32.totalorder %s237, 0
      %p1869 = por %p1867, %p1868
      %p1870 = scmp.ne.s32.totalorder %s1858, %s1859
      %p1871 = scmp.eq.s32.totalorder %s238, 1
      %p1872 = por %p1870, %p1871
      %p1874 = scmp.ne.s32.totalorder %s1859, %s1873
      %p1875 = scmp.eq.s32.totalorder %s238, 0
      %p1876 = por %p1874, %p1875
      %s1878 = sadd.s32 %s1877, 1
      %p1881 = scmp.eq.s32.totalorder %s232, 1
      %p1882 = scmp.ne.s32.totalorder %s1877, %s1879
      %p1883 = scmp.eq.s32.totalorder %s232, 0
      %p1884 = por %p1882, %p1883
      %p1885 = scmp.ne.s32.totalorder %s1877, %s1879
      %p1886 = scmp.eq.s32.totalorder %s237, 1
      %p1887 = por %p1885, %p1886
      %p1888 = scmp.ne.s32.totalorder %s1879, %s1880
      %p1889 = scmp.eq.s32.totalorder %s237, 0
      %p1890 = por %p1888, %p1889
      %p1891 = scmp.ne.s32.totalorder %s1879, %s1880
      %p1892 = scmp.eq.s32.totalorder %s238, 1
      %p1893 = por %p1891, %p1892
      %p1895 = scmp.ne.s32.totalorder %s1880, %s1894
      %p1896 = scmp.eq.s32.totalorder %s238, 0
      %p1897 = por %p1895, %p1896
      %s1899 = sadd.s32 %s1898, 1
      %p1902 = scmp.eq.s32.totalorder %s232, 1
      %p1903 = scmp.ne.s32.totalorder %s1898, %s1900
      %p1904 = scmp.eq.s32.totalorder %s232, 0
      %p1905 = por %p1903, %p1904
      %p1906 = scmp.ne.s32.totalorder %s1898, %s1900
      %p1907 = scmp.eq.s32.totalorder %s237, 1
      %p1908 = por %p1906, %p1907
      %p1909 = scmp.ne.s32.totalorder %s1900, %s1901
      %p1910 = scmp.eq.s32.totalorder %s237, 0
      %p1911 = por %p1909, %p1910
      %p1912 = scmp.ne.s32.totalorder %s1900, %s1901
      %p1913 = scmp.eq.s32.totalorder %s238, 1
      %p1914 = por %p1912, %p1913
      %p1916 = scmp.ne.s32.totalorder %s1901, %s1915
      %p1917 = scmp.eq.s32.totalorder %s238, 0
      %p1918 = por %p1916, %p1917
      %s1920 = sadd.s32 %s1919, 1
      %p1923 = scmp.eq.s32.totalorder %s232, 1
      %p1924 = scmp.ne.s32.totalorder %s1919, %s1921
      %p1925 = scmp.eq.s32.totalorder %s232, 0
      %p1926 = por %p1924, %p1925
      %p1927 = scmp.ne.s32.totalorder %s1919, %s1921
      %p1928 = scmp.eq.s32.totalorder %s237, 1
      %p1929 = por %p1927, %p1928
      %p1930 = scmp.ne.s32.totalorder %s1921, %s1922
      %p1931 = scmp.eq.s32.totalorder %s237, 0
      %p1932 = por %p1930, %p1931
      %p1933 = scmp.ne.s32.totalorder %s1921, %s1922
      %p1934 = scmp.eq.s32.totalorder %s238, 1
      %p1935 = por %p1933, %p1934
      %p1937 = scmp.ne.s32.totalorder %s1922, %s1936
      %p1938 = scmp.eq.s32.totalorder %s238, 0
      %p1939 = por %p1937, %p1938
      %s1941 = sadd.s32 %s1940, 1
      %p1944 = scmp.eq.s32.totalorder %s232, 1
      %p1945 = scmp.ne.s32.totalorder %s1940, %s1942
      %p1946 = scmp.eq.s32.totalorder %s232, 0
      %p1947 = por %p1945, %p1946
      %p1948 = scmp.ne.s32.totalorder %s1940, %s1942
      %p1949 = scmp.eq.s32.totalorder %s237, 1
      %p1950 = por %p1948, %p1949
      %p1951 = scmp.ne.s32.totalorder %s1942, %s1943
      %p1952 = scmp.eq.s32.totalorder %s237, 0
      %p1953 = por %p1951, %p1952
      %p1954 = scmp.ne.s32.totalorder %s1942, %s1943
      %p1955 = scmp.eq.s32.totalorder %s238, 1
      %p1956 = por %p1954, %p1955
      %p1958 = scmp.ne.s32.totalorder %s1943, %s1957
      %p1959 = scmp.eq.s32.totalorder %s238, 0
      %p1960 = por %p1958, %p1959
      %s1962 = sadd.s32 %s1961, 1
      %p1965 = scmp.eq.s32.totalorder %s232, 1
      %p1966 = scmp.ne.s32.totalorder %s1961, %s1963
      %p1967 = scmp.eq.s32.totalorder %s232, 0
      %p1968 = por %p1966, %p1967
      %p1969 = scmp.ne.s32.totalorder %s1961, %s1963
      %p1970 = scmp.eq.s32.totalorder %s237, 1
      %p1971 = por %p1969, %p1970
      %p1972 = scmp.ne.s32.totalorder %s1963, %s1964
      %p1973 = scmp.eq.s32.totalorder %s237, 0
      %p1974 = por %p1972, %p1973
      %p1975 = scmp.ne.s32.totalorder %s1963, %s1964
      %p1976 = scmp.eq.s32.totalorder %s238, 1
      %p1977 = por %p1975, %p1976
      %p1979 = scmp.ne.s32.totalorder %s1964, %s1978
      %p1980 = scmp.eq.s32.totalorder %s238, 0
      %p1981 = por %p1979, %p1980
      %s1983 = sadd.s32 %s1982, 1
      %p1986 = scmp.eq.s32.totalorder %s232, 1
      %p1987 = scmp.ne.s32.totalorder %s1982, %s1984
      %p1988 = scmp.eq.s32.totalorder %s232, 0
      %p1989 = por %p1987, %p1988
      %p1990 = scmp.ne.s32.totalorder %s1982, %s1984
      %p1991 = scmp.eq.s32.totalorder %s237, 1
      %p1992 = por %p1990, %p1991
      %p1993 = scmp.ne.s32.totalorder %s1984, %s1985
      %p1994 = scmp.eq.s32.totalorder %s237, 0
      %p1995 = por %p1993, %p1994
      %p1996 = scmp.ne.s32.totalorder %s1984, %s1985
      %p1997 = scmp.eq.s32.totalorder %s238, 1
      %p1998 = por %p1996, %p1997
      %p2000 = scmp.ne.s32.totalorder %s1985, %s1999
      %p2001 = scmp.eq.s32.totalorder %s238, 0
      %p2002 = por %p2000, %p2001
      %s2004 = sadd.s32 %s2003, 1
      %p2007 = scmp.eq.s32.totalorder %s232, 1
      %p2008 = scmp.ne.s32.totalorder %s2003, %s2005
      %p2009 = scmp.eq.s32.totalorder %s232, 0
      %p2010 = por %p2008, %p2009
      %p2011 = scmp.ne.s32.totalorder %s2003, %s2005
      %p2012 = scmp.eq.s32.totalorder %s237, 1
      %p2013 = por %p2011, %p2012
      %p2014 = scmp.ne.s32.totalorder %s2005, %s2006
      %p2015 = scmp.eq.s32.totalorder %s237, 0
      %p2016 = por %p2014, %p2015
      %p2017 = scmp.ne.s32.totalorder %s2005, %s2006
      %p2018 = scmp.eq.s32.totalorder %s238, 1
      %p2019 = por %p2017, %p2018
      %p2021 = scmp.ne.s32.totalorder %s2006, %s2020
      %p2022 = scmp.eq.s32.totalorder %s238, 0
      %p2023 = por %p2021, %p2022
      %s2025 = sadd.s32 %s2024, 1
      %p2028 = scmp.eq.s32.totalorder %s232, 1
      %p2029 = scmp.ne.s32.totalorder %s2024, %s2026
      %p2030 = scmp.eq.s32.totalorder %s232, 0
      %p2031 = por %p2029, %p2030
      %p2032 = scmp.ne.s32.totalorder %s2024, %s2026
      %p2033 = scmp.eq.s32.totalorder %s237, 1
      %p2034 = por %p2032, %p2033
      %p2035 = scmp.ne.s32.totalorder %s2026, %s2027
      %p2036 = scmp.eq.s32.totalorder %s237, 0
      %p2037 = por %p2035, %p2036
      %p2038 = scmp.ne.s32.totalorder %s2026, %s2027
      %p2039 = scmp.eq.s32.totalorder %s238, 1
      %p2040 = por %p2038, %p2039
      %p2042 = scmp.ne.s32.totalorder %s2027, %s2041
      %p2043 = scmp.eq.s32.totalorder %s238, 0
      %p2044 = por %p2042, %p2043
      %s2046 = sadd.s32 %s2045, 1
      %p2049 = scmp.eq.s32.totalorder %s232, 1
      %p2050 = scmp.ne.s32.totalorder %s2045, %s2047
      %p2051 = scmp.eq.s32.totalorder %s232, 0
      %p2052 = por %p2050, %p2051
      %p2053 = scmp.ne.s32.totalorder %s2045, %s2047
      %p2054 = scmp.eq.s32.totalorder %s237, 1
      %p2055 = por %p2053, %p2054
      %p2056 = scmp.ne.s32.totalorder %s2047, %s2048
      %p2057 = scmp.eq.s32.totalorder %s237, 0
      %p2058 = por %p2056, %p2057
      %p2059 = scmp.ne.s32.totalorder %s2047, %s2048
      %p2060 = scmp.eq.s32.totalorder %s238, 1
      %p2061 = por %p2059, %p2060
      %p2063 = scmp.ne.s32.totalorder %s2048, %s2062
      %p2064 = scmp.eq.s32.totalorder %s238, 0
      %p2065 = por %p2063, %p2064
      %s2067 = sadd.s32 %s2066, 1
      %p2070 = scmp.eq.s32.totalorder %s232, 1
      %p2071 = scmp.ne.s32.totalorder %s2066, %s2068
      %p2072 = scmp.eq.s32.totalorder %s232, 0
      %p2073 = por %p2071, %p2072
      %p2074 = scmp.ne.s32.totalorder %s2066, %s2068
      %p2075 = scmp.eq.s32.totalorder %s237, 1
      %p2076 = por %p2074, %p2075
      %p2077 = scmp.ne.s32.totalorder %s2068, %s2069
      %p2078 = scmp.eq.s32.totalorder %s237, 0
      %p2079 = por %p2077, %p2078
      %p2080 = scmp.ne.s32.totalorder %s2068, %s2069
      %p2081 = scmp.eq.s32.totalorder %s238, 1
      %p2082 = por %p2080, %p2081
      %p2084 = scmp.ne.s32.totalorder %s2069, %s2083
      %p2085 = scmp.eq.s32.totalorder %s238, 0
      %p2086 = por %p2084, %p2085
      %s2088 = sadd.s32 %s2087, 1
      %p2091 = scmp.eq.s32.totalorder %s232, 1
      %p2092 = scmp.ne.s32.totalorder %s2087, %s2089
      %p2093 = scmp.eq.s32.totalorder %s232, 0
      %p2094 = por %p2092, %p2093
      %p2095 = scmp.ne.s32.totalorder %s2087, %s2089
      %p2096 = scmp.eq.s32.totalorder %s237, 1
      %p2097 = por %p2095, %p2096
      %p2098 = scmp.ne.s32.totalorder %s2089, %s2090
      %p2099 = scmp.eq.s32.totalorder %s237, 0
      %p2100 = por %p2098, %p2099
      %p2101 = scmp.ne.s32.totalorder %s2089, %s2090
      %p2102 = scmp.eq.s32.totalorder %s238, 1
      %p2103 = por %p2101, %p2102
      %p2105 = scmp.ne.s32.totalorder %s2090, %s2104
      %p2106 = scmp.eq.s32.totalorder %s238, 0
      %p2107 = por %p2105, %p2106
      %s2109 = sadd.s32 %s2108, 1
      %p2112 = scmp.eq.s32.totalorder %s232, 1
      %p2113 = scmp.ne.s32.totalorder %s2108, %s2110
      %p2114 = scmp.eq.s32.totalorder %s232, 0
      %p2115 = por %p2113, %p2114
      %p2116 = scmp.ne.s32.totalorder %s2108, %s2110
      %p2117 = scmp.eq.s32.totalorder %s237, 1
      %p2118 = por %p2116, %p2117
      %p2119 = scmp.ne.s32.totalorder %s2110, %s2111
      %p2120 = scmp.eq.s32.totalorder %s237, 0
      %p2121 = por %p2119, %p2120
      %p2122 = scmp.ne.s32.totalorder %s2110, %s2111
      %p2123 = scmp.eq.s32.totalorder %s238, 1
      %p2124 = por %p2122, %p2123
      %p2126 = scmp.ne.s32.totalorder %s2111, %s2125
      %p2127 = scmp.eq.s32.totalorder %s238, 0
      %p2128 = por %p2126, %p2127
      %s2130 = sadd.s32 %s2129, 1
      %p2133 = scmp.eq.s32.totalorder %s232, 1
      %p2134 = scmp.ne.s32.totalorder %s2129, %s2131
      %p2135 = scmp.eq.s32.totalorder %s232, 0
      %p2136 = por %p2134, %p2135
      %p2137 = scmp.ne.s32.totalorder %s2129, %s2131
      %p2138 = scmp.eq.s32.totalorder %s237, 1
      %p2139 = por %p2137, %p2138
      %p2140 = scmp.ne.s32.totalorder %s2131, %s2132
      %p2141 = scmp.eq.s32.totalorder %s237, 0
      %p2142 = por %p2140, %p2141
      %p2143 = scmp.ne.s32.totalorder %s2131, %s2132
      %p2144 = scmp.eq.s32.totalorder %s238, 1
      %p2145 = por %p2143, %p2144
      %p2147 = scmp.ne.s32.totalorder %s2132, %s2146
      %p2148 = scmp.eq.s32.totalorder %s238, 0
      %p2149 = por %p2147, %p2148
      %s2151 = sadd.s32 %s2150, 1
      %p2154 = scmp.eq.s32.totalorder %s232, 1
      %p2155 = scmp.ne.s32.totalorder %s2150, %s2152
      %p2156 = scmp.eq.s32.totalorder %s232, 0
      %p2157 = por %p2155, %p2156
      %p2158 = scmp.ne.s32.totalorder %s2150, %s2152
      %p2159 = scmp.eq.s32.totalorder %s237, 1
      %p2160 = por %p2158, %p2159
      %p2161 = scmp.ne.s32.totalorder %s2152, %s2153
      %p2162 = scmp.eq.s32.totalorder %s237, 0
      %p2163 = por %p2161, %p2162
      %p2164 = scmp.ne.s32.totalorder %s2152, %s2153
      %p2165 = scmp.eq.s32.totalorder %s238, 1
      %p2166 = por %p2164, %p2165
      %p2168 = scmp.ne.s32.totalorder %s2153, %s2167
      %p2169 = scmp.eq.s32.totalorder %s238, 0
      %p2170 = por %p2168, %p2169
      %s2172 = sadd.s32 %s2171, 1
      %p2175 = scmp.eq.s32.totalorder %s232, 1
      %p2176 = scmp.ne.s32.totalorder %s2171, %s2173
      %p2177 = scmp.eq.s32.totalorder %s232, 0
      %p2178 = por %p2176, %p2177
      %p2179 = scmp.ne.s32.totalorder %s2171, %s2173
      %p2180 = scmp.eq.s32.totalorder %s237, 1
      %p2181 = por %p2179, %p2180
      %p2182 = scmp.ne.s32.totalorder %s2173, %s2174
      %p2183 = scmp.eq.s32.totalorder %s237, 0
      %p2184 = por %p2182, %p2183
      %p2185 = scmp.ne.s32.totalorder %s2173, %s2174
      %p2186 = scmp.eq.s32.totalorder %s238, 1
      %p2187 = por %p2185, %p2186
      %p2189 = scmp.ne.s32.totalorder %s2174, %s2188
      %p2190 = scmp.eq.s32.totalorder %s238, 0
      %p2191 = por %p2189, %p2190
      %s2193 = sadd.s32 %s2192, 1
      %p2196 = scmp.eq.s32.totalorder %s232, 1
      %p2197 = scmp.ne.s32.totalorder %s2192, %s2194
      %p2198 = scmp.eq.s32.totalorder %s232, 0
      %p2199 = por %p2197, %p2198
      %p2200 = scmp.ne.s32.totalorder %s2192, %s2194
      %p2201 = scmp.eq.s32.totalorder %s237, 1
      %p2202 = por %p2200, %p2201
      %p2203 = scmp.ne.s32.totalorder %s2194, %s2195
      %p2204 = scmp.eq.s32.totalorder %s237, 0
      %p2205 = por %p2203, %p2204
      %p2206 = scmp.ne.s32.totalorder %s2194, %s2195
      %p2207 = scmp.eq.s32.totalorder %s238, 1
      %p2208 = por %p2206, %p2207
      %p2210 = scmp.ne.s32.totalorder %s2195, %s2209
      %p2211 = scmp.eq.s32.totalorder %s238, 0
      %p2212 = por %p2210, %p2211
      %s2214 = sadd.s32 %s2213, 1
      %p2217 = scmp.eq.s32.totalorder %s232, 1
      %p2218 = scmp.ne.s32.totalorder %s2213, %s2215
      %p2219 = scmp.eq.s32.totalorder %s232, 0
      %p2220 = por %p2218, %p2219
      %p2221 = scmp.ne.s32.totalorder %s2213, %s2215
      %p2222 = scmp.eq.s32.totalorder %s237, 1
      %p2223 = por %p2221, %p2222
      %p2224 = scmp.ne.s32.totalorder %s2215, %s2216
      %p2225 = scmp.eq.s32.totalorder %s237, 0
      %p2226 = por %p2224, %p2225
      %p2227 = scmp.ne.s32.totalorder %s2215, %s2216
      %p2228 = scmp.eq.s32.totalorder %s238, 1
      %p2229 = por %p2227, %p2228
      %p2231 = scmp.ne.s32.totalorder %s2216, %s2230
      %p2232 = scmp.eq.s32.totalorder %s238, 0
      %p2233 = por %p2231, %p2232
      %s2235 = sadd.s32 %s2234, 1
      %p2238 = scmp.eq.s32.totalorder %s232, 1
      %p2239 = scmp.ne.s32.totalorder %s2234, %s2236
      %p2240 = scmp.eq.s32.totalorder %s232, 0
      %p2241 = por %p2239, %p2240
      %p2242 = scmp.ne.s32.totalorder %s2234, %s2236
      %p2243 = scmp.eq.s32.totalorder %s237, 1
      %p2244 = por %p2242, %p2243
      %p2245 = scmp.ne.s32.totalorder %s2236, %s2237
      %p2246 = scmp.eq.s32.totalorder %s237, 0
      %p2247 = por %p2245, %p2246
      %p2248 = scmp.ne.s32.totalorder %s2236, %s2237
      %p2249 = scmp.eq.s32.totalorder %s238, 1
      %p2250 = por %p2248, %p2249
      %p2252 = scmp.ne.s32.totalorder %s2237, %s2251
      %p2253 = scmp.eq.s32.totalorder %s238, 0
      %p2254 = por %p2252, %p2253
      %s2256 = sadd.s32 %s2255, 1
      %p2259 = scmp.eq.s32.totalorder %s232, 1
      %p2260 = scmp.ne.s32.totalorder %s2255, %s2257
      %p2261 = scmp.eq.s32.totalorder %s232, 0
      %p2262 = por %p2260, %p2261
      %p2263 = scmp.ne.s32.totalorder %s2255, %s2257
      %p2264 = scmp.eq.s32.totalorder %s237, 1
      %p2265 = por %p2263, %p2264
      %p2266 = scmp.ne.s32.totalorder %s2257, %s2258
      %p2267 = scmp.eq.s32.totalorder %s237, 0
      %p2268 = por %p2266, %p2267
      %p2269 = scmp.ne.s32.totalorder %s2257, %s2258
      %p2270 = scmp.eq.s32.totalorder %s238, 1
      %p2271 = por %p2269, %p2270
      %p2273 = scmp.ne.s32.totalorder %s2258, %s2272
      %p2274 = scmp.eq.s32.totalorder %s238, 0
      %p2275 = por %p2273, %p2274
      %s2276 = ssub.s32 %s232, %s239
      %p2277 = scmp.eq.s32.totalorder %s2276, 0
      %s2279 = sadd.s32 %s2278, 1
      %s2280 = scalar_select %p2277, %s2278, %s2279
      %p2283 = pneg %p2277
      %p2284 = scmp.eq.s32.totalorder %s232, 1
      %p2285 = por %p2283, %p2284
      %p2286 = scmp.ne.s32.totalorder %s2278, %s2281
      %p2287 = scmp.eq.s32.totalorder %s232, 0
      %p2288 = por %p2286, %p2287
      %p2289 = scmp.ne.s32.totalorder %s2278, %s2281
      %p2290 = scmp.eq.s32.totalorder %s237, 1
      %p2291 = por %p2289, %p2290
      %p2292 = scmp.ne.s32.totalorder %s2281, %s2282
      %p2293 = scmp.eq.s32.totalorder %s237, 0
      %p2294 = por %p2292, %p2293
      %p2295 = scmp.ne.s32.totalorder %s2281, %s2282
      %p2296 = scmp.eq.s32.totalorder %s238, 1
      %p2297 = por %p2295, %p2296
      %p2299 = scmp.ne.s32.totalorder %s2282, %s2298
      %p2300 = scmp.eq.s32.totalorder %s238, 0
      %p2301 = por %p2299, %p2300
      %p2302 = scmp.le.s32.totalorder 1, %s232
      %p2303 = scmp.lt.s32.totalorder %s232, 3
      %p2304 = pnand %p2302, %p2303
      %p2305 = pneg %p2304
      // Predicated region
      $region9: #{lxmert_binary_cls_forward.1} parent=5 // pred_check
        _
      $region10: #{lxmert_binary_cls_forward.1} parent=5 // pred_check_branch
        %2307 = sbr.rel (%p2304) target = $region12
      $region11: #{lxmert_binary_cls_forward.1} parent=5 // pred_region
        %s2308 = ssub.s32 %s232, 1
        // Predicated region
        $region13: #{lxmert_binary_cls_forward.1} parent=11 // pred_check
          %p2309 = pneg %p357
        $region14: #{lxmert_binary_cls_forward.1} parent=11 // pred_check_branch
          %2311 = sbr.rel (%p2309) target = $region16
        $region15: #{lxmert_binary_cls_forward.1} parent=11 // pred_region
          _
        $region16: #{lxmert_binary_cls_forward.1} parent=11 // pred_fallthru
          _
        // Predicated region
        $region17: #{lxmert_binary_cls_forward.1} parent=11 // pred_check
          %p2312 = pneg %p378
        $region18: #{lxmert_binary_cls_forward.1} parent=11 // pred_check_branch
          %2314 = sbr.rel (%p2312) target = $region20
        $region19: #{lxmert_binary_cls_forward.1} parent=11 // pred_region
          _
        $region20: #{lxmert_binary_cls_forward.1} parent=11 // pred_fallthru
          _
        // Predicated region
        $region21: #{lxmert_binary_cls_forward.1} parent=11 // pred_check
          %p2315 = pneg %p399
        $region22: #{lxmert_binary_cls_forward.1} parent=11 // pred_check_branch
          %2317 = sbr.rel (%p2315) target = $region24
        $region23: #{lxmert_binary_cls_forward.1} parent=11 // pred_region
          _
        $region24: #{lxmert_binary_cls_forward.1} parent=11 // pred_fallthru
          _
        // Predicated region
        $region25: #{lxmert_binary_cls_forward.1} parent=11 // pred_check
          %p2318 = pneg %p420
        $region26: #{lxmert_binary_cls_forward.1} parent=11 // pred_check_branch
          %2320 = sbr.rel (%p2318) target = $region28
        $region27: #{lxmert_binary_cls_forward.1} parent=11 // pred_region
          _
        $region28: #{lxmert_binary_cls_forward.1} parent=11 // pred_fallthru
          _
        // Predicated region
        $region29: #{lxmert_binary_cls_forward.1} parent=11 // pred_check
          %p2321 = pneg %p441
        $region30: #{lxmert_binary_cls_forward.1} parent=11 // pred_check_branch
          %2323 = sbr.rel (%p2321) target = $region32
        $region31: #{lxmert_binary_cls_forward.1} parent=11 // pred_region
          _
        $region32: #{lxmert_binary_cls_forward.1} parent=11 // pred_fallthru
          _
        // Predicated region
        $region33: #{lxmert_binary_cls_forward.1} parent=11 // pred_check
          %p2324 = pneg %p462
        $region34: #{lxmert_binary_cls_forward.1} parent=11 // pred_check_branch
          %2326 = sbr.rel (%p2324) target = $region36
        $region35: #{lxmert_binary_cls_forward.1} parent=11 // pred_region
          _
        $region36: #{lxmert_binary_cls_forward.1} parent=11 // pred_fallthru
          _
        // Predicated region
        $region37: #{lxmert_binary_cls_forward.1} parent=11 // pred_check
          %p2327 = pneg %p483
        $region38: #{lxmert_binary_cls_forward.1} parent=11 // pred_check_branch
          %2329 = sbr.rel (%p2327) target = $region40
        $region39: #{lxmert_binary_cls_forward.1} parent=11 // pred_region
          %2331 = vsyncadd [#allocation3], 0
          %s2333 = sshll.u32 %s21, 4
          %s2334 = int_to_ptr.hbm [resolvable:$true] %s2333
          %s2335 = sshll.u32 [#allocation2], 4
          %s2336 = int_to_ptr.vmem [resolvable:$true] %s2335
          %2338 = dma.hbm_to_vmem [thread:$0]  %s2334, 16, %s2336, [#allocation3]
        $region40: #{lxmert_binary_cls_forward.1} parent=11 // pred_fallthru
          _
        // Predicated region
        $region41: #{lxmert_binary_cls_forward.1} parent=11 // pred_check
          %p2339 = pneg %p504
        $region42: #{lxmert_binary_cls_forward.1} parent=11 // pred_check_branch
          %2341 = sbr.rel (%p2339) target = $region44
        $region43: #{lxmert_binary_cls_forward.1} parent=11 // pred_region
          %2343 = vsyncadd [#allocation6], 0
          %s2345 = sshll.u32 %s23, 4
          %s2346 = int_to_ptr.hbm [resolvable:$true] %s2345
          %s2347 = sshll.u32 [#allocation5], 4
          %s2348 = int_to_ptr.vmem [resolvable:$true] %s2347
          %2350 = dma.hbm_to_vmem [thread:$0]  %s2346, 16, %s2348, [#allocation6]
        $region44: #{lxmert_binary_cls_forward.1} parent=11 // pred_fallthru
          _
        // Predicated region
        $region45: #{lxmert_binary_cls_forward.1} parent=11 // pred_check
          %p2351 = pneg %p525
        $region46: #{lxmert_binary_cls_forward.1} parent=11 // pred_check_branch
          %2353 = sbr.rel (%p2351) target = $region48
        $region47: #{lxmert_binary_cls_forward.1} parent=11 // pred_region
          %2355 = vsyncadd [#allocation6], 0
          %s2357 = sshll.u32 %s25, 4
          %s2358 = int_to_ptr.hbm [resolvable:$true] %s2357
          %s2359 = sshll.u32 [#allocation7], 4
          %s2360 = int_to_ptr.vmem [resolvable:$true] %s2359
          %2362 = dma.hbm_to_vmem [thread:$0]  %s2358, 16, %s2360, [#allocation6]
        $region48: #{lxmert_binary_cls_forward.1} parent=11 // pred_fallthru
          _
        // Predicated region
        $region49: #{lxmert_binary_cls_forward.1} parent=11 // pred_check
          %p2363 = pneg %p546
        $region50: #{lxmert_binary_cls_forward.1} parent=11 // pred_check_branch
          %2365 = sbr.rel (%p2363) target = $region52
        $region51: #{lxmert_binary_cls_forward.1} parent=11 // pred_region
          _
        $region52: #{lxmert_binary_cls_forward.1} parent=11 // pred_fallthru
          _
        // Predicated region
        $region53: #{lxmert_binary_cls_forward.1} parent=11 // pred_check
          %p2366 = pneg %p567
        $region54: #{lxmert_binary_cls_forward.1} parent=11 // pred_check_branch
          %2368 = sbr.rel (%p2366) target = $region56
        $region55: #{lxmert_binary_cls_forward.1} parent=11 // pred_region
          %2370 = vsyncadd [#allocation9], 0
          %s2372 = sshll.u32 %s29, 4
          %s2373 = int_to_ptr.hbm [resolvable:$true] %s2372
          %s2374 = sshll.u32 [#allocation8], 4
          %s2375 = int_to_ptr.vmem [resolvable:$true] %s2374
          %2377 = dma.hbm_to_vmem [thread:$0]  %s2373, 16, %s2375, [#allocation9]
        $region56: #{lxmert_binary_cls_forward.1} parent=11 // pred_fallthru
          _
        // Predicated region
        $region57: #{lxmert_binary_cls_forward.1} parent=11 // pred_check
          %p2378 = pneg %p588
        $region58: #{lxmert_binary_cls_forward.1} parent=11 // pred_check_branch
          %2380 = sbr.rel (%p2378) target = $region60
        $region59: #{lxmert_binary_cls_forward.1} parent=11 // pred_region
          %2382 = vsyncadd [#allocation9], 0
          %s2384 = sshll.u32 %s31, 4
          %s2385 = int_to_ptr.hbm [resolvable:$true] %s2384
          %s2386 = sshll.u32 [#allocation10], 4
          %s2387 = int_to_ptr.vmem [resolvable:$true] %s2386
          %2389 = dma.hbm_to_vmem [thread:$0]  %s2385, 16, %s2387, [#allocation9]
        $region60: #{lxmert_binary_cls_forward.1} parent=11 // pred_fallthru
          _
        // Predicated region
        $region61: #{lxmert_binary_cls_forward.1} parent=11 // pred_check
          %p2390 = pneg %p609
        $region62: #{lxmert_binary_cls_forward.1} parent=11 // pred_check_branch
          %2392 = sbr.rel (%p2390) target = $region64
        $region63: #{lxmert_binary_cls_forward.1} parent=11 // pred_region
          %2394 = vsyncadd [#allocation12], 0
          %s2396 = sshll.u32 %s33, 4
          %s2397 = int_to_ptr.hbm [resolvable:$true] %s2396
          %s2398 = sshll.u32 [#allocation11], 4
          %s2399 = int_to_ptr.vmem [resolvable:$true] %s2398
          %2401 = dma.hbm_to_vmem [thread:$0]  %s2397, 16, %s2399, [#allocation12]
        $region64: #{lxmert_binary_cls_forward.1} parent=11 // pred_fallthru
          _
        // Predicated region
        $region65: #{lxmert_binary_cls_forward.1} parent=11 // pred_check
          %p2402 = pneg %p630
        $region66: #{lxmert_binary_cls_forward.1} parent=11 // pred_check_branch
          %2404 = sbr.rel (%p2402) target = $region68
        $region67: #{lxmert_binary_cls_forward.1} parent=11 // pred_region
          _
        $region68: #{lxmert_binary_cls_forward.1} parent=11 // pred_fallthru
          _
        // Predicated region
        $region69: #{lxmert_binary_cls_forward.1} parent=11 // pred_check
          %p2405 = pneg %p651
        $region70: #{lxmert_binary_cls_forward.1} parent=11 // pred_check_branch
          %2407 = sbr.rel (%p2405) target = $region72
        $region71: #{lxmert_binary_cls_forward.1} parent=11 // pred_region
          %2409 = vsyncadd [#allocation12], 0
          %s2411 = sshll.u32 %s37, 4
          %s2412 = int_to_ptr.hbm [resolvable:$true] %s2411
          %s2413 = sshll.u32 [#allocation13], 4
          %s2414 = int_to_ptr.vmem [resolvable:$true] %s2413
          %2416 = dma.hbm_to_vmem [thread:$0]  %s2412, 16, %s2414, [#allocation12]
        $region72: #{lxmert_binary_cls_forward.1} parent=11 // pred_fallthru
          _
        // Predicated region
        $region73: #{lxmert_binary_cls_forward.1} parent=11 // pred_check
          %p2417 = pneg %p672
        $region74: #{lxmert_binary_cls_forward.1} parent=11 // pred_check_branch
          %2419 = sbr.rel (%p2417) target = $region76
        $region75: #{lxmert_binary_cls_forward.1} parent=11 // pred_region
          _
        $region76: #{lxmert_binary_cls_forward.1} parent=11 // pred_fallthru
          _
        // Predicated region
        $region77: #{lxmert_binary_cls_forward.1} parent=11 // pred_check
          %p2420 = pneg %p693
        $region78: #{lxmert_binary_cls_forward.1} parent=11 // pred_check_branch
          %2422 = sbr.rel (%p2420) target = $region80
        $region79: #{lxmert_binary_cls_forward.1} parent=11 // pred_region
          %2424 = vsyncadd [#allocation15], 0
          %s2426 = sshll.u32 %s41, 4
          %s2427 = int_to_ptr.hbm [resolvable:$true] %s2426
          %s2428 = sshll.u32 [#allocation14], 4
          %s2429 = int_to_ptr.vmem [resolvable:$true] %s2428
          %2431 = dma.hbm_to_vmem [thread:$0]  %s2427, 16, %s2429, [#allocation15]
        $region80: #{lxmert_binary_cls_forward.1} parent=11 // pred_fallthru
          _
        // Predicated region
        $region81: #{lxmert_binary_cls_forward.1} parent=11 // pred_check
          %p2432 = pneg %p714
        $region82: #{lxmert_binary_cls_forward.1} parent=11 // pred_check_branch
          %2434 = sbr.rel (%p2432) target = $region84
        $region83: #{lxmert_binary_cls_forward.1} parent=11 // pred_region
          _
        $region84: #{lxmert_binary_cls_forward.1} parent=11 // pred_fallthru
          _
        // Predicated region
        $region85: #{lxmert_binary_cls_forward.1} parent=11 // pred_check
          %p2435 = pneg %p735
        $region86: #{lxmert_binary_cls_forward.1} parent=11 // pred_check_branch
          %2437 = sbr.rel (%p2435) target = $region88
        $region87: #{lxmert_binary_cls_forward.1} parent=11 // pred_region
          %2439 = vsyncadd [#allocation15], 0
          %s2441 = sshll.u32 %s45, 4
          %s2442 = int_to_ptr.hbm [resolvable:$true] %s2441
          %s2443 = sshll.u32 [#allocation16], 4
          %s2444 = int_to_ptr.vmem [resolvable:$true] %s2443
          %2446 = dma.hbm_to_vmem [thread:$0]  %s2442, 16, %s2444, [#allocation15]
        $region88: #{lxmert_binary_cls_forward.1} parent=11 // pred_fallthru
          _
        // Predicated region
        $region89: #{lxmert_binary_cls_forward.1} parent=11 // pred_check
          %p2447 = pneg %p756
        $region90: #{lxmert_binary_cls_forward.1} parent=11 // pred_check_branch
          %2449 = sbr.rel (%p2447) target = $region92
        $region91: #{lxmert_binary_cls_forward.1} parent=11 // pred_region
          %2451 = vsyncadd [#allocation18], 0
          %s2453 = sshll.u32 %s47, 4
          %s2454 = int_to_ptr.hbm [resolvable:$true] %s2453
          %s2455 = sshll.u32 [#allocation17], 4
          %s2456 = int_to_ptr.vmem [resolvable:$true] %s2455
          %2458 = dma.hbm_to_vmem [thread:$0]  %s2454, 16, %s2456, [#allocation18]
        $region92: #{lxmert_binary_cls_forward.1} parent=11 // pred_fallthru
          _
        // Predicated region
        $region93: #{lxmert_binary_cls_forward.1} parent=11 // pred_check
          %p2459 = pneg %p777
        $region94: #{lxmert_binary_cls_forward.1} parent=11 // pred_check_branch
          %2461 = sbr.rel (%p2459) target = $region96
        $region95: #{lxmert_binary_cls_forward.1} parent=11 // pred_region
          %2463 = vsyncadd [#allocation18], 0
          %s2465 = sshll.u32 %s49, 4
          %s2466 = int_to_ptr.hbm [resolvable:$true] %s2465
          %s2467 = sshll.u32 [#allocation19], 4
          %s2468 = int_to_ptr.vmem [resolvable:$true] %s2467
          %2470 = dma.hbm_to_vmem [thread:$0]  %s2466, 16, %s2468, [#allocation18]
        $region96: #{lxmert_binary_cls_forward.1} parent=11 // pred_fallthru
          _
        // Predicated region
        $region97: #{lxmert_binary_cls_forward.1} parent=11 // pred_check
          %p2471 = pneg %p798
        $region98: #{lxmert_binary_cls_forward.1} parent=11 // pred_check_branch
          %2473 = sbr.rel (%p2471) target = $region100
        $region99: #{lxmert_binary_cls_forward.1} parent=11 // pred_region
          _
        $region100: #{lxmert_binary_cls_forward.1} parent=11 // pred_fallthru
          _
        // Predicated region
        $region101: #{lxmert_binary_cls_forward.1} parent=11 // pred_check
          %p2474 = pneg %p819
        $region102: #{lxmert_binary_cls_forward.1} parent=11 // pred_check_branch
          %2476 = sbr.rel (%p2474) target = $region104
        $region103: #{lxmert_binary_cls_forward.1} parent=11 // pred_region
          %2478 = vsyncadd [#allocation21], 0
          %s2480 = sshll.u32 %s53, 4
          %s2481 = int_to_ptr.hbm [resolvable:$true] %s2480
          %s2482 = sshll.u32 [#allocation20], 4
          %s2483 = int_to_ptr.vmem [resolvable:$true] %s2482
          %2485 = dma.hbm_to_vmem [thread:$0]  %s2481, 16, %s2483, [#allocation21]
        $region104: #{lxmert_binary_cls_forward.1} parent=11 // pred_fallthru
          _
        // Predicated region
        $region105: #{lxmert_binary_cls_forward.1} parent=11 // pred_check
          %p2486 = pneg %p840
        $region106: #{lxmert_binary_cls_forward.1} parent=11 // pred_check_branch
          %2488 = sbr.rel (%p2486) target = $region108
        $region107: #{lxmert_binary_cls_forward.1} parent=11 // pred_region
          %2490 = vsyncadd [#allocation21], 0
          %s2492 = sshll.u32 %s55, 4
          %s2493 = int_to_ptr.hbm [resolvable:$true] %s2492
          %s2494 = sshll.u32 [#allocation22], 4
          %s2495 = int_to_ptr.vmem [resolvable:$true] %s2494
          %2497 = dma.hbm_to_vmem [thread:$0]  %s2493, 16, %s2495, [#allocation21]
        $region108: #{lxmert_binary_cls_forward.1} parent=11 // pred_fallthru
          _
        // Predicated region
        $region109: #{lxmert_binary_cls_forward.1} parent=11 // pred_check
          %p2498 = pneg %p861
        $region110: #{lxmert_binary_cls_forward.1} parent=11 // pred_check_branch
          %2500 = sbr.rel (%p2498) target = $region112
        $region111: #{lxmert_binary_cls_forward.1} parent=11 // pred_region
          %2502 = vsyncadd [#allocation24], 0
          %s2504 = sshll.u32 %s57, 4
          %s2505 = int_to_ptr.hbm [resolvable:$true] %s2504
          %s2506 = sshll.u32 [#allocation23], 4
          %s2507 = int_to_ptr.vmem [resolvable:$true] %s2506
          %2509 = dma.hbm_to_vmem [thread:$0]  %s2505, 16, %s2507, [#allocation24]
        $region112: #{lxmert_binary_cls_forward.1} parent=11 // pred_fallthru
          _
        // Predicated region
        $region113: #{lxmert_binary_cls_forward.1} parent=11 // pred_check
          %p2510 = pneg %p882
        $region114: #{lxmert_binary_cls_forward.1} parent=11 // pred_check_branch
          %2512 = sbr.rel (%p2510) target = $region116
        $region115: #{lxmert_binary_cls_forward.1} parent=11 // pred_region
          _
        $region116: #{lxmert_binary_cls_forward.1} parent=11 // pred_fallthru
          _
        // Predicated region
        $region117: #{lxmert_binary_cls_forward.1} parent=11 // pred_check
          %p2513 = pneg %p903
        $region118: #{lxmert_binary_cls_forward.1} parent=11 // pred_check_branch
          %2515 = sbr.rel (%p2513) target = $region120
        $region119: #{lxmert_binary_cls_forward.1} parent=11 // pred_region
          %2517 = vsyncadd [#allocation24], 0
          %s2519 = sshll.u32 %s61, 4
          %s2520 = int_to_ptr.hbm [resolvable:$true] %s2519
          %s2521 = sshll.u32 [#allocation25], 4
          %s2522 = int_to_ptr.vmem [resolvable:$true] %s2521
          %2524 = dma.hbm_to_vmem [thread:$0]  %s2520, 16, %s2522, [#allocation24]
        $region120: #{lxmert_binary_cls_forward.1} parent=11 // pred_fallthru
          _
        // Predicated region
        $region121: #{lxmert_binary_cls_forward.1} parent=11 // pred_check
          %p2525 = pneg %p924
        $region122: #{lxmert_binary_cls_forward.1} parent=11 // pred_check_branch
          %2527 = sbr.rel (%p2525) target = $region124
        $region123: #{lxmert_binary_cls_forward.1} parent=11 // pred_region
          _
        $region124: #{lxmert_binary_cls_forward.1} parent=11 // pred_fallthru
          _
        // Predicated region
        $region125: #{lxmert_binary_cls_forward.1} parent=11 // pred_check
          %p2528 = pneg %p945
        $region126: #{lxmert_binary_cls_forward.1} parent=11 // pred_check_branch
          %2530 = sbr.rel (%p2528) target = $region128
        $region127: #{lxmert_binary_cls_forward.1} parent=11 // pred_region
          %2532 = vsyncadd [#allocation27], 0
          %s2534 = sshll.u32 %s65, 4
          %s2535 = int_to_ptr.hbm [resolvable:$true] %s2534
          %s2536 = sshll.u32 [#allocation26], 4
          %s2537 = int_to_ptr.vmem [resolvable:$true] %s2536
          %2539 = dma.hbm_to_vmem [thread:$0]  %s2535, 16, %s2537, [#allocation27]
        $region128: #{lxmert_binary_cls_forward.1} parent=11 // pred_fallthru
          _
        // Predicated region
        $region129: #{lxmert_binary_cls_forward.1} parent=11 // pred_check
          %p2540 = pneg %p966
        $region130: #{lxmert_binary_cls_forward.1} parent=11 // pred_check_branch
          %2542 = sbr.rel (%p2540) target = $region132
        $region131: #{lxmert_binary_cls_forward.1} parent=11 // pred_region
          _
        $region132: #{lxmert_binary_cls_forward.1} parent=11 // pred_fallthru
          _
        // Predicated region
        $region133: #{lxmert_binary_cls_forward.1} parent=11 // pred_check
          %p2543 = pneg %p987
        $region134: #{lxmert_binary_cls_forward.1} parent=11 // pred_check_branch
          %2545 = sbr.rel (%p2543) target = $region136
        $region135: #{lxmert_binary_cls_forward.1} parent=11 // pred_region
          %2547 = vsyncadd [#allocation27], 0
          %s2549 = sshll.u32 %s69, 4
          %s2550 = int_to_ptr.hbm [resolvable:$true] %s2549
          %s2551 = sshll.u32 [#allocation28], 4
          %s2552 = int_to_ptr.vmem [resolvable:$true] %s2551
          %2554 = dma.hbm_to_vmem [thread:$0]  %s2550, 16, %s2552, [#allocation27]
        $region136: #{lxmert_binary_cls_forward.1} parent=11 // pred_fallthru
          _
        // Predicated region
        $region137: #{lxmert_binary_cls_forward.1} parent=11 // pred_check
          %p2555 = pneg %p1008
        $region138: #{lxmert_binary_cls_forward.1} parent=11 // pred_check_branch
          %2557 = sbr.rel (%p2555) target = $region140
        $region139: #{lxmert_binary_cls_forward.1} parent=11 // pred_region
          _
        $region140: #{lxmert_binary_cls_forward.1} parent=11 // pred_fallthru
          _
        // Predicated region
        $region141: #{lxmert_binary_cls_forward.1} parent=11 // pred_check
          %p2558 = pneg %p1029
        $region142: #{lxmert_binary_cls_forward.1} parent=11 // pred_check_branch
          %2560 = sbr.rel (%p2558) target = $region144
        $region143: #{lxmert_binary_cls_forward.1} parent=11 // pred_region
          %2562 = vsyncadd [#allocation30], 0
          %s2564 = sshll.u32 %s73, 4
          %s2565 = int_to_ptr.hbm [resolvable:$true] %s2564
          %s2566 = sshll.u32 [#allocation29], 4
          %s2567 = int_to_ptr.vmem [resolvable:$true] %s2566
          %2569 = dma.hbm_to_vmem [thread:$0]  %s2565, 16, %s2567, [#allocation30]
        $region144: #{lxmert_binary_cls_forward.1} parent=11 // pred_fallthru
          _
        // Predicated region
        $region145: #{lxmert_binary_cls_forward.1} parent=11 // pred_check
          %p2570 = pneg %p1050
        $region146: #{lxmert_binary_cls_forward.1} parent=11 // pred_check_branch
          %2572 = sbr.rel (%p2570) target = $region148
        $region147: #{lxmert_binary_cls_forward.1} parent=11 // pred_region
          %2574 = vsyncadd [#allocation30], 0
          %s2576 = sshll.u32 %s75, 4
          %s2577 = int_to_ptr.hbm [resolvable:$true] %s2576
          %s2578 = sshll.u32 [#allocation31], 4
          %s2579 = int_to_ptr.vmem [resolvable:$true] %s2578
          %2581 = dma.hbm_to_vmem [thread:$0]  %s2577, 16, %s2579, [#allocation30]
        $region148: #{lxmert_binary_cls_forward.1} parent=11 // pred_fallthru
          _
        // Predicated region
        $region149: #{lxmert_binary_cls_forward.1} parent=11 // pred_check
          %p2582 = pneg %p1071
        $region150: #{lxmert_binary_cls_forward.1} parent=11 // pred_check_branch
          %2584 = sbr.rel (%p2582) target = $region152
        $region151: #{lxmert_binary_cls_forward.1} parent=11 // pred_region
          %2586 = vsyncadd [#allocation33], 0
          %s2588 = sshll.u32 %s77, 4
          %s2589 = int_to_ptr.hbm [resolvable:$true] %s2588
          %s2590 = sshll.u32 [#allocation32], 4
          %s2591 = int_to_ptr.vmem [resolvable:$true] %s2590
          %2593 = dma.hbm_to_vmem [thread:$0]  %s2589, 16, %s2591, [#allocation33]
        $region152: #{lxmert_binary_cls_forward.1} parent=11 // pred_fallthru
          _
        // Predicated region
        $region153: #{lxmert_binary_cls_forward.1} parent=11 // pred_check
          %p2594 = pneg %p1092
        $region154: #{lxmert_binary_cls_forward.1} parent=11 // pred_check_branch
          %2596 = sbr.rel (%p2594) target = $region156
        $region155: #{lxmert_binary_cls_forward.1} parent=11 // pred_region
          _
        $region156: #{lxmert_binary_cls_forward.1} parent=11 // pred_fallthru
          _
        // Predicated region
        $region157: #{lxmert_binary_cls_forward.1} parent=11 // pred_check
          %p2597 = pneg %p1113
        $region158: #{lxmert_binary_cls_forward.1} parent=11 // pred_check_branch
          %2599 = sbr.rel (%p2597) target = $region160
        $region159: #{lxmert_binary_cls_forward.1} parent=11 // pred_region
          %2601 = vsyncadd [#allocation33], 0
          %s2603 = sshll.u32 %s81, 4
          %s2604 = int_to_ptr.hbm [resolvable:$true] %s2603
          %s2605 = sshll.u32 [#allocation34], 4
          %s2606 = int_to_ptr.vmem [resolvable:$true] %s2605
          %2608 = dma.hbm_to_vmem [thread:$0]  %s2604, 16, %s2606, [#allocation33]
        $region160: #{lxmert_binary_cls_forward.1} parent=11 // pred_fallthru
          _
        // Predicated region
        $region161: #{lxmert_binary_cls_forward.1} parent=11 // pred_check
          %p2609 = pneg %p1134
        $region162: #{lxmert_binary_cls_forward.1} parent=11 // pred_check_branch
          %2611 = sbr.rel (%p2609) target = $region164
        $region163: #{lxmert_binary_cls_forward.1} parent=11 // pred_region
          %2613 = vsyncadd [#allocation36], 0
          %s2615 = sshll.u32 %s83, 4
          %s2616 = int_to_ptr.hbm [resolvable:$true] %s2615
          %s2617 = sshll.u32 [#allocation35], 4
          %s2618 = int_to_ptr.vmem [resolvable:$true] %s2617
          %2620 = dma.hbm_to_vmem [thread:$0]  %s2616, 16, %s2618, [#allocation36]
        $region164: #{lxmert_binary_cls_forward.1} parent=11 // pred_fallthru
          _
        // Predicated region
        $region165: #{lxmert_binary_cls_forward.1} parent=11 // pred_check
          %p2621 = pneg %p1155
        $region166: #{lxmert_binary_cls_forward.1} parent=11 // pred_check_branch
          %2623 = sbr.rel (%p2621) target = $region168
        $region167: #{lxmert_binary_cls_forward.1} parent=11 // pred_region
          %2625 = vsyncadd [#allocation36], 0
          %s2627 = sshll.u32 %s85, 4
          %s2628 = int_to_ptr.hbm [resolvable:$true] %s2627
          %s2629 = sshll.u32 [#allocation37], 4
          %s2630 = int_to_ptr.vmem [resolvable:$true] %s2629
          %2632 = dma.hbm_to_vmem [thread:$0]  %s2628, 16, %s2630, [#allocation36]
        $region168: #{lxmert_binary_cls_forward.1} parent=11 // pred_fallthru
          _
        // Predicated region
        $region169: #{lxmert_binary_cls_forward.1} parent=11 // pred_check
          %p2633 = pneg %p1176
        $region170: #{lxmert_binary_cls_forward.1} parent=11 // pred_check_branch
          %2635 = sbr.rel (%p2633) target = $region172
        $region171: #{lxmert_binary_cls_forward.1} parent=11 // pred_region
          _
        $region172: #{lxmert_binary_cls_forward.1} parent=11 // pred_fallthru
          _
        // Predicated region
        $region173: #{lxmert_binary_cls_forward.1} parent=11 // pred_check
          %p2636 = pneg %p1197
        $region174: #{lxmert_binary_cls_forward.1} parent=11 // pred_check_branch
          %2638 = sbr.rel (%p2636) target = $region176
        $region175: #{lxmert_binary_cls_forward.1} parent=11 // pred_region
          %2640 = vsyncadd [#allocation39], 0
          %s2642 = sshll.u32 %s89, 4
          %s2643 = int_to_ptr.hbm [resolvable:$true] %s2642
          %s2644 = sshll.u32 [#allocation38], 4
          %s2645 = int_to_ptr.vmem [resolvable:$true] %s2644
          %2647 = dma.hbm_to_vmem [thread:$0]  %s2643, 16, %s2645, [#allocation39]
        $region176: #{lxmert_binary_cls_forward.1} parent=11 // pred_fallthru
          _
        // Predicated region
        $region177: #{lxmert_binary_cls_forward.1} parent=11 // pred_check
          %p2648 = pneg %p1218
        $region178: #{lxmert_binary_cls_forward.1} parent=11 // pred_check_branch
          %2650 = sbr.rel (%p2648) target = $region180
        $region179: #{lxmert_binary_cls_forward.1} parent=11 // pred_region
          _
        $region180: #{lxmert_binary_cls_forward.1} parent=11 // pred_fallthru
          _
        // Predicated region
        $region181: #{lxmert_binary_cls_forward.1} parent=11 // pred_check
          %p2651 = pneg %p1239
        $region182: #{lxmert_binary_cls_forward.1} parent=11 // pred_check_branch
          %2653 = sbr.rel (%p2651) target = $region184
        $region183: #{lxmert_binary_cls_forward.1} parent=11 // pred_region
          %2655 = vsyncadd [#allocation39], 0
          %s2657 = sshll.u32 %s93, 4
          %s2658 = int_to_ptr.hbm [resolvable:$true] %s2657
          %s2659 = sshll.u32 [#allocation40], 4
          %s2660 = int_to_ptr.vmem [resolvable:$true] %s2659
          %2662 = dma.hbm_to_vmem [thread:$0]  %s2658, 16, %s2660, [#allocation39]
        $region184: #{lxmert_binary_cls_forward.1} parent=11 // pred_fallthru
          _
        // Predicated region
        $region185: #{lxmert_binary_cls_forward.1} parent=11 // pred_check
          %p2663 = pneg %p1260
        $region186: #{lxmert_binary_cls_forward.1} parent=11 // pred_check_branch
          %2665 = sbr.rel (%p2663) target = $region188
        $region187: #{lxmert_binary_cls_forward.1} parent=11 // pred_region
          _
        $region188: #{lxmert_binary_cls_forward.1} parent=11 // pred_fallthru
          _
        // Predicated region
        $region189: #{lxmert_binary_cls_forward.1} parent=11 // pred_check
          %p2666 = pneg %p1281
        $region190: #{lxmert_binary_cls_forward.1} parent=11 // pred_check_branch
          %2668 = sbr.rel (%p2666) target = $region192
        $region191: #{lxmert_binary_cls_forward.1} parent=11 // pred_region
          %2670 = vsyncadd [#allocation42], 0
          %s2672 = sshll.u32 %s97, 4
          %s2673 = int_to_ptr.hbm [resolvable:$true] %s2672
          %s2674 = sshll.u32 [#allocation41], 4
          %s2675 = int_to_ptr.vmem [resolvable:$true] %s2674
          %2677 = dma.hbm_to_vmem [thread:$0]  %s2673, 16, %s2675, [#allocation42]
        $region192: #{lxmert_binary_cls_forward.1} parent=11 // pred_fallthru
          _
        // Predicated region
        $region193: #{lxmert_binary_cls_forward.1} parent=11 // pred_check
          %p2678 = pneg %p1302
        $region194: #{lxmert_binary_cls_forward.1} parent=11 // pred_check_branch
          %2680 = sbr.rel (%p2678) target = $region196
        $region195: #{lxmert_binary_cls_forward.1} parent=11 // pred_region
          %2682 = vsyncadd [#allocation42], 0
          %s2684 = sshll.u32 %s99, 4
          %s2685 = int_to_ptr.hbm [resolvable:$true] %s2684
          %s2686 = sshll.u32 [#allocation43], 4
          %s2687 = int_to_ptr.vmem [resolvable:$true] %s2686
          %2689 = dma.hbm_to_vmem [thread:$0]  %s2685, 16, %s2687, [#allocation42]
        $region196: #{lxmert_binary_cls_forward.1} parent=11 // pred_fallthru
          _
        // Predicated region
        $region197: #{lxmert_binary_cls_forward.1} parent=11 // pred_check
          %p2690 = pneg %p1323
        $region198: #{lxmert_binary_cls_forward.1} parent=11 // pred_check_branch
          %2692 = sbr.rel (%p2690) target = $region200
        $region199: #{lxmert_binary_cls_forward.1} parent=11 // pred_region
          %2694 = vsyncadd [#allocation45], 0
          %s2696 = sshll.u32 %s101, 4
          %s2697 = int_to_ptr.hbm [resolvable:$true] %s2696
          %s2698 = sshll.u32 [#allocation44], 4
          %s2699 = int_to_ptr.vmem [resolvable:$true] %s2698
          %2701 = dma.hbm_to_vmem [thread:$0]  %s2697, 16, %s2699, [#allocation45]
        $region200: #{lxmert_binary_cls_forward.1} parent=11 // pred_fallthru
          _
        // Predicated region
        $region201: #{lxmert_binary_cls_forward.1} parent=11 // pred_check
          %p2702 = pneg %p1344
        $region202: #{lxmert_binary_cls_forward.1} parent=11 // pred_check_branch
          %2704 = sbr.rel (%p2702) target = $region204
        $region203: #{lxmert_binary_cls_forward.1} parent=11 // pred_region
          _
        $region204: #{lxmert_binary_cls_forward.1} parent=11 // pred_fallthru
          _
        // Predicated region
        $region205: #{lxmert_binary_cls_forward.1} parent=11 // pred_check
          %p2705 = pneg %p1365
        $region206: #{lxmert_binary_cls_forward.1} parent=11 // pred_check_branch
          %2707 = sbr.rel (%p2705) target = $region208
        $region207: #{lxmert_binary_cls_forward.1} parent=11 // pred_region
          %2709 = vsyncadd [#allocation45], 0
          %s2711 = sshll.u32 %s105, 4
          %s2712 = int_to_ptr.hbm [resolvable:$true] %s2711
          %s2713 = sshll.u32 [#allocation46], 4
          %s2714 = int_to_ptr.vmem [resolvable:$true] %s2713
          %2716 = dma.hbm_to_vmem [thread:$0]  %s2712, 16, %s2714, [#allocation45]
        $region208: #{lxmert_binary_cls_forward.1} parent=11 // pred_fallthru
          _
        // Predicated region
        $region209: #{lxmert_binary_cls_forward.1} parent=11 // pred_check
          %p2717 = pneg %p1386
        $region210: #{lxmert_binary_cls_forward.1} parent=11 // pred_check_branch
          %2719 = sbr.rel (%p2717) target = $region212
        $region211: #{lxmert_binary_cls_forward.1} parent=11 // pred_region
          %2721 = vsyncadd [#allocation48], 0
          %s2723 = sshll.u32 %s107, 4
          %s2724 = int_to_ptr.hbm [resolvable:$true] %s2723
          %s2725 = sshll.u32 [#allocation47], 4
          %s2726 = int_to_ptr.vmem [resolvable:$true] %s2725
          %2728 = dma.hbm_to_vmem [thread:$0]  %s2724, 16, %s2726, [#allocation48]
        $region212: #{lxmert_binary_cls_forward.1} parent=11 // pred_fallthru
          _
        // Predicated region
        $region213: #{lxmert_binary_cls_forward.1} parent=11 // pred_check
          %p2729 = pneg %p1407
        $region214: #{lxmert_binary_cls_forward.1} parent=11 // pred_check_branch
          %2731 = sbr.rel (%p2729) target = $region216
        $region215: #{lxmert_binary_cls_forward.1} parent=11 // pred_region
          %2733 = vsyncadd [#allocation48], 0
          %s2735 = sshll.u32 %s109, 4
          %s2736 = int_to_ptr.hbm [resolvable:$true] %s2735
          %s2737 = sshll.u32 [#allocation49], 4
          %s2738 = int_to_ptr.vmem [resolvable:$true] %s2737
          %2740 = dma.hbm_to_vmem [thread:$0]  %s2736, 16, %s2738, [#allocation48]
        $region216: #{lxmert_binary_cls_forward.1} parent=11 // pred_fallthru
          _
        // Predicated region
        $region217: #{lxmert_binary_cls_forward.1} parent=11 // pred_check
          %p2741 = pneg %p1428
        $region218: #{lxmert_binary_cls_forward.1} parent=11 // pred_check_branch
          %2743 = sbr.rel (%p2741) target = $region220
        $region219: #{lxmert_binary_cls_forward.1} parent=11 // pred_region
          _
        $region220: #{lxmert_binary_cls_forward.1} parent=11 // pred_fallthru
          _
        // Predicated region
        $region221: #{lxmert_binary_cls_forward.1} parent=11 // pred_check
          %p2744 = pneg %p1449
        $region222: #{lxmert_binary_cls_forward.1} parent=11 // pred_check_branch
          %2746 = sbr.rel (%p2744) target = $region224
        $region223: #{lxmert_binary_cls_forward.1} parent=11 // pred_region
          %2748 = vsyncadd [#allocation51], 0
          %s2750 = sshll.u32 %s113, 4
          %s2751 = int_to_ptr.hbm [resolvable:$true] %s2750
          %s2752 = sshll.u32 [#allocation50], 4
          %s2753 = int_to_ptr.vmem [resolvable:$true] %s2752
          %2755 = dma.hbm_to_vmem [thread:$0]  %s2751, 16, %s2753, [#allocation51]
        $region224: #{lxmert_binary_cls_forward.1} parent=11 // pred_fallthru
          _
        // Predicated region
        $region225: #{lxmert_binary_cls_forward.1} parent=11 // pred_check
          %p2756 = pneg %p1470
        $region226: #{lxmert_binary_cls_forward.1} parent=11 // pred_check_branch
          %2758 = sbr.rel (%p2756) target = $region228
        $region227: #{lxmert_binary_cls_forward.1} parent=11 // pred_region
          _
        $region228: #{lxmert_binary_cls_forward.1} parent=11 // pred_fallthru
          _
        // Predicated region
        $region229: #{lxmert_binary_cls_forward.1} parent=11 // pred_check
          %p2759 = pneg %p1491
        $region230: #{lxmert_binary_cls_forward.1} parent=11 // pred_check_branch
          %2761 = sbr.rel (%p2759) target = $region232
        $region231: #{lxmert_binary_cls_forward.1} parent=11 // pred_region
          %2763 = vsyncadd [#allocation51], 0
          %s2765 = sshll.u32 %s117, 4
          %s2766 = int_to_ptr.hbm [resolvable:$true] %s2765
          %s2767 = sshll.u32 [#allocation52], 4
          %s2768 = int_to_ptr.vmem [resolvable:$true] %s2767
          %2770 = dma.hbm_to_vmem [thread:$0]  %s2766, 16, %s2768, [#allocation51]
        $region232: #{lxmert_binary_cls_forward.1} parent=11 // pred_fallthru
          _
        // Predicated region
        $region233: #{lxmert_binary_cls_forward.1} parent=11 // pred_check
          %p2771 = pneg %p1512
        $region234: #{lxmert_binary_cls_forward.1} parent=11 // pred_check_branch
          %2773 = sbr.rel (%p2771) target = $region236
        $region235: #{lxmert_binary_cls_forward.1} parent=11 // pred_region
          _
        $region236: #{lxmert_binary_cls_forward.1} parent=11 // pred_fallthru
          _
        // Predicated region
        $region237: #{lxmert_binary_cls_forward.1} parent=11 // pred_check
          %p2774 = pneg %p1533
        $region238: #{lxmert_binary_cls_forward.1} parent=11 // pred_check_branch
          %2776 = sbr.rel (%p2774) target = $region240
        $region239: #{lxmert_binary_cls_forward.1} parent=11 // pred_region
          %2778 = vsyncadd [#allocation54], 0
          %s2780 = sshll.u32 %s121, 4
          %s2781 = int_to_ptr.hbm [resolvable:$true] %s2780
          %s2782 = sshll.u32 [#allocation53], 4
          %s2783 = int_to_ptr.vmem [resolvable:$true] %s2782
          %2785 = dma.hbm_to_vmem [thread:$0]  %s2781, 16, %s2783, [#allocation54]
        $region240: #{lxmert_binary_cls_forward.1} parent=11 // pred_fallthru
          _
        // Predicated region
        $region241: #{lxmert_binary_cls_forward.1} parent=11 // pred_check
          %p2786 = pneg %p1554
        $region242: #{lxmert_binary_cls_forward.1} parent=11 // pred_check_branch
          %2788 = sbr.rel (%p2786) target = $region244
        $region243: #{lxmert_binary_cls_forward.1} parent=11 // pred_region
          %2790 = vsyncadd [#allocation54], 0
          %s2792 = sshll.u32 %s123, 4
          %s2793 = int_to_ptr.hbm [resolvable:$true] %s2792
          %s2794 = sshll.u32 [#allocation55], 4
          %s2795 = int_to_ptr.vmem [resolvable:$true] %s2794
          %2797 = dma.hbm_to_vmem [thread:$0]  %s2793, 16, %s2795, [#allocation54]
        $region244: #{lxmert_binary_cls_forward.1} parent=11 // pred_fallthru
          _
        // Predicated region
        $region245: #{lxmert_binary_cls_forward.1} parent=11 // pred_check
          %p2798 = pneg %p1575
        $region246: #{lxmert_binary_cls_forward.1} parent=11 // pred_check_branch
          %2800 = sbr.rel (%p2798) target = $region248
        $region247: #{lxmert_binary_cls_forward.1} parent=11 // pred_region
          %2802 = vsyncadd [#allocation57], 0
          %s2804 = sshll.u32 %s125, 4
          %s2805 = int_to_ptr.hbm [resolvable:$true] %s2804
          %s2806 = sshll.u32 [#allocation56], 4
          %s2807 = int_to_ptr.vmem [resolvable:$true] %s2806
          %2809 = dma.hbm_to_vmem [thread:$0]  %s2805, 16, %s2807, [#allocation57]
        $region248: #{lxmert_binary_cls_forward.1} parent=11 // pred_fallthru
          _
        // Predicated region
        $region249: #{lxmert_binary_cls_forward.1} parent=11 // pred_check
          %p2810 = pneg %p1596
        $region250: #{lxmert_binary_cls_forward.1} parent=11 // pred_check_branch
          %2812 = sbr.rel (%p2810) target = $region252
        $region251: #{lxmert_binary_cls_forward.1} parent=11 // pred_region
          _
        $region252: #{lxmert_binary_cls_forward.1} parent=11 // pred_fallthru
          _
        // Predicated region
        $region253: #{lxmert_binary_cls_forward.1} parent=11 // pred_check
          %p2813 = pneg %p1617
        $region254: #{lxmert_binary_cls_forward.1} parent=11 // pred_check_branch
          %2815 = sbr.rel (%p2813) target = $region256
        $region255: #{lxmert_binary_cls_forward.1} parent=11 // pred_region
          %2817 = vsyncadd [#allocation57], 0
          %s2819 = sshll.u32 %s129, 4
          %s2820 = int_to_ptr.hbm [resolvable:$true] %s2819
          %s2821 = sshll.u32 [#allocation58], 4
          %s2822 = int_to_ptr.vmem [resolvable:$true] %s2821
          %2824 = dma.hbm_to_vmem [thread:$0]  %s2820, 16, %s2822, [#allocation57]
        $region256: #{lxmert_binary_cls_forward.1} parent=11 // pred_fallthru
          _
        // Predicated region
        $region257: #{lxmert_binary_cls_forward.1} parent=11 // pred_check
          %p2825 = pneg %p1638
        $region258: #{lxmert_binary_cls_forward.1} parent=11 // pred_check_branch
          %2827 = sbr.rel (%p2825) target = $region260
        $region259: #{lxmert_binary_cls_forward.1} parent=11 // pred_region
          %2829 = vsyncadd [#allocation60], 0
          %s2831 = sshll.u32 %s131, 4
          %s2832 = int_to_ptr.hbm [resolvable:$true] %s2831
          %s2833 = sshll.u32 [#allocation59], 4
          %s2834 = int_to_ptr.vmem [resolvable:$true] %s2833
          %2836 = dma.hbm_to_vmem [thread:$0]  %s2832, 16, %s2834, [#allocation60]
        $region260: #{lxmert_binary_cls_forward.1} parent=11 // pred_fallthru
          _
        // Predicated region
        $region261: #{lxmert_binary_cls_forward.1} parent=11 // pred_check
          %p2837 = pneg %p1659
        $region262: #{lxmert_binary_cls_forward.1} parent=11 // pred_check_branch
          %2839 = sbr.rel (%p2837) target = $region264
        $region263: #{lxmert_binary_cls_forward.1} parent=11 // pred_region
          %2841 = vsyncadd [#allocation60], 0
          %s2843 = sshll.u32 %s133, 4
          %s2844 = int_to_ptr.hbm [resolvable:$true] %s2843
          %s2845 = sshll.u32 [#allocation61], 4
          %s2846 = int_to_ptr.vmem [resolvable:$true] %s2845
          %2848 = dma.hbm_to_vmem [thread:$0]  %s2844, 16, %s2846, [#allocation60]
        $region264: #{lxmert_binary_cls_forward.1} parent=11 // pred_fallthru
          _
        // Predicated region
        $region265: #{lxmert_binary_cls_forward.1} parent=11 // pred_check
          %p2849 = pneg %p1680
        $region266: #{lxmert_binary_cls_forward.1} parent=11 // pred_check_branch
          %2851 = sbr.rel (%p2849) target = $region268
        $region267: #{lxmert_binary_cls_forward.1} parent=11 // pred_region
          _
        $region268: #{lxmert_binary_cls_forward.1} parent=11 // pred_fallthru
          _
        // Predicated region
        $region269: #{lxmert_binary_cls_forward.1} parent=11 // pred_check
          %p2852 = pneg %p1701
        $region270: #{lxmert_binary_cls_forward.1} parent=11 // pred_check_branch
          %2854 = sbr.rel (%p2852) target = $region272
        $region271: #{lxmert_binary_cls_forward.1} parent=11 // pred_region
          %2856 = vsyncadd [#allocation63], 0
          %s2858 = sshll.u32 %s137, 4
          %s2859 = int_to_ptr.hbm [resolvable:$true] %s2858
          %s2860 = sshll.u32 [#allocation62], 4
          %s2861 = int_to_ptr.vmem [resolvable:$true] %s2860
          %2863 = dma.hbm_to_vmem [thread:$0]  %s2859, 16, %s2861, [#allocation63]
        $region272: #{lxmert_binary_cls_forward.1} parent=11 // pred_fallthru
          _
        // Predicated region
        $region273: #{lxmert_binary_cls_forward.1} parent=11 // pred_check
          %p2864 = pneg %p1722
        $region274: #{lxmert_binary_cls_forward.1} parent=11 // pred_check_branch
          %2866 = sbr.rel (%p2864) target = $region276
        $region275: #{lxmert_binary_cls_forward.1} parent=11 // pred_region
          _
        $region276: #{lxmert_binary_cls_forward.1} parent=11 // pred_fallthru
          _
        // Predicated region
        $region277: #{lxmert_binary_cls_forward.1} parent=11 // pred_check
          %p2867 = pneg %p1743
        $region278: #{lxmert_binary_cls_forward.1} parent=11 // pred_check_branch
          %2869 = sbr.rel (%p2867) target = $region280
        $region279: #{lxmert_binary_cls_forward.1} parent=11 // pred_region
          %2871 = vsyncadd [#allocation63], 0
          %s2873 = sshll.u32 %s141, 4
          %s2874 = int_to_ptr.hbm [resolvable:$true] %s2873
          %s2875 = sshll.u32 [#allocation64], 4
          %s2876 = int_to_ptr.vmem [resolvable:$true] %s2875
          %2878 = dma.hbm_to_vmem [thread:$0]  %s2874, 16, %s2876, [#allocation63]
        $region280: #{lxmert_binary_cls_forward.1} parent=11 // pred_fallthru
          _
        // Predicated region
        $region281: #{lxmert_binary_cls_forward.1} parent=11 // pred_check
          %p2879 = pneg %p1764
        $region282: #{lxmert_binary_cls_forward.1} parent=11 // pred_check_branch
          %2881 = sbr.rel (%p2879) target = $region284
        $region283: #{lxmert_binary_cls_forward.1} parent=11 // pred_region
          %2883 = vsyncadd [#allocation66], 0
          %s2885 = sshll.u32 %s143, 4
          %s2886 = int_to_ptr.hbm [resolvable:$true] %s2885
          %s2887 = sshll.u32 [#allocation65], 4
          %s2888 = int_to_ptr.vmem [resolvable:$true] %s2887
          %2890 = dma.hbm_to_vmem [thread:$0]  %s2886, 16, %s2888, [#allocation66]
        $region284: #{lxmert_binary_cls_forward.1} parent=11 // pred_fallthru
          _
        // Predicated region
        $region285: #{lxmert_binary_cls_forward.1} parent=11 // pred_check
          %p2891 = pneg %p1785
        $region286: #{lxmert_binary_cls_forward.1} parent=11 // pred_check_branch
          %2893 = sbr.rel (%p2891) target = $region288
        $region287: #{lxmert_binary_cls_forward.1} parent=11 // pred_region
          %2895 = vsyncadd [#allocation66], 0
          %s2897 = sshll.u32 %s145, 4
          %s2898 = int_to_ptr.hbm [resolvable:$true] %s2897
          %s2899 = sshll.u32 [#allocation67], 4
          %s2900 = int_to_ptr.vmem [resolvable:$true] %s2899
          %2902 = dma.hbm_to_vmem [thread:$0]  %s2898, 16, %s2900, [#allocation66]
        $region288: #{lxmert_binary_cls_forward.1} parent=11 // pred_fallthru
          _
        // Predicated region
        $region289: #{lxmert_binary_cls_forward.1} parent=11 // pred_check
          %p2903 = pneg %p1806
        $region290: #{lxmert_binary_cls_forward.1} parent=11 // pred_check_branch
          %2905 = sbr.rel (%p2903) target = $region292
        $region291: #{lxmert_binary_cls_forward.1} parent=11 // pred_region
          _
        $region292: #{lxmert_binary_cls_forward.1} parent=11 // pred_fallthru
          _
        // Predicated region
        $region293: #{lxmert_binary_cls_forward.1} parent=11 // pred_check
          %p2906 = pneg %p1827
        $region294: #{lxmert_binary_cls_forward.1} parent=11 // pred_check_branch
          %2908 = sbr.rel (%p2906) target = $region296
        $region295: #{lxmert_binary_cls_forward.1} parent=11 // pred_region
          %2910 = vsyncadd [#allocation69], 0
          %s2912 = sshll.u32 %s149, 4
          %s2913 = int_to_ptr.hbm [resolvable:$true] %s2912
          %s2914 = sshll.u32 [#allocation68], 4
          %s2915 = int_to_ptr.vmem [resolvable:$true] %s2914
          %2917 = dma.hbm_to_vmem [thread:$0]  %s2913, 16, %s2915, [#allocation69]
        $region296: #{lxmert_binary_cls_forward.1} parent=11 // pred_fallthru
          _
        // Predicated region
        $region297: #{lxmert_binary_cls_forward.1} parent=11 // pred_check
          %p2918 = pneg %p1848
        $region298: #{lxmert_binary_cls_forward.1} parent=11 // pred_check_branch
          %2920 = sbr.rel (%p2918) target = $region300
        $region299: #{lxmert_binary_cls_forward.1} parent=11 // pred_region
          %2922 = vsyncadd [#allocation69], 0
          %s2924 = sshll.u32 %s151, 4
          %s2925 = int_to_ptr.hbm [resolvable:$true] %s2924
          %s2926 = sshll.u32 [#allocation70], 4
          %s2927 = int_to_ptr.vmem [resolvable:$true] %s2926
          %2929 = dma.hbm_to_vmem [thread:$0]  %s2925, 16, %s2927, [#allocation69]
        $region300: #{lxmert_binary_cls_forward.1} parent=11 // pred_fallthru
          _
        // Predicated region
        $region301: #{lxmert_binary_cls_forward.1} parent=11 // pred_check
          %p2930 = pneg %p1869
        $region302: #{lxmert_binary_cls_forward.1} parent=11 // pred_check_branch
          %2932 = sbr.rel (%p2930) target = $region304
        $region303: #{lxmert_binary_cls_forward.1} parent=11 // pred_region
          %2934 = vsyncadd [#allocation72], 0
          %s2936 = sshll.u32 %s153, 4
          %s2937 = int_to_ptr.hbm [resolvable:$true] %s2936
          %s2938 = sshll.u32 [#allocation71], 4
          %s2939 = int_to_ptr.vmem [resolvable:$true] %s2938
          %2941 = dma.hbm_to_vmem [thread:$0]  %s2937, 16, %s2939, [#allocation72]
        $region304: #{lxmert_binary_cls_forward.1} parent=11 // pred_fallthru
          _
        // Predicated region
        $region305: #{lxmert_binary_cls_forward.1} parent=11 // pred_check
          %p2942 = pneg %p1890
        $region306: #{lxmert_binary_cls_forward.1} parent=11 // pred_check_branch
          %2944 = sbr.rel (%p2942) target = $region308
        $region307: #{lxmert_binary_cls_forward.1} parent=11 // pred_region
          _
        $region308: #{lxmert_binary_cls_forward.1} parent=11 // pred_fallthru
          _
        // Predicated region
        $region309: #{lxmert_binary_cls_forward.1} parent=11 // pred_check
          %p2945 = pneg %p1911
        $region310: #{lxmert_binary_cls_forward.1} parent=11 // pred_check_branch
          %2947 = sbr.rel (%p2945) target = $region312
        $region311: #{lxmert_binary_cls_forward.1} parent=11 // pred_region
          %2949 = vsyncadd [#allocation72], 0
          %s2951 = sshll.u32 %s157, 4
          %s2952 = int_to_ptr.hbm [resolvable:$true] %s2951
          %s2953 = sshll.u32 [#allocation73], 4
          %s2954 = int_to_ptr.vmem [resolvable:$true] %s2953
          %2956 = dma.hbm_to_vmem [thread:$0]  %s2952, 16, %s2954, [#allocation72]
        $region312: #{lxmert_binary_cls_forward.1} parent=11 // pred_fallthru
          _
        // Predicated region
        $region313: #{lxmert_binary_cls_forward.1} parent=11 // pred_check
          %p2957 = pneg %p1932
        $region314: #{lxmert_binary_cls_forward.1} parent=11 // pred_check_branch
          %2959 = sbr.rel (%p2957) target = $region316
        $region315: #{lxmert_binary_cls_forward.1} parent=11 // pred_region
          _
        $region316: #{lxmert_binary_cls_forward.1} parent=11 // pred_fallthru
          _
        // Predicated region
        $region317: #{lxmert_binary_cls_forward.1} parent=11 // pred_check
          %p2960 = pneg %p1953
        $region318: #{lxmert_binary_cls_forward.1} parent=11 // pred_check_branch
          %2962 = sbr.rel (%p2960) target = $region320
        $region319: #{lxmert_binary_cls_forward.1} parent=11 // pred_region
          %2964 = vsyncadd [#allocation75], 0
          %s2966 = sshll.u32 %s161, 4
          %s2967 = int_to_ptr.hbm [resolvable:$true] %s2966
          %s2968 = sshll.u32 [#allocation74], 4
          %s2969 = int_to_ptr.vmem [resolvable:$true] %s2968
          %2971 = dma.hbm_to_vmem [thread:$0]  %s2967, 16, %s2969, [#allocation75]
        $region320: #{lxmert_binary_cls_forward.1} parent=11 // pred_fallthru
          _
        // Predicated region
        $region321: #{lxmert_binary_cls_forward.1} parent=11 // pred_check
          %p2972 = pneg %p1974
        $region322: #{lxmert_binary_cls_forward.1} parent=11 // pred_check_branch
          %2974 = sbr.rel (%p2972) target = $region324
        $region323: #{lxmert_binary_cls_forward.1} parent=11 // pred_region
          _
        $region324: #{lxmert_binary_cls_forward.1} parent=11 // pred_fallthru
          _
        // Predicated region
        $region325: #{lxmert_binary_cls_forward.1} parent=11 // pred_check
          %p2975 = pneg %p1995
        $region326: #{lxmert_binary_cls_forward.1} parent=11 // pred_check_branch
          %2977 = sbr.rel (%p2975) target = $region328
        $region327: #{lxmert_binary_cls_forward.1} parent=11 // pred_region
          %2979 = vsyncadd [#allocation75], 0
          %s2981 = sshll.u32 %s165, 4
          %s2982 = int_to_ptr.hbm [resolvable:$true] %s2981
          %s2983 = sshll.u32 [#allocation76], 4
          %s2984 = int_to_ptr.vmem [resolvable:$true] %s2983
          %2986 = dma.hbm_to_vmem [thread:$0]  %s2982, 16, %s2984, [#allocation75]
        $region328: #{lxmert_binary_cls_forward.1} parent=11 // pred_fallthru
          _
        // Predicated region
        $region329: #{lxmert_binary_cls_forward.1} parent=11 // pred_check
          %p2987 = pneg %p2016
        $region330: #{lxmert_binary_cls_forward.1} parent=11 // pred_check_branch
          %2989 = sbr.rel (%p2987) target = $region332
        $region331: #{lxmert_binary_cls_forward.1} parent=11 // pred_region
          %2991 = vsyncadd [#allocation78], 0
          %s2993 = sshll.u32 %s167, 4
          %s2994 = int_to_ptr.hbm [resolvable:$true] %s2993
          %s2995 = sshll.u32 [#allocation77], 4
          %s2996 = int_to_ptr.vmem [resolvable:$true] %s2995
          %2998 = dma.hbm_to_vmem [thread:$0]  %s2994, 16, %s2996, [#allocation78]
        $region332: #{lxmert_binary_cls_forward.1} parent=11 // pred_fallthru
          _
        // Predicated region
        $region333: #{lxmert_binary_cls_forward.1} parent=11 // pred_check
          %p2999 = pneg %p2037
        $region334: #{lxmert_binary_cls_forward.1} parent=11 // pred_check_branch
          %3001 = sbr.rel (%p2999) target = $region336
        $region335: #{lxmert_binary_cls_forward.1} parent=11 // pred_region
          %3003 = vsyncadd [#allocation78], 0
          %s3005 = sshll.u32 %s169, 4
          %s3006 = int_to_ptr.hbm [resolvable:$true] %s3005
          %s3007 = sshll.u32 [#allocation79], 4
          %s3008 = int_to_ptr.vmem [resolvable:$true] %s3007
          %3010 = dma.hbm_to_vmem [thread:$0]  %s3006, 16, %s3008, [#allocation78]
        $region336: #{lxmert_binary_cls_forward.1} parent=11 // pred_fallthru
          _
        // Predicated region
        $region337: #{lxmert_binary_cls_forward.1} parent=11 // pred_check
          %p3011 = pneg %p2058
        $region338: #{lxmert_binary_cls_forward.1} parent=11 // pred_check_branch
          %3013 = sbr.rel (%p3011) target = $region340
        $region339: #{lxmert_binary_cls_forward.1} parent=11 // pred_region
          _
        $region340: #{lxmert_binary_cls_forward.1} parent=11 // pred_fallthru
          _
        // Predicated region
        $region341: #{lxmert_binary_cls_forward.1} parent=11 // pred_check
          %p3014 = pneg %p2079
        $region342: #{lxmert_binary_cls_forward.1} parent=11 // pred_check_branch
          %3016 = sbr.rel (%p3014) target = $region344
        $region343: #{lxmert_binary_cls_forward.1} parent=11 // pred_region
          %3018 = vsyncadd [#allocation81], 0
          %s3020 = sshll.u32 %s173, 4
          %s3021 = int_to_ptr.hbm [resolvable:$true] %s3020
          %s3022 = sshll.u32 [#allocation80], 4
          %s3023 = int_to_ptr.vmem [resolvable:$true] %s3022
          %3025 = dma.hbm_to_vmem [thread:$0]  %s3021, 16, %s3023, [#allocation81]
        $region344: #{lxmert_binary_cls_forward.1} parent=11 // pred_fallthru
          _
        // Predicated region
        $region345: #{lxmert_binary_cls_forward.1} parent=11 // pred_check
          %p3026 = pneg %p2100
        $region346: #{lxmert_binary_cls_forward.1} parent=11 // pred_check_branch
          %3028 = sbr.rel (%p3026) target = $region348
        $region347: #{lxmert_binary_cls_forward.1} parent=11 // pred_region
          %3030 = vsyncadd [#allocation81], 0
          %s3032 = sshll.u32 %s175, 4
          %s3033 = int_to_ptr.hbm [resolvable:$true] %s3032
          %s3034 = sshll.u32 [#allocation82], 4
          %s3035 = int_to_ptr.vmem [resolvable:$true] %s3034
          %3037 = dma.hbm_to_vmem [thread:$0]  %s3033, 16, %s3035, [#allocation81]
        $region348: #{lxmert_binary_cls_forward.1} parent=11 // pred_fallthru
          _
        // Predicated region
        $region349: #{lxmert_binary_cls_forward.1} parent=11 // pred_check
          %p3038 = pneg %p2121
        $region350: #{lxmert_binary_cls_forward.1} parent=11 // pred_check_branch
          %3040 = sbr.rel (%p3038) target = $region352
        $region351: #{lxmert_binary_cls_forward.1} parent=11 // pred_region
          %3042 = vsyncadd [#allocation84], 0
          %s3044 = sshll.u32 %s177, 4
          %s3045 = int_to_ptr.hbm [resolvable:$true] %s3044
          %s3046 = sshll.u32 [#allocation83], 4
          %s3047 = int_to_ptr.vmem [resolvable:$true] %s3046
          %3049 = dma.hbm_to_vmem [thread:$0]  %s3045, 16, %s3047, [#allocation84]
        $region352: #{lxmert_binary_cls_forward.1} parent=11 // pred_fallthru
          _
        // Predicated region
        $region353: #{lxmert_binary_cls_forward.1} parent=11 // pred_check
          %p3050 = pneg %p2142
        $region354: #{lxmert_binary_cls_forward.1} parent=11 // pred_check_branch
          %3052 = sbr.rel (%p3050) target = $region356
        $region355: #{lxmert_binary_cls_forward.1} parent=11 // pred_region
          _
        $region356: #{lxmert_binary_cls_forward.1} parent=11 // pred_fallthru
          _
        // Predicated region
        $region357: #{lxmert_binary_cls_forward.1} parent=11 // pred_check
          %p3053 = pneg %p2163
        $region358: #{lxmert_binary_cls_forward.1} parent=11 // pred_check_branch
          %3055 = sbr.rel (%p3053) target = $region360
        $region359: #{lxmert_binary_cls_forward.1} parent=11 // pred_region
          %3057 = vsyncadd [#allocation84], 0
          %s3059 = sshll.u32 %s181, 4
          %s3060 = int_to_ptr.hbm [resolvable:$true] %s3059
          %s3061 = sshll.u32 [#allocation85], 4
          %s3062 = int_to_ptr.vmem [resolvable:$true] %s3061
          %3064 = dma.hbm_to_vmem [thread:$0]  %s3060, 16, %s3062, [#allocation84]
        $region360: #{lxmert_binary_cls_forward.1} parent=11 // pred_fallthru
          _
        // Predicated region
        $region361: #{lxmert_binary_cls_forward.1} parent=11 // pred_check
          %p3065 = pneg %p2184
        $region362: #{lxmert_binary_cls_forward.1} parent=11 // pred_check_branch
          %3067 = sbr.rel (%p3065) target = $region364
        $region363: #{lxmert_binary_cls_forward.1} parent=11 // pred_region
          _
        $region364: #{lxmert_binary_cls_forward.1} parent=11 // pred_fallthru
          _
        // Predicated region
        $region365: #{lxmert_binary_cls_forward.1} parent=11 // pred_check
          %p3068 = pneg %p2205
        $region366: #{lxmert_binary_cls_forward.1} parent=11 // pred_check_branch
          %3070 = sbr.rel (%p3068) target = $region368
        $region367: #{lxmert_binary_cls_forward.1} parent=11 // pred_region
          %3072 = vsyncadd [#allocation87], 0
          %s3074 = sshll.u32 %s185, 4
          %s3075 = int_to_ptr.hbm [resolvable:$true] %s3074
          %s3076 = sshll.u32 [#allocation86], 4
          %s3077 = int_to_ptr.vmem [resolvable:$true] %s3076
          %3079 = dma.hbm_to_vmem [thread:$0]  %s3075, 16, %s3077, [#allocation87]
        $region368: #{lxmert_binary_cls_forward.1} parent=11 // pred_fallthru
          _
        // Predicated region
        $region369: #{lxmert_binary_cls_forward.1} parent=11 // pred_check
          %p3080 = pneg %p2226
        $region370: #{lxmert_binary_cls_forward.1} parent=11 // pred_check_branch
          %3082 = sbr.rel (%p3080) target = $region372
        $region371: #{lxmert_binary_cls_forward.1} parent=11 // pred_region
          _
        $region372: #{lxmert_binary_cls_forward.1} parent=11 // pred_fallthru
          _
        // Predicated region
        $region373: #{lxmert_binary_cls_forward.1} parent=11 // pred_check
          %p3083 = pneg %p2247
        $region374: #{lxmert_binary_cls_forward.1} parent=11 // pred_check_branch
          %3085 = sbr.rel (%p3083) target = $region376
        $region375: #{lxmert_binary_cls_forward.1} parent=11 // pred_region
          %3087 = vsyncadd [#allocation87], 0
          %s3089 = sshll.u32 %s189, 4
          %s3090 = int_to_ptr.hbm [resolvable:$true] %s3089
          %s3091 = sshll.u32 [#allocation88], 4
          %s3092 = int_to_ptr.vmem [resolvable:$true] %s3091
          %3094 = dma.hbm_to_vmem [thread:$0]  %s3090, 16, %s3092, [#allocation87]
        $region376: #{lxmert_binary_cls_forward.1} parent=11 // pred_fallthru
          _
        // Predicated region
        $region377: #{lxmert_binary_cls_forward.1} parent=11 // pred_check
          %p3095 = pneg %p2268
        $region378: #{lxmert_binary_cls_forward.1} parent=11 // pred_check_branch
          %3097 = sbr.rel (%p3095) target = $region380
        $region379: #{lxmert_binary_cls_forward.1} parent=11 // pred_region
          %3099 = vsyncadd [#allocation90], 0
          %s3101 = sshll.u32 %s191, 4
          %s3102 = int_to_ptr.hbm [resolvable:$true] %s3101
          %s3103 = sshll.u32 [#allocation89], 4
          %s3104 = int_to_ptr.vmem [resolvable:$true] %s3103
          %3106 = dma.hbm_to_vmem [thread:$0]  %s3102, 16, %s3104, [#allocation90]
        $region380: #{lxmert_binary_cls_forward.1} parent=11 // pred_fallthru
          _
      $region12: #{lxmert_binary_cls_forward.1} parent=5 // pred_fallthru
        _
      %p3107 = scmp.lt.s32.totalorder %s232, 2
      // Predicated region
      $region381: #{lxmert_binary_cls_forward.1} parent=5 // pred_check
        %p3108 = pneg %p3107
      $region382: #{lxmert_binary_cls_forward.1} parent=5 // pred_check_branch
        %3110 = sbr.rel (%p3108) target = $region384
      $region383: #{lxmert_binary_cls_forward.1} parent=5 // pred_region
        // Predicated region
        $region385: #{lxmert_binary_cls_forward.1} parent=383 // pred_check
          %p3111 = pneg %p252
        $region386: #{lxmert_binary_cls_forward.1} parent=383 // pred_check_branch
          %3113 = sbr.rel (%p3111) target = $region388
        $region387: #{lxmert_binary_cls_forward.1} parent=383 // pred_region
          %p3114 = scmp.lt.s32.totalorder %s232, 1
          %s3115 = scalar_select %p3114, %s232, 1
          %s3116 = smul.addr %s3115, 8
          %s3117 = scalar_lea.vmem %s1, %s3116
        $region388: #{lxmert_binary_cls_forward.1} parent=383 // pred_fallthru
          _
        // Predicated region
        $region389: #{lxmert_binary_cls_forward.1} parent=383 // pred_check
          %p3118 = pneg %p278
        $region390: #{lxmert_binary_cls_forward.1} parent=383 // pred_check_branch
          %3120 = sbr.rel (%p3118) target = $region392
        $region391: #{lxmert_binary_cls_forward.1} parent=383 // pred_region
          %p3121 = scmp.lt.s32.totalorder %s232, 1
          %s3122 = scalar_select %p3121, %s232, 1
          %s3123 = smul.addr %s3122, 4
          %s3124 = scalar_lea.vmem %s3, %s3123
        $region392: #{lxmert_binary_cls_forward.1} parent=383 // pred_fallthru
          _
        // Predicated region
        $region393: #{lxmert_binary_cls_forward.1} parent=383 // pred_check
          %p3125 = pneg %p304
        $region394: #{lxmert_binary_cls_forward.1} parent=383 // pred_check_branch
          %3127 = sbr.rel (%p3125) target = $region396
        $region395: #{lxmert_binary_cls_forward.1} parent=383 // pred_region
          %p3128 = scmp.lt.s32.totalorder %s232, 1
          %s3129 = scalar_select %p3128, %s232, 1
          %s3130 = smul.addr %s3129, 4
          %s3131 = scalar_lea.vmem %s5, %s3130
        $region396: #{lxmert_binary_cls_forward.1} parent=383 // pred_fallthru
          _
        // Predicated region
        $region397: #{lxmert_binary_cls_forward.1} parent=383 // pred_check
          %p3132 = pneg %p330
        $region398: #{lxmert_binary_cls_forward.1} parent=383 // pred_check_branch
          %3134 = sbr.rel (%p3132) target = $region400
        $region399: #{lxmert_binary_cls_forward.1} parent=383 // pred_region
          %p3135 = scmp.lt.s32.totalorder %s232, 1
          %s3136 = scalar_select %p3135, %s232, 1
          %s3137 = scalar_lea.vmem %s7, %s3136
        $region400: #{lxmert_binary_cls_forward.1} parent=383 // pred_fallthru
          _
      $region384: #{lxmert_binary_cls_forward.1} parent=5 // pred_fallthru
        _
      %p3138 = scmp.le.s32.totalorder 1, %s232
      %p3139 = scmp.lt.s32.totalorder %s232, 3
      %p3140 = pnand %p3138, %p3139
      %p3141 = pneg %p3140
      // Predicated region
      $region401: #{lxmert_binary_cls_forward.1} parent=5 // pred_check
        _
      $region402: #{lxmert_binary_cls_forward.1} parent=5 // pred_check_branch
        %3143 = sbr.rel (%p3140) target = $region404
      $region403: #{lxmert_binary_cls_forward.1} parent=5 // pred_region
        %s3144 = ssub.s32 %s232, 1
        // Predicated region
        $region405: #{lxmert_binary_cls_forward.1} parent=403 // pred_check
          %p3145 = pneg %p483
        $region406: #{lxmert_binary_cls_forward.1} parent=403 // pred_check_branch
          %3147 = sbr.rel (%p3145) target = $region408
        $region407: #{lxmert_binary_cls_forward.1} parent=403 // pred_region
          %3149 = dma.done [#allocation3], 16
        $region408: #{lxmert_binary_cls_forward.1} parent=403 // pred_fallthru
          _
        // Predicated region
        $region409: #{lxmert_binary_cls_forward.1} parent=403 // pred_check
          %p3150 = pneg %p504
        $region410: #{lxmert_binary_cls_forward.1} parent=403 // pred_check_branch
          %3152 = sbr.rel (%p3150) target = $region412
        $region411: #{lxmert_binary_cls_forward.1} parent=403 // pred_region
          %3154 = dma.done [#allocation6], 16
        $region412: #{lxmert_binary_cls_forward.1} parent=403 // pred_fallthru
          _
        // Predicated region
        $region413: #{lxmert_binary_cls_forward.1} parent=403 // pred_check
          %p3155 = pneg %p525
        $region414: #{lxmert_binary_cls_forward.1} parent=403 // pred_check_branch
          %3157 = sbr.rel (%p3155) target = $region416
        $region415: #{lxmert_binary_cls_forward.1} parent=403 // pred_region
          %3159 = dma.done [#allocation6], 16
        $region416: #{lxmert_binary_cls_forward.1} parent=403 // pred_fallthru
          _
        // Predicated region
        $region417: #{lxmert_binary_cls_forward.1} parent=403 // pred_check
          %p3160 = pneg %p567
        $region418: #{lxmert_binary_cls_forward.1} parent=403 // pred_check_branch
          %3162 = sbr.rel (%p3160) target = $region420
        $region419: #{lxmert_binary_cls_forward.1} parent=403 // pred_region
          %3164 = dma.done [#allocation9], 16
        $region420: #{lxmert_binary_cls_forward.1} parent=403 // pred_fallthru
          _
        // Predicated region
        $region421: #{lxmert_binary_cls_forward.1} parent=403 // pred_check
          %p3165 = pneg %p588
        $region422: #{lxmert_binary_cls_forward.1} parent=403 // pred_check_branch
          %3167 = sbr.rel (%p3165) target = $region424
        $region423: #{lxmert_binary_cls_forward.1} parent=403 // pred_region
          %3169 = dma.done [#allocation9], 16
        $region424: #{lxmert_binary_cls_forward.1} parent=403 // pred_fallthru
          _
        // Predicated region
        $region425: #{lxmert_binary_cls_forward.1} parent=403 // pred_check
          %p3170 = pneg %p609
        $region426: #{lxmert_binary_cls_forward.1} parent=403 // pred_check_branch
          %3172 = sbr.rel (%p3170) target = $region428
        $region427: #{lxmert_binary_cls_forward.1} parent=403 // pred_region
          %3174 = dma.done [#allocation12], 16
        $region428: #{lxmert_binary_cls_forward.1} parent=403 // pred_fallthru
          _
        // Predicated region
        $region429: #{lxmert_binary_cls_forward.1} parent=403 // pred_check
          %p3175 = pneg %p651
        $region430: #{lxmert_binary_cls_forward.1} parent=403 // pred_check_branch
          %3177 = sbr.rel (%p3175) target = $region432
        $region431: #{lxmert_binary_cls_forward.1} parent=403 // pred_region
          %3179 = dma.done [#allocation12], 16
        $region432: #{lxmert_binary_cls_forward.1} parent=403 // pred_fallthru
          _
        // Predicated region
        $region433: #{lxmert_binary_cls_forward.1} parent=403 // pred_check
          %p3180 = pneg %p693
        $region434: #{lxmert_binary_cls_forward.1} parent=403 // pred_check_branch
          %3182 = sbr.rel (%p3180) target = $region436
        $region435: #{lxmert_binary_cls_forward.1} parent=403 // pred_region
          %3184 = dma.done [#allocation15], 16
        $region436: #{lxmert_binary_cls_forward.1} parent=403 // pred_fallthru
          _
        // Predicated region
        $region437: #{lxmert_binary_cls_forward.1} parent=403 // pred_check
          %p3185 = pneg %p735
        $region438: #{lxmert_binary_cls_forward.1} parent=403 // pred_check_branch
          %3187 = sbr.rel (%p3185) target = $region440
        $region439: #{lxmert_binary_cls_forward.1} parent=403 // pred_region
          %3189 = dma.done [#allocation15], 16
        $region440: #{lxmert_binary_cls_forward.1} parent=403 // pred_fallthru
          _
        // Predicated region
        $region441: #{lxmert_binary_cls_forward.1} parent=403 // pred_check
          %p3190 = pneg %p756
        $region442: #{lxmert_binary_cls_forward.1} parent=403 // pred_check_branch
          %3192 = sbr.rel (%p3190) target = $region444
        $region443: #{lxmert_binary_cls_forward.1} parent=403 // pred_region
          %3194 = dma.done [#allocation18], 16
        $region444: #{lxmert_binary_cls_forward.1} parent=403 // pred_fallthru
          _
        // Predicated region
        $region445: #{lxmert_binary_cls_forward.1} parent=403 // pred_check
          %p3195 = pneg %p777
        $region446: #{lxmert_binary_cls_forward.1} parent=403 // pred_check_branch
          %3197 = sbr.rel (%p3195) target = $region448
        $region447: #{lxmert_binary_cls_forward.1} parent=403 // pred_region
          %3199 = dma.done [#allocation18], 16
        $region448: #{lxmert_binary_cls_forward.1} parent=403 // pred_fallthru
          _
        // Predicated region
        $region449: #{lxmert_binary_cls_forward.1} parent=403 // pred_check
          %p3200 = pneg %p819
        $region450: #{lxmert_binary_cls_forward.1} parent=403 // pred_check_branch
          %3202 = sbr.rel (%p3200) target = $region452
        $region451: #{lxmert_binary_cls_forward.1} parent=403 // pred_region
          %3204 = dma.done [#allocation21], 16
        $region452: #{lxmert_binary_cls_forward.1} parent=403 // pred_fallthru
          _
        // Predicated region
        $region453: #{lxmert_binary_cls_forward.1} parent=403 // pred_check
          %p3205 = pneg %p840
        $region454: #{lxmert_binary_cls_forward.1} parent=403 // pred_check_branch
          %3207 = sbr.rel (%p3205) target = $region456
        $region455: #{lxmert_binary_cls_forward.1} parent=403 // pred_region
          %3209 = dma.done [#allocation21], 16
        $region456: #{lxmert_binary_cls_forward.1} parent=403 // pred_fallthru
          _
        // Predicated region
        $region457: #{lxmert_binary_cls_forward.1} parent=403 // pred_check
          %p3210 = pneg %p861
        $region458: #{lxmert_binary_cls_forward.1} parent=403 // pred_check_branch
          %3212 = sbr.rel (%p3210) target = $region460
        $region459: #{lxmert_binary_cls_forward.1} parent=403 // pred_region
          %3214 = dma.done [#allocation24], 16
        $region460: #{lxmert_binary_cls_forward.1} parent=403 // pred_fallthru
          _
        // Predicated region
        $region461: #{lxmert_binary_cls_forward.1} parent=403 // pred_check
          %p3215 = pneg %p903
        $region462: #{lxmert_binary_cls_forward.1} parent=403 // pred_check_branch
          %3217 = sbr.rel (%p3215) target = $region464
        $region463: #{lxmert_binary_cls_forward.1} parent=403 // pred_region
          %3219 = dma.done [#allocation24], 16
        $region464: #{lxmert_binary_cls_forward.1} parent=403 // pred_fallthru
          _
        // Predicated region
        $region465: #{lxmert_binary_cls_forward.1} parent=403 // pred_check
          %p3220 = pneg %p945
        $region466: #{lxmert_binary_cls_forward.1} parent=403 // pred_check_branch
          %3222 = sbr.rel (%p3220) target = $region468
        $region467: #{lxmert_binary_cls_forward.1} parent=403 // pred_region
          %3224 = dma.done [#allocation27], 16
        $region468: #{lxmert_binary_cls_forward.1} parent=403 // pred_fallthru
          _
        // Predicated region
        $region469: #{lxmert_binary_cls_forward.1} parent=403 // pred_check
          %p3225 = pneg %p987
        $region470: #{lxmert_binary_cls_forward.1} parent=403 // pred_check_branch
          %3227 = sbr.rel (%p3225) target = $region472
        $region471: #{lxmert_binary_cls_forward.1} parent=403 // pred_region
          %3229 = dma.done [#allocation27], 16
        $region472: #{lxmert_binary_cls_forward.1} parent=403 // pred_fallthru
          _
        // Predicated region
        $region473: #{lxmert_binary_cls_forward.1} parent=403 // pred_check
          %p3230 = pneg %p1029
        $region474: #{lxmert_binary_cls_forward.1} parent=403 // pred_check_branch
          %3232 = sbr.rel (%p3230) target = $region476
        $region475: #{lxmert_binary_cls_forward.1} parent=403 // pred_region
          %3234 = dma.done [#allocation30], 16
        $region476: #{lxmert_binary_cls_forward.1} parent=403 // pred_fallthru
          _
        // Predicated region
        $region477: #{lxmert_binary_cls_forward.1} parent=403 // pred_check
          %p3235 = pneg %p1050
        $region478: #{lxmert_binary_cls_forward.1} parent=403 // pred_check_branch
          %3237 = sbr.rel (%p3235) target = $region480
        $region479: #{lxmert_binary_cls_forward.1} parent=403 // pred_region
          %3239 = dma.done [#allocation30], 16
        $region480: #{lxmert_binary_cls_forward.1} parent=403 // pred_fallthru
          _
        // Predicated region
        $region481: #{lxmert_binary_cls_forward.1} parent=403 // pred_check
          %p3240 = pneg %p1071
        $region482: #{lxmert_binary_cls_forward.1} parent=403 // pred_check_branch
          %3242 = sbr.rel (%p3240) target = $region484
        $region483: #{lxmert_binary_cls_forward.1} parent=403 // pred_region
          %3244 = dma.done [#allocation33], 16
        $region484: #{lxmert_binary_cls_forward.1} parent=403 // pred_fallthru
          _
        // Predicated region
        $region485: #{lxmert_binary_cls_forward.1} parent=403 // pred_check
          %p3245 = pneg %p1113
        $region486: #{lxmert_binary_cls_forward.1} parent=403 // pred_check_branch
          %3247 = sbr.rel (%p3245) target = $region488
        $region487: #{lxmert_binary_cls_forward.1} parent=403 // pred_region
          %3249 = dma.done [#allocation33], 16
        $region488: #{lxmert_binary_cls_forward.1} parent=403 // pred_fallthru
          _
        // Predicated region
        $region489: #{lxmert_binary_cls_forward.1} parent=403 // pred_check
          %p3250 = pneg %p1134
        $region490: #{lxmert_binary_cls_forward.1} parent=403 // pred_check_branch
          %3252 = sbr.rel (%p3250) target = $region492
        $region491: #{lxmert_binary_cls_forward.1} parent=403 // pred_region
          %3254 = dma.done [#allocation36], 16
        $region492: #{lxmert_binary_cls_forward.1} parent=403 // pred_fallthru
          _
        // Predicated region
        $region493: #{lxmert_binary_cls_forward.1} parent=403 // pred_check
          %p3255 = pneg %p1155
        $region494: #{lxmert_binary_cls_forward.1} parent=403 // pred_check_branch
          %3257 = sbr.rel (%p3255) target = $region496
        $region495: #{lxmert_binary_cls_forward.1} parent=403 // pred_region
          %3259 = dma.done [#allocation36], 16
        $region496: #{lxmert_binary_cls_forward.1} parent=403 // pred_fallthru
          _
        // Predicated region
        $region497: #{lxmert_binary_cls_forward.1} parent=403 // pred_check
          %p3260 = pneg %p1197
        $region498: #{lxmert_binary_cls_forward.1} parent=403 // pred_check_branch
          %3262 = sbr.rel (%p3260) target = $region500
        $region499: #{lxmert_binary_cls_forward.1} parent=403 // pred_region
          %3264 = dma.done [#allocation39], 16
        $region500: #{lxmert_binary_cls_forward.1} parent=403 // pred_fallthru
          _
        // Predicated region
        $region501: #{lxmert_binary_cls_forward.1} parent=403 // pred_check
          %p3265 = pneg %p1239
        $region502: #{lxmert_binary_cls_forward.1} parent=403 // pred_check_branch
          %3267 = sbr.rel (%p3265) target = $region504
        $region503: #{lxmert_binary_cls_forward.1} parent=403 // pred_region
          %3269 = dma.done [#allocation39], 16
        $region504: #{lxmert_binary_cls_forward.1} parent=403 // pred_fallthru
          _
        // Predicated region
        $region505: #{lxmert_binary_cls_forward.1} parent=403 // pred_check
          %p3270 = pneg %p1281
        $region506: #{lxmert_binary_cls_forward.1} parent=403 // pred_check_branch
          %3272 = sbr.rel (%p3270) target = $region508
        $region507: #{lxmert_binary_cls_forward.1} parent=403 // pred_region
          %3274 = dma.done [#allocation42], 16
        $region508: #{lxmert_binary_cls_forward.1} parent=403 // pred_fallthru
          _
        // Predicated region
        $region509: #{lxmert_binary_cls_forward.1} parent=403 // pred_check
          %p3275 = pneg %p1302
        $region510: #{lxmert_binary_cls_forward.1} parent=403 // pred_check_branch
          %3277 = sbr.rel (%p3275) target = $region512
        $region511: #{lxmert_binary_cls_forward.1} parent=403 // pred_region
          %3279 = dma.done [#allocation42], 16
        $region512: #{lxmert_binary_cls_forward.1} parent=403 // pred_fallthru
          _
        // Predicated region
        $region513: #{lxmert_binary_cls_forward.1} parent=403 // pred_check
          %p3280 = pneg %p1323
        $region514: #{lxmert_binary_cls_forward.1} parent=403 // pred_check_branch
          %3282 = sbr.rel (%p3280) target = $region516
        $region515: #{lxmert_binary_cls_forward.1} parent=403 // pred_region
          %3284 = dma.done [#allocation45], 16
        $region516: #{lxmert_binary_cls_forward.1} parent=403 // pred_fallthru
          _
        // Predicated region
        $region517: #{lxmert_binary_cls_forward.1} parent=403 // pred_check
          %p3285 = pneg %p1365
        $region518: #{lxmert_binary_cls_forward.1} parent=403 // pred_check_branch
          %3287 = sbr.rel (%p3285) target = $region520
        $region519: #{lxmert_binary_cls_forward.1} parent=403 // pred_region
          %3289 = dma.done [#allocation45], 16
        $region520: #{lxmert_binary_cls_forward.1} parent=403 // pred_fallthru
          _
        // Predicated region
        $region521: #{lxmert_binary_cls_forward.1} parent=403 // pred_check
          %p3290 = pneg %p1386
        $region522: #{lxmert_binary_cls_forward.1} parent=403 // pred_check_branch
          %3292 = sbr.rel (%p3290) target = $region524
        $region523: #{lxmert_binary_cls_forward.1} parent=403 // pred_region
          %3294 = dma.done [#allocation48], 16
        $region524: #{lxmert_binary_cls_forward.1} parent=403 // pred_fallthru
          _
        // Predicated region
        $region525: #{lxmert_binary_cls_forward.1} parent=403 // pred_check
          %p3295 = pneg %p1407
        $region526: #{lxmert_binary_cls_forward.1} parent=403 // pred_check_branch
          %3297 = sbr.rel (%p3295) target = $region528
        $region527: #{lxmert_binary_cls_forward.1} parent=403 // pred_region
          %3299 = dma.done [#allocation48], 16
        $region528: #{lxmert_binary_cls_forward.1} parent=403 // pred_fallthru
          _
        // Predicated region
        $region529: #{lxmert_binary_cls_forward.1} parent=403 // pred_check
          %p3300 = pneg %p1449
        $region530: #{lxmert_binary_cls_forward.1} parent=403 // pred_check_branch
          %3302 = sbr.rel (%p3300) target = $region532
        $region531: #{lxmert_binary_cls_forward.1} parent=403 // pred_region
          %3304 = dma.done [#allocation51], 16
        $region532: #{lxmert_binary_cls_forward.1} parent=403 // pred_fallthru
          _
        // Predicated region
        $region533: #{lxmert_binary_cls_forward.1} parent=403 // pred_check
          %p3305 = pneg %p1491
        $region534: #{lxmert_binary_cls_forward.1} parent=403 // pred_check_branch
          %3307 = sbr.rel (%p3305) target = $region536
        $region535: #{lxmert_binary_cls_forward.1} parent=403 // pred_region
          %3309 = dma.done [#allocation51], 16
        $region536: #{lxmert_binary_cls_forward.1} parent=403 // pred_fallthru
          _
        // Predicated region
        $region537: #{lxmert_binary_cls_forward.1} parent=403 // pred_check
          %p3310 = pneg %p1533
        $region538: #{lxmert_binary_cls_forward.1} parent=403 // pred_check_branch
          %3312 = sbr.rel (%p3310) target = $region540
        $region539: #{lxmert_binary_cls_forward.1} parent=403 // pred_region
          %3314 = dma.done [#allocation54], 16
        $region540: #{lxmert_binary_cls_forward.1} parent=403 // pred_fallthru
          _
        // Predicated region
        $region541: #{lxmert_binary_cls_forward.1} parent=403 // pred_check
          %p3315 = pneg %p1554
        $region542: #{lxmert_binary_cls_forward.1} parent=403 // pred_check_branch
          %3317 = sbr.rel (%p3315) target = $region544
        $region543: #{lxmert_binary_cls_forward.1} parent=403 // pred_region
          %3319 = dma.done [#allocation54], 16
        $region544: #{lxmert_binary_cls_forward.1} parent=403 // pred_fallthru
          _
        // Predicated region
        $region545: #{lxmert_binary_cls_forward.1} parent=403 // pred_check
          %p3320 = pneg %p1575
        $region546: #{lxmert_binary_cls_forward.1} parent=403 // pred_check_branch
          %3322 = sbr.rel (%p3320) target = $region548
        $region547: #{lxmert_binary_cls_forward.1} parent=403 // pred_region
          %3324 = dma.done [#allocation57], 16
        $region548: #{lxmert_binary_cls_forward.1} parent=403 // pred_fallthru
          _
        // Predicated region
        $region549: #{lxmert_binary_cls_forward.1} parent=403 // pred_check
          %p3325 = pneg %p1617
        $region550: #{lxmert_binary_cls_forward.1} parent=403 // pred_check_branch
          %3327 = sbr.rel (%p3325) target = $region552
        $region551: #{lxmert_binary_cls_forward.1} parent=403 // pred_region
          %3329 = dma.done [#allocation57], 16
        $region552: #{lxmert_binary_cls_forward.1} parent=403 // pred_fallthru
          _
        // Predicated region
        $region553: #{lxmert_binary_cls_forward.1} parent=403 // pred_check
          %p3330 = pneg %p1638
        $region554: #{lxmert_binary_cls_forward.1} parent=403 // pred_check_branch
          %3332 = sbr.rel (%p3330) target = $region556
        $region555: #{lxmert_binary_cls_forward.1} parent=403 // pred_region
          %3334 = dma.done [#allocation60], 16
        $region556: #{lxmert_binary_cls_forward.1} parent=403 // pred_fallthru
          _
        // Predicated region
        $region557: #{lxmert_binary_cls_forward.1} parent=403 // pred_check
          %p3335 = pneg %p1659
        $region558: #{lxmert_binary_cls_forward.1} parent=403 // pred_check_branch
          %3337 = sbr.rel (%p3335) target = $region560
        $region559: #{lxmert_binary_cls_forward.1} parent=403 // pred_region
          %3339 = dma.done [#allocation60], 16
        $region560: #{lxmert_binary_cls_forward.1} parent=403 // pred_fallthru
          _
        // Predicated region
        $region561: #{lxmert_binary_cls_forward.1} parent=403 // pred_check
          %p3340 = pneg %p1701
        $region562: #{lxmert_binary_cls_forward.1} parent=403 // pred_check_branch
          %3342 = sbr.rel (%p3340) target = $region564
        $region563: #{lxmert_binary_cls_forward.1} parent=403 // pred_region
          %3344 = dma.done [#allocation63], 16
        $region564: #{lxmert_binary_cls_forward.1} parent=403 // pred_fallthru
          _
        // Predicated region
        $region565: #{lxmert_binary_cls_forward.1} parent=403 // pred_check
          %p3345 = pneg %p1743
        $region566: #{lxmert_binary_cls_forward.1} parent=403 // pred_check_branch
          %3347 = sbr.rel (%p3345) target = $region568
        $region567: #{lxmert_binary_cls_forward.1} parent=403 // pred_region
          %3349 = dma.done [#allocation63], 16
        $region568: #{lxmert_binary_cls_forward.1} parent=403 // pred_fallthru
          _
        // Predicated region
        $region569: #{lxmert_binary_cls_forward.1} parent=403 // pred_check
          %p3350 = pneg %p1764
        $region570: #{lxmert_binary_cls_forward.1} parent=403 // pred_check_branch
          %3352 = sbr.rel (%p3350) target = $region572
        $region571: #{lxmert_binary_cls_forward.1} parent=403 // pred_region
          %3354 = dma.done [#allocation66], 16
        $region572: #{lxmert_binary_cls_forward.1} parent=403 // pred_fallthru
          _
        // Predicated region
        $region573: #{lxmert_binary_cls_forward.1} parent=403 // pred_check
          %p3355 = pneg %p1785
        $region574: #{lxmert_binary_cls_forward.1} parent=403 // pred_check_branch
          %3357 = sbr.rel (%p3355) target = $region576
        $region575: #{lxmert_binary_cls_forward.1} parent=403 // pred_region
          %3359 = dma.done [#allocation66], 16
        $region576: #{lxmert_binary_cls_forward.1} parent=403 // pred_fallthru
          _
        // Predicated region
        $region577: #{lxmert_binary_cls_forward.1} parent=403 // pred_check
          %p3360 = pneg %p1827
        $region578: #{lxmert_binary_cls_forward.1} parent=403 // pred_check_branch
          %3362 = sbr.rel (%p3360) target = $region580
        $region579: #{lxmert_binary_cls_forward.1} parent=403 // pred_region
          %3364 = dma.done [#allocation69], 16
        $region580: #{lxmert_binary_cls_forward.1} parent=403 // pred_fallthru
          _
        // Predicated region
        $region581: #{lxmert_binary_cls_forward.1} parent=403 // pred_check
          %p3365 = pneg %p1848
        $region582: #{lxmert_binary_cls_forward.1} parent=403 // pred_check_branch
          %3367 = sbr.rel (%p3365) target = $region584
        $region583: #{lxmert_binary_cls_forward.1} parent=403 // pred_region
          %3369 = dma.done [#allocation69], 16
        $region584: #{lxmert_binary_cls_forward.1} parent=403 // pred_fallthru
          _
        // Predicated region
        $region585: #{lxmert_binary_cls_forward.1} parent=403 // pred_check
          %p3370 = pneg %p1869
        $region586: #{lxmert_binary_cls_forward.1} parent=403 // pred_check_branch
          %3372 = sbr.rel (%p3370) target = $region588
        $region587: #{lxmert_binary_cls_forward.1} parent=403 // pred_region
          %3374 = dma.done [#allocation72], 16
        $region588: #{lxmert_binary_cls_forward.1} parent=403 // pred_fallthru
          _
        // Predicated region
        $region589: #{lxmert_binary_cls_forward.1} parent=403 // pred_check
          %p3375 = pneg %p1911
        $region590: #{lxmert_binary_cls_forward.1} parent=403 // pred_check_branch
          %3377 = sbr.rel (%p3375) target = $region592
        $region591: #{lxmert_binary_cls_forward.1} parent=403 // pred_region
          %3379 = dma.done [#allocation72], 16
        $region592: #{lxmert_binary_cls_forward.1} parent=403 // pred_fallthru
          _
        // Predicated region
        $region593: #{lxmert_binary_cls_forward.1} parent=403 // pred_check
          %p3380 = pneg %p1953
        $region594: #{lxmert_binary_cls_forward.1} parent=403 // pred_check_branch
          %3382 = sbr.rel (%p3380) target = $region596
        $region595: #{lxmert_binary_cls_forward.1} parent=403 // pred_region
          %3384 = dma.done [#allocation75], 16
        $region596: #{lxmert_binary_cls_forward.1} parent=403 // pred_fallthru
          _
        // Predicated region
        $region597: #{lxmert_binary_cls_forward.1} parent=403 // pred_check
          %p3385 = pneg %p1995
        $region598: #{lxmert_binary_cls_forward.1} parent=403 // pred_check_branch
          %3387 = sbr.rel (%p3385) target = $region600
        $region599: #{lxmert_binary_cls_forward.1} parent=403 // pred_region
          %3389 = dma.done [#allocation75], 16
        $region600: #{lxmert_binary_cls_forward.1} parent=403 // pred_fallthru
          _
        // Predicated region
        $region601: #{lxmert_binary_cls_forward.1} parent=403 // pred_check
          %p3390 = pneg %p2016
        $region602: #{lxmert_binary_cls_forward.1} parent=403 // pred_check_branch
          %3392 = sbr.rel (%p3390) target = $region604
        $region603: #{lxmert_binary_cls_forward.1} parent=403 // pred_region
          %3394 = dma.done [#allocation78], 16
        $region604: #{lxmert_binary_cls_forward.1} parent=403 // pred_fallthru
          _
        // Predicated region
        $region605: #{lxmert_binary_cls_forward.1} parent=403 // pred_check
          %p3395 = pneg %p2037
        $region606: #{lxmert_binary_cls_forward.1} parent=403 // pred_check_branch
          %3397 = sbr.rel (%p3395) target = $region608
        $region607: #{lxmert_binary_cls_forward.1} parent=403 // pred_region
          %3399 = dma.done [#allocation78], 16
        $region608: #{lxmert_binary_cls_forward.1} parent=403 // pred_fallthru
          _
        // Predicated region
        $region609: #{lxmert_binary_cls_forward.1} parent=403 // pred_check
          %p3400 = pneg %p2079
        $region610: #{lxmert_binary_cls_forward.1} parent=403 // pred_check_branch
          %3402 = sbr.rel (%p3400) target = $region612
        $region611: #{lxmert_binary_cls_forward.1} parent=403 // pred_region
          %3404 = dma.done [#allocation81], 16
        $region612: #{lxmert_binary_cls_forward.1} parent=403 // pred_fallthru
          _
        // Predicated region
        $region613: #{lxmert_binary_cls_forward.1} parent=403 // pred_check
          %p3405 = pneg %p2100
        $region614: #{lxmert_binary_cls_forward.1} parent=403 // pred_check_branch
          %3407 = sbr.rel (%p3405) target = $region616
        $region615: #{lxmert_binary_cls_forward.1} parent=403 // pred_region
          %3409 = dma.done [#allocation81], 16
        $region616: #{lxmert_binary_cls_forward.1} parent=403 // pred_fallthru
          _
        // Predicated region
        $region617: #{lxmert_binary_cls_forward.1} parent=403 // pred_check
          %p3410 = pneg %p2121
        $region618: #{lxmert_binary_cls_forward.1} parent=403 // pred_check_branch
          %3412 = sbr.rel (%p3410) target = $region620
        $region619: #{lxmert_binary_cls_forward.1} parent=403 // pred_region
          %3414 = dma.done [#allocation84], 16
        $region620: #{lxmert_binary_cls_forward.1} parent=403 // pred_fallthru
          _
        // Predicated region
        $region621: #{lxmert_binary_cls_forward.1} parent=403 // pred_check
          %p3415 = pneg %p2163
        $region622: #{lxmert_binary_cls_forward.1} parent=403 // pred_check_branch
          %3417 = sbr.rel (%p3415) target = $region624
        $region623: #{lxmert_binary_cls_forward.1} parent=403 // pred_region
          %3419 = dma.done [#allocation84], 16
        $region624: #{lxmert_binary_cls_forward.1} parent=403 // pred_fallthru
          _
        // Predicated region
        $region625: #{lxmert_binary_cls_forward.1} parent=403 // pred_check
          %p3420 = pneg %p2205
        $region626: #{lxmert_binary_cls_forward.1} parent=403 // pred_check_branch
          %3422 = sbr.rel (%p3420) target = $region628
        $region627: #{lxmert_binary_cls_forward.1} parent=403 // pred_region
          %3424 = dma.done [#allocation87], 16
        $region628: #{lxmert_binary_cls_forward.1} parent=403 // pred_fallthru
          _
        // Predicated region
        $region629: #{lxmert_binary_cls_forward.1} parent=403 // pred_check
          %p3425 = pneg %p2247
        $region630: #{lxmert_binary_cls_forward.1} parent=403 // pred_check_branch
          %3427 = sbr.rel (%p3425) target = $region632
        $region631: #{lxmert_binary_cls_forward.1} parent=403 // pred_region
          %3429 = dma.done [#allocation87], 16
        $region632: #{lxmert_binary_cls_forward.1} parent=403 // pred_fallthru
          _
        // Predicated region
        $region633: #{lxmert_binary_cls_forward.1} parent=403 // pred_check
          %p3430 = pneg %p2268
        $region634: #{lxmert_binary_cls_forward.1} parent=403 // pred_check_branch
          %3432 = sbr.rel (%p3430) target = $region636
        $region635: #{lxmert_binary_cls_forward.1} parent=403 // pred_region
          %3434 = dma.done [#allocation90], 16
        $region636: #{lxmert_binary_cls_forward.1} parent=403 // pred_fallthru
          _
        %p3435 = scmp.lt.s32.totalorder %s237, 1
        %s3436 = scalar_select %p3435, %s237, 1
        %s3437 = smul.addr %s3436, 8
        %s3438 = scalar_lea.vmem %s1, %s3437
        %p3439 = pneg %p258
        %p3440 = pneg %p255
        %p3441 = scmp.lt.s32.totalorder %s237, 1
        %s3442 = scalar_select %p3441, %s237, 1
        %s3443 = smul.addr %s3442, 4
        %s3444 = scalar_lea.vmem %s3, %s3443
        %p3445 = pneg %p284
        %p3446 = pneg %p281
        %p3447 = scmp.lt.s32.totalorder %s237, 1
        %s3448 = scalar_select %p3447, %s237, 1
        %s3449 = smul.addr %s3448, 4
        %s3450 = scalar_lea.vmem %s5, %s3449
        %p3451 = pneg %p310
        %p3452 = pneg %p307
        %p3453 = scmp.lt.s32.totalorder %s237, 1
        %s3454 = scalar_select %p3453, %s237, 1
        %s3455 = scalar_lea.vmem %s7, %s3454
        %p3456 = pneg %p336
        %p3457 = pneg %p333
        %p3458 = pneg %p357
        %p3459 = pneg %p354
        %p3460 = pneg %p378
        %p3461 = pneg %p375
        %p3462 = pneg %p399
        %p3463 = pneg %p396
        %p3464 = pneg %p420
        %p3465 = pneg %p417
        %p3466 = pneg %p441
        %p3467 = pneg %p438
        %p3468 = pneg %p462
        %p3469 = pneg %p459
        %p3470 = pneg %p483
        %p3471 = pneg %p480
        %p3472 = pneg %p504
        %p3473 = pneg %p501
        %p3474 = pneg %p525
        %p3475 = pneg %p522
        %p3476 = pneg %p546
        %p3477 = pneg %p543
        %p3478 = pneg %p567
        %p3479 = pneg %p564
        %p3480 = pneg %p588
        %p3481 = pneg %p585
        %p3482 = pneg %p609
        %p3483 = pneg %p606
        %p3484 = pneg %p630
        %p3485 = pneg %p627
        %p3486 = pneg %p651
        %p3487 = pneg %p648
        %p3488 = pneg %p672
        %p3489 = pneg %p669
        %p3490 = pneg %p693
        %p3491 = pneg %p690
        %p3492 = pneg %p714
        %p3493 = pneg %p711
        %p3494 = pneg %p735
        %p3495 = pneg %p732
        %p3496 = pneg %p756
        %p3497 = pneg %p753
        %p3498 = pneg %p777
        %p3499 = pneg %p774
        %p3500 = pneg %p798
        %p3501 = pneg %p795
        %p3502 = pneg %p819
        %p3503 = pneg %p816
        %p3504 = pneg %p840
        %p3505 = pneg %p837
        %p3506 = pneg %p861
        %p3507 = pneg %p858
        %p3508 = pneg %p882
        %p3509 = pneg %p879
        %p3510 = pneg %p903
        %p3511 = pneg %p900
        %p3512 = pneg %p924
        %p3513 = pneg %p921
        %p3514 = pneg %p945
        %p3515 = pneg %p942
        %p3516 = pneg %p966
        %p3517 = pneg %p963
        %p3518 = pneg %p987
        %p3519 = pneg %p984
        %p3520 = pneg %p1008
        %p3521 = pneg %p1005
        %p3522 = pneg %p1029
        %p3523 = pneg %p1026
        %p3524 = pneg %p1050
        %p3525 = pneg %p1047
        %p3526 = pneg %p1071
        %p3527 = pneg %p1068
        %p3528 = pneg %p1092
        %p3529 = pneg %p1089
        %p3530 = pneg %p1113
        %p3531 = pneg %p1110
        %p3532 = pneg %p1134
        %p3533 = pneg %p1131
        %p3534 = pneg %p1155
        %p3535 = pneg %p1152
        %p3536 = pneg %p1176
        %p3537 = pneg %p1173
        %p3538 = pneg %p1197
        %p3539 = pneg %p1194
        %p3540 = pneg %p1218
        %p3541 = pneg %p1215
        %p3542 = pneg %p1239
        %p3543 = pneg %p1236
        %p3544 = pneg %p1260
        %p3545 = pneg %p1257
        %p3546 = pneg %p1281
        %p3547 = pneg %p1278
        %p3548 = pneg %p1302
        %p3549 = pneg %p1299
        %p3550 = pneg %p1323
        %p3551 = pneg %p1320
        %p3552 = pneg %p1344
        %p3553 = pneg %p1341
        %p3554 = pneg %p1365
        %p3555 = pneg %p1362
        %p3556 = pneg %p1386
        %p3557 = pneg %p1383
        %p3558 = pneg %p1407
        %p3559 = pneg %p1404
        %p3560 = pneg %p1428
        %p3561 = pneg %p1425
        %p3562 = pneg %p1449
        %p3563 = pneg %p1446
        %p3564 = pneg %p1470
        %p3565 = pneg %p1467
        %p3566 = pneg %p1491
        %p3567 = pneg %p1488
        %p3568 = pneg %p1512
        %p3569 = pneg %p1509
        %p3570 = pneg %p1533
        %p3571 = pneg %p1530
        %p3572 = pneg %p1554
        %p3573 = pneg %p1551
        %p3574 = pneg %p1575
        %p3575 = pneg %p1572
        %p3576 = pneg %p1596
        %p3577 = pneg %p1593
        %p3578 = pneg %p1617
        %p3579 = pneg %p1614
        %p3580 = pneg %p1638
        %p3581 = pneg %p1635
        %p3582 = pneg %p1659
        %p3583 = pneg %p1656
        %p3584 = pneg %p1680
        %p3585 = pneg %p1677
        %p3586 = pneg %p1701
        %p3587 = pneg %p1698
        %p3588 = pneg %p1722
        %p3589 = pneg %p1719
        %p3590 = pneg %p1743
        %p3591 = pneg %p1740
        %p3592 = pneg %p1764
        %p3593 = pneg %p1761
        %p3594 = pneg %p1785
        %p3595 = pneg %p1782
        %p3596 = pneg %p1806
        %p3597 = pneg %p1803
        %p3598 = pneg %p1827
        %p3599 = pneg %p1824
        %p3600 = pneg %p1848
        %p3601 = pneg %p1845
        %p3602 = pneg %p1869
        %p3603 = pneg %p1866
        %p3604 = pneg %p1890
        %p3605 = pneg %p1887
        %p3606 = pneg %p1911
        %p3607 = pneg %p1908
        %p3608 = pneg %p1932
        %p3609 = pneg %p1929
        %p3610 = pneg %p1953
        %p3611 = pneg %p1950
        %p3612 = pneg %p1974
        %p3613 = pneg %p1971
        %p3614 = pneg %p1995
        %p3615 = pneg %p1992
        %p3616 = pneg %p2016
        %p3617 = pneg %p2013
        %p3618 = pneg %p2037
        %p3619 = pneg %p2034
        %p3620 = pneg %p2058
        %p3621 = pneg %p2055
        %p3622 = pneg %p2079
        %p3623 = pneg %p2076
        %p3624 = pneg %p2100
        %p3625 = pneg %p2097
        %p3626 = pneg %p2121
        %p3627 = pneg %p2118
        %p3628 = pneg %p2142
        %p3629 = pneg %p2139
        %p3630 = pneg %p2163
        %p3631 = pneg %p2160
        %p3632 = pneg %p2184
        %p3633 = pneg %p2181
        %p3634 = pneg %p2205
        %p3635 = pneg %p2202
        %p3636 = pneg %p2226
        %p3637 = pneg %p2223
        %p3638 = pneg %p2247
        %p3639 = pneg %p2244
        %p3640 = pneg %p2268
        %p3641 = pneg %p2265
        %p3642 = pneg %p2294
        %p3643 = pneg %p2291
        %s3644 = sand.u32 %s2281, 1
        %s3645 = scalar_lea.sflag [#allocation4], %s3644
        %s3646 = sand.u32 %s2281, 1
        %s3647 = scalar_lea.vmem [#allocation91], %s3646
        %p3648 = scmp.lt.s32.totalorder %s237, 1
        %s3649 = scalar_select %p3648, %s237, 1
        %s3650 = smul.addr %s3649, 8
        %s3651 = scalar_lea.vmem %s1, %s3650
        %p3652 = scmp.lt.s32.totalorder %s237, 1
        %s3653 = scalar_select %p3652, %s237, 1
        %s3654 = smul.addr %s3653, 4
        %s3655 = scalar_lea.vmem %s3, %s3654
        %p3656 = scmp.lt.s32.totalorder %s237, 1
        %s3657 = scalar_select %p3656, %s237, 1
        %s3658 = smul.addr %s3657, 4
        %s3659 = scalar_lea.vmem %s5, %s3658
        %p3660 = scmp.lt.s32.totalorder %s237, 1
        %s3661 = scalar_select %p3660, %s237, 1
        %s3662 = scalar_lea.vmem %s7, %s3661
        %v3663 = vld [vmem:[%s3651] sm:$0xff]
        %vm3664 = vcmask 261120
        %v3665 = vsel %vm3664, %v3663, 0.0
        %3666 = vadd.xlane.f32.xlu0 %v3665
        %v3667 = vpop.xlane.xlu0 %3666
        %v3668 = vrcp.pop 32.0
        %v3669 = vmul.f32 32.0, %v3668
        %v3670 = vsub.f32 1.0, %v3669
        %v3671 = vmul.f32 %v3668, %v3670
        %v3672 = vadd.f32 %v3668, %v3671
        %vm3673 = vweird.f32 %v3668
        %v3674 = vsel %vm3673, %v3668, %v3672
        %v3675 = vmul.f32 %v3667, %v3674
        %v3676 = vsub.f32 %v3663, %v3675
        %v3677 = vmul.f32 %v3676, %v3676
        %v3678 = vsel %vm3664, %v3677, 0.0
        %3679 = vadd.xlane.f32.xlu0 %v3678
        %v3680 = vpop.xlane.xlu0 %3679
        %v3681 = vmul.f32 %v3680, %v3674
        %v3682 = vadd.f32 %v3681, 1e-12
        %v3683 = vrsqrt.pop %v3682
        %v3684 = vmul.f32 %v3683, %v3682
        %v3685 = vmul.f32 %v3684, %v3683
        %v3686 = vmul.f32 0.5, %v3685
        %v3687 = vsub.f32 1.5, %v3686
        %v3688 = vmul.f32 %v3683, %v3687
        %vm3689 = vweird.f32 %v3682
        %vm3690 = vweird.f32 %v3683
        %vm3691 = vmor %vm3689, %vm3690
        %v3692 = vsel %vm3691, %v3683, %v3688
        %v3693 = vmul.f32 %v3676, %v3692
        %v3694 = vld [vmem:[%s11] sm:$0x1]
        %v3696 = vperm.slane %v3694, 0
        %v3698 = vmul.f32 %v3693, %v3696
        %v3699 = vld [vmem:[%s9] sm:$0x1]
        %v3701 = vperm.slane %v3699, 0
        %v3703 = vadd.f32 %v3698, %v3701
        %v3704 = vld [vmem:[%s3655] sm:$0xf]
        %v3705 = vld [vmem:[%s127] sm:$0xff]
        %v3706 = vld [vmem:[%s127 + $0x8] sm:$0xff]
        %v3707 = vld [vmem:[#allocation56] sm:$0x1]
        %v3709 = vperm.slane %v3707, 0
        %vm3711 = vcmask 130048
        %v3713 = vsel %vm3711, %v3704, 0
        %3715 = vmatpush.msra.mxu0 0.0
        %3716 = vmatpush.msra.mxu0 0.0
        %3717 = vmatpush.msra.mxu0 0.0
        %3718 = vmatpush.msra.mxu0 0.0
        %3719 = vmatpush.msra.mxu0 0.0
        %3720 = vmatpush.msra.mxu0 0.0
        %3721 = vmatpush.msra.mxu0 0.0
        %3722 = vmatpush.msra.mxu0 0.0
        %3723 = vmatpush.msra.mxu0 0.0
        %3724 = vmatpush.msra.mxu0 0.0
        %3725 = vmatpush.msra.mxu0 0.0
        %3726 = vmatpush.msra.mxu0 0.0
        %3727 = vmatpush.msra.mxu0 0.0
        %3728 = vmatpush.msra.mxu0 0.0
        %3729 = vmatpush.msra.mxu0 %v3706
        %3730 = vmatpush.msra.mxu0 %v3705
        %3731 = vmatmul.f32.gmra.mxu0 %v3713
        %v3732 = vpop.f32.mrf.mxu0
        %v3733 = vadd.f32 %v3709, %v3732
        %3734 = vdwg.mxu0
        %vm3735 = vcmask 257024
        %v3736 = vsel %vm3735, %v3733, 0.0
        %3737 = vadd.xlane.f32.xlu0 %v3736
        %v3738 = vpop.xlane.xlu0 %3737
        %v3739 = vmul.f32 %v3738, %v3674
        %v3740 = vsub.f32 %v3733, %v3739
        %v3741 = vmul.f32 %v3740, %v3740
        %v3742 = vsel %vm3735, %v3741, 0.0
        %3743 = vadd.xlane.f32.xlu0 %v3742
        %v3744 = vpop.xlane.xlu0 %3743
        %v3745 = vmul.f32 %v3744, %v3674
        %v3746 = vadd.f32 %v3745, 1e-12
        %v3747 = vrsqrt.pop %v3746
        %v3748 = vmul.f32 %v3747, %v3746
        %v3749 = vmul.f32 %v3748, %v3747
        %v3750 = vmul.f32 0.5, %v3749
        %v3751 = vsub.f32 1.5, %v3750
        %v3752 = vmul.f32 %v3747, %v3751
        %vm3753 = vweird.f32 %v3746
        %vm3754 = vweird.f32 %v3747
        %vm3755 = vmor %vm3753, %vm3754
        %v3756 = vsel %vm3755, %v3747, %v3752
        %v3757 = vmul.f32 %v3740, %v3756
        %v3758 = vld [vmem:[#allocation59] sm:$0x1]
        %v3760 = vperm.slane %v3758, 0
        %v3762 = vmul.f32 %v3757, %v3760
        %v3763 = vld [vmem:[#allocation58] sm:$0x1]
        %v3765 = vperm.slane %v3763, 0
        %v3767 = vadd.f32 %v3762, %v3765
        %v3768 = vld [vmem:[%s3659] sm:$0xf]
        %v3769 = vld [vmem:[%s119] sm:$0xf]
        %v3770 = vld [vmem:[#allocation52] sm:$0x1]
        %v3772 = vperm.slane %v3770, 0
        %vm3774 = vcmask 31744
        %v3776 = vsel %vm3774, %v3768, 0
        %vm3778 = vcmask 1043456
        %v3780 = vsel %vm3778, %v3769, 0
        %3782 = vmatpush.msra.mxu0 0.0
        %3783 = vmatpush.msra.mxu0 0.0
        %3784 = vmatpush.msra.mxu0 0.0
        %3785 = vmatpush.msra.mxu0 0.0
        %3786 = vmatpush.msra.mxu0 0.0
        %3787 = vmatpush.msra.mxu0 0.0
        %3788 = vmatpush.msra.mxu0 0.0
        %3789 = vmatpush.msra.mxu0 0.0
        %3790 = vmatpush.msra.mxu0 0.0
        %3791 = vmatpush.msra.mxu0 0.0
        %3792 = vmatpush.msra.mxu0 0.0
        %3793 = vmatpush.msra.mxu0 0.0
        %3794 = vmatpush.msra.mxu0 0.0
        %3795 = vmatpush.msra.mxu0 0.0
        %3796 = vmatpush.msra.mxu0 0.0
        %3797 = vmatpush.msra.mxu0 %v3780
        %3798 = vmatmul.f32.gmra.mxu0 %v3776
        %v3799 = vpop.f32.mrf.mxu0
        %v3800 = vadd.f32 %v3772, %v3799
        %3801 = vdwg.mxu0
        %v3802 = vsel %vm3735, %v3800, 0.0
        %3803 = vadd.xlane.f32.xlu0 %v3802
        %v3804 = vpop.xlane.xlu0 %3803
        %v3805 = vmul.f32 %v3804, %v3674
        %v3806 = vsub.f32 %v3800, %v3805
        %v3807 = vmul.f32 %v3806, %v3806
        %v3808 = vsel %vm3735, %v3807, 0.0
        %3809 = vadd.xlane.f32.xlu0 %v3808
        %v3810 = vpop.xlane.xlu0 %3809
        %v3811 = vmul.f32 %v3810, %v3674
        %v3812 = vadd.f32 %v3811, 1e-12
        %v3813 = vrsqrt.pop %v3812
        %v3814 = vmul.f32 %v3813, %v3812
        %v3815 = vmul.f32 %v3814, %v3813
        %v3816 = vmul.f32 0.5, %v3815
        %v3817 = vsub.f32 1.5, %v3816
        %v3818 = vmul.f32 %v3813, %v3817
        %vm3819 = vweird.f32 %v3812
        %vm3820 = vweird.f32 %v3813
        %vm3821 = vmor %vm3819, %vm3820
        %v3822 = vsel %vm3821, %v3813, %v3818
        %v3823 = vmul.f32 %v3806, %v3822
        %v3824 = vld [vmem:[#allocation55] sm:$0x1]
        %v3826 = vperm.slane %v3824, 0
        %v3828 = vmul.f32 %v3823, %v3826
        %v3829 = vld [vmem:[#allocation53] sm:$0x1]
        %v3831 = vperm.slane %v3829, 0
        %v3833 = vadd.f32 %v3828, %v3831
        %v3834 = vadd.f32 %v3767, %v3833
        %v3835 = vmul.f32 %v3834, 0.5
        %v3836 = vld [vmem:[%s3662] sm:$0x1]
        %v3837 = vld [vmem:[%s15] sm:$0xff]
        %v3838 = vld [vmem:[%s15 + $0x8] sm:$0xff]
        %v3839 = vld [vmem:[%s15 + $0x10] sm:$0xff]
        %v3840 = vld [vmem:[%s15 + $0x18] sm:$0xff]
        %v3841 = vld [vmem:[%s13] sm:$0x1]
        %v3843 = vperm.slane %v3841, 0
        %v3846 = vsel %vm3664, %v3703, 0
        %3848 = vmatpush.msra.mxu0 0.0
        %3849 = vmatpush.msra.mxu0 0.0
        %3850 = vmatpush.msra.mxu0 0.0
        %3851 = vmatpush.msra.mxu0 0.0
        %3852 = vmatpush.msra.mxu0 0.0
        %3853 = vmatpush.msra.mxu0 0.0
        %3854 = vmatpush.msra.mxu0 0.0
        %3855 = vmatpush.msra.mxu0 0.0
        %3856 = vmatpush.msra.mxu0 0.0
        %3857 = vmatpush.msra.mxu0 0.0
        %3858 = vmatpush.msra.mxu0 0.0
        %3859 = vmatpush.msra.mxu0 0.0
        %3860 = vmatpush.msra.mxu0 %v3840
        %3861 = vmatpush.msra.mxu0 %v3839
        %3862 = vmatpush.msra.mxu0 %v3838
        %3863 = vmatpush.msra.mxu0 %v3837
        %3864 = vmatmul.f32.gmra.mxu0 %v3846
        %v3865 = vpop.f32.mrf.mxu0
        %v3866 = vadd.f32 %v3843, %v3865
        %3867 = vdwg.mxu0
        %3869 = vrot.lane.b32.xlu0 %v3866, 96
        %v3870 = vpop.permute.xlu0 %3869
        %vm3871 = vcmask 64512
        %v3872 = vsel %vm3871, %v3866, 0
        %v3874 = vsel %vm3871, %v3870, 0
        %3876 = vmatpush.xpose.msra.mxu0 0.0
        %3877 = vmatpush.xpose.msra.mxu0 0.0
        %3878 = vmatpush.xpose.msra.mxu0 0.0
        %3879 = vmatpush.xpose.msra.mxu0 0.0
        %3880 = vmatpush.xpose.msra.mxu0 0.0
        %3881 = vmatpush.xpose.msra.mxu0 0.0
        %3882 = vmatpush.xpose.msra.mxu0 0.0
        %3883 = vmatpush.xpose.msra.mxu0 0.0
        %3884 = vmatpush.xpose.msra.mxu0 0.0
        %3885 = vmatpush.xpose.msra.mxu0 0.0
        %3886 = vmatpush.xpose.msra.mxu0 0.0
        %3887 = vmatpush.xpose.msra.mxu0 0.0
        %3888 = vmatpush.xpose.msra.mxu0 0.0
        %3889 = vmatpush.xpose.msra.mxu0 0.0
        %3890 = vmatpush.xpose.msra.mxu0 0.0
        %3891 = vmatpush.xpose.msra.mxu0 %v3874
        %3892 = vmatmul.f32.gmra.mxu0 %v3872
        %v3893 = vpop.f32.mrf.mxu0
        %v3894 = vadd.f32 0.0, %v3893
        %3895 = vdwg.mxu0
        %v3896 = vmul.f32 %v3894, 0.35355338
        %v3898 = vperm.slane %v3836, 0
        %v3900 = vadd.f32 %v3896, %v3898
        %v3901 = vsel %vm3871, %v3900, -inf
        %3902 = vmax.xlane.f32.xlu0 %v3901
        %v3903 = vpop.xlane.xlu0 %3902
        %v3904 = vsub.f32 %v3900, %v3903
        %v3905 = vmul.f32 %v3904, 1.442695
        %v3906 = vpow.pop %v3905
        %v3907 = vsel %vm3871, %v3906, 0.0
        %3908 = vadd.xlane.f32.xlu0 %v3907
        %v3909 = vpop.xlane.xlu0 %3908
        %v3910 = vrcp.pop %v3909
        %v3911 = vmul.f32 %v3906, %v3910
        %3912 = vrot.lane.b32.xlu0 %v3866, 64
        %v3913 = vpop.permute.xlu0 %3912
        %v3916 = vsel %vm3871, %v3911, 0
        %3918 = vmatpush.msra.mxu0 0.0
        %3919 = vmatpush.msra.mxu0 0.0
        %3920 = vmatpush.msra.mxu0 0.0
        %3921 = vmatpush.msra.mxu0 0.0
        %3922 = vmatpush.msra.mxu0 0.0
        %3923 = vmatpush.msra.mxu0 0.0
        %3924 = vmatpush.msra.mxu0 0.0
        %3925 = vmatpush.msra.mxu0 0.0
        %3926 = vmatpush.msra.mxu0 0.0
        %3927 = vmatpush.msra.mxu0 0.0
        %3928 = vmatpush.msra.mxu0 0.0
        %3929 = vmatpush.msra.mxu0 0.0
        %3930 = vmatpush.msra.mxu0 0.0
        %3931 = vmatpush.msra.mxu0 0.0
        %3932 = vmatpush.msra.mxu0 0.0
        %3933 = vmatpush.msra.mxu0 %v3913
        %3934 = vmatmul.f32.gmra.mxu0 %v3916
        %v3935 = vpop.f32.mrf.mxu0
        %v3936 = vadd.f32 0.0, %v3935
        %3937 = vdwg.mxu0
        %3938 = vrot.lane.b32.xlu0 %v3866, 120
        %v3939 = vpop.permute.xlu0 %3938
        %3940 = vrot.lane.b32.xlu0 %v3866, 88
        %v3941 = vpop.permute.xlu0 %3940
        %v3942 = vsel %vm3871, %v3939, 0
        %v3944 = vsel %vm3871, %v3941, 0
        %3946 = vmatpush.xpose.msra.mxu0 0.0
        %3947 = vmatpush.xpose.msra.mxu0 0.0
        %3948 = vmatpush.xpose.msra.mxu0 0.0
        %3949 = vmatpush.xpose.msra.mxu0 0.0
        %3950 = vmatpush.xpose.msra.mxu0 0.0
        %3951 = vmatpush.xpose.msra.mxu0 0.0
        %3952 = vmatpush.xpose.msra.mxu0 0.0
        %3953 = vmatpush.xpose.msra.mxu0 0.0
        %3954 = vmatpush.xpose.msra.mxu0 0.0
        %3955 = vmatpush.xpose.msra.mxu0 0.0
        %3956 = vmatpush.xpose.msra.mxu0 0.0
        %3957 = vmatpush.xpose.msra.mxu0 0.0
        %3958 = vmatpush.xpose.msra.mxu0 0.0
        %3959 = vmatpush.xpose.msra.mxu0 0.0
        %3960 = vmatpush.xpose.msra.mxu0 0.0
        %3961 = vmatpush.xpose.msra.mxu0 %v3944
        %3962 = vmatmul.f32.gmra.mxu0 %v3942
        %v3963 = vpop.f32.mrf.mxu0
        %v3964 = vadd.f32 0.0, %v3963
        %3965 = vdwg.mxu0
        %v3966 = vmul.f32 %v3964, 0.35355338
        %v3967 = vadd.f32 %v3966, %v3898
        %v3968 = vsel %vm3871, %v3967, -inf
        %3969 = vmax.xlane.f32.xlu0 %v3968
        %v3970 = vpop.xlane.xlu0 %3969
        %v3971 = vsub.f32 %v3967, %v3970
        %v3972 = vmul.f32 %v3971, 1.442695
        %v3973 = vpow.pop %v3972
        %v3974 = vsel %vm3871, %v3973, 0.0
        %3975 = vadd.xlane.f32.xlu0 %v3974
        %v3976 = vpop.xlane.xlu0 %3975
        %v3977 = vrcp.pop %v3976
        %v3978 = vmul.f32 %v3973, %v3977
        %3979 = vrot.lane.b32.xlu0 %v3866, 56
        %v3980 = vpop.permute.xlu0 %3979
        %v3983 = vsel %vm3871, %v3978, 0
        %3985 = vmatpush.msra.mxu0 0.0
        %3986 = vmatpush.msra.mxu0 0.0
        %3987 = vmatpush.msra.mxu0 0.0
        %3988 = vmatpush.msra.mxu0 0.0
        %3989 = vmatpush.msra.mxu0 0.0
        %3990 = vmatpush.msra.mxu0 0.0
        %3991 = vmatpush.msra.mxu0 0.0
        %3992 = vmatpush.msra.mxu0 0.0
        %3993 = vmatpush.msra.mxu0 0.0
        %3994 = vmatpush.msra.mxu0 0.0
        %3995 = vmatpush.msra.mxu0 0.0
        %3996 = vmatpush.msra.mxu0 0.0
        %3997 = vmatpush.msra.mxu0 0.0
        %3998 = vmatpush.msra.mxu0 0.0
        %3999 = vmatpush.msra.mxu0 0.0
        %4000 = vmatpush.msra.mxu0 %v3980
        %4001 = vmatmul.f32.gmra.mxu0 %v3983
        %v4002 = vpop.f32.mrf.mxu0
        %v4003 = vadd.f32 0.0, %v4002
        %4004 = vdwg.mxu0
        %4005 = vrot.lane.b32.xlu0 %v3866, 112
        %v4006 = vpop.permute.xlu0 %4005
        %4007 = vrot.lane.b32.xlu0 %v3866, 80
        %v4008 = vpop.permute.xlu0 %4007
        %v4009 = vsel %vm3871, %v4006, 0
        %v4011 = vsel %vm3871, %v4008, 0
        %4013 = vmatpush.xpose.msra.mxu0 0.0
        %4014 = vmatpush.xpose.msra.mxu0 0.0
        %4015 = vmatpush.xpose.msra.mxu0 0.0
        %4016 = vmatpush.xpose.msra.mxu0 0.0
        %4017 = vmatpush.xpose.msra.mxu0 0.0
        %4018 = vmatpush.xpose.msra.mxu0 0.0
        %4019 = vmatpush.xpose.msra.mxu0 0.0
        %4020 = vmatpush.xpose.msra.mxu0 0.0
        %4021 = vmatpush.xpose.msra.mxu0 0.0
        %4022 = vmatpush.xpose.msra.mxu0 0.0
        %4023 = vmatpush.xpose.msra.mxu0 0.0
        %4024 = vmatpush.xpose.msra.mxu0 0.0
        %4025 = vmatpush.xpose.msra.mxu0 0.0
        %4026 = vmatpush.xpose.msra.mxu0 0.0
        %4027 = vmatpush.xpose.msra.mxu0 0.0
        %4028 = vmatpush.xpose.msra.mxu0 %v4011
        %4029 = vmatmul.f32.gmra.mxu0 %v4009
        %v4030 = vpop.f32.mrf.mxu0
        %v4031 = vadd.f32 0.0, %v4030
        %4032 = vdwg.mxu0
        %v4033 = vmul.f32 %v4031, 0.35355338
        %v4034 = vadd.f32 %v4033, %v3898
        %v4035 = vsel %vm3871, %v4034, -inf
        %4036 = vmax.xlane.f32.xlu0 %v4035
        %v4037 = vpop.xlane.xlu0 %4036
        %v4038 = vsub.f32 %v4034, %v4037
        %v4039 = vmul.f32 %v4038, 1.442695
        %v4040 = vpow.pop %v4039
        %v4041 = vsel %vm3871, %v4040, 0.0
        %4042 = vadd.xlane.f32.xlu0 %v4041
        %v4043 = vpop.xlane.xlu0 %4042
        %v4044 = vrcp.pop %v4043
        %v4045 = vmul.f32 %v4040, %v4044
        %4046 = vrot.lane.b32.xlu0 %v3866, 48
        %v4047 = vpop.permute.xlu0 %4046
        %v4050 = vsel %vm3871, %v4045, 0
        %4052 = vmatpush.msra.mxu0 0.0
        %4053 = vmatpush.msra.mxu0 0.0
        %4054 = vmatpush.msra.mxu0 0.0
        %4055 = vmatpush.msra.mxu0 0.0
        %4056 = vmatpush.msra.mxu0 0.0
        %4057 = vmatpush.msra.mxu0 0.0
        %4058 = vmatpush.msra.mxu0 0.0
        %4059 = vmatpush.msra.mxu0 0.0
        %4060 = vmatpush.msra.mxu0 0.0
        %4061 = vmatpush.msra.mxu0 0.0
        %4062 = vmatpush.msra.mxu0 0.0
        %4063 = vmatpush.msra.mxu0 0.0
        %4064 = vmatpush.msra.mxu0 0.0
        %4065 = vmatpush.msra.mxu0 0.0
        %4066 = vmatpush.msra.mxu0 0.0
        %4067 = vmatpush.msra.mxu0 %v4047
        %4068 = vmatmul.f32.gmra.mxu0 %v4050
        %v4069 = vpop.f32.mrf.mxu0
        %v4070 = vadd.f32 0.0, %v4069
        %4071 = vdwg.mxu0
        %4072 = vrot.lane.b32.xlu0 %v3866, 104
        %v4073 = vpop.permute.xlu0 %4072
        %4074 = vrot.lane.b32.xlu0 %v3866, 72
        %v4075 = vpop.permute.xlu0 %4074
        %v4076 = vsel %vm3871, %v4073, 0
        %v4078 = vsel %vm3871, %v4075, 0
        %4080 = vmatpush.xpose.msra.mxu0 0.0
        %4081 = vmatpush.xpose.msra.mxu0 0.0
        %4082 = vmatpush.xpose.msra.mxu0 0.0
        %4083 = vmatpush.xpose.msra.mxu0 0.0
        %4084 = vmatpush.xpose.msra.mxu0 0.0
        %4085 = vmatpush.xpose.msra.mxu0 0.0
        %4086 = vmatpush.xpose.msra.mxu0 0.0
        %4087 = vmatpush.xpose.msra.mxu0 0.0
        %4088 = vmatpush.xpose.msra.mxu0 0.0
        %4089 = vmatpush.xpose.msra.mxu0 0.0
        %4090 = vmatpush.xpose.msra.mxu0 0.0
        %4091 = vmatpush.xpose.msra.mxu0 0.0
        %4092 = vmatpush.xpose.msra.mxu0 0.0
        %4093 = vmatpush.xpose.msra.mxu0 0.0
        %4094 = vmatpush.xpose.msra.mxu0 0.0
        %4095 = vmatpush.xpose.msra.mxu0 %v4078
        %4096 = vmatmul.f32.gmra.mxu0 %v4076
        %v4097 = vpop.f32.mrf.mxu0
        %v4098 = vadd.f32 0.0, %v4097
        %4099 = vdwg.mxu0
        %v4100 = vmul.f32 %v4098, 0.35355338
        %v4101 = vadd.f32 %v4100, %v3898
        %v4102 = vsel %vm3871, %v4101, -inf
        %4103 = vmax.xlane.f32.xlu0 %v4102
        %v4104 = vpop.xlane.xlu0 %4103
        %v4105 = vsub.f32 %v4101, %v4104
        %v4106 = vmul.f32 %v4105, 1.442695
        %v4107 = vpow.pop %v4106
        %v4108 = vsel %vm3871, %v4107, 0.0
        %4109 = vadd.xlane.f32.xlu0 %v4108
        %v4110 = vpop.xlane.xlu0 %4109
        %v4111 = vrcp.pop %v4110
        %v4112 = vmul.f32 %v4107, %v4111
        %4113 = vrot.lane.b32.xlu0 %v3866, 40
        %v4114 = vpop.permute.xlu0 %4113
        %v4117 = vsel %vm3871, %v4112, 0
        %4119 = vmatpush.msra.mxu0 0.0
        %4120 = vmatpush.msra.mxu0 0.0
        %4121 = vmatpush.msra.mxu0 0.0
        %4122 = vmatpush.msra.mxu0 0.0
        %4123 = vmatpush.msra.mxu0 0.0
        %4124 = vmatpush.msra.mxu0 0.0
        %4125 = vmatpush.msra.mxu0 0.0
        %4126 = vmatpush.msra.mxu0 0.0
        %4127 = vmatpush.msra.mxu0 0.0
        %4128 = vmatpush.msra.mxu0 0.0
        %4129 = vmatpush.msra.mxu0 0.0
        %4130 = vmatpush.msra.mxu0 0.0
        %4131 = vmatpush.msra.mxu0 0.0
        %4132 = vmatpush.msra.mxu0 0.0
        %4133 = vmatpush.msra.mxu0 0.0
        %4134 = vmatpush.msra.mxu0 %v4114
        %4135 = vmatmul.f32.gmra.mxu0 %v4117
        %v4136 = vpop.f32.mrf.mxu0
        %v4137 = vadd.f32 0.0, %v4136
        %4138 = vdwg.mxu0
        %4140 = vrot.lane.b32.xlu0 %v4003, 8
        %v4141 = vpop.permute.xlu0 %4140
        %4144 = vrot.lane.b32.xlu0 %v4070, 16
        %v4145 = vpop.permute.xlu0 %4144
        %4148 = vrot.lane.b32.xlu0 %v4137, 24
        %v4149 = vpop.permute.xlu0 %4148
        %v4151 = vsel %vm3871, %v3936, %v4141
        %v4152 = vsel %vm3711, %v4151, %v4145
        %vm4153 = vcmask 195584
        %v4154 = vsel %vm4153, %v4152, %v4149
        %v4155 = vld [vmem:[%s19] sm:$0xff]
        %v4156 = vld [vmem:[%s19 + $0x8] sm:$0xff]
        %v4157 = vld [vmem:[%s19 + $0x10] sm:$0xff]
        %v4158 = vld [vmem:[%s19 + $0x18] sm:$0xff]
        %v4159 = vld [vmem:[%s17] sm:$0x1]
        %v4161 = vperm.slane %v4159, 0
        %v4164 = vsel %vm3664, %v4154, 0
        %4166 = vmatpush.msra.mxu0 0.0
        %4167 = vmatpush.msra.mxu0 0.0
        %4168 = vmatpush.msra.mxu0 0.0
        %4169 = vmatpush.msra.mxu0 0.0
        %4170 = vmatpush.msra.mxu0 0.0
        %4171 = vmatpush.msra.mxu0 0.0
        %4172 = vmatpush.msra.mxu0 0.0
        %4173 = vmatpush.msra.mxu0 0.0
        %4174 = vmatpush.msra.mxu0 0.0
        %4175 = vmatpush.msra.mxu0 0.0
        %4176 = vmatpush.msra.mxu0 0.0
        %4177 = vmatpush.msra.mxu0 0.0
        %4178 = vmatpush.msra.mxu0 %v4158
        %4179 = vmatpush.msra.mxu0 %v4157
        %4180 = vmatpush.msra.mxu0 %v4156
        %4181 = vmatpush.msra.mxu0 %v4155
        %4182 = vmatmul.f32.gmra.mxu0 %v4164
        %v4183 = vpop.f32.mrf.mxu0
        %v4184 = vadd.f32 %v4161, %v4183
        %4185 = vdwg.mxu0
        %v4186 = vadd.f32 %v4184, %v3703
        %v4187 = vsel %vm3664, %v4186, 0.0
        %4188 = vadd.xlane.f32.xlu0 %v4187
        %v4189 = vpop.xlane.xlu0 %4188
        %v4190 = vmul.f32 %v4189, %v3674
        %v4191 = vsub.f32 %v4186, %v4190
        %v4192 = vmul.f32 %v4191, %v4191
        %v4193 = vsel %vm3664, %v4192, 0.0
        %4194 = vadd.xlane.f32.xlu0 %v4193
        %v4195 = vpop.xlane.xlu0 %4194
        %v4196 = vmul.f32 %v4195, %v3674
        %v4197 = vadd.f32 %v4196, 1e-12
        %v4198 = vrsqrt.pop %v4197
        %v4199 = vmul.f32 %v4198, %v4197
        %v4200 = vmul.f32 %v4199, %v4198
        %v4201 = vmul.f32 0.5, %v4200
        %v4202 = vsub.f32 1.5, %v4201
        %v4203 = vmul.f32 %v4198, %v4202
        %vm4204 = vweird.f32 %v4197
        %vm4205 = vweird.f32 %v4198
        %vm4206 = vmor %vm4204, %vm4205
        %v4207 = vsel %vm4206, %v4198, %v4203
        %v4208 = vmul.f32 %v4191, %v4207
        %v4209 = vld [vmem:[#allocation5] sm:$0x1]
        %v4211 = vperm.slane %v4209, 0
        %v4213 = vmul.f32 %v4208, %v4211
        %v4214 = vld [vmem:[#allocation2] sm:$0x1]
        %v4216 = vperm.slane %v4214, 0
        %v4218 = vadd.f32 %v4213, %v4216
        %v4219 = vld [vmem:[%s27] sm:$0xff]
        %v4220 = vld [vmem:[%s27 + $0x8] sm:$0xff]
        %v4221 = vld [vmem:[%s27 + $0x10] sm:$0xff]
        %v4222 = vld [vmem:[%s27 + $0x18] sm:$0xff]
        %v4223 = vld [vmem:[#allocation7] sm:$0x1]
        %v4225 = vperm.slane %v4223, 0
        %v4228 = vsel %vm3664, %v4218, 0
        %4230 = vmatpush.msra.mxu0 0.0
        %4231 = vmatpush.msra.mxu0 0.0
        %4232 = vmatpush.msra.mxu0 0.0
        %4233 = vmatpush.msra.mxu0 0.0
        %4234 = vmatpush.msra.mxu0 0.0
        %4235 = vmatpush.msra.mxu0 0.0
        %4236 = vmatpush.msra.mxu0 0.0
        %4237 = vmatpush.msra.mxu0 0.0
        %4238 = vmatpush.msra.mxu0 0.0
        %4239 = vmatpush.msra.mxu0 0.0
        %4240 = vmatpush.msra.mxu0 0.0
        %4241 = vmatpush.msra.mxu0 0.0
        %4242 = vmatpush.msra.mxu0 %v4222
        %4243 = vmatpush.msra.mxu0 %v4221
        %4244 = vmatpush.msra.mxu0 %v4220
        %4245 = vmatpush.msra.mxu0 %v4219
        %4246 = vmatmul.f32.gmra.mxu0 %v4228
        %v4247 = vpop.f32.mrf.mxu0
        %v4248 = vadd.f32 %v4225, %v4247
        %4249 = vdwg.mxu0
        %v4250 = vmul.f32 %v4248, 0.5
        %v4251 = vmul.f32 %v4248, 0.70710677
        %v4252 = vmul.f32 %v4251, %v4251
        %v4253 = vmin.f32 16.0, %v4252
        %v4254 = vmul.f32 %v4253, 2.1237322e-06
        %v4255 = vadd.f32 %v4254, 0.00028619796
        %v4256 = vmul.f32 %v4253, %v4255
        %v4257 = vadd.f32 %v4256, 0.0036580483
        %v4258 = vmul.f32 %v4253, %v4257
        %v4259 = vadd.f32 %v4258, 0.05243302
        %v4260 = vmul.f32 %v4253, %v4259
        %v4261 = vadd.f32 %v4260, 0.18741608
        %v4262 = vmul.f32 %v4253, %v4261
        %v4263 = vadd.f32 %v4262, 1.1283791
        %v4264 = vmul.f32 %v4251, %v4263
        %v4265 = vmul.f32 %v4253, 3.8918573e-05
        %v4266 = vadd.f32 %v4265, 0.001143296
        %v4267 = vmul.f32 %v4253, %v4266
        %v4268 = vadd.f32 %v4267, 0.014752088
        %v4269 = vmul.f32 %v4253, %v4268
        %v4270 = vadd.f32 %v4269, 0.112945676
        %v4271 = vmul.f32 %v4253, %v4270
        %v4272 = vadd.f32 %v4271, 0.4994258
        %v4273 = vmul.f32 %v4253, %v4272
        %v4274 = vadd.f32 %v4273, 1.0
        %v4275 = vrcp.pop %v4274
        %v4276 = vmul.f32 %v4274, %v4275
        %v4277 = vsub.f32 1.0, %v4276
        %v4278 = vmul.f32 %v4275, %v4277
        %v4279 = vadd.f32 %v4275, %v4278
        %vm4280 = vweird.f32 %v4274
        %vm4281 = vweird.f32 %v4275
        %vm4282 = vmor %vm4280, %vm4281
        %v4283 = vsel %vm4282, %v4275, %v4279
        %v4284 = vand.u32 2147483647, %v4274
        %vm4285 = vcmp.eq.f32.partialorder %v4284, 8.507059e+37
        %v4286 = vand.u32 %v4274, 2147483648
        %v4287 = vor.u32 1.1754944e-38, %v4286
        %v4288 = vsel %vm4285, %v4287, %v4283
        %v4289 = vmul.f32 %v4264, %v4288
        %v4290 = vmin.f32 %v4289, 1.0
        %v4291 = vmax.f32 %v4290, -1.0
        %v4292 = vadd.f32 %v4291, 1.0
        %v4293 = vmul.f32 %v4250, %v4292
        %v4294 = vld [vmem:[%s35] sm:$0xff]
        %v4295 = vld [vmem:[%s35 + $0x8] sm:$0xff]
        %v4296 = vld [vmem:[%s35 + $0x10] sm:$0xff]
        %v4297 = vld [vmem:[%s35 + $0x18] sm:$0xff]
        %v4298 = vld [vmem:[%s35 + $0x20] sm:$0xff]
        %v4299 = vld [vmem:[%s35 + $0x28] sm:$0xff]
        %v4300 = vld [vmem:[%s35 + $0x30] sm:$0xff]
        %v4301 = vld [vmem:[%s35 + $0x38] sm:$0xff]
        %v4302 = vld [vmem:[#allocation11] sm:$0x1]
        %v4304 = vperm.slane %v4302, 0
        %vm4306 = vcmask 523264
        %v4308 = vsel %vm4306, %v4293, 0
        %4310 = vmatpush.msra.mxu0 0.0
        %4311 = vmatpush.msra.mxu0 0.0
        %4312 = vmatpush.msra.mxu0 0.0
        %4313 = vmatpush.msra.mxu0 0.0
        %4314 = vmatpush.msra.mxu0 0.0
        %4315 = vmatpush.msra.mxu0 0.0
        %4316 = vmatpush.msra.mxu0 0.0
        %4317 = vmatpush.msra.mxu0 0.0
        %4318 = vmatpush.msra.mxu0 %v4301
        %4319 = vmatpush.msra.mxu0 %v4300
        %4320 = vmatpush.msra.mxu0 %v4299
        %4321 = vmatpush.msra.mxu0 %v4298
        %4322 = vmatpush.msra.mxu0 %v4297
        %4323 = vmatpush.msra.mxu0 %v4296
        %4324 = vmatpush.msra.mxu0 %v4295
        %4325 = vmatpush.msra.mxu0 %v4294
        %4326 = vmatmul.f32.gmra.mxu0 %v4308
        %v4327 = vpop.f32.mrf.mxu0
        %v4328 = vadd.f32 %v4304, %v4327
        %4329 = vdwg.mxu0
        %v4330 = vadd.f32 %v4328, %v4218
        %v4331 = vsel %vm3664, %v4330, 0.0
        %4332 = vadd.xlane.f32.xlu0 %v4331
        %v4333 = vpop.xlane.xlu0 %4332
        %v4334 = vmul.f32 %v4333, %v3674
        %v4335 = vsub.f32 %v4330, %v4334
        %v4336 = vmul.f32 %v4335, %v4335
        %v4337 = vsel %vm3664, %v4336, 0.0
        %4338 = vadd.xlane.f32.xlu0 %v4337
        %v4339 = vpop.xlane.xlu0 %4338
        %v4340 = vmul.f32 %v4339, %v3674
        %v4341 = vadd.f32 %v4340, 1e-12
        %v4342 = vrsqrt.pop %v4341
        %v4343 = vmul.f32 %v4342, %v4341
        %v4344 = vmul.f32 %v4343, %v4342
        %v4345 = vmul.f32 0.5, %v4344
        %v4346 = vsub.f32 1.5, %v4345
        %v4347 = vmul.f32 %v4342, %v4346
        %vm4348 = vweird.f32 %v4341
        %vm4349 = vweird.f32 %v4342
        %vm4350 = vmor %vm4348, %vm4349
        %v4351 = vsel %vm4350, %v4342, %v4347
        %v4352 = vmul.f32 %v4335, %v4351
        %v4353 = vld [vmem:[#allocation10] sm:$0x1]
        %v4355 = vperm.slane %v4353, 0
        %v4357 = vmul.f32 %v4352, %v4355
        %v4358 = vld [vmem:[#allocation8] sm:$0x1]
        %v4360 = vperm.slane %v4358, 0
        %v4362 = vadd.f32 %v4357, %v4360
        %v4363 = vld [vmem:[%s39] sm:$0xff]
        %v4364 = vld [vmem:[%s39 + $0x8] sm:$0xff]
        %v4365 = vld [vmem:[%s39 + $0x10] sm:$0xff]
        %v4366 = vld [vmem:[%s39 + $0x18] sm:$0xff]
        %v4367 = vld [vmem:[#allocation13] sm:$0x1]
        %v4369 = vperm.slane %v4367, 0
        %v4372 = vsel %vm3664, %v4362, 0
        %4374 = vmatpush.msra.mxu0 0.0
        %4375 = vmatpush.msra.mxu0 0.0
        %4376 = vmatpush.msra.mxu0 0.0
        %4377 = vmatpush.msra.mxu0 0.0
        %4378 = vmatpush.msra.mxu0 0.0
        %4379 = vmatpush.msra.mxu0 0.0
        %4380 = vmatpush.msra.mxu0 0.0
        %4381 = vmatpush.msra.mxu0 0.0
        %4382 = vmatpush.msra.mxu0 0.0
        %4383 = vmatpush.msra.mxu0 0.0
        %4384 = vmatpush.msra.mxu0 0.0
        %4385 = vmatpush.msra.mxu0 0.0
        %4386 = vmatpush.msra.mxu0 %v4366
        %4387 = vmatpush.msra.mxu0 %v4365
        %4388 = vmatpush.msra.mxu0 %v4364
        %4389 = vmatpush.msra.mxu0 %v4363
        %4390 = vmatmul.f32.gmra.mxu0 %v4372
        %v4391 = vpop.f32.mrf.mxu0
        %v4392 = vadd.f32 %v4369, %v4391
        %4393 = vdwg.mxu0
        %4395 = vrot.lane.b32.xlu0 %v4392, 96
        %v4396 = vpop.permute.xlu0 %4395
        %v4397 = vsel %vm3871, %v4392, 0
        %v4399 = vsel %vm3871, %v4396, 0
        %4401 = vmatpush.xpose.msra.mxu0 0.0
        %4402 = vmatpush.xpose.msra.mxu0 0.0
        %4403 = vmatpush.xpose.msra.mxu0 0.0
        %4404 = vmatpush.xpose.msra.mxu0 0.0
        %4405 = vmatpush.xpose.msra.mxu0 0.0
        %4406 = vmatpush.xpose.msra.mxu0 0.0
        %4407 = vmatpush.xpose.msra.mxu0 0.0
        %4408 = vmatpush.xpose.msra.mxu0 0.0
        %4409 = vmatpush.xpose.msra.mxu0 0.0
        %4410 = vmatpush.xpose.msra.mxu0 0.0
        %4411 = vmatpush.xpose.msra.mxu0 0.0
        %4412 = vmatpush.xpose.msra.mxu0 0.0
        %4413 = vmatpush.xpose.msra.mxu0 0.0
        %4414 = vmatpush.xpose.msra.mxu0 0.0
        %4415 = vmatpush.xpose.msra.mxu0 0.0
        %4416 = vmatpush.xpose.msra.mxu0 %v4399
        %4417 = vmatmul.f32.gmra.mxu0 %v4397
        %v4418 = vpop.f32.mrf.mxu0
        %v4419 = vadd.f32 0.0, %v4418
        %4420 = vdwg.mxu0
        %v4421 = vmul.f32 %v4419, 0.35355338
        %v4422 = vadd.f32 %v4421, %v3898
        %v4423 = vsel %vm3871, %v4422, -inf
        %4424 = vmax.xlane.f32.xlu0 %v4423
        %v4425 = vpop.xlane.xlu0 %4424
        %v4426 = vsub.f32 %v4422, %v4425
        %v4427 = vmul.f32 %v4426, 1.442695
        %v4428 = vpow.pop %v4427
        %v4429 = vsel %vm3871, %v4428, 0.0
        %4430 = vadd.xlane.f32.xlu0 %v4429
        %v4431 = vpop.xlane.xlu0 %4430
        %v4432 = vrcp.pop %v4431
        %v4433 = vmul.f32 %v4428, %v4432
        %4434 = vrot.lane.b32.xlu0 %v4392, 64
        %v4435 = vpop.permute.xlu0 %4434
        %v4438 = vsel %vm3871, %v4433, 0
        %4440 = vmatpush.msra.mxu0 0.0
        %4441 = vmatpush.msra.mxu0 0.0
        %4442 = vmatpush.msra.mxu0 0.0
        %4443 = vmatpush.msra.mxu0 0.0
        %4444 = vmatpush.msra.mxu0 0.0
        %4445 = vmatpush.msra.mxu0 0.0
        %4446 = vmatpush.msra.mxu0 0.0
        %4447 = vmatpush.msra.mxu0 0.0
        %4448 = vmatpush.msra.mxu0 0.0
        %4449 = vmatpush.msra.mxu0 0.0
        %4450 = vmatpush.msra.mxu0 0.0
        %4451 = vmatpush.msra.mxu0 0.0
        %4452 = vmatpush.msra.mxu0 0.0
        %4453 = vmatpush.msra.mxu0 0.0
        %4454 = vmatpush.msra.mxu0 0.0
        %4455 = vmatpush.msra.mxu0 %v4435
        %4456 = vmatmul.f32.gmra.mxu0 %v4438
        %v4457 = vpop.f32.mrf.mxu0
        %v4458 = vadd.f32 0.0, %v4457
        %4459 = vdwg.mxu0
        %4460 = vrot.lane.b32.xlu0 %v4392, 120
        %v4461 = vpop.permute.xlu0 %4460
        %4462 = vrot.lane.b32.xlu0 %v4392, 88
        %v4463 = vpop.permute.xlu0 %4462
        %v4464 = vsel %vm3871, %v4461, 0
        %v4466 = vsel %vm3871, %v4463, 0
        %4468 = vmatpush.xpose.msra.mxu0 0.0
        %4469 = vmatpush.xpose.msra.mxu0 0.0
        %4470 = vmatpush.xpose.msra.mxu0 0.0
        %4471 = vmatpush.xpose.msra.mxu0 0.0
        %4472 = vmatpush.xpose.msra.mxu0 0.0
        %4473 = vmatpush.xpose.msra.mxu0 0.0
        %4474 = vmatpush.xpose.msra.mxu0 0.0
        %4475 = vmatpush.xpose.msra.mxu0 0.0
        %4476 = vmatpush.xpose.msra.mxu0 0.0
        %4477 = vmatpush.xpose.msra.mxu0 0.0
        %4478 = vmatpush.xpose.msra.mxu0 0.0
        %4479 = vmatpush.xpose.msra.mxu0 0.0
        %4480 = vmatpush.xpose.msra.mxu0 0.0
        %4481 = vmatpush.xpose.msra.mxu0 0.0
        %4482 = vmatpush.xpose.msra.mxu0 0.0
        %4483 = vmatpush.xpose.msra.mxu0 %v4466
        %4484 = vmatmul.f32.gmra.mxu0 %v4464
        %v4485 = vpop.f32.mrf.mxu0
        %v4486 = vadd.f32 0.0, %v4485
        %4487 = vdwg.mxu0
        %v4488 = vmul.f32 %v4486, 0.35355338
        %v4489 = vadd.f32 %v4488, %v3898
        %v4490 = vsel %vm3871, %v4489, -inf
        %4491 = vmax.xlane.f32.xlu0 %v4490
        %v4492 = vpop.xlane.xlu0 %4491
        %v4493 = vsub.f32 %v4489, %v4492
        %v4494 = vmul.f32 %v4493, 1.442695
        %v4495 = vpow.pop %v4494
        %v4496 = vsel %vm3871, %v4495, 0.0
        %4497 = vadd.xlane.f32.xlu0 %v4496
        %v4498 = vpop.xlane.xlu0 %4497
        %v4499 = vrcp.pop %v4498
        %v4500 = vmul.f32 %v4495, %v4499
        %4501 = vrot.lane.b32.xlu0 %v4392, 56
        %v4502 = vpop.permute.xlu0 %4501
        %v4505 = vsel %vm3871, %v4500, 0
        %4507 = vmatpush.msra.mxu0 0.0
        %4508 = vmatpush.msra.mxu0 0.0
        %4509 = vmatpush.msra.mxu0 0.0
        %4510 = vmatpush.msra.mxu0 0.0
        %4511 = vmatpush.msra.mxu0 0.0
        %4512 = vmatpush.msra.mxu0 0.0
        %4513 = vmatpush.msra.mxu0 0.0
        %4514 = vmatpush.msra.mxu0 0.0
        %4515 = vmatpush.msra.mxu0 0.0
        %4516 = vmatpush.msra.mxu0 0.0
        %4517 = vmatpush.msra.mxu0 0.0
        %4518 = vmatpush.msra.mxu0 0.0
        %4519 = vmatpush.msra.mxu0 0.0
        %4520 = vmatpush.msra.mxu0 0.0
        %4521 = vmatpush.msra.mxu0 0.0
        %4522 = vmatpush.msra.mxu0 %v4502
        %4523 = vmatmul.f32.gmra.mxu0 %v4505
        %v4524 = vpop.f32.mrf.mxu0
        %v4525 = vadd.f32 0.0, %v4524
        %4526 = vdwg.mxu0
        %4527 = vrot.lane.b32.xlu0 %v4392, 112
        %v4528 = vpop.permute.xlu0 %4527
        %4529 = vrot.lane.b32.xlu0 %v4392, 80
        %v4530 = vpop.permute.xlu0 %4529
        %v4531 = vsel %vm3871, %v4528, 0
        %v4533 = vsel %vm3871, %v4530, 0
        %4535 = vmatpush.xpose.msra.mxu0 0.0
        %4536 = vmatpush.xpose.msra.mxu0 0.0
        %4537 = vmatpush.xpose.msra.mxu0 0.0
        %4538 = vmatpush.xpose.msra.mxu0 0.0
        %4539 = vmatpush.xpose.msra.mxu0 0.0
        %4540 = vmatpush.xpose.msra.mxu0 0.0
        %4541 = vmatpush.xpose.msra.mxu0 0.0
        %4542 = vmatpush.xpose.msra.mxu0 0.0
        %4543 = vmatpush.xpose.msra.mxu0 0.0
        %4544 = vmatpush.xpose.msra.mxu0 0.0
        %4545 = vmatpush.xpose.msra.mxu0 0.0
        %4546 = vmatpush.xpose.msra.mxu0 0.0
        %4547 = vmatpush.xpose.msra.mxu0 0.0
        %4548 = vmatpush.xpose.msra.mxu0 0.0
        %4549 = vmatpush.xpose.msra.mxu0 0.0
        %4550 = vmatpush.xpose.msra.mxu0 %v4533
        %4551 = vmatmul.f32.gmra.mxu0 %v4531
        %v4552 = vpop.f32.mrf.mxu0
        %v4553 = vadd.f32 0.0, %v4552
        %4554 = vdwg.mxu0
        %v4555 = vmul.f32 %v4553, 0.35355338
        %v4556 = vadd.f32 %v4555, %v3898
        %v4557 = vsel %vm3871, %v4556, -inf
        %4558 = vmax.xlane.f32.xlu0 %v4557
        %v4559 = vpop.xlane.xlu0 %4558
        %v4560 = vsub.f32 %v4556, %v4559
        %v4561 = vmul.f32 %v4560, 1.442695
        %v4562 = vpow.pop %v4561
        %v4563 = vsel %vm3871, %v4562, 0.0
        %4564 = vadd.xlane.f32.xlu0 %v4563
        %v4565 = vpop.xlane.xlu0 %4564
        %v4566 = vrcp.pop %v4565
        %v4567 = vmul.f32 %v4562, %v4566
        %4568 = vrot.lane.b32.xlu0 %v4392, 48
        %v4569 = vpop.permute.xlu0 %4568
        %v4572 = vsel %vm3871, %v4567, 0
        %4574 = vmatpush.msra.mxu0 0.0
        %4575 = vmatpush.msra.mxu0 0.0
        %4576 = vmatpush.msra.mxu0 0.0
        %4577 = vmatpush.msra.mxu0 0.0
        %4578 = vmatpush.msra.mxu0 0.0
        %4579 = vmatpush.msra.mxu0 0.0
        %4580 = vmatpush.msra.mxu0 0.0
        %4581 = vmatpush.msra.mxu0 0.0
        %4582 = vmatpush.msra.mxu0 0.0
        %4583 = vmatpush.msra.mxu0 0.0
        %4584 = vmatpush.msra.mxu0 0.0
        %4585 = vmatpush.msra.mxu0 0.0
        %4586 = vmatpush.msra.mxu0 0.0
        %4587 = vmatpush.msra.mxu0 0.0
        %4588 = vmatpush.msra.mxu0 0.0
        %4589 = vmatpush.msra.mxu0 %v4569
        %4590 = vmatmul.f32.gmra.mxu0 %v4572
        %v4591 = vpop.f32.mrf.mxu0
        %v4592 = vadd.f32 0.0, %v4591
        %4593 = vdwg.mxu0
        %4594 = vrot.lane.b32.xlu0 %v4392, 104
        %v4595 = vpop.permute.xlu0 %4594
        %4596 = vrot.lane.b32.xlu0 %v4392, 72
        %v4597 = vpop.permute.xlu0 %4596
        %v4598 = vsel %vm3871, %v4595, 0
        %v4600 = vsel %vm3871, %v4597, 0
        %4602 = vmatpush.xpose.msra.mxu0 0.0
        %4603 = vmatpush.xpose.msra.mxu0 0.0
        %4604 = vmatpush.xpose.msra.mxu0 0.0
        %4605 = vmatpush.xpose.msra.mxu0 0.0
        %4606 = vmatpush.xpose.msra.mxu0 0.0
        %4607 = vmatpush.xpose.msra.mxu0 0.0
        %4608 = vmatpush.xpose.msra.mxu0 0.0
        %4609 = vmatpush.xpose.msra.mxu0 0.0
        %4610 = vmatpush.xpose.msra.mxu0 0.0
        %4611 = vmatpush.xpose.msra.mxu0 0.0
        %4612 = vmatpush.xpose.msra.mxu0 0.0
        %4613 = vmatpush.xpose.msra.mxu0 0.0
        %4614 = vmatpush.xpose.msra.mxu0 0.0
        %4615 = vmatpush.xpose.msra.mxu0 0.0
        %4616 = vmatpush.xpose.msra.mxu0 0.0
        %4617 = vmatpush.xpose.msra.mxu0 %v4600
        %4618 = vmatmul.f32.gmra.mxu0 %v4598
        %v4619 = vpop.f32.mrf.mxu0
        %v4620 = vadd.f32 0.0, %v4619
        %4621 = vdwg.mxu0
        %v4622 = vmul.f32 %v4620, 0.35355338
        %v4623 = vadd.f32 %v4622, %v3898
        %v4624 = vsel %vm3871, %v4623, -inf
        %4625 = vmax.xlane.f32.xlu0 %v4624
        %v4626 = vpop.xlane.xlu0 %4625
        %v4627 = vsub.f32 %v4623, %v4626
        %v4628 = vmul.f32 %v4627, 1.442695
        %v4629 = vpow.pop %v4628
        %v4630 = vsel %vm3871, %v4629, 0.0
        %4631 = vadd.xlane.f32.xlu0 %v4630
        %v4632 = vpop.xlane.xlu0 %4631
        %v4633 = vrcp.pop %v4632
        %v4634 = vmul.f32 %v4629, %v4633
        %4635 = vrot.lane.b32.xlu0 %v4392, 40
        %v4636 = vpop.permute.xlu0 %4635
        %v4639 = vsel %vm3871, %v4634, 0
        %4641 = vmatpush.msra.mxu0 0.0
        %4642 = vmatpush.msra.mxu0 0.0
        %4643 = vmatpush.msra.mxu0 0.0
        %4644 = vmatpush.msra.mxu0 0.0
        %4645 = vmatpush.msra.mxu0 0.0
        %4646 = vmatpush.msra.mxu0 0.0
        %4647 = vmatpush.msra.mxu0 0.0
        %4648 = vmatpush.msra.mxu0 0.0
        %4649 = vmatpush.msra.mxu0 0.0
        %4650 = vmatpush.msra.mxu0 0.0
        %4651 = vmatpush.msra.mxu0 0.0
        %4652 = vmatpush.msra.mxu0 0.0
        %4653 = vmatpush.msra.mxu0 0.0
        %4654 = vmatpush.msra.mxu0 0.0
        %4655 = vmatpush.msra.mxu0 0.0
        %4656 = vmatpush.msra.mxu0 %v4636
        %4657 = vmatmul.f32.gmra.mxu0 %v4639
        %v4658 = vpop.f32.mrf.mxu0
        %v4659 = vadd.f32 0.0, %v4658
        %4660 = vdwg.mxu0
        %4662 = vrot.lane.b32.xlu0 %v4525, 8
        %v4663 = vpop.permute.xlu0 %4662
        %4666 = vrot.lane.b32.xlu0 %v4592, 16
        %v4667 = vpop.permute.xlu0 %4666
        %4670 = vrot.lane.b32.xlu0 %v4659, 24
        %v4671 = vpop.permute.xlu0 %4670
        %v4673 = vsel %vm3871, %v4458, %v4663
        %v4674 = vsel %vm3711, %v4673, %v4667
        %v4675 = vsel %vm4153, %v4674, %v4671
        %v4676 = vld [vmem:[%s43] sm:$0xff]
        %v4677 = vld [vmem:[%s43 + $0x8] sm:$0xff]
        %v4678 = vld [vmem:[%s43 + $0x10] sm:$0xff]
        %v4679 = vld [vmem:[%s43 + $0x18] sm:$0xff]
        %v4680 = vld [vmem:[#allocation14] sm:$0x1]
        %v4682 = vperm.slane %v4680, 0
        %v4685 = vsel %vm3664, %v4675, 0
        %4687 = vmatpush.msra.mxu0 0.0
        %4688 = vmatpush.msra.mxu0 0.0
        %4689 = vmatpush.msra.mxu0 0.0
        %4690 = vmatpush.msra.mxu0 0.0
        %4691 = vmatpush.msra.mxu0 0.0
        %4692 = vmatpush.msra.mxu0 0.0
        %4693 = vmatpush.msra.mxu0 0.0
        %4694 = vmatpush.msra.mxu0 0.0
        %4695 = vmatpush.msra.mxu0 0.0
        %4696 = vmatpush.msra.mxu0 0.0
        %4697 = vmatpush.msra.mxu0 0.0
        %4698 = vmatpush.msra.mxu0 0.0
        %4699 = vmatpush.msra.mxu0 %v4679
        %4700 = vmatpush.msra.mxu0 %v4678
        %4701 = vmatpush.msra.mxu0 %v4677
        %4702 = vmatpush.msra.mxu0 %v4676
        %4703 = vmatmul.f32.gmra.mxu0 %v4685
        %v4704 = vpop.f32.mrf.mxu0
        %v4705 = vadd.f32 %v4682, %v4704
        %4706 = vdwg.mxu0
        %v4707 = vadd.f32 %v4705, %v4362
        %v4708 = vsel %vm3664, %v4707, 0.0
        %4709 = vadd.xlane.f32.xlu0 %v4708
        %v4710 = vpop.xlane.xlu0 %4709
        %v4711 = vmul.f32 %v4710, %v3674
        %v4712 = vsub.f32 %v4707, %v4711
        %v4713 = vmul.f32 %v4712, %v4712
        %v4714 = vsel %vm3664, %v4713, 0.0
        %4715 = vadd.xlane.f32.xlu0 %v4714
        %v4716 = vpop.xlane.xlu0 %4715
        %v4717 = vmul.f32 %v4716, %v3674
        %v4718 = vadd.f32 %v4717, 1e-12
        %v4719 = vrsqrt.pop %v4718
        %v4720 = vmul.f32 %v4719, %v4718
        %v4721 = vmul.f32 %v4720, %v4719
        %v4722 = vmul.f32 0.5, %v4721
        %v4723 = vsub.f32 1.5, %v4722
        %v4724 = vmul.f32 %v4719, %v4723
        %vm4725 = vweird.f32 %v4718
        %vm4726 = vweird.f32 %v4719
        %vm4727 = vmor %vm4725, %vm4726
        %v4728 = vsel %vm4727, %v4719, %v4724
        %v4729 = vmul.f32 %v4712, %v4728
        %v4730 = vld [vmem:[#allocation17] sm:$0x1]
        %v4732 = vperm.slane %v4730, 0
        %v4734 = vmul.f32 %v4729, %v4732
        %v4735 = vld [vmem:[#allocation16] sm:$0x1]
        %v4737 = vperm.slane %v4735, 0
        %v4739 = vadd.f32 %v4734, %v4737
        %v4740 = vld [vmem:[%s51] sm:$0xff]
        %v4741 = vld [vmem:[%s51 + $0x8] sm:$0xff]
        %v4742 = vld [vmem:[%s51 + $0x10] sm:$0xff]
        %v4743 = vld [vmem:[%s51 + $0x18] sm:$0xff]
        %v4744 = vld [vmem:[#allocation19] sm:$0x1]
        %v4746 = vperm.slane %v4744, 0
        %v4749 = vsel %vm3664, %v4739, 0
        %4751 = vmatpush.msra.mxu0 0.0
        %4752 = vmatpush.msra.mxu0 0.0
        %4753 = vmatpush.msra.mxu0 0.0
        %4754 = vmatpush.msra.mxu0 0.0
        %4755 = vmatpush.msra.mxu0 0.0
        %4756 = vmatpush.msra.mxu0 0.0
        %4757 = vmatpush.msra.mxu0 0.0
        %4758 = vmatpush.msra.mxu0 0.0
        %4759 = vmatpush.msra.mxu0 0.0
        %4760 = vmatpush.msra.mxu0 0.0
        %4761 = vmatpush.msra.mxu0 0.0
        %4762 = vmatpush.msra.mxu0 0.0
        %4763 = vmatpush.msra.mxu0 %v4743
        %4764 = vmatpush.msra.mxu0 %v4742
        %4765 = vmatpush.msra.mxu0 %v4741
        %4766 = vmatpush.msra.mxu0 %v4740
        %4767 = vmatmul.f32.gmra.mxu0 %v4749
        %v4768 = vpop.f32.mrf.mxu0
        %v4769 = vadd.f32 %v4746, %v4768
        %4770 = vdwg.mxu0
        %v4771 = vmul.f32 %v4769, 0.5
        %v4772 = vmul.f32 %v4769, 0.70710677
        %v4773 = vmul.f32 %v4772, %v4772
        %v4774 = vmin.f32 16.0, %v4773
        %v4775 = vmul.f32 %v4774, 2.1237322e-06
        %v4776 = vadd.f32 %v4775, 0.00028619796
        %v4777 = vmul.f32 %v4774, %v4776
        %v4778 = vadd.f32 %v4777, 0.0036580483
        %v4779 = vmul.f32 %v4774, %v4778
        %v4780 = vadd.f32 %v4779, 0.05243302
        %v4781 = vmul.f32 %v4774, %v4780
        %v4782 = vadd.f32 %v4781, 0.18741608
        %v4783 = vmul.f32 %v4774, %v4782
        %v4784 = vadd.f32 %v4783, 1.1283791
        %v4785 = vmul.f32 %v4772, %v4784
        %v4786 = vmul.f32 %v4774, 3.8918573e-05
        %v4787 = vadd.f32 %v4786, 0.001143296
        %v4788 = vmul.f32 %v4774, %v4787
        %v4789 = vadd.f32 %v4788, 0.014752088
        %v4790 = vmul.f32 %v4774, %v4789
        %v4791 = vadd.f32 %v4790, 0.112945676
        %v4792 = vmul.f32 %v4774, %v4791
        %v4793 = vadd.f32 %v4792, 0.4994258
        %v4794 = vmul.f32 %v4774, %v4793
        %v4795 = vadd.f32 %v4794, 1.0
        %v4796 = vrcp.pop %v4795
        %v4797 = vmul.f32 %v4795, %v4796
        %v4798 = vsub.f32 1.0, %v4797
        %v4799 = vmul.f32 %v4796, %v4798
        %v4800 = vadd.f32 %v4796, %v4799
        %vm4801 = vweird.f32 %v4795
        %vm4802 = vweird.f32 %v4796
        %vm4803 = vmor %vm4801, %vm4802
        %v4804 = vsel %vm4803, %v4796, %v4800
        %v4805 = vand.u32 2147483647, %v4795
        %vm4806 = vcmp.eq.f32.partialorder %v4805, 8.507059e+37
        %v4807 = vand.u32 %v4795, 2147483648
        %v4808 = vor.u32 1.1754944e-38, %v4807
        %v4809 = vsel %vm4806, %v4808, %v4804
        %v4810 = vmul.f32 %v4785, %v4809
        %v4811 = vmin.f32 %v4810, 1.0
        %v4812 = vmax.f32 %v4811, -1.0
        %v4813 = vadd.f32 %v4812, 1.0
        %v4814 = vmul.f32 %v4771, %v4813
        %v4815 = vld [vmem:[%s59] sm:$0xff]
        %v4816 = vld [vmem:[%s59 + $0x8] sm:$0xff]
        %v4817 = vld [vmem:[%s59 + $0x10] sm:$0xff]
        %v4818 = vld [vmem:[%s59 + $0x18] sm:$0xff]
        %v4819 = vld [vmem:[%s59 + $0x20] sm:$0xff]
        %v4820 = vld [vmem:[%s59 + $0x28] sm:$0xff]
        %v4821 = vld [vmem:[%s59 + $0x30] sm:$0xff]
        %v4822 = vld [vmem:[%s59 + $0x38] sm:$0xff]
        %v4823 = vld [vmem:[#allocation23] sm:$0x1]
        %v4825 = vperm.slane %v4823, 0
        %v4828 = vsel %vm4306, %v4814, 0
        %4830 = vmatpush.msra.mxu0 0.0
        %4831 = vmatpush.msra.mxu0 0.0
        %4832 = vmatpush.msra.mxu0 0.0
        %4833 = vmatpush.msra.mxu0 0.0
        %4834 = vmatpush.msra.mxu0 0.0
        %4835 = vmatpush.msra.mxu0 0.0
        %4836 = vmatpush.msra.mxu0 0.0
        %4837 = vmatpush.msra.mxu0 0.0
        %4838 = vmatpush.msra.mxu0 %v4822
        %4839 = vmatpush.msra.mxu0 %v4821
        %4840 = vmatpush.msra.mxu0 %v4820
        %4841 = vmatpush.msra.mxu0 %v4819
        %4842 = vmatpush.msra.mxu0 %v4818
        %4843 = vmatpush.msra.mxu0 %v4817
        %4844 = vmatpush.msra.mxu0 %v4816
        %4845 = vmatpush.msra.mxu0 %v4815
        %4846 = vmatmul.f32.gmra.mxu0 %v4828
        %v4847 = vpop.f32.mrf.mxu0
        %v4848 = vadd.f32 %v4825, %v4847
        %4849 = vdwg.mxu0
        %v4850 = vadd.f32 %v4848, %v4739
        %v4851 = vsel %vm3664, %v4850, 0.0
        %4852 = vadd.xlane.f32.xlu0 %v4851
        %v4853 = vpop.xlane.xlu0 %4852
        %v4854 = vmul.f32 %v4853, %v3674
        %v4855 = vsub.f32 %v4850, %v4854
        %v4856 = vmul.f32 %v4855, %v4855
        %v4857 = vsel %vm3664, %v4856, 0.0
        %4858 = vadd.xlane.f32.xlu0 %v4857
        %v4859 = vpop.xlane.xlu0 %4858
        %v4860 = vmul.f32 %v4859, %v3674
        %v4861 = vadd.f32 %v4860, 1e-12
        %v4862 = vrsqrt.pop %v4861
        %v4863 = vmul.f32 %v4862, %v4861
        %v4864 = vmul.f32 %v4863, %v4862
        %v4865 = vmul.f32 0.5, %v4864
        %v4866 = vsub.f32 1.5, %v4865
        %v4867 = vmul.f32 %v4862, %v4866
        %vm4868 = vweird.f32 %v4861
        %vm4869 = vweird.f32 %v4862
        %vm4870 = vmor %vm4868, %vm4869
        %v4871 = vsel %vm4870, %v4862, %v4867
        %v4872 = vmul.f32 %v4855, %v4871
        %v4873 = vld [vmem:[#allocation22] sm:$0x1]
        %v4875 = vperm.slane %v4873, 0
        %v4877 = vmul.f32 %v4872, %v4875
        %v4878 = vld [vmem:[#allocation20] sm:$0x1]
        %v4880 = vperm.slane %v4878, 0
        %v4882 = vadd.f32 %v4877, %v4880
        %v4883 = vld [vmem:[%s67] sm:$0xff]
        %v4884 = vld [vmem:[%s67 + $0x8] sm:$0xff]
        %v4885 = vld [vmem:[%s67 + $0x10] sm:$0xff]
        %v4886 = vld [vmem:[%s67 + $0x18] sm:$0xff]
        %v4887 = vld [vmem:[#allocation26] sm:$0x1]
        %v4889 = vperm.slane %v4887, 0
        %v4892 = vsel %vm3664, %v3835, 0
        %4894 = vmatpush.msra.mxu0 0.0
        %4895 = vmatpush.msra.mxu0 0.0
        %4896 = vmatpush.msra.mxu0 0.0
        %4897 = vmatpush.msra.mxu0 0.0
        %4898 = vmatpush.msra.mxu0 0.0
        %4899 = vmatpush.msra.mxu0 0.0
        %4900 = vmatpush.msra.mxu0 0.0
        %4901 = vmatpush.msra.mxu0 0.0
        %4902 = vmatpush.msra.mxu0 0.0
        %4903 = vmatpush.msra.mxu0 0.0
        %4904 = vmatpush.msra.mxu0 0.0
        %4905 = vmatpush.msra.mxu0 0.0
        %4906 = vmatpush.msra.mxu0 %v4886
        %4907 = vmatpush.msra.mxu0 %v4885
        %4908 = vmatpush.msra.mxu0 %v4884
        %4909 = vmatpush.msra.mxu0 %v4883
        %4910 = vmatmul.f32.gmra.mxu0 %v4892
        %v4911 = vpop.f32.mrf.mxu0
        %v4912 = vadd.f32 %v4889, %v4911
        %4913 = vdwg.mxu0
        %4915 = vrot.lane.b32.xlu0 %v4912, 96
        %v4916 = vpop.permute.xlu0 %4915
        %v4917 = vsel %vm3871, %v4912, 0
        %v4919 = vsel %vm3871, %v4916, 0
        %4921 = vmatpush.xpose.msra.mxu0 0.0
        %4922 = vmatpush.xpose.msra.mxu0 0.0
        %4923 = vmatpush.xpose.msra.mxu0 0.0
        %4924 = vmatpush.xpose.msra.mxu0 0.0
        %4925 = vmatpush.xpose.msra.mxu0 0.0
        %4926 = vmatpush.xpose.msra.mxu0 0.0
        %4927 = vmatpush.xpose.msra.mxu0 0.0
        %4928 = vmatpush.xpose.msra.mxu0 0.0
        %4929 = vmatpush.xpose.msra.mxu0 0.0
        %4930 = vmatpush.xpose.msra.mxu0 0.0
        %4931 = vmatpush.xpose.msra.mxu0 0.0
        %4932 = vmatpush.xpose.msra.mxu0 0.0
        %4933 = vmatpush.xpose.msra.mxu0 0.0
        %4934 = vmatpush.xpose.msra.mxu0 0.0
        %4935 = vmatpush.xpose.msra.mxu0 0.0
        %4936 = vmatpush.xpose.msra.mxu0 %v4919
        %4937 = vmatmul.f32.gmra.mxu0 %v4917
        %v4938 = vpop.f32.mrf.mxu0
        %v4939 = vadd.f32 0.0, %v4938
        %4940 = vdwg.mxu0
        %v4941 = vmul.f32 %v4939, 0.35355338
        %vm4942 = vcmask 27648
        %v4943 = vsel %vm4942, %v4941, -inf
        %4944 = vmax.xlane.f32.xlu0 %v4943
        %v4945 = vpop.xlane.xlu0 %4944
        %v4946 = vsub.f32 %v4941, %v4945
        %v4947 = vmul.f32 %v4946, 1.442695
        %v4948 = vpow.pop %v4947
        %v4949 = vsel %vm4942, %v4948, 0.0
        %4950 = vadd.xlane.f32.xlu0 %v4949
        %v4951 = vpop.xlane.xlu0 %4950
        %v4952 = vrcp.pop %v4951
        %v4953 = vmul.f32 %v4948, %v4952
        %4954 = vrot.lane.b32.xlu0 %v4912, 64
        %v4955 = vpop.permute.xlu0 %4954
        %v4957 = vsel %vm3774, %v4953, 0
        %v4959 = vsel %vm3778, %v4955, 0
        %4961 = vmatpush.msra.mxu0 0.0
        %4962 = vmatpush.msra.mxu0 0.0
        %4963 = vmatpush.msra.mxu0 0.0
        %4964 = vmatpush.msra.mxu0 0.0
        %4965 = vmatpush.msra.mxu0 0.0
        %4966 = vmatpush.msra.mxu0 0.0
        %4967 = vmatpush.msra.mxu0 0.0
        %4968 = vmatpush.msra.mxu0 0.0
        %4969 = vmatpush.msra.mxu0 0.0
        %4970 = vmatpush.msra.mxu0 0.0
        %4971 = vmatpush.msra.mxu0 0.0
        %4972 = vmatpush.msra.mxu0 0.0
        %4973 = vmatpush.msra.mxu0 0.0
        %4974 = vmatpush.msra.mxu0 0.0
        %4975 = vmatpush.msra.mxu0 0.0
        %4976 = vmatpush.msra.mxu0 %v4959
        %4977 = vmatmul.f32.gmra.mxu0 %v4957
        %v4978 = vpop.f32.mrf.mxu0
        %v4979 = vadd.f32 0.0, %v4978
        %4980 = vdwg.mxu0
        %4981 = vrot.lane.b32.xlu0 %v4912, 120
        %v4982 = vpop.permute.xlu0 %4981
        %4983 = vrot.lane.b32.xlu0 %v4912, 88
        %v4984 = vpop.permute.xlu0 %4983
        %v4985 = vsel %vm3871, %v4982, 0
        %v4987 = vsel %vm3871, %v4984, 0
        %4989 = vmatpush.xpose.msra.mxu0 0.0
        %4990 = vmatpush.xpose.msra.mxu0 0.0
        %4991 = vmatpush.xpose.msra.mxu0 0.0
        %4992 = vmatpush.xpose.msra.mxu0 0.0
        %4993 = vmatpush.xpose.msra.mxu0 0.0
        %4994 = vmatpush.xpose.msra.mxu0 0.0
        %4995 = vmatpush.xpose.msra.mxu0 0.0
        %4996 = vmatpush.xpose.msra.mxu0 0.0
        %4997 = vmatpush.xpose.msra.mxu0 0.0
        %4998 = vmatpush.xpose.msra.mxu0 0.0
        %4999 = vmatpush.xpose.msra.mxu0 0.0
        %5000 = vmatpush.xpose.msra.mxu0 0.0
        %5001 = vmatpush.xpose.msra.mxu0 0.0
        %5002 = vmatpush.xpose.msra.mxu0 0.0
        %5003 = vmatpush.xpose.msra.mxu0 0.0
        %5004 = vmatpush.xpose.msra.mxu0 %v4987
        %5005 = vmatmul.f32.gmra.mxu0 %v4985
        %v5006 = vpop.f32.mrf.mxu0
        %v5007 = vadd.f32 0.0, %v5006
        %5008 = vdwg.mxu0
        %v5009 = vmul.f32 %v5007, 0.35355338
        %v5010 = vsel %vm4942, %v5009, -inf
        %5011 = vmax.xlane.f32.xlu0 %v5010
        %v5012 = vpop.xlane.xlu0 %5011
        %v5013 = vsub.f32 %v5009, %v5012
        %v5014 = vmul.f32 %v5013, 1.442695
        %v5015 = vpow.pop %v5014
        %v5016 = vsel %vm4942, %v5015, 0.0
        %5017 = vadd.xlane.f32.xlu0 %v5016
        %v5018 = vpop.xlane.xlu0 %5017
        %v5019 = vrcp.pop %v5018
        %v5020 = vmul.f32 %v5015, %v5019
        %5021 = vrot.lane.b32.xlu0 %v4912, 56
        %v5022 = vpop.permute.xlu0 %5021
        %v5024 = vsel %vm3774, %v5020, 0
        %v5026 = vsel %vm3778, %v5022, 0
        %5028 = vmatpush.msra.mxu0 0.0
        %5029 = vmatpush.msra.mxu0 0.0
        %5030 = vmatpush.msra.mxu0 0.0
        %5031 = vmatpush.msra.mxu0 0.0
        %5032 = vmatpush.msra.mxu0 0.0
        %5033 = vmatpush.msra.mxu0 0.0
        %5034 = vmatpush.msra.mxu0 0.0
        %5035 = vmatpush.msra.mxu0 0.0
        %5036 = vmatpush.msra.mxu0 0.0
        %5037 = vmatpush.msra.mxu0 0.0
        %5038 = vmatpush.msra.mxu0 0.0
        %5039 = vmatpush.msra.mxu0 0.0
        %5040 = vmatpush.msra.mxu0 0.0
        %5041 = vmatpush.msra.mxu0 0.0
        %5042 = vmatpush.msra.mxu0 0.0
        %5043 = vmatpush.msra.mxu0 %v5026
        %5044 = vmatmul.f32.gmra.mxu0 %v5024
        %v5045 = vpop.f32.mrf.mxu0
        %v5046 = vadd.f32 0.0, %v5045
        %5047 = vdwg.mxu0
        %5048 = vrot.lane.b32.xlu0 %v4912, 112
        %v5049 = vpop.permute.xlu0 %5048
        %5050 = vrot.lane.b32.xlu0 %v4912, 80
        %v5051 = vpop.permute.xlu0 %5050
        %v5052 = vsel %vm3871, %v5049, 0
        %v5054 = vsel %vm3871, %v5051, 0
        %5056 = vmatpush.xpose.msra.mxu0 0.0
        %5057 = vmatpush.xpose.msra.mxu0 0.0
        %5058 = vmatpush.xpose.msra.mxu0 0.0
        %5059 = vmatpush.xpose.msra.mxu0 0.0
        %5060 = vmatpush.xpose.msra.mxu0 0.0
        %5061 = vmatpush.xpose.msra.mxu0 0.0
        %5062 = vmatpush.xpose.msra.mxu0 0.0
        %5063 = vmatpush.xpose.msra.mxu0 0.0
        %5064 = vmatpush.xpose.msra.mxu0 0.0
        %5065 = vmatpush.xpose.msra.mxu0 0.0
        %5066 = vmatpush.xpose.msra.mxu0 0.0
        %5067 = vmatpush.xpose.msra.mxu0 0.0
        %5068 = vmatpush.xpose.msra.mxu0 0.0
        %5069 = vmatpush.xpose.msra.mxu0 0.0
        %5070 = vmatpush.xpose.msra.mxu0 0.0
        %5071 = vmatpush.xpose.msra.mxu0 %v5054
        %5072 = vmatmul.f32.gmra.mxu0 %v5052
        %v5073 = vpop.f32.mrf.mxu0
        %v5074 = vadd.f32 0.0, %v5073
        %5075 = vdwg.mxu0
        %v5076 = vmul.f32 %v5074, 0.35355338
        %v5077 = vsel %vm4942, %v5076, -inf
        %5078 = vmax.xlane.f32.xlu0 %v5077
        %v5079 = vpop.xlane.xlu0 %5078
        %v5080 = vsub.f32 %v5076, %v5079
        %v5081 = vmul.f32 %v5080, 1.442695
        %v5082 = vpow.pop %v5081
        %v5083 = vsel %vm4942, %v5082, 0.0
        %5084 = vadd.xlane.f32.xlu0 %v5083
        %v5085 = vpop.xlane.xlu0 %5084
        %v5086 = vrcp.pop %v5085
        %v5087 = vmul.f32 %v5082, %v5086
        %5088 = vrot.lane.b32.xlu0 %v4912, 48
        %v5089 = vpop.permute.xlu0 %5088
        %v5091 = vsel %vm3774, %v5087, 0
        %v5093 = vsel %vm3778, %v5089, 0
        %5095 = vmatpush.msra.mxu0 0.0
        %5096 = vmatpush.msra.mxu0 0.0
        %5097 = vmatpush.msra.mxu0 0.0
        %5098 = vmatpush.msra.mxu0 0.0
        %5099 = vmatpush.msra.mxu0 0.0
        %5100 = vmatpush.msra.mxu0 0.0
        %5101 = vmatpush.msra.mxu0 0.0
        %5102 = vmatpush.msra.mxu0 0.0
        %5103 = vmatpush.msra.mxu0 0.0
        %5104 = vmatpush.msra.mxu0 0.0
        %5105 = vmatpush.msra.mxu0 0.0
        %5106 = vmatpush.msra.mxu0 0.0
        %5107 = vmatpush.msra.mxu0 0.0
        %5108 = vmatpush.msra.mxu0 0.0
        %5109 = vmatpush.msra.mxu0 0.0
        %5110 = vmatpush.msra.mxu0 %v5093
        %5111 = vmatmul.f32.gmra.mxu0 %v5091
        %v5112 = vpop.f32.mrf.mxu0
        %v5113 = vadd.f32 0.0, %v5112
        %5114 = vdwg.mxu0
        %5115 = vrot.lane.b32.xlu0 %v4912, 104
        %v5116 = vpop.permute.xlu0 %5115
        %5117 = vrot.lane.b32.xlu0 %v4912, 72
        %v5118 = vpop.permute.xlu0 %5117
        %v5119 = vsel %vm3871, %v5116, 0
        %v5121 = vsel %vm3871, %v5118, 0
        %5123 = vmatpush.xpose.msra.mxu0 0.0
        %5124 = vmatpush.xpose.msra.mxu0 0.0
        %5125 = vmatpush.xpose.msra.mxu0 0.0
        %5126 = vmatpush.xpose.msra.mxu0 0.0
        %5127 = vmatpush.xpose.msra.mxu0 0.0
        %5128 = vmatpush.xpose.msra.mxu0 0.0
        %5129 = vmatpush.xpose.msra.mxu0 0.0
        %5130 = vmatpush.xpose.msra.mxu0 0.0
        %5131 = vmatpush.xpose.msra.mxu0 0.0
        %5132 = vmatpush.xpose.msra.mxu0 0.0
        %5133 = vmatpush.xpose.msra.mxu0 0.0
        %5134 = vmatpush.xpose.msra.mxu0 0.0
        %5135 = vmatpush.xpose.msra.mxu0 0.0
        %5136 = vmatpush.xpose.msra.mxu0 0.0
        %5137 = vmatpush.xpose.msra.mxu0 0.0
        %5138 = vmatpush.xpose.msra.mxu0 %v5121
        %5139 = vmatmul.f32.gmra.mxu0 %v5119
        %v5140 = vpop.f32.mrf.mxu0
        %v5141 = vadd.f32 0.0, %v5140
        %5142 = vdwg.mxu0
        %v5143 = vmul.f32 %v5141, 0.35355338
        %v5144 = vsel %vm4942, %v5143, -inf
        %5145 = vmax.xlane.f32.xlu0 %v5144
        %v5146 = vpop.xlane.xlu0 %5145
        %v5147 = vsub.f32 %v5143, %v5146
        %v5148 = vmul.f32 %v5147, 1.442695
        %v5149 = vpow.pop %v5148
        %v5150 = vsel %vm4942, %v5149, 0.0
        %5151 = vadd.xlane.f32.xlu0 %v5150
        %v5152 = vpop.xlane.xlu0 %5151
        %v5153 = vrcp.pop %v5152
        %v5154 = vmul.f32 %v5149, %v5153
        %5155 = vrot.lane.b32.xlu0 %v4912, 40
        %v5156 = vpop.permute.xlu0 %5155
        %v5158 = vsel %vm3774, %v5154, 0
        %v5160 = vsel %vm3778, %v5156, 0
        %5162 = vmatpush.msra.mxu0 0.0
        %5163 = vmatpush.msra.mxu0 0.0
        %5164 = vmatpush.msra.mxu0 0.0
        %5165 = vmatpush.msra.mxu0 0.0
        %5166 = vmatpush.msra.mxu0 0.0
        %5167 = vmatpush.msra.mxu0 0.0
        %5168 = vmatpush.msra.mxu0 0.0
        %5169 = vmatpush.msra.mxu0 0.0
        %5170 = vmatpush.msra.mxu0 0.0
        %5171 = vmatpush.msra.mxu0 0.0
        %5172 = vmatpush.msra.mxu0 0.0
        %5173 = vmatpush.msra.mxu0 0.0
        %5174 = vmatpush.msra.mxu0 0.0
        %5175 = vmatpush.msra.mxu0 0.0
        %5176 = vmatpush.msra.mxu0 0.0
        %5177 = vmatpush.msra.mxu0 %v5160
        %5178 = vmatmul.f32.gmra.mxu0 %v5158
        %v5179 = vpop.f32.mrf.mxu0
        %v5180 = vadd.f32 0.0, %v5179
        %5181 = vdwg.mxu0
        %5183 = vrot.lane.b32.xlu0 %v5046, 8
        %v5184 = vpop.permute.xlu0 %5183
        %5187 = vrot.lane.b32.xlu0 %v5113, 16
        %v5188 = vpop.permute.xlu0 %5187
        %5191 = vrot.lane.b32.xlu0 %v5180, 24
        %v5192 = vpop.permute.xlu0 %5191
        %v5194 = vsel %vm3871, %v4979, %v5184
        %v5195 = vsel %vm3711, %v5194, %v5188
        %v5196 = vsel %vm4153, %v5195, %v5192
        %v5197 = vld [vmem:[%s71] sm:$0xff]
        %v5198 = vld [vmem:[%s71 + $0x8] sm:$0xff]
        %v5199 = vld [vmem:[%s71 + $0x10] sm:$0xff]
        %v5200 = vld [vmem:[%s71 + $0x18] sm:$0xff]
        %v5201 = vld [vmem:[#allocation28] sm:$0x1]
        %v5203 = vperm.slane %v5201, 0
        %v5206 = vsel %vm3664, %v5196, 0
        %5208 = vmatpush.msra.mxu0 0.0
        %5209 = vmatpush.msra.mxu0 0.0
        %5210 = vmatpush.msra.mxu0 0.0
        %5211 = vmatpush.msra.mxu0 0.0
        %5212 = vmatpush.msra.mxu0 0.0
        %5213 = vmatpush.msra.mxu0 0.0
        %5214 = vmatpush.msra.mxu0 0.0
        %5215 = vmatpush.msra.mxu0 0.0
        %5216 = vmatpush.msra.mxu0 0.0
        %5217 = vmatpush.msra.mxu0 0.0
        %5218 = vmatpush.msra.mxu0 0.0
        %5219 = vmatpush.msra.mxu0 0.0
        %5220 = vmatpush.msra.mxu0 %v5200
        %5221 = vmatpush.msra.mxu0 %v5199
        %5222 = vmatpush.msra.mxu0 %v5198
        %5223 = vmatpush.msra.mxu0 %v5197
        %5224 = vmatmul.f32.gmra.mxu0 %v5206
        %v5225 = vpop.f32.mrf.mxu0
        %v5226 = vadd.f32 %v5203, %v5225
        %5227 = vdwg.mxu0
        %v5228 = vadd.f32 %v5226, %v3835
        %v5229 = vsel %vm3735, %v5228, 0.0
        %5230 = vadd.xlane.f32.xlu0 %v5229
        %v5231 = vpop.xlane.xlu0 %5230
        %v5232 = vmul.f32 %v5231, %v3674
        %v5233 = vsub.f32 %v5228, %v5232
        %v5234 = vmul.f32 %v5233, %v5233
        %v5235 = vsel %vm3735, %v5234, 0.0
        %5236 = vadd.xlane.f32.xlu0 %v5235
        %v5237 = vpop.xlane.xlu0 %5236
        %v5238 = vmul.f32 %v5237, %v3674
        %v5239 = vadd.f32 %v5238, 1e-12
        %v5240 = vrsqrt.pop %v5239
        %v5241 = vmul.f32 %v5240, %v5239
        %v5242 = vmul.f32 %v5241, %v5240
        %v5243 = vmul.f32 0.5, %v5242
        %v5244 = vsub.f32 1.5, %v5243
        %v5245 = vmul.f32 %v5240, %v5244
        %vm5246 = vweird.f32 %v5239
        %vm5247 = vweird.f32 %v5240
        %vm5248 = vmor %vm5246, %vm5247
        %v5249 = vsel %vm5248, %v5240, %v5245
        %v5250 = vmul.f32 %v5233, %v5249
        %v5251 = vld [vmem:[#allocation31] sm:$0x1]
        %v5253 = vperm.slane %v5251, 0
        %v5255 = vmul.f32 %v5250, %v5253
        %v5256 = vld [vmem:[#allocation29] sm:$0x1]
        %v5258 = vperm.slane %v5256, 0
        %v5260 = vadd.f32 %v5255, %v5258
        %v5261 = vld [vmem:[%s79] sm:$0xff]
        %v5262 = vld [vmem:[%s79 + $0x8] sm:$0xff]
        %v5263 = vld [vmem:[%s79 + $0x10] sm:$0xff]
        %v5264 = vld [vmem:[%s79 + $0x18] sm:$0xff]
        %v5265 = vld [vmem:[#allocation32] sm:$0x1]
        %v5267 = vperm.slane %v5265, 0
        %v5270 = vsel %vm3664, %v5260, 0
        %5272 = vmatpush.msra.mxu0 0.0
        %5273 = vmatpush.msra.mxu0 0.0
        %5274 = vmatpush.msra.mxu0 0.0
        %5275 = vmatpush.msra.mxu0 0.0
        %5276 = vmatpush.msra.mxu0 0.0
        %5277 = vmatpush.msra.mxu0 0.0
        %5278 = vmatpush.msra.mxu0 0.0
        %5279 = vmatpush.msra.mxu0 0.0
        %5280 = vmatpush.msra.mxu0 0.0
        %5281 = vmatpush.msra.mxu0 0.0
        %5282 = vmatpush.msra.mxu0 0.0
        %5283 = vmatpush.msra.mxu0 0.0
        %5284 = vmatpush.msra.mxu0 %v5264
        %5285 = vmatpush.msra.mxu0 %v5263
        %5286 = vmatpush.msra.mxu0 %v5262
        %5287 = vmatpush.msra.mxu0 %v5261
        %5288 = vmatmul.f32.gmra.mxu0 %v5270
        %v5289 = vpop.f32.mrf.mxu0
        %v5290 = vadd.f32 %v5267, %v5289
        %5291 = vdwg.mxu0
        %v5292 = vmul.f32 %v5290, 0.5
        %v5293 = vmul.f32 %v5290, 0.70710677
        %v5294 = vmul.f32 %v5293, %v5293
        %v5295 = vmin.f32 16.0, %v5294
        %v5296 = vmul.f32 %v5295, 2.1237322e-06
        %v5297 = vadd.f32 %v5296, 0.00028619796
        %v5298 = vmul.f32 %v5295, %v5297
        %v5299 = vadd.f32 %v5298, 0.0036580483
        %v5300 = vmul.f32 %v5295, %v5299
        %v5301 = vadd.f32 %v5300, 0.05243302
        %v5302 = vmul.f32 %v5295, %v5301
        %v5303 = vadd.f32 %v5302, 0.18741608
        %v5304 = vmul.f32 %v5295, %v5303
        %v5305 = vadd.f32 %v5304, 1.1283791
        %v5306 = vmul.f32 %v5293, %v5305
        %v5307 = vmul.f32 %v5295, 3.8918573e-05
        %v5308 = vadd.f32 %v5307, 0.001143296
        %v5309 = vmul.f32 %v5295, %v5308
        %v5310 = vadd.f32 %v5309, 0.014752088
        %v5311 = vmul.f32 %v5295, %v5310
        %v5312 = vadd.f32 %v5311, 0.112945676
        %v5313 = vmul.f32 %v5295, %v5312
        %v5314 = vadd.f32 %v5313, 0.4994258
        %v5315 = vmul.f32 %v5295, %v5314
        %v5316 = vadd.f32 %v5315, 1.0
        %v5317 = vrcp.pop %v5316
        %v5318 = vmul.f32 %v5316, %v5317
        %v5319 = vsub.f32 1.0, %v5318
        %v5320 = vmul.f32 %v5317, %v5319
        %v5321 = vadd.f32 %v5317, %v5320
        %vm5322 = vweird.f32 %v5316
        %vm5323 = vweird.f32 %v5317
        %vm5324 = vmor %vm5322, %vm5323
        %v5325 = vsel %vm5324, %v5317, %v5321
        %v5326 = vand.u32 2147483647, %v5316
        %vm5327 = vcmp.eq.f32.partialorder %v5326, 8.507059e+37
        %v5328 = vand.u32 %v5316, 2147483648
        %v5329 = vor.u32 1.1754944e-38, %v5328
        %v5330 = vsel %vm5327, %v5329, %v5325
        %v5331 = vmul.f32 %v5306, %v5330
        %v5332 = vmin.f32 %v5331, 1.0
        %v5333 = vmax.f32 %v5332, -1.0
        %v5334 = vadd.f32 %v5333, 1.0
        %v5335 = vmul.f32 %v5292, %v5334
        %v5336 = vld [vmem:[%s87] sm:$0xff]
        %v5337 = vld [vmem:[%s87 + $0x8] sm:$0xff]
        %v5338 = vld [vmem:[%s87 + $0x10] sm:$0xff]
        %v5339 = vld [vmem:[%s87 + $0x18] sm:$0xff]
        %v5340 = vld [vmem:[%s87 + $0x20] sm:$0xff]
        %v5341 = vld [vmem:[%s87 + $0x28] sm:$0xff]
        %v5342 = vld [vmem:[%s87 + $0x30] sm:$0xff]
        %v5343 = vld [vmem:[%s87 + $0x38] sm:$0xff]
        %v5344 = vld [vmem:[#allocation37] sm:$0x1]
        %v5346 = vperm.slane %v5344, 0
        %v5349 = vsel %vm4306, %v5335, 0
        %5351 = vmatpush.msra.mxu0 0.0
        %5352 = vmatpush.msra.mxu0 0.0
        %5353 = vmatpush.msra.mxu0 0.0
        %5354 = vmatpush.msra.mxu0 0.0
        %5355 = vmatpush.msra.mxu0 0.0
        %5356 = vmatpush.msra.mxu0 0.0
        %5357 = vmatpush.msra.mxu0 0.0
        %5358 = vmatpush.msra.mxu0 0.0
        %5359 = vmatpush.msra.mxu0 %v5343
        %5360 = vmatpush.msra.mxu0 %v5342
        %5361 = vmatpush.msra.mxu0 %v5341
        %5362 = vmatpush.msra.mxu0 %v5340
        %5363 = vmatpush.msra.mxu0 %v5339
        %5364 = vmatpush.msra.mxu0 %v5338
        %5365 = vmatpush.msra.mxu0 %v5337
        %5366 = vmatpush.msra.mxu0 %v5336
        %5367 = vmatmul.f32.gmra.mxu0 %v5349
        %v5368 = vpop.f32.mrf.mxu0
        %v5369 = vadd.f32 %v5346, %v5368
        %5370 = vdwg.mxu0
        %v5371 = vadd.f32 %v5369, %v5260
        %v5372 = vsel %vm3735, %v5371, 0.0
        %5373 = vadd.xlane.f32.xlu0 %v5372
        %v5374 = vpop.xlane.xlu0 %5373
        %v5375 = vmul.f32 %v5374, %v3674
        %v5376 = vsub.f32 %v5371, %v5375
        %v5377 = vmul.f32 %v5376, %v5376
        %v5378 = vsel %vm3735, %v5377, 0.0
        %5379 = vadd.xlane.f32.xlu0 %v5378
        %v5380 = vpop.xlane.xlu0 %5379
        %v5381 = vmul.f32 %v5380, %v3674
        %v5382 = vadd.f32 %v5381, 1e-12
        %v5383 = vrsqrt.pop %v5382
        %v5384 = vmul.f32 %v5383, %v5382
        %v5385 = vmul.f32 %v5384, %v5383
        %v5386 = vmul.f32 0.5, %v5385
        %v5387 = vsub.f32 1.5, %v5386
        %v5388 = vmul.f32 %v5383, %v5387
        %vm5389 = vweird.f32 %v5382
        %vm5390 = vweird.f32 %v5383
        %vm5391 = vmor %vm5389, %vm5390
        %v5392 = vsel %vm5391, %v5383, %v5388
        %v5393 = vmul.f32 %v5376, %v5392
        %v5394 = vld [vmem:[#allocation35] sm:$0x1]
        %v5396 = vperm.slane %v5394, 0
        %v5398 = vmul.f32 %v5393, %v5396
        %v5399 = vld [vmem:[#allocation34] sm:$0x1]
        %v5401 = vperm.slane %v5399, 0
        %v5403 = vadd.f32 %v5398, %v5401
        %v5404 = vld [vmem:[%s91] sm:$0xff]
        %v5405 = vld [vmem:[%s91 + $0x8] sm:$0xff]
        %v5406 = vld [vmem:[%s91 + $0x10] sm:$0xff]
        %v5407 = vld [vmem:[%s91 + $0x18] sm:$0xff]
        %v5408 = vld [vmem:[#allocation38] sm:$0x1]
        %v5410 = vperm.slane %v5408, 0
        %v5413 = vsel %vm3664, %v5403, 0
        %5415 = vmatpush.msra.mxu0 0.0
        %5416 = vmatpush.msra.mxu0 0.0
        %5417 = vmatpush.msra.mxu0 0.0
        %5418 = vmatpush.msra.mxu0 0.0
        %5419 = vmatpush.msra.mxu0 0.0
        %5420 = vmatpush.msra.mxu0 0.0
        %5421 = vmatpush.msra.mxu0 0.0
        %5422 = vmatpush.msra.mxu0 0.0
        %5423 = vmatpush.msra.mxu0 0.0
        %5424 = vmatpush.msra.mxu0 0.0
        %5425 = vmatpush.msra.mxu0 0.0
        %5426 = vmatpush.msra.mxu0 0.0
        %5427 = vmatpush.msra.mxu0 %v5407
        %5428 = vmatpush.msra.mxu0 %v5406
        %5429 = vmatpush.msra.mxu0 %v5405
        %5430 = vmatpush.msra.mxu0 %v5404
        %5431 = vmatmul.f32.gmra.mxu0 %v5413
        %v5432 = vpop.f32.mrf.mxu0
        %v5433 = vadd.f32 %v5410, %v5432
        %5434 = vdwg.mxu0
        %5436 = vrot.lane.b32.xlu0 %v5433, 96
        %v5437 = vpop.permute.xlu0 %5436
        %v5438 = vsel %vm3871, %v5433, 0
        %v5440 = vsel %vm3871, %v5437, 0
        %5442 = vmatpush.xpose.msra.mxu0 0.0
        %5443 = vmatpush.xpose.msra.mxu0 0.0
        %5444 = vmatpush.xpose.msra.mxu0 0.0
        %5445 = vmatpush.xpose.msra.mxu0 0.0
        %5446 = vmatpush.xpose.msra.mxu0 0.0
        %5447 = vmatpush.xpose.msra.mxu0 0.0
        %5448 = vmatpush.xpose.msra.mxu0 0.0
        %5449 = vmatpush.xpose.msra.mxu0 0.0
        %5450 = vmatpush.xpose.msra.mxu0 0.0
        %5451 = vmatpush.xpose.msra.mxu0 0.0
        %5452 = vmatpush.xpose.msra.mxu0 0.0
        %5453 = vmatpush.xpose.msra.mxu0 0.0
        %5454 = vmatpush.xpose.msra.mxu0 0.0
        %5455 = vmatpush.xpose.msra.mxu0 0.0
        %5456 = vmatpush.xpose.msra.mxu0 0.0
        %5457 = vmatpush.xpose.msra.mxu0 %v5440
        %5458 = vmatmul.f32.gmra.mxu0 %v5438
        %v5459 = vpop.f32.mrf.mxu0
        %v5460 = vadd.f32 0.0, %v5459
        %5461 = vdwg.mxu0
        %v5462 = vmul.f32 %v5460, 0.35355338
        %v5463 = vsel %vm4942, %v5462, -inf
        %5464 = vmax.xlane.f32.xlu0 %v5463
        %v5465 = vpop.xlane.xlu0 %5464
        %v5466 = vsub.f32 %v5462, %v5465
        %v5467 = vmul.f32 %v5466, 1.442695
        %v5468 = vpow.pop %v5467
        %v5469 = vsel %vm4942, %v5468, 0.0
        %5470 = vadd.xlane.f32.xlu0 %v5469
        %v5471 = vpop.xlane.xlu0 %5470
        %v5472 = vrcp.pop %v5471
        %v5473 = vmul.f32 %v5468, %v5472
        %5474 = vrot.lane.b32.xlu0 %v5433, 64
        %v5475 = vpop.permute.xlu0 %5474
        %v5477 = vsel %vm3774, %v5473, 0
        %v5479 = vsel %vm3778, %v5475, 0
        %5481 = vmatpush.msra.mxu0 0.0
        %5482 = vmatpush.msra.mxu0 0.0
        %5483 = vmatpush.msra.mxu0 0.0
        %5484 = vmatpush.msra.mxu0 0.0
        %5485 = vmatpush.msra.mxu0 0.0
        %5486 = vmatpush.msra.mxu0 0.0
        %5487 = vmatpush.msra.mxu0 0.0
        %5488 = vmatpush.msra.mxu0 0.0
        %5489 = vmatpush.msra.mxu0 0.0
        %5490 = vmatpush.msra.mxu0 0.0
        %5491 = vmatpush.msra.mxu0 0.0
        %5492 = vmatpush.msra.mxu0 0.0
        %5493 = vmatpush.msra.mxu0 0.0
        %5494 = vmatpush.msra.mxu0 0.0
        %5495 = vmatpush.msra.mxu0 0.0
        %5496 = vmatpush.msra.mxu0 %v5479
        %5497 = vmatmul.f32.gmra.mxu0 %v5477
        %v5498 = vpop.f32.mrf.mxu0
        %v5499 = vadd.f32 0.0, %v5498
        %5500 = vdwg.mxu0
        %5501 = vrot.lane.b32.xlu0 %v5433, 120
        %v5502 = vpop.permute.xlu0 %5501
        %5503 = vrot.lane.b32.xlu0 %v5433, 88
        %v5504 = vpop.permute.xlu0 %5503
        %v5505 = vsel %vm3871, %v5502, 0
        %v5507 = vsel %vm3871, %v5504, 0
        %5509 = vmatpush.xpose.msra.mxu0 0.0
        %5510 = vmatpush.xpose.msra.mxu0 0.0
        %5511 = vmatpush.xpose.msra.mxu0 0.0
        %5512 = vmatpush.xpose.msra.mxu0 0.0
        %5513 = vmatpush.xpose.msra.mxu0 0.0
        %5514 = vmatpush.xpose.msra.mxu0 0.0
        %5515 = vmatpush.xpose.msra.mxu0 0.0
        %5516 = vmatpush.xpose.msra.mxu0 0.0
        %5517 = vmatpush.xpose.msra.mxu0 0.0
        %5518 = vmatpush.xpose.msra.mxu0 0.0
        %5519 = vmatpush.xpose.msra.mxu0 0.0
        %5520 = vmatpush.xpose.msra.mxu0 0.0
        %5521 = vmatpush.xpose.msra.mxu0 0.0
        %5522 = vmatpush.xpose.msra.mxu0 0.0
        %5523 = vmatpush.xpose.msra.mxu0 0.0
        %5524 = vmatpush.xpose.msra.mxu0 %v5507
        %5525 = vmatmul.f32.gmra.mxu0 %v5505
        %v5526 = vpop.f32.mrf.mxu0
        %v5527 = vadd.f32 0.0, %v5526
        %5528 = vdwg.mxu0
        %v5529 = vmul.f32 %v5527, 0.35355338
        %v5530 = vsel %vm4942, %v5529, -inf
        %5531 = vmax.xlane.f32.xlu0 %v5530
        %v5532 = vpop.xlane.xlu0 %5531
        %v5533 = vsub.f32 %v5529, %v5532
        %v5534 = vmul.f32 %v5533, 1.442695
        %v5535 = vpow.pop %v5534
        %v5536 = vsel %vm4942, %v5535, 0.0
        %5537 = vadd.xlane.f32.xlu0 %v5536
        %v5538 = vpop.xlane.xlu0 %5537
        %v5539 = vrcp.pop %v5538
        %v5540 = vmul.f32 %v5535, %v5539
        %5541 = vrot.lane.b32.xlu0 %v5433, 56
        %v5542 = vpop.permute.xlu0 %5541
        %v5544 = vsel %vm3774, %v5540, 0
        %v5546 = vsel %vm3778, %v5542, 0
        %5548 = vmatpush.msra.mxu0 0.0
        %5549 = vmatpush.msra.mxu0 0.0
        %5550 = vmatpush.msra.mxu0 0.0
        %5551 = vmatpush.msra.mxu0 0.0
        %5552 = vmatpush.msra.mxu0 0.0
        %5553 = vmatpush.msra.mxu0 0.0
        %5554 = vmatpush.msra.mxu0 0.0
        %5555 = vmatpush.msra.mxu0 0.0
        %5556 = vmatpush.msra.mxu0 0.0
        %5557 = vmatpush.msra.mxu0 0.0
        %5558 = vmatpush.msra.mxu0 0.0
        %5559 = vmatpush.msra.mxu0 0.0
        %5560 = vmatpush.msra.mxu0 0.0
        %5561 = vmatpush.msra.mxu0 0.0
        %5562 = vmatpush.msra.mxu0 0.0
        %5563 = vmatpush.msra.mxu0 %v5546
        %5564 = vmatmul.f32.gmra.mxu0 %v5544
        %v5565 = vpop.f32.mrf.mxu0
        %v5566 = vadd.f32 0.0, %v5565
        %5567 = vdwg.mxu0
        %5568 = vrot.lane.b32.xlu0 %v5433, 112
        %v5569 = vpop.permute.xlu0 %5568
        %5570 = vrot.lane.b32.xlu0 %v5433, 80
        %v5571 = vpop.permute.xlu0 %5570
        %v5572 = vsel %vm3871, %v5569, 0
        %v5574 = vsel %vm3871, %v5571, 0
        %5576 = vmatpush.xpose.msra.mxu0 0.0
        %5577 = vmatpush.xpose.msra.mxu0 0.0
        %5578 = vmatpush.xpose.msra.mxu0 0.0
        %5579 = vmatpush.xpose.msra.mxu0 0.0
        %5580 = vmatpush.xpose.msra.mxu0 0.0
        %5581 = vmatpush.xpose.msra.mxu0 0.0
        %5582 = vmatpush.xpose.msra.mxu0 0.0
        %5583 = vmatpush.xpose.msra.mxu0 0.0
        %5584 = vmatpush.xpose.msra.mxu0 0.0
        %5585 = vmatpush.xpose.msra.mxu0 0.0
        %5586 = vmatpush.xpose.msra.mxu0 0.0
        %5587 = vmatpush.xpose.msra.mxu0 0.0
        %5588 = vmatpush.xpose.msra.mxu0 0.0
        %5589 = vmatpush.xpose.msra.mxu0 0.0
        %5590 = vmatpush.xpose.msra.mxu0 0.0
        %5591 = vmatpush.xpose.msra.mxu0 %v5574
        %5592 = vmatmul.f32.gmra.mxu0 %v5572
        %v5593 = vpop.f32.mrf.mxu0
        %v5594 = vadd.f32 0.0, %v5593
        %5595 = vdwg.mxu0
        %v5596 = vmul.f32 %v5594, 0.35355338
        %v5597 = vsel %vm4942, %v5596, -inf
        %5598 = vmax.xlane.f32.xlu0 %v5597
        %v5599 = vpop.xlane.xlu0 %5598
        %v5600 = vsub.f32 %v5596, %v5599
        %v5601 = vmul.f32 %v5600, 1.442695
        %v5602 = vpow.pop %v5601
        %v5603 = vsel %vm4942, %v5602, 0.0
        %5604 = vadd.xlane.f32.xlu0 %v5603
        %v5605 = vpop.xlane.xlu0 %5604
        %v5606 = vrcp.pop %v5605
        %v5607 = vmul.f32 %v5602, %v5606
        %5608 = vrot.lane.b32.xlu0 %v5433, 48
        %v5609 = vpop.permute.xlu0 %5608
        %v5611 = vsel %vm3774, %v5607, 0
        %v5613 = vsel %vm3778, %v5609, 0
        %5615 = vmatpush.msra.mxu0 0.0
        %5616 = vmatpush.msra.mxu0 0.0
        %5617 = vmatpush.msra.mxu0 0.0
        %5618 = vmatpush.msra.mxu0 0.0
        %5619 = vmatpush.msra.mxu0 0.0
        %5620 = vmatpush.msra.mxu0 0.0
        %5621 = vmatpush.msra.mxu0 0.0
        %5622 = vmatpush.msra.mxu0 0.0
        %5623 = vmatpush.msra.mxu0 0.0
        %5624 = vmatpush.msra.mxu0 0.0
        %5625 = vmatpush.msra.mxu0 0.0
        %5626 = vmatpush.msra.mxu0 0.0
        %5627 = vmatpush.msra.mxu0 0.0
        %5628 = vmatpush.msra.mxu0 0.0
        %5629 = vmatpush.msra.mxu0 0.0
        %5630 = vmatpush.msra.mxu0 %v5613
        %5631 = vmatmul.f32.gmra.mxu0 %v5611
        %v5632 = vpop.f32.mrf.mxu0
        %v5633 = vadd.f32 0.0, %v5632
        %5634 = vdwg.mxu0
        %5635 = vrot.lane.b32.xlu0 %v5433, 104
        %v5636 = vpop.permute.xlu0 %5635
        %5637 = vrot.lane.b32.xlu0 %v5433, 72
        %v5638 = vpop.permute.xlu0 %5637
        %v5639 = vsel %vm3871, %v5636, 0
        %v5641 = vsel %vm3871, %v5638, 0
        %5643 = vmatpush.xpose.msra.mxu0 0.0
        %5644 = vmatpush.xpose.msra.mxu0 0.0
        %5645 = vmatpush.xpose.msra.mxu0 0.0
        %5646 = vmatpush.xpose.msra.mxu0 0.0
        %5647 = vmatpush.xpose.msra.mxu0 0.0
        %5648 = vmatpush.xpose.msra.mxu0 0.0
        %5649 = vmatpush.xpose.msra.mxu0 0.0
        %5650 = vmatpush.xpose.msra.mxu0 0.0
        %5651 = vmatpush.xpose.msra.mxu0 0.0
        %5652 = vmatpush.xpose.msra.mxu0 0.0
        %5653 = vmatpush.xpose.msra.mxu0 0.0
        %5654 = vmatpush.xpose.msra.mxu0 0.0
        %5655 = vmatpush.xpose.msra.mxu0 0.0
        %5656 = vmatpush.xpose.msra.mxu0 0.0
        %5657 = vmatpush.xpose.msra.mxu0 0.0
        %5658 = vmatpush.xpose.msra.mxu0 %v5641
        %5659 = vmatmul.f32.gmra.mxu0 %v5639
        %v5660 = vpop.f32.mrf.mxu0
        %v5661 = vadd.f32 0.0, %v5660
        %5662 = vdwg.mxu0
        %v5663 = vmul.f32 %v5661, 0.35355338
        %v5664 = vsel %vm4942, %v5663, -inf
        %5665 = vmax.xlane.f32.xlu0 %v5664
        %v5666 = vpop.xlane.xlu0 %5665
        %v5667 = vsub.f32 %v5663, %v5666
        %v5668 = vmul.f32 %v5667, 1.442695
        %v5669 = vpow.pop %v5668
        %v5670 = vsel %vm4942, %v5669, 0.0
        %5671 = vadd.xlane.f32.xlu0 %v5670
        %v5672 = vpop.xlane.xlu0 %5671
        %v5673 = vrcp.pop %v5672
        %v5674 = vmul.f32 %v5669, %v5673
        %5675 = vrot.lane.b32.xlu0 %v5433, 40
        %v5676 = vpop.permute.xlu0 %5675
        %v5678 = vsel %vm3774, %v5674, 0
        %v5680 = vsel %vm3778, %v5676, 0
        %5682 = vmatpush.msra.mxu0 0.0
        %5683 = vmatpush.msra.mxu0 0.0
        %5684 = vmatpush.msra.mxu0 0.0
        %5685 = vmatpush.msra.mxu0 0.0
        %5686 = vmatpush.msra.mxu0 0.0
        %5687 = vmatpush.msra.mxu0 0.0
        %5688 = vmatpush.msra.mxu0 0.0
        %5689 = vmatpush.msra.mxu0 0.0
        %5690 = vmatpush.msra.mxu0 0.0
        %5691 = vmatpush.msra.mxu0 0.0
        %5692 = vmatpush.msra.mxu0 0.0
        %5693 = vmatpush.msra.mxu0 0.0
        %5694 = vmatpush.msra.mxu0 0.0
        %5695 = vmatpush.msra.mxu0 0.0
        %5696 = vmatpush.msra.mxu0 0.0
        %5697 = vmatpush.msra.mxu0 %v5680
        %5698 = vmatmul.f32.gmra.mxu0 %v5678
        %v5699 = vpop.f32.mrf.mxu0
        %v5700 = vadd.f32 0.0, %v5699
        %5701 = vdwg.mxu0
        %5703 = vrot.lane.b32.xlu0 %v5566, 8
        %v5704 = vpop.permute.xlu0 %5703
        %5707 = vrot.lane.b32.xlu0 %v5633, 16
        %v5708 = vpop.permute.xlu0 %5707
        %5711 = vrot.lane.b32.xlu0 %v5700, 24
        %v5712 = vpop.permute.xlu0 %5711
        %v5714 = vsel %vm3871, %v5499, %v5704
        %v5715 = vsel %vm3711, %v5714, %v5708
        %v5716 = vsel %vm4153, %v5715, %v5712
        %v5717 = vld [vmem:[%s95] sm:$0xff]
        %v5718 = vld [vmem:[%s95 + $0x8] sm:$0xff]
        %v5719 = vld [vmem:[%s95 + $0x10] sm:$0xff]
        %v5720 = vld [vmem:[%s95 + $0x18] sm:$0xff]
        %v5721 = vld [vmem:[#allocation40] sm:$0x1]
        %v5723 = vperm.slane %v5721, 0
        %v5726 = vsel %vm3664, %v5716, 0
        %5728 = vmatpush.msra.mxu0 0.0
        %5729 = vmatpush.msra.mxu0 0.0
        %5730 = vmatpush.msra.mxu0 0.0
        %5731 = vmatpush.msra.mxu0 0.0
        %5732 = vmatpush.msra.mxu0 0.0
        %5733 = vmatpush.msra.mxu0 0.0
        %5734 = vmatpush.msra.mxu0 0.0
        %5735 = vmatpush.msra.mxu0 0.0
        %5736 = vmatpush.msra.mxu0 0.0
        %5737 = vmatpush.msra.mxu0 0.0
        %5738 = vmatpush.msra.mxu0 0.0
        %5739 = vmatpush.msra.mxu0 0.0
        %5740 = vmatpush.msra.mxu0 %v5720
        %5741 = vmatpush.msra.mxu0 %v5719
        %5742 = vmatpush.msra.mxu0 %v5718
        %5743 = vmatpush.msra.mxu0 %v5717
        %5744 = vmatmul.f32.gmra.mxu0 %v5726
        %v5745 = vpop.f32.mrf.mxu0
        %v5746 = vadd.f32 %v5723, %v5745
        %5747 = vdwg.mxu0
        %v5748 = vadd.f32 %v5746, %v5403
        %v5749 = vsel %vm3735, %v5748, 0.0
        %5750 = vadd.xlane.f32.xlu0 %v5749
        %v5751 = vpop.xlane.xlu0 %5750
        %v5752 = vmul.f32 %v5751, %v3674
        %v5753 = vsub.f32 %v5748, %v5752
        %v5754 = vmul.f32 %v5753, %v5753
        %v5755 = vsel %vm3735, %v5754, 0.0
        %5756 = vadd.xlane.f32.xlu0 %v5755
        %v5757 = vpop.xlane.xlu0 %5756
        %v5758 = vmul.f32 %v5757, %v3674
        %v5759 = vadd.f32 %v5758, 1e-12
        %v5760 = vrsqrt.pop %v5759
        %v5761 = vmul.f32 %v5760, %v5759
        %v5762 = vmul.f32 %v5761, %v5760
        %v5763 = vmul.f32 0.5, %v5762
        %v5764 = vsub.f32 1.5, %v5763
        %v5765 = vmul.f32 %v5760, %v5764
        %vm5766 = vweird.f32 %v5759
        %vm5767 = vweird.f32 %v5760
        %vm5768 = vmor %vm5766, %vm5767
        %v5769 = vsel %vm5768, %v5760, %v5765
        %v5770 = vmul.f32 %v5753, %v5769
        %v5771 = vld [vmem:[#allocation43] sm:$0x1]
        %v5773 = vperm.slane %v5771, 0
        %v5775 = vmul.f32 %v5770, %v5773
        %v5776 = vld [vmem:[#allocation41] sm:$0x1]
        %v5778 = vperm.slane %v5776, 0
        %v5780 = vadd.f32 %v5775, %v5778
        %v5781 = vld [vmem:[%s103] sm:$0xff]
        %v5782 = vld [vmem:[%s103 + $0x8] sm:$0xff]
        %v5783 = vld [vmem:[%s103 + $0x10] sm:$0xff]
        %v5784 = vld [vmem:[%s103 + $0x18] sm:$0xff]
        %v5785 = vld [vmem:[#allocation44] sm:$0x1]
        %v5787 = vperm.slane %v5785, 0
        %v5790 = vsel %vm3664, %v5780, 0
        %5792 = vmatpush.msra.mxu0 0.0
        %5793 = vmatpush.msra.mxu0 0.0
        %5794 = vmatpush.msra.mxu0 0.0
        %5795 = vmatpush.msra.mxu0 0.0
        %5796 = vmatpush.msra.mxu0 0.0
        %5797 = vmatpush.msra.mxu0 0.0
        %5798 = vmatpush.msra.mxu0 0.0
        %5799 = vmatpush.msra.mxu0 0.0
        %5800 = vmatpush.msra.mxu0 0.0
        %5801 = vmatpush.msra.mxu0 0.0
        %5802 = vmatpush.msra.mxu0 0.0
        %5803 = vmatpush.msra.mxu0 0.0
        %5804 = vmatpush.msra.mxu0 %v5784
        %5805 = vmatpush.msra.mxu0 %v5783
        %5806 = vmatpush.msra.mxu0 %v5782
        %5807 = vmatpush.msra.mxu0 %v5781
        %5808 = vmatmul.f32.gmra.mxu0 %v5790
        %v5809 = vpop.f32.mrf.mxu0
        %v5810 = vadd.f32 %v5787, %v5809
        %5811 = vdwg.mxu0
        %v5812 = vmul.f32 %v5810, 0.5
        %v5813 = vmul.f32 %v5810, 0.70710677
        %v5814 = vmul.f32 %v5813, %v5813
        %v5815 = vmin.f32 16.0, %v5814
        %v5816 = vmul.f32 %v5815, 2.1237322e-06
        %v5817 = vadd.f32 %v5816, 0.00028619796
        %v5818 = vmul.f32 %v5815, %v5817
        %v5819 = vadd.f32 %v5818, 0.0036580483
        %v5820 = vmul.f32 %v5815, %v5819
        %v5821 = vadd.f32 %v5820, 0.05243302
        %v5822 = vmul.f32 %v5815, %v5821
        %v5823 = vadd.f32 %v5822, 0.18741608
        %v5824 = vmul.f32 %v5815, %v5823
        %v5825 = vadd.f32 %v5824, 1.1283791
        %v5826 = vmul.f32 %v5813, %v5825
        %v5827 = vmul.f32 %v5815, 3.8918573e-05
        %v5828 = vadd.f32 %v5827, 0.001143296
        %v5829 = vmul.f32 %v5815, %v5828
        %v5830 = vadd.f32 %v5829, 0.014752088
        %v5831 = vmul.f32 %v5815, %v5830
        %v5832 = vadd.f32 %v5831, 0.112945676
        %v5833 = vmul.f32 %v5815, %v5832
        %v5834 = vadd.f32 %v5833, 0.4994258
        %v5835 = vmul.f32 %v5815, %v5834
        %v5836 = vadd.f32 %v5835, 1.0
        %v5837 = vrcp.pop %v5836
        %v5838 = vmul.f32 %v5836, %v5837
        %v5839 = vsub.f32 1.0, %v5838
        %v5840 = vmul.f32 %v5837, %v5839
        %v5841 = vadd.f32 %v5837, %v5840
        %vm5842 = vweird.f32 %v5836
        %vm5843 = vweird.f32 %v5837
        %vm5844 = vmor %vm5842, %vm5843
        %v5845 = vsel %vm5844, %v5837, %v5841
        %v5846 = vand.u32 2147483647, %v5836
        %vm5847 = vcmp.eq.f32.partialorder %v5846, 8.507059e+37
        %v5848 = vand.u32 %v5836, 2147483648
        %v5849 = vor.u32 1.1754944e-38, %v5848
        %v5850 = vsel %vm5847, %v5849, %v5845
        %v5851 = vmul.f32 %v5826, %v5850
        %v5852 = vmin.f32 %v5851, 1.0
        %v5853 = vmax.f32 %v5852, -1.0
        %v5854 = vadd.f32 %v5853, 1.0
        %v5855 = vmul.f32 %v5812, %v5854
        %v5856 = vld [vmem:[%s111] sm:$0xff]
        %v5857 = vld [vmem:[%s111 + $0x8] sm:$0xff]
        %v5858 = vld [vmem:[%s111 + $0x10] sm:$0xff]
        %v5859 = vld [vmem:[%s111 + $0x18] sm:$0xff]
        %v5860 = vld [vmem:[%s111 + $0x20] sm:$0xff]
        %v5861 = vld [vmem:[%s111 + $0x28] sm:$0xff]
        %v5862 = vld [vmem:[%s111 + $0x30] sm:$0xff]
        %v5863 = vld [vmem:[%s111 + $0x38] sm:$0xff]
        %v5864 = vld [vmem:[#allocation49] sm:$0x1]
        %v5866 = vperm.slane %v5864, 0
        %v5869 = vsel %vm4306, %v5855, 0
        %5871 = vmatpush.msra.mxu0 0.0
        %5872 = vmatpush.msra.mxu0 0.0
        %5873 = vmatpush.msra.mxu0 0.0
        %5874 = vmatpush.msra.mxu0 0.0
        %5875 = vmatpush.msra.mxu0 0.0
        %5876 = vmatpush.msra.mxu0 0.0
        %5877 = vmatpush.msra.mxu0 0.0
        %5878 = vmatpush.msra.mxu0 0.0
        %5879 = vmatpush.msra.mxu0 %v5863
        %5880 = vmatpush.msra.mxu0 %v5862
        %5881 = vmatpush.msra.mxu0 %v5861
        %5882 = vmatpush.msra.mxu0 %v5860
        %5883 = vmatpush.msra.mxu0 %v5859
        %5884 = vmatpush.msra.mxu0 %v5858
        %5885 = vmatpush.msra.mxu0 %v5857
        %5886 = vmatpush.msra.mxu0 %v5856
        %5887 = vmatmul.f32.gmra.mxu0 %v5869
        %v5888 = vpop.f32.mrf.mxu0
        %v5889 = vadd.f32 %v5866, %v5888
        %5890 = vdwg.mxu0
        %v5891 = vadd.f32 %v5889, %v5780
        %v5892 = vsel %vm3735, %v5891, 0.0
        %5893 = vadd.xlane.f32.xlu0 %v5892
        %v5894 = vpop.xlane.xlu0 %5893
        %v5895 = vmul.f32 %v5894, %v3674
        %v5896 = vsub.f32 %v5891, %v5895
        %v5897 = vmul.f32 %v5896, %v5896
        %v5898 = vsel %vm3735, %v5897, 0.0
        %5899 = vadd.xlane.f32.xlu0 %v5898
        %v5900 = vpop.xlane.xlu0 %5899
        %v5901 = vmul.f32 %v5900, %v3674
        %v5902 = vadd.f32 %v5901, 1e-12
        %v5903 = vrsqrt.pop %v5902
        %v5904 = vmul.f32 %v5903, %v5902
        %v5905 = vmul.f32 %v5904, %v5903
        %v5906 = vmul.f32 0.5, %v5905
        %v5907 = vsub.f32 1.5, %v5906
        %v5908 = vmul.f32 %v5903, %v5907
        %vm5909 = vweird.f32 %v5902
        %vm5910 = vweird.f32 %v5903
        %vm5911 = vmor %vm5909, %vm5910
        %v5912 = vsel %vm5911, %v5903, %v5908
        %v5913 = vmul.f32 %v5896, %v5912
        %v5914 = vld [vmem:[#allocation47] sm:$0x1]
        %v5916 = vperm.slane %v5914, 0
        %v5918 = vmul.f32 %v5913, %v5916
        %v5919 = vld [vmem:[#allocation46] sm:$0x1]
        %v5921 = vperm.slane %v5919, 0
        %v5923 = vadd.f32 %v5918, %v5921
        %v5924 = vld [vmem:[%s135] sm:$0xff]
        %v5925 = vld [vmem:[%s135 + $0x8] sm:$0xff]
        %v5926 = vld [vmem:[%s135 + $0x10] sm:$0xff]
        %v5927 = vld [vmem:[%s135 + $0x18] sm:$0xff]
        %v5928 = vld [vmem:[#allocation61] sm:$0x1]
        %v5930 = vperm.slane %v5928, 0
        %v5933 = vsel %vm3664, %v4882, 0
        %5935 = vmatpush.msra.mxu0 0.0
        %5936 = vmatpush.msra.mxu0 0.0
        %5937 = vmatpush.msra.mxu0 0.0
        %5938 = vmatpush.msra.mxu0 0.0
        %5939 = vmatpush.msra.mxu0 0.0
        %5940 = vmatpush.msra.mxu0 0.0
        %5941 = vmatpush.msra.mxu0 0.0
        %5942 = vmatpush.msra.mxu0 0.0
        %5943 = vmatpush.msra.mxu0 0.0
        %5944 = vmatpush.msra.mxu0 0.0
        %5945 = vmatpush.msra.mxu0 0.0
        %5946 = vmatpush.msra.mxu0 0.0
        %5947 = vmatpush.msra.mxu0 %v5927
        %5948 = vmatpush.msra.mxu0 %v5926
        %5949 = vmatpush.msra.mxu0 %v5925
        %5950 = vmatpush.msra.mxu0 %v5924
        %5951 = vmatmul.f32.gmra.mxu0 %v5933
        %v5952 = vpop.f32.mrf.mxu0
        %v5953 = vadd.f32 %v5930, %v5952
        %5954 = vdwg.mxu0
        %5959 = vrot.lane.b32.xlu0 %v5924, 96
        %v5960 = vpop.permute.xlu0 %5959
        %5961 = vrot.lane.b32.xlu0 %v5925, 96
        %v5962 = vpop.permute.xlu0 %5961
        %5963 = vrot.lane.b32.xlu0 %v5926, 96
        %v5964 = vpop.permute.xlu0 %5963
        %5965 = vrot.lane.b32.xlu0 %v5927, 96
        %v5966 = vpop.permute.xlu0 %5965
        %5971 = vrot.lane.b32.xlu0 %v5930, 96
        %v5972 = vpop.permute.xlu0 %5971
        %v5975 = vsel %vm3664, %v5923, 0
        %5977 = vmatpush.msra.mxu0 0.0
        %5978 = vmatpush.msra.mxu0 0.0
        %5979 = vmatpush.msra.mxu0 0.0
        %5980 = vmatpush.msra.mxu0 0.0
        %5981 = vmatpush.msra.mxu0 0.0
        %5982 = vmatpush.msra.mxu0 0.0
        %5983 = vmatpush.msra.mxu0 0.0
        %5984 = vmatpush.msra.mxu0 0.0
        %5985 = vmatpush.msra.mxu0 0.0
        %5986 = vmatpush.msra.mxu0 0.0
        %5987 = vmatpush.msra.mxu0 0.0
        %5988 = vmatpush.msra.mxu0 0.0
        %5989 = vmatpush.msra.mxu0 %v5966
        %5990 = vmatpush.msra.mxu0 %v5964
        %5991 = vmatpush.msra.mxu0 %v5962
        %5992 = vmatpush.msra.mxu0 %v5960
        %5993 = vmatmul.f32.gmra.mxu0 %v5975
        %v5994 = vpop.f32.mrf.mxu0
        %v5995 = vadd.f32 %v5972, %v5994
        %5996 = vdwg.mxu0
        %v5998 = vsel %vm3871, %v5953, 0
        %v6001 = vsel %vm3871, %v5995, 0
        %6003 = vmatpush.xpose.msra.mxu0 0.0
        %6004 = vmatpush.xpose.msra.mxu0 0.0
        %6005 = vmatpush.xpose.msra.mxu0 0.0
        %6006 = vmatpush.xpose.msra.mxu0 0.0
        %6007 = vmatpush.xpose.msra.mxu0 0.0
        %6008 = vmatpush.xpose.msra.mxu0 0.0
        %6009 = vmatpush.xpose.msra.mxu0 0.0
        %6010 = vmatpush.xpose.msra.mxu0 0.0
        %6011 = vmatpush.xpose.msra.mxu0 0.0
        %6012 = vmatpush.xpose.msra.mxu0 0.0
        %6013 = vmatpush.xpose.msra.mxu0 0.0
        %6014 = vmatpush.xpose.msra.mxu0 0.0
        %6015 = vmatpush.xpose.msra.mxu0 0.0
        %6016 = vmatpush.xpose.msra.mxu0 0.0
        %6017 = vmatpush.xpose.msra.mxu0 0.0
        %6018 = vmatpush.xpose.msra.mxu0 %v6001
        %6019 = vmatmul.f32.gmra.mxu0 %v5998
        %v6020 = vpop.f32.mrf.mxu0
        %v6021 = vadd.f32 0.0, %v6020
        %6022 = vdwg.mxu0
        %v6023 = vmul.f32 %v6021, 0.35355338
        %v6024 = vsel %vm3774, %v6023, -inf
        %6025 = vmax.xlane.f32.xlu0 %v6024
        %v6026 = vpop.xlane.xlu0 %6025
        %v6027 = vsub.f32 %v6023, %v6026
        %v6028 = vmul.f32 %v6027, 1.442695
        %v6029 = vpow.pop %v6028
        %v6030 = vsel %vm3774, %v6029, 0.0
        %6031 = vadd.xlane.f32.xlu0 %v6030
        %v6032 = vpop.xlane.xlu0 %6031
        %v6033 = vrcp.pop %v6032
        %v6034 = vmul.f32 %v6029, %v6033
        %6035 = vrot.lane.b32.xlu0 %v5995, 96
        %v6036 = vpop.permute.xlu0 %6035
        %v6038 = vsel %vm3774, %v6034, 0
        %v6040 = vsel %vm3778, %v6036, 0
        %6042 = vmatpush.msra.mxu0 0.0
        %6043 = vmatpush.msra.mxu0 0.0
        %6044 = vmatpush.msra.mxu0 0.0
        %6045 = vmatpush.msra.mxu0 0.0
        %6046 = vmatpush.msra.mxu0 0.0
        %6047 = vmatpush.msra.mxu0 0.0
        %6048 = vmatpush.msra.mxu0 0.0
        %6049 = vmatpush.msra.mxu0 0.0
        %6050 = vmatpush.msra.mxu0 0.0
        %6051 = vmatpush.msra.mxu0 0.0
        %6052 = vmatpush.msra.mxu0 0.0
        %6053 = vmatpush.msra.mxu0 0.0
        %6054 = vmatpush.msra.mxu0 0.0
        %6055 = vmatpush.msra.mxu0 0.0
        %6056 = vmatpush.msra.mxu0 0.0
        %6057 = vmatpush.msra.mxu0 %v6040
        %6058 = vmatmul.f32.gmra.mxu0 %v6038
        %v6059 = vpop.f32.mrf.mxu0
        %v6060 = vadd.f32 0.0, %v6059
        %6061 = vdwg.mxu0
        %6062 = vrot.lane.b32.xlu0 %v5953, 120
        %v6063 = vpop.permute.xlu0 %6062
        %6064 = vrot.lane.b32.xlu0 %v5995, 120
        %v6065 = vpop.permute.xlu0 %6064
        %v6066 = vsel %vm3871, %v6063, 0
        %v6068 = vsel %vm3871, %v6065, 0
        %6070 = vmatpush.xpose.msra.mxu0 0.0
        %6071 = vmatpush.xpose.msra.mxu0 0.0
        %6072 = vmatpush.xpose.msra.mxu0 0.0
        %6073 = vmatpush.xpose.msra.mxu0 0.0
        %6074 = vmatpush.xpose.msra.mxu0 0.0
        %6075 = vmatpush.xpose.msra.mxu0 0.0
        %6076 = vmatpush.xpose.msra.mxu0 0.0
        %6077 = vmatpush.xpose.msra.mxu0 0.0
        %6078 = vmatpush.xpose.msra.mxu0 0.0
        %6079 = vmatpush.xpose.msra.mxu0 0.0
        %6080 = vmatpush.xpose.msra.mxu0 0.0
        %6081 = vmatpush.xpose.msra.mxu0 0.0
        %6082 = vmatpush.xpose.msra.mxu0 0.0
        %6083 = vmatpush.xpose.msra.mxu0 0.0
        %6084 = vmatpush.xpose.msra.mxu0 0.0
        %6085 = vmatpush.xpose.msra.mxu0 %v6068
        %6086 = vmatmul.f32.gmra.mxu0 %v6066
        %v6087 = vpop.f32.mrf.mxu0
        %v6088 = vadd.f32 0.0, %v6087
        %6089 = vdwg.mxu0
        %v6090 = vmul.f32 %v6088, 0.35355338
        %v6091 = vsel %vm3774, %v6090, -inf
        %6092 = vmax.xlane.f32.xlu0 %v6091
        %v6093 = vpop.xlane.xlu0 %6092
        %v6094 = vsub.f32 %v6090, %v6093
        %v6095 = vmul.f32 %v6094, 1.442695
        %v6096 = vpow.pop %v6095
        %v6097 = vsel %vm3774, %v6096, 0.0
        %6098 = vadd.xlane.f32.xlu0 %v6097
        %v6099 = vpop.xlane.xlu0 %6098
        %v6100 = vrcp.pop %v6099
        %v6101 = vmul.f32 %v6096, %v6100
        %6102 = vrot.lane.b32.xlu0 %v5995, 88
        %v6103 = vpop.permute.xlu0 %6102
        %v6105 = vsel %vm3774, %v6101, 0
        %v6107 = vsel %vm3778, %v6103, 0
        %6109 = vmatpush.msra.mxu0 0.0
        %6110 = vmatpush.msra.mxu0 0.0
        %6111 = vmatpush.msra.mxu0 0.0
        %6112 = vmatpush.msra.mxu0 0.0
        %6113 = vmatpush.msra.mxu0 0.0
        %6114 = vmatpush.msra.mxu0 0.0
        %6115 = vmatpush.msra.mxu0 0.0
        %6116 = vmatpush.msra.mxu0 0.0
        %6117 = vmatpush.msra.mxu0 0.0
        %6118 = vmatpush.msra.mxu0 0.0
        %6119 = vmatpush.msra.mxu0 0.0
        %6120 = vmatpush.msra.mxu0 0.0
        %6121 = vmatpush.msra.mxu0 0.0
        %6122 = vmatpush.msra.mxu0 0.0
        %6123 = vmatpush.msra.mxu0 0.0
        %6124 = vmatpush.msra.mxu0 %v6107
        %6125 = vmatmul.f32.gmra.mxu0 %v6105
        %v6126 = vpop.f32.mrf.mxu0
        %v6127 = vadd.f32 0.0, %v6126
        %6128 = vdwg.mxu0
        %6129 = vrot.lane.b32.xlu0 %v5953, 112
        %v6130 = vpop.permute.xlu0 %6129
        %6131 = vrot.lane.b32.xlu0 %v5995, 112
        %v6132 = vpop.permute.xlu0 %6131
        %v6133 = vsel %vm3871, %v6130, 0
        %v6135 = vsel %vm3871, %v6132, 0
        %6137 = vmatpush.xpose.msra.mxu0 0.0
        %6138 = vmatpush.xpose.msra.mxu0 0.0
        %6139 = vmatpush.xpose.msra.mxu0 0.0
        %6140 = vmatpush.xpose.msra.mxu0 0.0
        %6141 = vmatpush.xpose.msra.mxu0 0.0
        %6142 = vmatpush.xpose.msra.mxu0 0.0
        %6143 = vmatpush.xpose.msra.mxu0 0.0
        %6144 = vmatpush.xpose.msra.mxu0 0.0
        %6145 = vmatpush.xpose.msra.mxu0 0.0
        %6146 = vmatpush.xpose.msra.mxu0 0.0
        %6147 = vmatpush.xpose.msra.mxu0 0.0
        %6148 = vmatpush.xpose.msra.mxu0 0.0
        %6149 = vmatpush.xpose.msra.mxu0 0.0
        %6150 = vmatpush.xpose.msra.mxu0 0.0
        %6151 = vmatpush.xpose.msra.mxu0 0.0
        %6152 = vmatpush.xpose.msra.mxu0 %v6135
        %6153 = vmatmul.f32.gmra.mxu0 %v6133
        %v6154 = vpop.f32.mrf.mxu0
        %v6155 = vadd.f32 0.0, %v6154
        %6156 = vdwg.mxu0
        %v6157 = vmul.f32 %v6155, 0.35355338
        %v6158 = vsel %vm3774, %v6157, -inf
        %6159 = vmax.xlane.f32.xlu0 %v6158
        %v6160 = vpop.xlane.xlu0 %6159
        %v6161 = vsub.f32 %v6157, %v6160
        %v6162 = vmul.f32 %v6161, 1.442695
        %v6163 = vpow.pop %v6162
        %v6164 = vsel %vm3774, %v6163, 0.0
        %6165 = vadd.xlane.f32.xlu0 %v6164
        %v6166 = vpop.xlane.xlu0 %6165
        %v6167 = vrcp.pop %v6166
        %v6168 = vmul.f32 %v6163, %v6167
        %6169 = vrot.lane.b32.xlu0 %v5995, 80
        %v6170 = vpop.permute.xlu0 %6169
        %v6172 = vsel %vm3774, %v6168, 0
        %v6174 = vsel %vm3778, %v6170, 0
        %6176 = vmatpush.msra.mxu0 0.0
        %6177 = vmatpush.msra.mxu0 0.0
        %6178 = vmatpush.msra.mxu0 0.0
        %6179 = vmatpush.msra.mxu0 0.0
        %6180 = vmatpush.msra.mxu0 0.0
        %6181 = vmatpush.msra.mxu0 0.0
        %6182 = vmatpush.msra.mxu0 0.0
        %6183 = vmatpush.msra.mxu0 0.0
        %6184 = vmatpush.msra.mxu0 0.0
        %6185 = vmatpush.msra.mxu0 0.0
        %6186 = vmatpush.msra.mxu0 0.0
        %6187 = vmatpush.msra.mxu0 0.0
        %6188 = vmatpush.msra.mxu0 0.0
        %6189 = vmatpush.msra.mxu0 0.0
        %6190 = vmatpush.msra.mxu0 0.0
        %6191 = vmatpush.msra.mxu0 %v6174
        %6192 = vmatmul.f32.gmra.mxu0 %v6172
        %v6193 = vpop.f32.mrf.mxu0
        %v6194 = vadd.f32 0.0, %v6193
        %6195 = vdwg.mxu0
        %6196 = vrot.lane.b32.xlu0 %v5953, 104
        %v6197 = vpop.permute.xlu0 %6196
        %6198 = vrot.lane.b32.xlu0 %v5995, 104
        %v6199 = vpop.permute.xlu0 %6198
        %v6200 = vsel %vm3871, %v6197, 0
        %v6202 = vsel %vm3871, %v6199, 0
        %6204 = vmatpush.xpose.msra.mxu0 0.0
        %6205 = vmatpush.xpose.msra.mxu0 0.0
        %6206 = vmatpush.xpose.msra.mxu0 0.0
        %6207 = vmatpush.xpose.msra.mxu0 0.0
        %6208 = vmatpush.xpose.msra.mxu0 0.0
        %6209 = vmatpush.xpose.msra.mxu0 0.0
        %6210 = vmatpush.xpose.msra.mxu0 0.0
        %6211 = vmatpush.xpose.msra.mxu0 0.0
        %6212 = vmatpush.xpose.msra.mxu0 0.0
        %6213 = vmatpush.xpose.msra.mxu0 0.0
        %6214 = vmatpush.xpose.msra.mxu0 0.0
        %6215 = vmatpush.xpose.msra.mxu0 0.0
        %6216 = vmatpush.xpose.msra.mxu0 0.0
        %6217 = vmatpush.xpose.msra.mxu0 0.0
        %6218 = vmatpush.xpose.msra.mxu0 0.0
        %6219 = vmatpush.xpose.msra.mxu0 %v6202
        %6220 = vmatmul.f32.gmra.mxu0 %v6200
        %v6221 = vpop.f32.mrf.mxu0
        %v6222 = vadd.f32 0.0, %v6221
        %6223 = vdwg.mxu0
        %v6224 = vmul.f32 %v6222, 0.35355338
        %v6225 = vsel %vm3774, %v6224, -inf
        %6226 = vmax.xlane.f32.xlu0 %v6225
        %v6227 = vpop.xlane.xlu0 %6226
        %v6228 = vsub.f32 %v6224, %v6227
        %v6229 = vmul.f32 %v6228, 1.442695
        %v6230 = vpow.pop %v6229
        %v6231 = vsel %vm3774, %v6230, 0.0
        %6232 = vadd.xlane.f32.xlu0 %v6231
        %v6233 = vpop.xlane.xlu0 %6232
        %v6234 = vrcp.pop %v6233
        %v6235 = vmul.f32 %v6230, %v6234
        %6236 = vrot.lane.b32.xlu0 %v5995, 72
        %v6237 = vpop.permute.xlu0 %6236
        %v6239 = vsel %vm3774, %v6235, 0
        %v6241 = vsel %vm3778, %v6237, 0
        %6243 = vmatpush.msra.mxu0 0.0
        %6244 = vmatpush.msra.mxu0 0.0
        %6245 = vmatpush.msra.mxu0 0.0
        %6246 = vmatpush.msra.mxu0 0.0
        %6247 = vmatpush.msra.mxu0 0.0
        %6248 = vmatpush.msra.mxu0 0.0
        %6249 = vmatpush.msra.mxu0 0.0
        %6250 = vmatpush.msra.mxu0 0.0
        %6251 = vmatpush.msra.mxu0 0.0
        %6252 = vmatpush.msra.mxu0 0.0
        %6253 = vmatpush.msra.mxu0 0.0
        %6254 = vmatpush.msra.mxu0 0.0
        %6255 = vmatpush.msra.mxu0 0.0
        %6256 = vmatpush.msra.mxu0 0.0
        %6257 = vmatpush.msra.mxu0 0.0
        %6258 = vmatpush.msra.mxu0 %v6241
        %6259 = vmatmul.f32.gmra.mxu0 %v6239
        %v6260 = vpop.f32.mrf.mxu0
        %v6261 = vadd.f32 0.0, %v6260
        %6262 = vdwg.mxu0
        %6264 = vrot.lane.b32.xlu0 %v6127, 8
        %v6265 = vpop.permute.xlu0 %6264
        %6268 = vrot.lane.b32.xlu0 %v6194, 16
        %v6269 = vpop.permute.xlu0 %6268
        %6272 = vrot.lane.b32.xlu0 %v6261, 24
        %v6273 = vpop.permute.xlu0 %6272
        %v6275 = vsel %vm3871, %v6060, %v6265
        %v6276 = vsel %vm3711, %v6275, %v6269
        %v6277 = vsel %vm4153, %v6276, %v6273
        %v6278 = vld [vmem:[%s139] sm:$0xff]
        %v6279 = vld [vmem:[%s139 + $0x8] sm:$0xff]
        %v6280 = vld [vmem:[%s139 + $0x10] sm:$0xff]
        %v6281 = vld [vmem:[%s139 + $0x18] sm:$0xff]
        %v6282 = vld [vmem:[#allocation62] sm:$0x1]
        %v6284 = vperm.slane %v6282, 0
        %v6287 = vsel %vm3664, %v6277, 0
        %6289 = vmatpush.msra.mxu0 0.0
        %6290 = vmatpush.msra.mxu0 0.0
        %6291 = vmatpush.msra.mxu0 0.0
        %6292 = vmatpush.msra.mxu0 0.0
        %6293 = vmatpush.msra.mxu0 0.0
        %6294 = vmatpush.msra.mxu0 0.0
        %6295 = vmatpush.msra.mxu0 0.0
        %6296 = vmatpush.msra.mxu0 0.0
        %6297 = vmatpush.msra.mxu0 0.0
        %6298 = vmatpush.msra.mxu0 0.0
        %6299 = vmatpush.msra.mxu0 0.0
        %6300 = vmatpush.msra.mxu0 0.0
        %6301 = vmatpush.msra.mxu0 %v6281
        %6302 = vmatpush.msra.mxu0 %v6280
        %6303 = vmatpush.msra.mxu0 %v6279
        %6304 = vmatpush.msra.mxu0 %v6278
        %6305 = vmatmul.f32.gmra.mxu0 %v6287
        %v6306 = vpop.f32.mrf.mxu0
        %v6307 = vadd.f32 %v6284, %v6306
        %6308 = vdwg.mxu0
        %v6309 = vadd.f32 %v6307, %v4882
        %v6310 = vsel %vm3664, %v6309, 0.0
        %6311 = vadd.xlane.f32.xlu0 %v6310
        %v6312 = vpop.xlane.xlu0 %6311
        %v6313 = vmul.f32 %v6312, %v3674
        %v6314 = vsub.f32 %v6309, %v6313
        %v6315 = vmul.f32 %v6314, %v6314
        %v6316 = vsel %vm3664, %v6315, 0.0
        %6317 = vadd.xlane.f32.xlu0 %v6316
        %v6318 = vpop.xlane.xlu0 %6317
        %v6319 = vmul.f32 %v6318, %v3674
        %v6320 = vadd.f32 %v6319, 1e-12
        %v6321 = vrsqrt.pop %v6320
        %v6322 = vmul.f32 %v6321, %v6320
        %v6323 = vmul.f32 %v6322, %v6321
        %v6324 = vmul.f32 0.5, %v6323
        %v6325 = vsub.f32 1.5, %v6324
        %v6326 = vmul.f32 %v6321, %v6325
        %vm6327 = vweird.f32 %v6320
        %vm6328 = vweird.f32 %v6321
        %vm6329 = vmor %vm6327, %vm6328
        %v6330 = vsel %vm6329, %v6321, %v6326
        %v6331 = vmul.f32 %v6314, %v6330
        %v6332 = vld [vmem:[#allocation65] sm:$0x1]
        %v6334 = vperm.slane %v6332, 0
        %v6336 = vmul.f32 %v6331, %v6334
        %v6337 = vld [vmem:[#allocation64] sm:$0x1]
        %v6339 = vperm.slane %v6337, 0
        %v6341 = vadd.f32 %v6336, %v6339
        %v6342 = vld [vmem:[%s159] sm:$0xff]
        %v6343 = vld [vmem:[%s159 + $0x8] sm:$0xff]
        %v6344 = vld [vmem:[%s159 + $0x10] sm:$0xff]
        %v6345 = vld [vmem:[%s159 + $0x18] sm:$0xff]
        %v6346 = vld [vmem:[#allocation73] sm:$0x1]
        %v6348 = vperm.slane %v6346, 0
        %v6351 = vsel %vm3664, %v6341, 0
        %6353 = vmatpush.msra.mxu0 0.0
        %6354 = vmatpush.msra.mxu0 0.0
        %6355 = vmatpush.msra.mxu0 0.0
        %6356 = vmatpush.msra.mxu0 0.0
        %6357 = vmatpush.msra.mxu0 0.0
        %6358 = vmatpush.msra.mxu0 0.0
        %6359 = vmatpush.msra.mxu0 0.0
        %6360 = vmatpush.msra.mxu0 0.0
        %6361 = vmatpush.msra.mxu0 0.0
        %6362 = vmatpush.msra.mxu0 0.0
        %6363 = vmatpush.msra.mxu0 0.0
        %6364 = vmatpush.msra.mxu0 0.0
        %6365 = vmatpush.msra.mxu0 %v6345
        %6366 = vmatpush.msra.mxu0 %v6344
        %6367 = vmatpush.msra.mxu0 %v6343
        %6368 = vmatpush.msra.mxu0 %v6342
        %6369 = vmatmul.f32.gmra.mxu0 %v6351
        %v6370 = vpop.f32.mrf.mxu0
        %v6371 = vadd.f32 %v6348, %v6370
        %6372 = vdwg.mxu0
        %6374 = vrot.lane.b32.xlu0 %v6371, 96
        %v6375 = vpop.permute.xlu0 %6374
        %v6376 = vsel %vm3871, %v6371, 0
        %v6378 = vsel %vm3871, %v6375, 0
        %6380 = vmatpush.xpose.msra.mxu0 0.0
        %6381 = vmatpush.xpose.msra.mxu0 0.0
        %6382 = vmatpush.xpose.msra.mxu0 0.0
        %6383 = vmatpush.xpose.msra.mxu0 0.0
        %6384 = vmatpush.xpose.msra.mxu0 0.0
        %6385 = vmatpush.xpose.msra.mxu0 0.0
        %6386 = vmatpush.xpose.msra.mxu0 0.0
        %6387 = vmatpush.xpose.msra.mxu0 0.0
        %6388 = vmatpush.xpose.msra.mxu0 0.0
        %6389 = vmatpush.xpose.msra.mxu0 0.0
        %6390 = vmatpush.xpose.msra.mxu0 0.0
        %6391 = vmatpush.xpose.msra.mxu0 0.0
        %6392 = vmatpush.xpose.msra.mxu0 0.0
        %6393 = vmatpush.xpose.msra.mxu0 0.0
        %6394 = vmatpush.xpose.msra.mxu0 0.0
        %6395 = vmatpush.xpose.msra.mxu0 %v6378
        %6396 = vmatmul.f32.gmra.mxu0 %v6376
        %v6397 = vpop.f32.mrf.mxu0
        %v6398 = vadd.f32 0.0, %v6397
        %6399 = vdwg.mxu0
        %v6400 = vmul.f32 %v6398, 0.35355338
        %v6401 = vadd.f32 %v6400, %v3898
        %v6402 = vsel %vm3871, %v6401, -inf
        %6403 = vmax.xlane.f32.xlu0 %v6402
        %v6404 = vpop.xlane.xlu0 %6403
        %v6405 = vsub.f32 %v6401, %v6404
        %v6406 = vmul.f32 %v6405, 1.442695
        %v6407 = vpow.pop %v6406
        %v6408 = vsel %vm3871, %v6407, 0.0
        %6409 = vadd.xlane.f32.xlu0 %v6408
        %v6410 = vpop.xlane.xlu0 %6409
        %v6411 = vrcp.pop %v6410
        %v6412 = vmul.f32 %v6407, %v6411
        %6413 = vrot.lane.b32.xlu0 %v6371, 64
        %v6414 = vpop.permute.xlu0 %6413
        %v6417 = vsel %vm3871, %v6412, 0
        %6419 = vmatpush.msra.mxu0 0.0
        %6420 = vmatpush.msra.mxu0 0.0
        %6421 = vmatpush.msra.mxu0 0.0
        %6422 = vmatpush.msra.mxu0 0.0
        %6423 = vmatpush.msra.mxu0 0.0
        %6424 = vmatpush.msra.mxu0 0.0
        %6425 = vmatpush.msra.mxu0 0.0
        %6426 = vmatpush.msra.mxu0 0.0
        %6427 = vmatpush.msra.mxu0 0.0
        %6428 = vmatpush.msra.mxu0 0.0
        %6429 = vmatpush.msra.mxu0 0.0
        %6430 = vmatpush.msra.mxu0 0.0
        %6431 = vmatpush.msra.mxu0 0.0
        %6432 = vmatpush.msra.mxu0 0.0
        %6433 = vmatpush.msra.mxu0 0.0
        %6434 = vmatpush.msra.mxu0 %v6414
        %6435 = vmatmul.f32.gmra.mxu0 %v6417
        %v6436 = vpop.f32.mrf.mxu0
        %v6437 = vadd.f32 0.0, %v6436
        %6438 = vdwg.mxu0
        %6439 = vrot.lane.b32.xlu0 %v6371, 120
        %v6440 = vpop.permute.xlu0 %6439
        %6441 = vrot.lane.b32.xlu0 %v6371, 88
        %v6442 = vpop.permute.xlu0 %6441
        %v6443 = vsel %vm3871, %v6440, 0
        %v6445 = vsel %vm3871, %v6442, 0
        %6447 = vmatpush.xpose.msra.mxu0 0.0
        %6448 = vmatpush.xpose.msra.mxu0 0.0
        %6449 = vmatpush.xpose.msra.mxu0 0.0
        %6450 = vmatpush.xpose.msra.mxu0 0.0
        %6451 = vmatpush.xpose.msra.mxu0 0.0
        %6452 = vmatpush.xpose.msra.mxu0 0.0
        %6453 = vmatpush.xpose.msra.mxu0 0.0
        %6454 = vmatpush.xpose.msra.mxu0 0.0
        %6455 = vmatpush.xpose.msra.mxu0 0.0
        %6456 = vmatpush.xpose.msra.mxu0 0.0
        %6457 = vmatpush.xpose.msra.mxu0 0.0
        %6458 = vmatpush.xpose.msra.mxu0 0.0
        %6459 = vmatpush.xpose.msra.mxu0 0.0
        %6460 = vmatpush.xpose.msra.mxu0 0.0
        %6461 = vmatpush.xpose.msra.mxu0 0.0
        %6462 = vmatpush.xpose.msra.mxu0 %v6445
        %6463 = vmatmul.f32.gmra.mxu0 %v6443
        %v6464 = vpop.f32.mrf.mxu0
        %v6465 = vadd.f32 0.0, %v6464
        %6466 = vdwg.mxu0
        %v6467 = vmul.f32 %v6465, 0.35355338
        %v6468 = vadd.f32 %v6467, %v3898
        %v6469 = vsel %vm3871, %v6468, -inf
        %6470 = vmax.xlane.f32.xlu0 %v6469
        %v6471 = vpop.xlane.xlu0 %6470
        %v6472 = vsub.f32 %v6468, %v6471
        %v6473 = vmul.f32 %v6472, 1.442695
        %v6474 = vpow.pop %v6473
        %v6475 = vsel %vm3871, %v6474, 0.0
        %6476 = vadd.xlane.f32.xlu0 %v6475
        %v6477 = vpop.xlane.xlu0 %6476
        %v6478 = vrcp.pop %v6477
        %v6479 = vmul.f32 %v6474, %v6478
        %6480 = vrot.lane.b32.xlu0 %v6371, 56
        %v6481 = vpop.permute.xlu0 %6480
        %v6484 = vsel %vm3871, %v6479, 0
        %6486 = vmatpush.msra.mxu0 0.0
        %6487 = vmatpush.msra.mxu0 0.0
        %6488 = vmatpush.msra.mxu0 0.0
        %6489 = vmatpush.msra.mxu0 0.0
        %6490 = vmatpush.msra.mxu0 0.0
        %6491 = vmatpush.msra.mxu0 0.0
        %6492 = vmatpush.msra.mxu0 0.0
        %6493 = vmatpush.msra.mxu0 0.0
        %6494 = vmatpush.msra.mxu0 0.0
        %6495 = vmatpush.msra.mxu0 0.0
        %6496 = vmatpush.msra.mxu0 0.0
        %6497 = vmatpush.msra.mxu0 0.0
        %6498 = vmatpush.msra.mxu0 0.0
        %6499 = vmatpush.msra.mxu0 0.0
        %6500 = vmatpush.msra.mxu0 0.0
        %6501 = vmatpush.msra.mxu0 %v6481
        %6502 = vmatmul.f32.gmra.mxu0 %v6484
        %v6503 = vpop.f32.mrf.mxu0
        %v6504 = vadd.f32 0.0, %v6503
        %6505 = vdwg.mxu0
        %6506 = vrot.lane.b32.xlu0 %v6371, 112
        %v6507 = vpop.permute.xlu0 %6506
        %6508 = vrot.lane.b32.xlu0 %v6371, 80
        %v6509 = vpop.permute.xlu0 %6508
        %v6510 = vsel %vm3871, %v6507, 0
        %v6512 = vsel %vm3871, %v6509, 0
        %6514 = vmatpush.xpose.msra.mxu0 0.0
        %6515 = vmatpush.xpose.msra.mxu0 0.0
        %6516 = vmatpush.xpose.msra.mxu0 0.0
        %6517 = vmatpush.xpose.msra.mxu0 0.0
        %6518 = vmatpush.xpose.msra.mxu0 0.0
        %6519 = vmatpush.xpose.msra.mxu0 0.0
        %6520 = vmatpush.xpose.msra.mxu0 0.0
        %6521 = vmatpush.xpose.msra.mxu0 0.0
        %6522 = vmatpush.xpose.msra.mxu0 0.0
        %6523 = vmatpush.xpose.msra.mxu0 0.0
        %6524 = vmatpush.xpose.msra.mxu0 0.0
        %6525 = vmatpush.xpose.msra.mxu0 0.0
        %6526 = vmatpush.xpose.msra.mxu0 0.0
        %6527 = vmatpush.xpose.msra.mxu0 0.0
        %6528 = vmatpush.xpose.msra.mxu0 0.0
        %6529 = vmatpush.xpose.msra.mxu0 %v6512
        %6530 = vmatmul.f32.gmra.mxu0 %v6510
        %v6531 = vpop.f32.mrf.mxu0
        %v6532 = vadd.f32 0.0, %v6531
        %6533 = vdwg.mxu0
        %v6534 = vmul.f32 %v6532, 0.35355338
        %v6535 = vadd.f32 %v6534, %v3898
        %v6536 = vsel %vm3871, %v6535, -inf
        %6537 = vmax.xlane.f32.xlu0 %v6536
        %v6538 = vpop.xlane.xlu0 %6537
        %v6539 = vsub.f32 %v6535, %v6538
        %v6540 = vmul.f32 %v6539, 1.442695
        %v6541 = vpow.pop %v6540
        %v6542 = vsel %vm3871, %v6541, 0.0
        %6543 = vadd.xlane.f32.xlu0 %v6542
        %v6544 = vpop.xlane.xlu0 %6543
        %v6545 = vrcp.pop %v6544
        %v6546 = vmul.f32 %v6541, %v6545
        %6547 = vrot.lane.b32.xlu0 %v6371, 48
        %v6548 = vpop.permute.xlu0 %6547
        %v6551 = vsel %vm3871, %v6546, 0
        %6553 = vmatpush.msra.mxu0 0.0
        %6554 = vmatpush.msra.mxu0 0.0
        %6555 = vmatpush.msra.mxu0 0.0
        %6556 = vmatpush.msra.mxu0 0.0
        %6557 = vmatpush.msra.mxu0 0.0
        %6558 = vmatpush.msra.mxu0 0.0
        %6559 = vmatpush.msra.mxu0 0.0
        %6560 = vmatpush.msra.mxu0 0.0
        %6561 = vmatpush.msra.mxu0 0.0
        %6562 = vmatpush.msra.mxu0 0.0
        %6563 = vmatpush.msra.mxu0 0.0
        %6564 = vmatpush.msra.mxu0 0.0
        %6565 = vmatpush.msra.mxu0 0.0
        %6566 = vmatpush.msra.mxu0 0.0
        %6567 = vmatpush.msra.mxu0 0.0
        %6568 = vmatpush.msra.mxu0 %v6548
        %6569 = vmatmul.f32.gmra.mxu0 %v6551
        %v6570 = vpop.f32.mrf.mxu0
        %v6571 = vadd.f32 0.0, %v6570
        %6572 = vdwg.mxu0
        %6573 = vrot.lane.b32.xlu0 %v6371, 104
        %v6574 = vpop.permute.xlu0 %6573
        %6575 = vrot.lane.b32.xlu0 %v6371, 72
        %v6576 = vpop.permute.xlu0 %6575
        %v6577 = vsel %vm3871, %v6574, 0
        %v6579 = vsel %vm3871, %v6576, 0
        %6581 = vmatpush.xpose.msra.mxu0 0.0
        %6582 = vmatpush.xpose.msra.mxu0 0.0
        %6583 = vmatpush.xpose.msra.mxu0 0.0
        %6584 = vmatpush.xpose.msra.mxu0 0.0
        %6585 = vmatpush.xpose.msra.mxu0 0.0
        %6586 = vmatpush.xpose.msra.mxu0 0.0
        %6587 = vmatpush.xpose.msra.mxu0 0.0
        %6588 = vmatpush.xpose.msra.mxu0 0.0
        %6589 = vmatpush.xpose.msra.mxu0 0.0
        %6590 = vmatpush.xpose.msra.mxu0 0.0
        %6591 = vmatpush.xpose.msra.mxu0 0.0
        %6592 = vmatpush.xpose.msra.mxu0 0.0
        %6593 = vmatpush.xpose.msra.mxu0 0.0
        %6594 = vmatpush.xpose.msra.mxu0 0.0
        %6595 = vmatpush.xpose.msra.mxu0 0.0
        %6596 = vmatpush.xpose.msra.mxu0 %v6579
        %6597 = vmatmul.f32.gmra.mxu0 %v6577
        %v6598 = vpop.f32.mrf.mxu0
        %v6599 = vadd.f32 0.0, %v6598
        %6600 = vdwg.mxu0
        %v6601 = vmul.f32 %v6599, 0.35355338
        %v6602 = vadd.f32 %v6601, %v3898
        %v6603 = vsel %vm3871, %v6602, -inf
        %6604 = vmax.xlane.f32.xlu0 %v6603
        %v6605 = vpop.xlane.xlu0 %6604
        %v6606 = vsub.f32 %v6602, %v6605
        %v6607 = vmul.f32 %v6606, 1.442695
        %v6608 = vpow.pop %v6607
        %v6609 = vsel %vm3871, %v6608, 0.0
        %6610 = vadd.xlane.f32.xlu0 %v6609
        %v6611 = vpop.xlane.xlu0 %6610
        %v6612 = vrcp.pop %v6611
        %v6613 = vmul.f32 %v6608, %v6612
        %6614 = vrot.lane.b32.xlu0 %v6371, 40
        %v6615 = vpop.permute.xlu0 %6614
        %v6618 = vsel %vm3871, %v6613, 0
        %6620 = vmatpush.msra.mxu0 0.0
        %6621 = vmatpush.msra.mxu0 0.0
        %6622 = vmatpush.msra.mxu0 0.0
        %6623 = vmatpush.msra.mxu0 0.0
        %6624 = vmatpush.msra.mxu0 0.0
        %6625 = vmatpush.msra.mxu0 0.0
        %6626 = vmatpush.msra.mxu0 0.0
        %6627 = vmatpush.msra.mxu0 0.0
        %6628 = vmatpush.msra.mxu0 0.0
        %6629 = vmatpush.msra.mxu0 0.0
        %6630 = vmatpush.msra.mxu0 0.0
        %6631 = vmatpush.msra.mxu0 0.0
        %6632 = vmatpush.msra.mxu0 0.0
        %6633 = vmatpush.msra.mxu0 0.0
        %6634 = vmatpush.msra.mxu0 0.0
        %6635 = vmatpush.msra.mxu0 %v6615
        %6636 = vmatmul.f32.gmra.mxu0 %v6618
        %v6637 = vpop.f32.mrf.mxu0
        %v6638 = vadd.f32 0.0, %v6637
        %6639 = vdwg.mxu0
        %6641 = vrot.lane.b32.xlu0 %v6504, 8
        %v6642 = vpop.permute.xlu0 %6641
        %6645 = vrot.lane.b32.xlu0 %v6571, 16
        %v6646 = vpop.permute.xlu0 %6645
        %6649 = vrot.lane.b32.xlu0 %v6638, 24
        %v6650 = vpop.permute.xlu0 %6649
        %v6652 = vsel %vm3871, %v6437, %v6642
        %v6653 = vsel %vm3711, %v6652, %v6646
        %v6654 = vsel %vm4153, %v6653, %v6650
        %v6655 = vld [vmem:[%s163] sm:$0xff]
        %v6656 = vld [vmem:[%s163 + $0x8] sm:$0xff]
        %v6657 = vld [vmem:[%s163 + $0x10] sm:$0xff]
        %v6658 = vld [vmem:[%s163 + $0x18] sm:$0xff]
        %v6659 = vld [vmem:[#allocation74] sm:$0x1]
        %v6661 = vperm.slane %v6659, 0
        %v6664 = vsel %vm3664, %v6654, 0
        %6666 = vmatpush.msra.mxu0 0.0
        %6667 = vmatpush.msra.mxu0 0.0
        %6668 = vmatpush.msra.mxu0 0.0
        %6669 = vmatpush.msra.mxu0 0.0
        %6670 = vmatpush.msra.mxu0 0.0
        %6671 = vmatpush.msra.mxu0 0.0
        %6672 = vmatpush.msra.mxu0 0.0
        %6673 = vmatpush.msra.mxu0 0.0
        %6674 = vmatpush.msra.mxu0 0.0
        %6675 = vmatpush.msra.mxu0 0.0
        %6676 = vmatpush.msra.mxu0 0.0
        %6677 = vmatpush.msra.mxu0 0.0
        %6678 = vmatpush.msra.mxu0 %v6658
        %6679 = vmatpush.msra.mxu0 %v6657
        %6680 = vmatpush.msra.mxu0 %v6656
        %6681 = vmatpush.msra.mxu0 %v6655
        %6682 = vmatmul.f32.gmra.mxu0 %v6664
        %v6683 = vpop.f32.mrf.mxu0
        %v6684 = vadd.f32 %v6661, %v6683
        %6685 = vdwg.mxu0
        %v6686 = vadd.f32 %v6684, %v6341
        %v6687 = vsel %vm3664, %v6686, 0.0
        %6688 = vadd.xlane.f32.xlu0 %v6687
        %v6689 = vpop.xlane.xlu0 %6688
        %v6690 = vmul.f32 %v6689, %v3674
        %v6691 = vsub.f32 %v6686, %v6690
        %v6692 = vmul.f32 %v6691, %v6691
        %v6693 = vsel %vm3664, %v6692, 0.0
        %6694 = vadd.xlane.f32.xlu0 %v6693
        %v6695 = vpop.xlane.xlu0 %6694
        %v6696 = vmul.f32 %v6695, %v3674
        %v6697 = vadd.f32 %v6696, 1e-12
        %v6698 = vrsqrt.pop %v6697
        %v6699 = vmul.f32 %v6698, %v6697
        %v6700 = vmul.f32 %v6699, %v6698
        %v6701 = vmul.f32 0.5, %v6700
        %v6702 = vsub.f32 1.5, %v6701
        %v6703 = vmul.f32 %v6698, %v6702
        %vm6704 = vweird.f32 %v6697
        %vm6705 = vweird.f32 %v6698
        %vm6706 = vmor %vm6704, %vm6705
        %v6707 = vsel %vm6706, %v6698, %v6703
        %v6708 = vmul.f32 %v6691, %v6707
        %v6709 = vld [vmem:[#allocation77] sm:$0x1]
        %v6711 = vperm.slane %v6709, 0
        %v6713 = vmul.f32 %v6708, %v6711
        %v6714 = vld [vmem:[#allocation76] sm:$0x1]
        %v6716 = vperm.slane %v6714, 0
        %v6718 = vadd.f32 %v6713, %v6716
        %v6719 = vld [vmem:[%s147] sm:$0xff]
        %v6720 = vld [vmem:[%s147 + $0x8] sm:$0xff]
        %v6721 = vld [vmem:[%s147 + $0x10] sm:$0xff]
        %v6722 = vld [vmem:[%s147 + $0x18] sm:$0xff]
        %v6723 = vld [vmem:[#allocation67] sm:$0x1]
        %v6725 = vperm.slane %v6723, 0
        %v6728 = vsel %vm3664, %v6718, 0
        %6730 = vmatpush.msra.mxu0 0.0
        %6731 = vmatpush.msra.mxu0 0.0
        %6732 = vmatpush.msra.mxu0 0.0
        %6733 = vmatpush.msra.mxu0 0.0
        %6734 = vmatpush.msra.mxu0 0.0
        %6735 = vmatpush.msra.mxu0 0.0
        %6736 = vmatpush.msra.mxu0 0.0
        %6737 = vmatpush.msra.mxu0 0.0
        %6738 = vmatpush.msra.mxu0 0.0
        %6739 = vmatpush.msra.mxu0 0.0
        %6740 = vmatpush.msra.mxu0 0.0
        %6741 = vmatpush.msra.mxu0 0.0
        %6742 = vmatpush.msra.mxu0 %v6722
        %6743 = vmatpush.msra.mxu0 %v6721
        %6744 = vmatpush.msra.mxu0 %v6720
        %6745 = vmatpush.msra.mxu0 %v6719
        %6746 = vmatmul.f32.gmra.mxu0 %v6728
        %v6747 = vpop.f32.mrf.mxu0
        %v6748 = vadd.f32 %v6725, %v6747
        %6749 = vdwg.mxu0
        %v6750 = vmul.f32 %v6748, 0.5
        %v6751 = vmul.f32 %v6748, 0.70710677
        %v6752 = vmul.f32 %v6751, %v6751
        %v6753 = vmin.f32 16.0, %v6752
        %v6754 = vmul.f32 %v6753, 2.1237322e-06
        %v6755 = vadd.f32 %v6754, 0.00028619796
        %v6756 = vmul.f32 %v6753, %v6755
        %v6757 = vadd.f32 %v6756, 0.0036580483
        %v6758 = vmul.f32 %v6753, %v6757
        %v6759 = vadd.f32 %v6758, 0.05243302
        %v6760 = vmul.f32 %v6753, %v6759
        %v6761 = vadd.f32 %v6760, 0.18741608
        %v6762 = vmul.f32 %v6753, %v6761
        %v6763 = vadd.f32 %v6762, 1.1283791
        %v6764 = vmul.f32 %v6751, %v6763
        %v6765 = vmul.f32 %v6753, 3.8918573e-05
        %v6766 = vadd.f32 %v6765, 0.001143296
        %v6767 = vmul.f32 %v6753, %v6766
        %v6768 = vadd.f32 %v6767, 0.014752088
        %v6769 = vmul.f32 %v6753, %v6768
        %v6770 = vadd.f32 %v6769, 0.112945676
        %v6771 = vmul.f32 %v6753, %v6770
        %v6772 = vadd.f32 %v6771, 0.4994258
        %v6773 = vmul.f32 %v6753, %v6772
        %v6774 = vadd.f32 %v6773, 1.0
        %v6775 = vrcp.pop %v6774
        %v6776 = vmul.f32 %v6774, %v6775
        %v6777 = vsub.f32 1.0, %v6776
        %v6778 = vmul.f32 %v6775, %v6777
        %v6779 = vadd.f32 %v6775, %v6778
        %vm6780 = vweird.f32 %v6774
        %vm6781 = vweird.f32 %v6775
        %vm6782 = vmor %vm6780, %vm6781
        %v6783 = vsel %vm6782, %v6775, %v6779
        %v6784 = vand.u32 2147483647, %v6774
        %vm6785 = vcmp.eq.f32.partialorder %v6784, 8.507059e+37
        %v6786 = vand.u32 %v6774, 2147483648
        %v6787 = vor.u32 1.1754944e-38, %v6786
        %v6788 = vsel %vm6785, %v6787, %v6783
        %v6789 = vmul.f32 %v6764, %v6788
        %v6790 = vmin.f32 %v6789, 1.0
        %v6791 = vmax.f32 %v6790, -1.0
        %v6792 = vadd.f32 %v6791, 1.0
        %v6793 = vmul.f32 %v6750, %v6792
        %v6794 = vld [vmem:[%s155] sm:$0xff]
        %v6795 = vld [vmem:[%s155 + $0x8] sm:$0xff]
        %v6796 = vld [vmem:[%s155 + $0x10] sm:$0xff]
        %v6797 = vld [vmem:[%s155 + $0x18] sm:$0xff]
        %v6798 = vld [vmem:[%s155 + $0x20] sm:$0xff]
        %v6799 = vld [vmem:[%s155 + $0x28] sm:$0xff]
        %v6800 = vld [vmem:[%s155 + $0x30] sm:$0xff]
        %v6801 = vld [vmem:[%s155 + $0x38] sm:$0xff]
        %v6802 = vld [vmem:[#allocation71] sm:$0x1]
        %v6804 = vperm.slane %v6802, 0
        %v6807 = vsel %vm4306, %v6793, 0
        %6809 = vmatpush.msra.mxu0 0.0
        %6810 = vmatpush.msra.mxu0 0.0
        %6811 = vmatpush.msra.mxu0 0.0
        %6812 = vmatpush.msra.mxu0 0.0
        %6813 = vmatpush.msra.mxu0 0.0
        %6814 = vmatpush.msra.mxu0 0.0
        %6815 = vmatpush.msra.mxu0 0.0
        %6816 = vmatpush.msra.mxu0 0.0
        %6817 = vmatpush.msra.mxu0 %v6801
        %6818 = vmatpush.msra.mxu0 %v6800
        %6819 = vmatpush.msra.mxu0 %v6799
        %6820 = vmatpush.msra.mxu0 %v6798
        %6821 = vmatpush.msra.mxu0 %v6797
        %6822 = vmatpush.msra.mxu0 %v6796
        %6823 = vmatpush.msra.mxu0 %v6795
        %6824 = vmatpush.msra.mxu0 %v6794
        %6825 = vmatmul.f32.gmra.mxu0 %v6807
        %v6826 = vpop.f32.mrf.mxu0
        %v6827 = vadd.f32 %v6804, %v6826
        %6828 = vdwg.mxu0
        %v6829 = vadd.f32 %v6827, %v6718
        %v6830 = vsel %vm3664, %v6829, 0.0
        %6831 = vadd.xlane.f32.xlu0 %v6830
        %v6832 = vpop.xlane.xlu0 %6831
        %v6833 = vmul.f32 %v6832, %v3674
        %v6834 = vsub.f32 %v6829, %v6833
        %v6835 = vmul.f32 %v6834, %v6834
        %v6836 = vsel %vm3664, %v6835, 0.0
        %6837 = vadd.xlane.f32.xlu0 %v6836
        %v6838 = vpop.xlane.xlu0 %6837
        %v6839 = vmul.f32 %v6838, %v3674
        %v6840 = vadd.f32 %v6839, 1e-12
        %v6841 = vrsqrt.pop %v6840
        %v6842 = vmul.f32 %v6841, %v6840
        %v6843 = vmul.f32 %v6842, %v6841
        %v6844 = vmul.f32 0.5, %v6843
        %v6845 = vsub.f32 1.5, %v6844
        %v6846 = vmul.f32 %v6841, %v6845
        %vm6847 = vweird.f32 %v6840
        %vm6848 = vweird.f32 %v6841
        %vm6849 = vmor %vm6847, %vm6848
        %v6850 = vsel %vm6849, %v6841, %v6846
        %v6851 = vmul.f32 %v6834, %v6850
        %v6852 = vld [vmem:[#allocation70] sm:$0x1]
        %v6854 = vperm.slane %v6852, 0
        %v6856 = vmul.f32 %v6851, %v6854
        %v6857 = vld [vmem:[#allocation68] sm:$0x1]
        %v6859 = vperm.slane %v6857, 0
        %v6861 = vadd.f32 %v6856, %v6859
        %v6862 = vld [vmem:[%s63] sm:$0xff]
        %v6863 = vld [vmem:[%s63 + $0x8] sm:$0xff]
        %v6864 = vld [vmem:[%s63 + $0x10] sm:$0xff]
        %v6865 = vld [vmem:[%s63 + $0x18] sm:$0xff]
        %v6866 = vld [vmem:[#allocation25] sm:$0x1]
        %v6868 = vsel %vm3664, %v6861, 0
        %6870 = vmatpush.msra.mxu0 0.0
        %6871 = vmatpush.msra.mxu0 0.0
        %6872 = vmatpush.msra.mxu0 0.0
        %6873 = vmatpush.msra.mxu0 0.0
        %6874 = vmatpush.msra.mxu0 0.0
        %6875 = vmatpush.msra.mxu0 0.0
        %6876 = vmatpush.msra.mxu0 0.0
        %6877 = vmatpush.msra.mxu0 0.0
        %6878 = vmatpush.msra.mxu0 0.0
        %6879 = vmatpush.msra.mxu0 0.0
        %6880 = vmatpush.msra.mxu0 0.0
        %6881 = vmatpush.msra.mxu0 0.0
        %6882 = vmatpush.msra.mxu0 %v6865
        %6883 = vmatpush.msra.mxu0 %v6864
        %6884 = vmatpush.msra.mxu0 %v6863
        %6885 = vmatpush.msra.mxu0 %v6862
        %6886 = vmatmul.f32.gmra.mxu0 %v6868
        %v6887 = vpop.f32.mrf.mxu0
        %v6888 = vadd.f32 %v6866, %v6887
        %6889 = vdwg.mxu0
        %v6890 = vtanh.pop %v6888
        %v6891 = vld [vmem:[%s115] sm:$0xff]
        %v6892 = vld [vmem:[%s115 + $0x8] sm:$0xff]
        %v6893 = vld [vmem:[%s115 + $0x10] sm:$0xff]
        %v6894 = vld [vmem:[%s115 + $0x18] sm:$0xff]
        %v6895 = vld [vmem:[#allocation50] sm:$0x1]
        %v6897 = vsel %vm3664, %v6890, 0
        %6899 = vmatpush.msra.mxu0 0.0
        %6900 = vmatpush.msra.mxu0 0.0
        %6901 = vmatpush.msra.mxu0 0.0
        %6902 = vmatpush.msra.mxu0 0.0
        %6903 = vmatpush.msra.mxu0 0.0
        %6904 = vmatpush.msra.mxu0 0.0
        %6905 = vmatpush.msra.mxu0 0.0
        %6906 = vmatpush.msra.mxu0 0.0
        %6907 = vmatpush.msra.mxu0 0.0
        %6908 = vmatpush.msra.mxu0 0.0
        %6909 = vmatpush.msra.mxu0 0.0
        %6910 = vmatpush.msra.mxu0 0.0
        %6911 = vmatpush.msra.mxu0 %v6894
        %6912 = vmatpush.msra.mxu0 %v6893
        %6913 = vmatpush.msra.mxu0 %v6892
        %6914 = vmatpush.msra.mxu0 %v6891
        %6915 = vmatmul.f32.gmra.mxu0 %v6897
        %v6916 = vpop.f32.mrf.mxu0
        %v6917 = vadd.f32 %v6895, %v6916
        %6918 = vdwg.mxu0
        %vm6919 = vcmask 8192
        %6920 = vst.msk [vmem:[%s3647] sm:$0x1] %vm6919, %v6917
        %s6921 = sand.u32 %s2281, 1
        %s6922 = scalar_lea.sflag [#allocation4], %s6921
        %s6923 = sand.u32 %s2281, 1
        %s6924 = scalar_lea.vmem [#allocation91], %s6923
        // Predicated region
        $region637: #{lxmert_binary_cls_forward.1} parent=403 // pred_check
          %p6925 = pneg %p2291
        $region638: #{lxmert_binary_cls_forward.1} parent=403 // pred_check_branch
          %6927 = sbr.rel (%p6925) target = $region640
        $region639: #{lxmert_binary_cls_forward.1} parent=403 // pred_region
          %6929 = vsyncadd %s6922, 0
          %s6930 = scalar_lea.hbm %s193, %s237
          %s6932 = sshll.u32 %s6924, 4
          %s6933 = int_to_ptr.vmem [resolvable:$true] %s6932
          %s6934 = sshll.u32 %s6930, 4
          %s6935 = int_to_ptr.hbm [resolvable:$true] %s6934
          %6937 = dma.vmem_to_hbm [thread:$0]  %s6933, 16, %s6935, %s6922
        $region640: #{lxmert_binary_cls_forward.1} parent=403 // pred_fallthru
          _
      $region404: #{lxmert_binary_cls_forward.1} parent=5 // pred_fallthru
        _
      %p6938 = scmp.le.s32.totalorder 2, %s232
      // Predicated region
      $region641: #{lxmert_binary_cls_forward.1} parent=5 // pred_check
        %p6939 = pneg %p6938
      $region642: #{lxmert_binary_cls_forward.1} parent=5 // pred_check_branch
        %6941 = sbr.rel (%p6939) target = $region644
      $region643: #{lxmert_binary_cls_forward.1} parent=5 // pred_region
        %s6942 = ssub.s32 %s232, 2
        // Predicated region
        $region645: #{lxmert_binary_cls_forward.1} parent=643 // pred_check
          %p6943 = pneg %p2297
        $region646: #{lxmert_binary_cls_forward.1} parent=643 // pred_check_branch
          %6945 = sbr.rel (%p6943) target = $region648
        $region647: #{lxmert_binary_cls_forward.1} parent=643 // pred_region
          %s6946 = sand.u32 %s2282, 1
          %s6947 = scalar_lea.sflag [#allocation4], %s6946
          %s6948 = sand.u32 %s2282, 1
          %s6949 = scalar_lea.vmem [#allocation91], %s6948
          %6951 = dma.done %s6947, 16
        $region648: #{lxmert_binary_cls_forward.1} parent=643 // pred_fallthru
          _
      $region644: #{lxmert_binary_cls_forward.1} parent=5 // pred_fallthru
        _
    $region6: #{lxmert_binary_cls_forward.1} parent=1 // loop_footer
      %s236 = sadd.s32 1, %s232
    $region7: #{lxmert_binary_cls_forward.1} parent=1 // loop_footer_branch
      %231 = sbr.rel target = $region3
    $region8: #{lxmert_binary_cls_forward.1} parent=1 // loop_exit
      _
    %6952 = vsyncpa [#allocation3], 1
    %s6953 = scalar_lea.sflag [#allocation3], 1
    %6954 = vsyncpa %s6953, 1
    %6955 = vsyncpa [#allocation6], 1
    %6956 = vsyncpa [#allocation9], 1
    %6957 = vsyncpa [#allocation12], 1
    %6958 = vsyncpa [#allocation15], 1
    %6959 = vsyncpa [#allocation18], 1
    %6960 = vsyncpa [#allocation21], 1
    %6961 = vsyncpa [#allocation24], 1
    %6962 = vsyncpa [#allocation27], 1
    %6963 = vsyncpa [#allocation30], 1
    %6964 = vsyncpa [#allocation33], 1
    %6965 = vsyncpa [#allocation36], 1
    %6966 = vsyncpa [#allocation39], 1
    %6967 = vsyncpa [#allocation42], 1
    %6968 = vsyncpa [#allocation45], 1
    %6969 = vsyncpa [#allocation48], 1
    %6970 = vsyncpa [#allocation51], 1
    %6971 = vsyncpa [#allocation54], 1
    %6972 = vsyncpa [#allocation57], 1
    %6973 = vsyncpa [#allocation60], 1
    %6974 = vsyncpa [#allocation63], 1
    %6975 = vsyncpa [#allocation66], 1
    %6976 = vsyncpa [#allocation69], 1
    %6977 = vsyncpa [#allocation72], 1
    %6978 = vsyncpa [#allocation75], 1
    %6979 = vsyncpa [#allocation78], 1
    %6980 = vsyncpa [#allocation81], 1
    %6981 = vsyncpa [#allocation84], 1
    %6982 = vsyncpa [#allocation87], 1
    %6983 = vsyncpa [#allocation90], 1
    %6984 = vsyncpa [#allocation4], 1
    %s6985 = scalar_lea.sflag [#allocation4], 1
    %6986 = vsyncpa %s6985, 1

</llo_original>
